<compile_context>
chip_gen: v7x
topology: tpu7x:2x2x1
jax: 0.10.0
libtpu: 0.0.40
codegen_flags: <defaults>
</compile_context>

<pallas_src>
import math

import jax
import jax.numpy as jnp
import numpy as np
from jax.experimental import pallas as pl
from jax.experimental.pallas import tpu as pltpu

LEAKY_SLOPE = 0.2
MXU_DTYPE = jnp.bfloat16        # MXU operand dtype; accumulation is always f32


# ----------------------------------------------------------------------------
# Shared forward math.  Used (a) inside the Pallas kernel on VMEM-resident
# values (col_ref / flat_ref are VMEM scratch refs) and (b) with the refs left
# as None, as a pure-JAX numerics-matched reference for the tight check.
# ----------------------------------------------------------------------------
def _leaky(v):
    return jnp.where(v > 0, v, LEAKY_SLOPE * v)


def _mm(a, b):
    # bf16 operands at the MXU inputs, f32 accumulation.
    return jnp.dot(a.astype(MXU_DTYPE), b.astype(MXU_DTYPE),
                   preferred_element_type=jnp.float32)


def _avgpool2(x):
    """2x2 average pooling as two paired adds (length-2 sums), no 5-D mean."""
    H, W, C = x.shape
    x = x.reshape(H // 2, 2, W, C).sum(axis=1)        # add row pairs
    x = x.reshape(H // 2, W // 2, 2, C).sum(axis=2)   # add column pairs
    return x * 0.25


def _conv3x3(x, w, b, col_ref=None):
    """3x3 / stride 1 / pad 1 conv as ONE im2col matmul with K = 9*Cin.

    In-kernel (col_ref given): the im2col matrix is built in a zero-filled VMEM
    scratch buffer via static-slice stores -- the zero fill provides the SAME
    padding, so no padded copy of the activation is ever created."""
    H, W, C = x.shape
    K = 9 * C
    if col_ref is None:                                # pure-JAX reference path
        xp = jnp.pad(x, ((1, 1), (1, 1), (0, 0)))
        cols = [xp[ky:ky + H, kx:kx + W, :]
                for ky in range(3) for kx in range(3)]
        patches = jnp.concatenate(cols, axis=-1).reshape(H * W, K)
    else:                                              # in-kernel path (VMEM)
        col_ref[0:H, 0:W, 0:K] = jnp.zeros((H, W, K), jnp.float32)
        for ky in range(3):
            for kx in range(3):
                dy, dx = ky - 1, kx - 1
                oh0, oh1 = max(0, -dy), H - max(0, dy)
                ow0, ow1 = max(0, -dx), W - max(0, dx)
                t = ky * 3 + kx
                col_ref[oh0:oh1, ow0:ow1, t * C:(t + 1) * C] = (
                    x[oh0 + dy:oh1 + dy, ow0 + dx:ow1 + dx, :])
        patches = col_ref[0:H, 0:W, 0:K].reshape(H * W, K)
    y = _mm(patches, w) + b                            # w: (9*Cin, Cout), b: (1, Cout)
    return y.reshape(H, W, -1)


def _resblk(h, c1w, c1b, c2w, c2b, scw, col_ref=None):
    """ResBlk(dim_in->dim_out, downsample=True, normalize=False)."""
    inv_sqrt2 = 1.0 / math.sqrt(2.0)
    # residual: leaky -> conv1 -> avgpool -> leaky -> conv2
    t = _conv3x3(_leaky(h), c1w, c1b, col_ref)
    t = _conv3x3(_leaky(_avgpool2(t)), c2w, c2b, col_ref)
    # shortcut: conv1x1 (no bias) + avgpool.  The two commute; pooling first
    # shrinks the matmul 4x (same math as the module's conv-then-pool order).
    p = _avgpool2(h)
    Ho, Wo, C = p.shape
    s = _mm(p.reshape(Ho * Wo, C), scw).reshape(Ho, Wo, -1)
    return (t + s) * inv_sqrt2


def _tail(h, wf, bf_, wl, bl, flat_ref=None):
    """LeakyReLU -> full-spatial conv (valid) -> LeakyReLU -> style Linear,
    expressed as two matmuls on the flattened (h, w, c) feature row."""
    hv = _leaky(h)
    Hf, Wf, C = hv.shape
    if flat_ref is None:                               # pure-JAX reference path
        flat = hv.reshape(1, Hf * Wf * C)
    else:                                              # in-kernel flatten via VMEM scratch
        for ph in range(Hf):
            for pw in range(Wf):
                p = ph * Wf + pw
                flat_ref[:, p * C:(p + 1) * C] = hv[ph, pw:pw + 1, :]
        flat = flat_ref[...]
    # HWIO flatten order of the conv weight matches the NHWC (h, w, c) flatten.
    h2 = _leaky(_mm(flat, wf) + bf_)
    return _mm(h2, wl) + bl                            # (1, style_dim)


def _forward_one(xv, wts, col_ref=None, flat_ref=None):
    """Full StyleEncoder forward for one image xv of shape (H, W, Cin)."""
    n_blocks = (len(wts) - 6) // 5
    h = _conv3x3(xv, wts[0], wts[1], col_ref)
    k = 2
    for _ in range(n_blocks):
        h = _resblk(h, wts[k], wts[k + 1], wts[k + 2], wts[k + 3], wts[k + 4],
                    col_ref)
        k += 5
    return _tail(h, wts[k], wts[k + 1], wts[k + 2], wts[k + 3], flat_ref)


# ----------------------------------------------------------------------------
# Kernel-ready weight prep + scratch sizing
# ----------------------------------------------------------------------------
def _prep_weights(params):
    """conv weights HWIO -> (kh*kw*cin, cout) bf16 (im2col layout),
       biases -> (1, cout) f32, 1x1 / linear weights -> bf16."""
    def cw(w):
        kh, kw, ci, co = w.shape
        return w.reshape(kh * kw * ci, co).astype(MXU_DTYPE)

    def bias(b):
        return b.reshape(1, -1).astype(jnp.float32)

    wts = [cw(params["conv0_w"]), bias(params["conv0_b"])]
    for blk in params["blocks"]:
        wts += [cw(blk["conv1_w"]), bias(blk["conv1_b"]),
                cw(blk["conv2_w"]), bias(blk["conv2_b"]),
                blk["sc_w"].astype(MXU_DTYPE)]
    wts += [cw(params["convf_w"]), bias(params["convf_b"]),
            params["lin_w"].astype(MXU_DTYPE), bias(params["lin_b"])]
    return wts


def _scratch_dims(params, H, W, Cin):
    """Per-dim maxima over all im2col matrices + flattened tail length."""
    hs, ws, ks = [H], [W], [9 * Cin]
    h, w = H, W
    d = params["conv0_w"].shape[-1]
    for blk in params["blocks"]:
        hs += [h, h // 2]
        ws += [w, w // 2]
        ks += [9 * d, 9 * d]
        d = blk["conv2_w"].shape[-1]
        h //= 2
        w //= 2
    return (max(hs), max(ws), max(ks)), h * w * d


# ----------------------------------------------------------------------------
# Fused Pallas forward
# ----------------------------------------------------------------------------
def _const_map(ndim):
    zeros = (0,) * ndim
    return lambda b: zeros


def _make_kernel(n_wts):
    def kernel(*refs):
        x_ref = refs[0]
        w_refs = refs[1:1 + n_wts]
        o_ref, col_ref, flat_ref = refs[1 + n_wts:]
        xv = x_ref[0]                          # (H, W, Cin) of this image
        wts = [r[...] for r in w_refs]         # weights are VMEM-resident
        z = _forward_one(xv, wts, col_ref, flat_ref)
        o_ref[0] = z.astype(o_ref.dtype)
    return kernel


def style_encoder_forward(x, params):
    """Whole StyleEncoder forward as ONE pallas_call, grid=(batch,) "parallel"
    (one image per TensorCore on v7x); no intermediate HBM traffic."""
    # TODO(synk): single_style=False branch (per-domain unshared heads + gather
    # by domain label y) is not implemented; this is the single_style=True path.
    B, H, W, Cin = x.shape
    wts = _prep_weights(params)
    col_shape, flat_len = _scratch_dims(params, H, W, Cin)
    style_dim = params["lin_w"].shape[-1]
    n_wts = len(wts)

    in_specs = [pl.BlockSpec((1, H, W, Cin), lambda b: (b, 0, 0, 0))]
    # Whole-array weight blocks with constant index maps: copied to VMEM once,
    # the pipeline skips the DMA on later grid steps.
    in_specs += [pl.BlockSpec(w.shape, _const_map(w.ndim)) for w in wts]

    out = pl.pallas_call(
        _make_kernel(n_wts),
        out_shape=jax.ShapeDtypeStruct((B, 1, style_dim), jnp.float32),
        grid=(B,),
        in_specs=in_specs,
        out_specs=pl.BlockSpec((1, 1, style_dim), lambda b: (b, 0, 0)),
        scratch_shapes=[pltpu.VMEM(col_shape, jnp.float32),      # shared im2col buffer
                        pltpu.VMEM((1, flat_len), jnp.float32)],  # tail flatten row
        compiler_params=pltpu.CompilerParams(dimension_semantics=("parallel",)),
    )(x, *wts)
    return out.reshape(B, style_dim)


# ----------------------------------------------------------------------------
# References for verification
# ----------------------------------------------------------------------------
def matched_forward(x, params):
    """Pure-JAX replay of the exact kernel math (same im2col ordering, same
    bf16 rounding points, f32 accumulation) -- tight structural check."""
    wts = _prep_weights(params)
    return jnp.concatenate([_forward_one(x[b], wts) for b in range(x.shape[0])],
                           axis=0)


def ref_forward_f32(x, params):
    """Module-faithful full-f32 reference (bounds the bf16 MXU-operand drift)."""
    dn = ("NHWC", "HWIO", "NHWC")
    prec = jax.lax.Precision.HIGHEST

    def conv(x, w, b, padding):
        y = jax.lax.conv_general_dilated(x, w, (1, 1), padding,
                                         dimension_numbers=dn, precision=prec)
        return y + b

    def pool(x):
        B, H, W, C = x.shape
        return x.reshape(B, H // 2, 2, W // 2, 2, C).mean(axis=(2, 4))

    h = conv(x, params["conv0_w"], params["conv0_b"], "SAME")
    for blk in params["blocks"]:
        cout = blk["sc_w"].shape[-1]
        s = pool(conv(h, blk["sc_w"].reshape(1, 1, *blk["sc_w"].shape),
                      jnp.zeros((cout,), jnp.float32), "VALID"))
        t = _leaky(h)
        t = conv(t, blk["conv1_w"], blk["conv1_b"], "SAME")
        t = pool(t)
        t = _leaky(t)
        t = conv(t, blk["conv2_w"], blk["conv2_b"], "SAME")
        h = (s + t) / math.sqrt(2.0)
    h = _leaky(h)
    h = conv(h, params["convf_w"], params["convf_b"], "VALID")
    h = _leaky(h)
    h = h.reshape(h.shape[0], -1)
    return jnp.dot(h, params["lin_w"], precision=prec) + params["lin_b"]


# ----------------------------------------------------------------------------
# Deterministic parameter init
# ----------------------------------------------------------------------------
def init_params(key, *, in_channels, dim_in, img_size, max_conv_dim, style_dim):
    repeat_num = math.ceil(math.log2(img_size)) - 2
    final_conv_dim = img_size // 2 ** repeat_num
    keys = iter(jax.random.split(key, 64))

    def nrm(shape, s=0.1):
        return s * jax.random.normal(next(keys), shape, jnp.float32)

    params = {
        "conv0_w": nrm((3, 3, in_channels, dim_in)),
        "conv0_b": nrm((dim_in,)),
        "blocks": [],
    }
    d = dim_in
    for _ in range(repeat_num):
        d_out = min(d * 2, max_conv_dim)
        params["blocks"].append({
            "conv1_w": nrm((3, 3, d, d)), "conv1_b": nrm((d,)),
            "conv2_w": nrm((3, 3, d, d_out)), "conv2_b": nrm((d_out,)),
            "sc_w": nrm((d, d_out)),
        })
        d = d_out
    params["convf_w"] = nrm((final_conv_dim, final_conv_dim, d, d))
    params["convf_b"] = nrm((d,))
    params["lin_w"] = nrm((d, style_dim))
    params["lin_b"] = nrm((style_dim,))
    return params


# ----------------------------------------------------------------------------
if __name__ == "__main__":
    B, IMG, CIN = 2, 16, 4
    DIM_IN, MAX_DIM, STYLE = 8, 32, 16

    key = jax.random.PRNGKey(0)
    kx, kp = jax.random.split(key)
    x = jax.random.normal(kx, (B, IMG, IMG, CIN), jnp.float32)  # NHWC
    params = init_params(kp, in_channels=CIN, dim_in=DIM_IN, img_size=IMG,
                         max_conv_dim=MAX_DIM, style_dim=STYLE)

    fwd = jax.jit(style_encoder_forward)
    z = jax.block_until_ready(fwd(x, params))
    assert z.shape == (B, STYLE), z.shape
    assert bool(jnp.all(jnp.isfinite(z)))

    # Tight check: pure-JAX replay of the exact kernel math (same bf16 rounding
    # points and im2col ordering) -- verifies the Pallas lowering / plumbing.
    z_match = jax.block_until_ready(jax.jit(matched_forward)(x, params))
    np.testing.assert_allclose(np.asarray(z), np.asarray(z_match),
                               rtol=5e-3, atol=5e-4)

    # Loose check: module-faithful full-f32 reference (bounds bf16 operand drift).
    z_ref = jax.block_until_ready(jax.jit(ref_forward_f32)(x, params))
    np.testing.assert_allclose(np.asarray(z), np.asarray(z_ref),
                               rtol=5e-2, atol=1e-2)

    print("KERNEL_OK")
</pallas_src>

<mosaic_0001>
module attributes {stable_mosaic.version = 11 : i64} {
  func.func @kernel(%arg0: i32, %arg1: memref<1x16x16x4xf32, #tpu.memory_space<vmem>>, %arg2: memref<36x8xbf16, #tpu.memory_space<vmem>>, %arg3: memref<1x8xf32, #tpu.memory_space<vmem>>, %arg4: memref<72x8xbf16, #tpu.memory_space<vmem>>, %arg5: memref<1x8xf32, #tpu.memory_space<vmem>>, %arg6: memref<72x16xbf16, #tpu.memory_space<vmem>>, %arg7: memref<1x16xf32, #tpu.memory_space<vmem>>, %arg8: memref<8x16xbf16, #tpu.memory_space<vmem>>, %arg9: memref<144x16xbf16, #tpu.memory_space<vmem>>, %arg10: memref<1x16xf32, #tpu.memory_space<vmem>>, %arg11: memref<144x32xbf16, #tpu.memory_space<vmem>>, %arg12: memref<1x32xf32, #tpu.memory_space<vmem>>, %arg13: memref<16x32xbf16, #tpu.memory_space<vmem>>, %arg14: memref<512x32xbf16, #tpu.memory_space<vmem>>, %arg15: memref<1x32xf32, #tpu.memory_space<vmem>>, %arg16: memref<32x16xbf16, #tpu.memory_space<vmem>>, %arg17: memref<1x16xf32, #tpu.memory_space<vmem>>, %arg18: memref<1x1x16xf32, #tpu.memory_space<vmem>>, %arg19: memref<16x16x144xf32, #tpu.memory_space<vmem>>, %arg20: memref<1x512xf32, #tpu.memory_space<vmem>>) attributes {dimension_semantics = [#tpu.dimension_semantics<parallel>], iteration_bounds = array<i64: 2>, scalar_prefetch = 0 : i64, scratch_operands = 2 : i64, tpu.core_type = #tpu.core_type<tc>, window_params = [{transform_indices = @transform_0, window_bounds = array<i64: 1, 16, 16, 4>}, {pipeline_mode = #tpu.pipeline_mode<synchronous>, transform_indices = @transform_1, window_bounds = array<i64: 36, 8>}, {pipeline_mode = #tpu.pipeline_mode<synchronous>, transform_indices = @transform_2, window_bounds = array<i64: 1, 8>}, {pipeline_mode = #tpu.pipeline_mode<synchronous>, transform_indices = @transform_3, window_bounds = array<i64: 72, 8>}, {pipeline_mode = #tpu.pipeline_mode<synchronous>, transform_indices = @transform_4, window_bounds = array<i64: 1, 8>}, {pipeline_mode = #tpu.pipeline_mode<synchronous>, transform_indices = @transform_5, window_bounds = array<i64: 72, 16>}, {pipeline_mode = #tpu.pipeline_mode<synchronous>, transform_indices = @transform_6, window_bounds = array<i64: 1, 16>}, {pipeline_mode = #tpu.pipeline_mode<synchronous>, transform_indices = @transform_7, window_bounds = array<i64: 8, 16>}, {pipeline_mode = #tpu.pipeline_mode<synchronous>, transform_indices = @transform_8, window_bounds = array<i64: 144, 16>}, {pipeline_mode = #tpu.pipeline_mode<synchronous>, transform_indices = @transform_9, window_bounds = array<i64: 1, 16>}, {pipeline_mode = #tpu.pipeline_mode<synchronous>, transform_indices = @transform_10, window_bounds = array<i64: 144, 32>}, {pipeline_mode = #tpu.pipeline_mode<synchronous>, transform_indices = @transform_11, window_bounds = array<i64: 1, 32>}, {pipeline_mode = #tpu.pipeline_mode<synchronous>, transform_indices = @transform_12, window_bounds = array<i64: 16, 32>}, {pipeline_mode = #tpu.pipeline_mode<synchronous>, transform_indices = @transform_13, window_bounds = array<i64: 512, 32>}, {pipeline_mode = #tpu.pipeline_mode<synchronous>, transform_indices = @transform_14, window_bounds = array<i64: 1, 32>}, {pipeline_mode = #tpu.pipeline_mode<synchronous>, transform_indices = @transform_15, window_bounds = array<i64: 32, 16>}, {pipeline_mode = #tpu.pipeline_mode<synchronous>, transform_indices = @transform_16, window_bounds = array<i64: 1, 16>}, {transform_indices = @transform_17, window_bounds = array<i64: 1, 1, 16>}]} {
    %c0 = arith.constant 0 : index
    %c0_0 = arith.constant 0 : index
    %c0_1 = arith.constant 0 : index
    %c0_2 = arith.constant 0 : index
    %0 = vector.load %arg1[%c0, %c0_0, %c0_1, %c0_2] : memref<1x16x16x4xf32, #tpu.memory_space<vmem>>, vector<1x16x16x4xf32>
    %1 = vector.shape_cast %0 : vector<1x16x16x4xf32> to vector<16x16x4xf32>
    %c0_3 = arith.constant 0 : index
    %c0_4 = arith.constant 0 : index
    %2 = vector.load %arg2[%c0_3, %c0_4] : memref<36x8xbf16, #tpu.memory_space<vmem>>, vector<36x8xbf16>
    %c0_5 = arith.constant 0 : index
    %c0_6 = arith.constant 0 : index
    %3 = vector.load %arg3[%c0_5, %c0_6] : memref<1x8xf32, #tpu.memory_space<vmem>>, vector<1x8xf32>
    %c0_7 = arith.constant 0 : index
    %c0_8 = arith.constant 0 : index
    %4 = vector.load %arg4[%c0_7, %c0_8] : memref<72x8xbf16, #tpu.memory_space<vmem>>, vector<72x8xbf16>
    %c0_9 = arith.constant 0 : index
    %c0_10 = arith.constant 0 : index
    %5 = vector.load %arg5[%c0_9, %c0_10] : memref<1x8xf32, #tpu.memory_space<vmem>>, vector<1x8xf32>
    %c0_11 = arith.constant 0 : index
    %c0_12 = arith.constant 0 : index
    %6 = vector.load %arg6[%c0_11, %c0_12] : memref<72x16xbf16, #tpu.memory_space<vmem>>, vector<72x16xbf16>
    %c0_13 = arith.constant 0 : index
    %c0_14 = arith.constant 0 : index
    %7 = vector.load %arg7[%c0_13, %c0_14] : memref<1x16xf32, #tpu.memory_space<vmem>>, vector<1x16xf32>
    %c0_15 = arith.constant 0 : index
    %c0_16 = arith.constant 0 : index
    %8 = vector.load %arg8[%c0_15, %c0_16] : memref<8x16xbf16, #tpu.memory_space<vmem>>, vector<8x16xbf16>
    %c0_17 = arith.constant 0 : index
    %c0_18 = arith.constant 0 : index
    %9 = vector.load %arg9[%c0_17, %c0_18] : memref<144x16xbf16, #tpu.memory_space<vmem>>, vector<144x16xbf16>
    %c0_19 = arith.constant 0 : index
    %c0_20 = arith.constant 0 : index
    %10 = vector.load %arg10[%c0_19, %c0_20] : memref<1x16xf32, #tpu.memory_space<vmem>>, vector<1x16xf32>
    %c0_21 = arith.constant 0 : index
    %c0_22 = arith.constant 0 : index
    %11 = vector.load %arg11[%c0_21, %c0_22] : memref<144x32xbf16, #tpu.memory_space<vmem>>, vector<144x32xbf16>
    %c0_23 = arith.constant 0 : index
    %c0_24 = arith.constant 0 : index
    %12 = vector.load %arg12[%c0_23, %c0_24] : memref<1x32xf32, #tpu.memory_space<vmem>>, vector<1x32xf32>
    %c0_25 = arith.constant 0 : index
    %c0_26 = arith.constant 0 : index
    %13 = vector.load %arg13[%c0_25, %c0_26] : memref<16x32xbf16, #tpu.memory_space<vmem>>, vector<16x32xbf16>
    %c0_27 = arith.constant 0 : index
    %c0_28 = arith.constant 0 : index
    %14 = vector.load %arg14[%c0_27, %c0_28] : memref<512x32xbf16, #tpu.memory_space<vmem>>, vector<512x32xbf16>
    %c0_29 = arith.constant 0 : index
    %c0_30 = arith.constant 0 : index
    %15 = vector.load %arg15[%c0_29, %c0_30] : memref<1x32xf32, #tpu.memory_space<vmem>>, vector<1x32xf32>
    %c0_31 = arith.constant 0 : index
    %c0_32 = arith.constant 0 : index
    %16 = vector.load %arg16[%c0_31, %c0_32] : memref<32x16xbf16, #tpu.memory_space<vmem>>, vector<32x16xbf16>
    %c0_33 = arith.constant 0 : index
    %c0_34 = arith.constant 0 : index
    %17 = vector.load %arg17[%c0_33, %c0_34] : memref<1x16xf32, #tpu.memory_space<vmem>>, vector<1x16xf32>
    %cst = arith.constant 0.000000e+00 : f32
    %18 = vector.broadcast %cst : f32 to vector<16x16x36xf32>
    %c0_35 = arith.constant 0 : index
    %c0_36 = arith.constant 0 : index
    %c0_37 = arith.constant 0 : index
    %19 = vector.load %arg19[%c0_35, %c0_36, %c0_37] : memref<16x16x144xf32, #tpu.memory_space<vmem>>, vector<16x16x36xf32>
    tpu.vector_store %arg19[%c0_35, %c0_36, %c0_37], %18 {strides = array<i32>} : memref<16x16x144xf32, #tpu.memory_space<vmem>>, vector<16x16x36xf32>,
    %20 = vector.extract_strided_slice %1 {offsets = [0, 0, 0], sizes = [15, 15, 4], strides = [1, 1, 1]} : vector<16x16x4xf32> to vector<15x15x4xf32>
    %c1 = arith.constant 1 : index
    %c1_38 = arith.constant 1 : index
    %c0_39 = arith.constant 0 : index
    %21 = vector.load %arg19[%c1, %c1_38, %c0_39] : memref<16x16x144xf32, #tpu.memory_space<vmem>>, vector<15x15x4xf32>
    tpu.vector_store %arg19[%c1, %c1_38, %c0_39], %20 {strides = array<i32>} : memref<16x16x144xf32, #tpu.memory_space<vmem>>, vector<15x15x4xf32>,
    %22 = vector.extract_strided_slice %1 {offsets = [0, 0, 0], sizes = [15, 16, 4], strides = [1, 1, 1]} : vector<16x16x4xf32> to vector<15x16x4xf32>
    %c1_40 = arith.constant 1 : index
    %c0_41 = arith.constant 0 : index
    %c4 = arith.constant 4 : index
    %23 = vector.load %arg19[%c1_40, %c0_41, %c4] : memref<16x16x144xf32, #tpu.memory_space<vmem>>, vector<15x16x4xf32>
    tpu.vector_store %arg19[%c1_40, %c0_41, %c4], %22 {strides = array<i32>} : memref<16x16x144xf32, #tpu.memory_space<vmem>>, vector<15x16x4xf32>,
    %24 = vector.extract_strided_slice %1 {offsets = [0, 1, 0], sizes = [15, 15, 4], strides = [1, 1, 1]} : vector<16x16x4xf32> to vector<15x15x4xf32>
    %c1_42 = arith.constant 1 : index
    %c0_43 = arith.constant 0 : index
    %c8 = arith.constant 8 : index
    %25 = vector.load %arg19[%c1_42, %c0_43, %c8] : memref<16x16x144xf32, #tpu.memory_space<vmem>>, vector<15x15x4xf32>
    tpu.vector_store %arg19[%c1_42, %c0_43, %c8], %24 {strides = array<i32>} : memref<16x16x144xf32, #tpu.memory_space<vmem>>, vector<15x15x4xf32>,
    %26 = vector.extract_strided_slice %1 {offsets = [0, 0, 0], sizes = [16, 15, 4], strides = [1, 1, 1]} : vector<16x16x4xf32> to vector<16x15x4xf32>
    %c0_44 = arith.constant 0 : index
    %c1_45 = arith.constant 1 : index
    %c12 = arith.constant 12 : index
    %27 = vector.load %arg19[%c0_44, %c1_45, %c12] : memref<16x16x144xf32, #tpu.memory_space<vmem>>, vector<16x15x4xf32>
    tpu.vector_store %arg19[%c0_44, %c1_45, %c12], %26 {strides = array<i32>} : memref<16x16x144xf32, #tpu.memory_space<vmem>>, vector<16x15x4xf32>,
    %c0_46 = arith.constant 0 : index
    %c0_47 = arith.constant 0 : index
    %c16 = arith.constant 16 : index
    %28 = vector.load %arg19[%c0_46, %c0_47, %c16] : memref<16x16x144xf32, #tpu.memory_space<vmem>>, vector<16x16x4xf32>
    tpu.vector_store %arg19[%c0_46, %c0_47, %c16], %1 {strides = array<i32>} : memref<16x16x144xf32, #tpu.memory_space<vmem>>, vector<16x16x4xf32>,
    %29 = vector.extract_strided_slice %1 {offsets = [0, 1, 0], sizes = [16, 15, 4], strides = [1, 1, 1]} : vector<16x16x4xf32> to vector<16x15x4xf32>
    %c0_48 = arith.constant 0 : index
    %c0_49 = arith.constant 0 : index
    %c20 = arith.constant 20 : index
    %30 = vector.load %arg19[%c0_48, %c0_49, %c20] : memref<16x16x144xf32, #tpu.memory_space<vmem>>, vector<16x15x4xf32>
    tpu.vector_store %arg19[%c0_48, %c0_49, %c20], %29 {strides = array<i32>} : memref<16x16x144xf32, #tpu.memory_space<vmem>>, vector<16x15x4xf32>,
    %31 = vector.extract_strided_slice %1 {offsets = [1, 0, 0], sizes = [15, 15, 4], strides = [1, 1, 1]} : vector<16x16x4xf32> to vector<15x15x4xf32>
    %c0_50 = arith.constant 0 : index
    %c1_51 = arith.constant 1 : index
    %c24 = arith.constant 24 : index
    %32 = vector.load %arg19[%c0_50, %c1_51, %c24] : memref<16x16x144xf32, #tpu.memory_space<vmem>>, vector<15x15x4xf32>
    tpu.vector_store %arg19[%c0_50, %c1_51, %c24], %31 {strides = array<i32>} : memref<16x16x144xf32, #tpu.memory_space<vmem>>, vector<15x15x4xf32>,
    %33 = vector.extract_strided_slice %1 {offsets = [1, 0, 0], sizes = [15, 16, 4], strides = [1, 1, 1]} : vector<16x16x4xf32> to vector<15x16x4xf32>
    %c0_52 = arith.constant 0 : index
    %c0_53 = arith.constant 0 : index
    %c28 = arith.constant 28 : index
    %34 = vector.load %arg19[%c0_52, %c0_53, %c28] : memref<16x16x144xf32, #tpu.memory_space<vmem>>, vector<15x16x4xf32>
    tpu.vector_store %arg19[%c0_52, %c0_53, %c28], %33 {strides = array<i32>} : memref<16x16x144xf32, #tpu.memory_space<vmem>>, vector<15x16x4xf32>,
    %35 = vector.extract_strided_slice %1 {offsets = [1, 1, 0], sizes = [15, 15, 4], strides = [1, 1, 1]} : vector<16x16x4xf32> to vector<15x15x4xf32>
    %c0_54 = arith.constant 0 : index
    %c0_55 = arith.constant 0 : index
    %c32 = arith.constant 32 : index
    %36 = vector.load %arg19[%c0_54, %c0_55, %c32] : memref<16x16x144xf32, #tpu.memory_space<vmem>>, vector<15x15x4xf32>
    tpu.vector_store %arg19[%c0_54, %c0_55, %c32], %35 {strides = array<i32>} : memref<16x16x144xf32, #tpu.memory_space<vmem>>, vector<15x15x4xf32>,
    %c0_56 = arith.constant 0 : index
    %c0_57 = arith.constant 0 : index
    %c0_58 = arith.constant 0 : index
    %37 = vector.load %arg19[%c0_56, %c0_57, %c0_58] : memref<16x16x144xf32, #tpu.memory_space<vmem>>, vector<16x16x36xf32>
    %38 = vector.shape_cast %37 : vector<16x16x36xf32> to vector<256x36xf32>
    %39 = arith.truncf %38 : vector<256x36xf32> to vector<256x36xbf16>
    %cst_59 = arith.constant dense<0.000000e+00> : vector<256x8xf32>
    %40 = tpu.matmul %39, %2, %cst_59 {dimension_numbers = #tpu.dot_dimension_numbers<[1], [0], [0], [1], [0, 0, 1, 1], [], []>} : vector<256x36xbf16>, vector<36x8xbf16>, vector<256x8xf32> -> vector<256x8xf32>
    %41 = vector.broadcast %3 : vector<1x8xf32> to vector<256x8xf32>
    %42 = arith.addf %40, %41 : vector<256x8xf32>
    %43 = vector.shape_cast %42 : vector<256x8xf32> to vector<16x16x8xf32>
    %cst_60 = arith.constant 0.000000e+00 : f32
    %44 = vector.broadcast %cst_60 : f32 to vector<16x16x8xf32>
    %45 = arith.cmpf ogt, %43, %44 : vector<16x16x8xf32>
    %cst_61 = arith.constant 2.000000e-01 : f32
    %46 = vector.broadcast %cst_61 : f32 to vector<16x16x8xf32>
    %47 = arith.mulf %46, %43 : vector<16x16x8xf32>
    %48 = arith.select %45, %43, %47 : vector<16x16x8xi1>, vector<16x16x8xf32>
    %cst_62 = arith.constant 0.000000e+00 : f32
    %49 = vector.broadcast %cst_62 : f32 to vector<16x16x72xf32>
    %c0_63 = arith.constant 0 : index
    %c0_64 = arith.constant 0 : index
    %c0_65 = arith.constant 0 : index
    %50 = vector.load %arg19[%c0_63, %c0_64, %c0_65] : memref<16x16x144xf32, #tpu.memory_space<vmem>>, vector<16x16x72xf32>
    tpu.vector_store %arg19[%c0_63, %c0_64, %c0_65], %49 {strides = array<i32>} : memref<16x16x144xf32, #tpu.memory_space<vmem>>, vector<16x16x72xf32>,
    %51 = vector.extract_strided_slice %48 {offsets = [0, 0, 0], sizes = [15, 15, 8], strides = [1, 1, 1]} : vector<16x16x8xf32> to vector<15x15x8xf32>
    %c1_66 = arith.constant 1 : index
    %c1_67 = arith.constant 1 : index
    %c0_68 = arith.constant 0 : index
    %52 = vector.load %arg19[%c1_66, %c1_67, %c0_68] : memref<16x16x144xf32, #tpu.memory_space<vmem>>, vector<15x15x8xf32>
    tpu.vector_store %arg19[%c1_66, %c1_67, %c0_68], %51 {strides = array<i32>} : memref<16x16x144xf32, #tpu.memory_space<vmem>>, vector<15x15x8xf32>,
    %53 = vector.extract_strided_slice %48 {offsets = [0, 0, 0], sizes = [15, 16, 8], strides = [1, 1, 1]} : vector<16x16x8xf32> to vector<15x16x8xf32>
    %c1_69 = arith.constant 1 : index
    %c0_70 = arith.constant 0 : index
    %c8_71 = arith.constant 8 : index
    %54 = vector.load %arg19[%c1_69, %c0_70, %c8_71] : memref<16x16x144xf32, #tpu.memory_space<vmem>>, vector<15x16x8xf32>
    tpu.vector_store %arg19[%c1_69, %c0_70, %c8_71], %53 {strides = array<i32>} : memref<16x16x144xf32, #tpu.memory_space<vmem>>, vector<15x16x8xf32>,
    %55 = vector.extract_strided_slice %48 {offsets = [0, 1, 0], sizes = [15, 15, 8], strides = [1, 1, 1]} : vector<16x16x8xf32> to vector<15x15x8xf32>
    %c1_72 = arith.constant 1 : index
    %c0_73 = arith.constant 0 : index
    %c16_74 = arith.constant 16 : index
    %56 = vector.load %arg19[%c1_72, %c0_73, %c16_74] : memref<16x16x144xf32, #tpu.memory_space<vmem>>, vector<15x15x8xf32>
    tpu.vector_store %arg19[%c1_72, %c0_73, %c16_74], %55 {strides = array<i32>} : memref<16x16x144xf32, #tpu.memory_space<vmem>>, vector<15x15x8xf32>,
    %57 = vector.extract_strided_slice %48 {offsets = [0, 0, 0], sizes = [16, 15, 8], strides = [1, 1, 1]} : vector<16x16x8xf32> to vector<16x15x8xf32>
    %c0_75 = arith.constant 0 : index
    %c1_76 = arith.constant 1 : index
    %c24_77 = arith.constant 24 : index
    %58 = vector.load %arg19[%c0_75, %c1_76, %c24_77] : memref<16x16x144xf32, #tpu.memory_space<vmem>>, vector<16x15x8xf32>
    tpu.vector_store %arg19[%c0_75, %c1_76, %c24_77], %57 {strides = array<i32>} : memref<16x16x144xf32, #tpu.memory_space<vmem>>, vector<16x15x8xf32>,
    %c0_78 = arith.constant 0 : index
    %c0_79 = arith.constant 0 : index
    %c32_80 = arith.constant 32 : index
    %59 = vector.load %arg19[%c0_78, %c0_79, %c32_80] : memref<16x16x144xf32, #tpu.memory_space<vmem>>, vector<16x16x8xf32>
    tpu.vector_store %arg19[%c0_78, %c0_79, %c32_80], %48 {strides = array<i32>} : memref<16x16x144xf32, #tpu.memory_space<vmem>>, vector<16x16x8xf32>,
    %60 = vector.extract_strided_slice %48 {offsets = [0, 1, 0], sizes = [16, 15, 8], strides = [1, 1, 1]} : vector<16x16x8xf32> to vector<16x15x8xf32>
    %c0_81 = arith.constant 0 : index
    %c0_82 = arith.constant 0 : index
    %c40 = arith.constant 40 : index
    %61 = vector.load %arg19[%c0_81, %c0_82, %c40] : memref<16x16x144xf32, #tpu.memory_space<vmem>>, vector<16x15x8xf32>
    tpu.vector_store %arg19[%c0_81, %c0_82, %c40], %60 {strides = array<i32>} : memref<16x16x144xf32, #tpu.memory_space<vmem>>, vector<16x15x8xf32>,
    %62 = vector.extract_strided_slice %48 {offsets = [1, 0, 0], sizes = [15, 15, 8], strides = [1, 1, 1]} : vector<16x16x8xf32> to vector<15x15x8xf32>
    %c0_83 = arith.constant 0 : index
    %c1_84 = arith.constant 1 : index
    %c48 = arith.constant 48 : index
    %63 = vector.load %arg19[%c0_83, %c1_84, %c48] : memref<16x16x144xf32, #tpu.memory_space<vmem>>, vector<15x15x8xf32>
    tpu.vector_store %arg19[%c0_83, %c1_84, %c48], %62 {strides = array<i32>} : memref<16x16x144xf32, #tpu.memory_space<vmem>>, vector<15x15x8xf32>,
    %64 = vector.extract_strided_slice %48 {offsets = [1, 0, 0], sizes = [15, 16, 8], strides = [1, 1, 1]} : vector<16x16x8xf32> to vector<15x16x8xf32>
    %c0_85 = arith.constant 0 : index
    %c0_86 = arith.constant 0 : index
    %c56 = arith.constant 56 : index
    %65 = vector.load %arg19[%c0_85, %c0_86, %c56] : memref<16x16x144xf32, #tpu.memory_space<vmem>>, vector<15x16x8xf32>
    tpu.vector_store %arg19[%c0_85, %c0_86, %c56], %64 {strides = array<i32>} : memref<16x16x144xf32, #tpu.memory_space<vmem>>, vector<15x16x8xf32>,
    %66 = vector.extract_strided_slice %48 {offsets = [1, 1, 0], sizes = [15, 15, 8], strides = [1, 1, 1]} : vector<16x16x8xf32> to vector<15x15x8xf32>
    %c0_87 = arith.constant 0 : index
    %c0_88 = arith.constant 0 : index
    %c64 = arith.constant 64 : index
    %67 = vector.load %arg19[%c0_87, %c0_88, %c64] : memref<16x16x144xf32, #tpu.memory_space<vmem>>, vector<15x15x8xf32>
    tpu.vector_store %arg19[%c0_87, %c0_88, %c64], %66 {strides = array<i32>} : memref<16x16x144xf32, #tpu.memory_space<vmem>>, vector<15x15x8xf32>,
    %c0_89 = arith.constant 0 : index
    %c0_90 = arith.constant 0 : index
    %c0_91 = arith.constant 0 : index
    %68 = vector.load %arg19[%c0_89, %c0_90, %c0_91] : memref<16x16x144xf32, #tpu.memory_space<vmem>>, vector<16x16x72xf32>
    %69 = vector.shape_cast %68 : vector<16x16x72xf32> to vector<256x72xf32>
    %70 = arith.truncf %69 : vector<256x72xf32> to vector<256x72xbf16>
    %cst_92 = arith.constant dense<0.000000e+00> : vector<256x8xf32>
    %71 = tpu.matmul %70, %4, %cst_92 {dimension_numbers = #tpu.dot_dimension_numbers<[1], [0], [0], [1], [0, 0, 1, 1], [], []>} : vector<256x72xbf16>, vector<72x8xbf16>, vector<256x8xf32> -> vector<256x8xf32>
    %72 = vector.broadcast %5 : vector<1x8xf32> to vector<256x8xf32>
    %73 = arith.addf %71, %72 : vector<256x8xf32>
    %74 = vector.shape_cast %73 : vector<256x8xf32> to vector<16x16x8xf32>
    %75 = vector.shape_cast %74 : vector<16x16x8xf32> to vector<8x2x16x8xf32>
    %cst_93 = arith.constant dense<0.000000e+00> : vector<8x16x8xf32>
    %76 = vector.multi_reduction <add>, %75, %cst_93 [1] : vector<8x2x16x8xf32> to vector<8x16x8xf32>
    %77 = vector.shape_cast %76 : vector<8x16x8xf32> to vector<8x8x2x8xf32>
    %cst_94 = arith.constant dense<0.000000e+00> : vector<8x8x8xf32>
    %78 = vector.multi_reduction <add>, %77, %cst_94 [2] : vector<8x8x2x8xf32> to vector<8x8x8xf32>
    %cst_95 = arith.constant 2.500000e-01 : f32
    %79 = vector.broadcast %cst_95 : f32 to vector<8x8x8xf32>
    %80 = arith.mulf %78, %79 : vector<8x8x8xf32>
    %cst_96 = arith.constant 0.000000e+00 : f32
    %81 = vector.broadcast %cst_96 : f32 to vector<8x8x8xf32>
    %82 = arith.cmpf ogt, %80, %81 : vector<8x8x8xf32>
    %cst_97 = arith.constant 2.000000e-01 : f32
    %83 = vector.broadcast %cst_97 : f32 to vector<8x8x8xf32>
    %84 = arith.mulf %83, %80 : vector<8x8x8xf32>
    %85 = arith.select %82, %80, %84 : vector<8x8x8xi1>, vector<8x8x8xf32>
    %cst_98 = arith.constant 0.000000e+00 : f32
    %86 = vector.broadcast %cst_98 : f32 to vector<8x8x72xf32>
    %c0_99 = arith.constant 0 : index
    %c0_100 = arith.constant 0 : index
    %c0_101 = arith.constant 0 : index
    %87 = vector.load %arg19[%c0_99, %c0_100, %c0_101] : memref<16x16x144xf32, #tpu.memory_space<vmem>>, vector<8x8x72xf32>
    tpu.vector_store %arg19[%c0_99, %c0_100, %c0_101], %86 {strides = array<i32>} : memref<16x16x144xf32, #tpu.memory_space<vmem>>, vector<8x8x72xf32>,
    %88 = vector.extract_strided_slice %85 {offsets = [0, 0, 0], sizes = [7, 7, 8], strides = [1, 1, 1]} : vector<8x8x8xf32> to vector<7x7x8xf32>
    %c1_102 = arith.constant 1 : index
    %c1_103 = arith.constant 1 : index
    %c0_104 = arith.constant 0 : index
    %89 = vector.load %arg19[%c1_102, %c1_103, %c0_104] : memref<16x16x144xf32, #tpu.memory_space<vmem>>, vector<7x7x8xf32>
    tpu.vector_store %arg19[%c1_102, %c1_103, %c0_104], %88 {strides = array<i32>} : memref<16x16x144xf32, #tpu.memory_space<vmem>>, vector<7x7x8xf32>,
    %90 = vector.extract_strided_slice %85 {offsets = [0, 0, 0], sizes = [7, 8, 8], strides = [1, 1, 1]} : vector<8x8x8xf32> to vector<7x8x8xf32>
    %c1_105 = arith.constant 1 : index
    %c0_106 = arith.constant 0 : index
    %c8_107 = arith.constant 8 : index
    %91 = vector.load %arg19[%c1_105, %c0_106, %c8_107] : memref<16x16x144xf32, #tpu.memory_space<vmem>>, vector<7x8x8xf32>
    tpu.vector_store %arg19[%c1_105, %c0_106, %c8_107], %90 {strides = array<i32>} : memref<16x16x144xf32, #tpu.memory_space<vmem>>, vector<7x8x8xf32>,
    %92 = vector.extract_strided_slice %85 {offsets = [0, 1, 0], sizes = [7, 7, 8], strides = [1, 1, 1]} : vector<8x8x8xf32> to vector<7x7x8xf32>
    %c1_108 = arith.constant 1 : index
    %c0_109 = arith.constant 0 : index
    %c16_110 = arith.constant 16 : index
    %93 = vector.load %arg19[%c1_108, %c0_109, %c16_110] : memref<16x16x144xf32, #tpu.memory_space<vmem>>, vector<7x7x8xf32>
    tpu.vector_store %arg19[%c1_108, %c0_109, %c16_110], %92 {strides = array<i32>} : memref<16x16x144xf32, #tpu.memory_space<vmem>>, vector<7x7x8xf32>,
    %94 = vector.extract_strided_slice %85 {offsets = [0, 0, 0], sizes = [8, 7, 8], strides = [1, 1, 1]} : vector<8x8x8xf32> to vector<8x7x8xf32>
    %c0_111 = arith.constant 0 : index
    %c1_112 = arith.constant 1 : index
    %c24_113 = arith.constant 24 : index
    %95 = vector.load %arg19[%c0_111, %c1_112, %c24_113] : memref<16x16x144xf32, #tpu.memory_space<vmem>>, vector<8x7x8xf32>
    tpu.vector_store %arg19[%c0_111, %c1_112, %c24_113], %94 {strides = array<i32>} : memref<16x16x144xf32, #tpu.memory_space<vmem>>, vector<8x7x8xf32>,
    %c0_114 = arith.constant 0 : index
    %c0_115 = arith.constant 0 : index
    %c32_116 = arith.constant 32 : index
    %96 = vector.load %arg19[%c0_114, %c0_115, %c32_116] : memref<16x16x144xf32, #tpu.memory_space<vmem>>, vector<8x8x8xf32>
    tpu.vector_store %arg19[%c0_114, %c0_115, %c32_116], %85 {strides = array<i32>} : memref<16x16x144xf32, #tpu.memory_space<vmem>>, vector<8x8x8xf32>,
    %97 = vector.extract_strided_slice %85 {offsets = [0, 1, 0], sizes = [8, 7, 8], strides = [1, 1, 1]} : vector<8x8x8xf32> to vector<8x7x8xf32>
    %c0_117 = arith.constant 0 : index
    %c0_118 = arith.constant 0 : index
    %c40_119 = arith.constant 40 : index
    %98 = vector.load %arg19[%c0_117, %c0_118, %c40_119] : memref<16x16x144xf32, #tpu.memory_space<vmem>>, vector<8x7x8xf32>
    tpu.vector_store %arg19[%c0_117, %c0_118, %c40_119], %97 {strides = array<i32>} : memref<16x16x144xf32, #tpu.memory_space<vmem>>, vector<8x7x8xf32>,
    %99 = vector.extract_strided_slice %85 {offsets = [1, 0, 0], sizes = [7, 7, 8], strides = [1, 1, 1]} : vector<8x8x8xf32> to vector<7x7x8xf32>
    %c0_120 = arith.constant 0 : index
    %c1_121 = arith.constant 1 : index
    %c48_122 = arith.constant 48 : index
    %100 = vector.load %arg19[%c0_120, %c1_121, %c48_122] : memref<16x16x144xf32, #tpu.memory_space<vmem>>, vector<7x7x8xf32>
    tpu.vector_store %arg19[%c0_120, %c1_121, %c48_122], %99 {strides = array<i32>} : memref<16x16x144xf32, #tpu.memory_space<vmem>>, vector<7x7x8xf32>,
    %101 = vector.extract_strided_slice %85 {offsets = [1, 0, 0], sizes = [7, 8, 8], strides = [1, 1, 1]} : vector<8x8x8xf32> to vector<7x8x8xf32>
    %c0_123 = arith.constant 0 : index
    %c0_124 = arith.constant 0 : index
    %c56_125 = arith.constant 56 : index
    %102 = vector.load %arg19[%c0_123, %c0_124, %c56_125] : memref<16x16x144xf32, #tpu.memory_space<vmem>>, vector<7x8x8xf32>
    tpu.vector_store %arg19[%c0_123, %c0_124, %c56_125], %101 {strides = array<i32>} : memref<16x16x144xf32, #tpu.memory_space<vmem>>, vector<7x8x8xf32>,
    %103 = vector.extract_strided_slice %85 {offsets = [1, 1, 0], sizes = [7, 7, 8], strides = [1, 1, 1]} : vector<8x8x8xf32> to vector<7x7x8xf32>
    %c0_126 = arith.constant 0 : index
    %c0_127 = arith.constant 0 : index
    %c64_128 = arith.constant 64 : index
    %104 = vector.load %arg19[%c0_126, %c0_127, %c64_128] : memref<16x16x144xf32, #tpu.memory_space<vmem>>, vector<7x7x8xf32>
    tpu.vector_store %arg19[%c0_126, %c0_127, %c64_128], %103 {strides = array<i32>} : memref<16x16x144xf32, #tpu.memory_space<vmem>>, vector<7x7x8xf32>,
    %c0_129 = arith.constant 0 : index
    %c0_130 = arith.constant 0 : index
    %c0_131 = arith.constant 0 : index
    %105 = vector.load %arg19[%c0_129, %c0_130, %c0_131] : memref<16x16x144xf32, #tpu.memory_space<vmem>>, vector<8x8x72xf32>
    %106 = vector.shape_cast %105 : vector<8x8x72xf32> to vector<64x72xf32>
    %107 = arith.truncf %106 : vector<64x72xf32> to vector<64x72xbf16>
    %cst_132 = arith.constant dense<0.000000e+00> : vector<64x16xf32>
    %108 = tpu.matmul %107, %6, %cst_132 {dimension_numbers = #tpu.dot_dimension_numbers<[1], [0], [0], [1], [0, 0, 1, 1], [], []>} : vector<64x72xbf16>, vector<72x16xbf16>, vector<64x16xf32> -> vector<64x16xf32>
    %109 = vector.broadcast %7 : vector<1x16xf32> to vector<64x16xf32>
    %110 = arith.addf %108, %109 : vector<64x16xf32>
    %111 = vector.shape_cast %110 : vector<64x16xf32> to vector<8x8x16xf32>
    %112 = vector.shape_cast %43 : vector<16x16x8xf32> to vector<8x2x16x8xf32>
    %cst_133 = arith.constant dense<0.000000e+00> : vector<8x16x8xf32>
    %113 = vector.multi_reduction <add>, %112, %cst_133 [1] : vector<8x2x16x8xf32> to vector<8x16x8xf32>
    %114 = vector.shape_cast %113 : vector<8x16x8xf32> to vector<8x8x2x8xf32>
    %cst_134 = arith.constant dense<0.000000e+00> : vector<8x8x8xf32>
    %115 = vector.multi_reduction <add>, %114, %cst_134 [2] : vector<8x8x2x8xf32> to vector<8x8x8xf32>
    %cst_135 = arith.constant 2.500000e-01 : f32
    %116 = vector.broadcast %cst_135 : f32 to vector<8x8x8xf32>
    %117 = arith.mulf %115, %116 : vector<8x8x8xf32>
    %118 = vector.shape_cast %117 : vector<8x8x8xf32> to vector<64x8xf32>
    %119 = arith.truncf %118 : vector<64x8xf32> to vector<64x8xbf16>
    %cst_136 = arith.constant dense<0.000000e+00> : vector<64x16xf32>
    %120 = tpu.matmul %119, %8, %cst_136 {dimension_numbers = #tpu.dot_dimension_numbers<[1], [0], [0], [1], [0, 0, 1, 1], [], []>} : vector<64x8xbf16>, vector<8x16xbf16>, vector<64x16xf32> -> vector<64x16xf32>
    %121 = vector.shape_cast %120 : vector<64x16xf32> to vector<8x8x16xf32>
    %122 = arith.addf %111, %121 : vector<8x8x16xf32>
    %cst_137 = arith.constant 0.707106769 : f32
    %123 = vector.broadcast %cst_137 : f32 to vector<8x8x16xf32>
    %124 = arith.mulf %122, %123 : vector<8x8x16xf32>
    %cst_138 = arith.constant 0.000000e+00 : f32
    %125 = vector.broadcast %cst_138 : f32 to vector<8x8x16xf32>
    %126 = arith.cmpf ogt, %124, %125 : vector<8x8x16xf32>
    %cst_139 = arith.constant 2.000000e-01 : f32
    %127 = vector.broadcast %cst_139 : f32 to vector<8x8x16xf32>
    %128 = arith.mulf %127, %124 : vector<8x8x16xf32>
    %129 = arith.select %126, %124, %128 : vector<8x8x16xi1>, vector<8x8x16xf32>
    %cst_140 = arith.constant 0.000000e+00 : f32
    %130 = vector.broadcast %cst_140 : f32 to vector<8x8x144xf32>
    %c0_141 = arith.constant 0 : index
    %c0_142 = arith.constant 0 : index
    %c0_143 = arith.constant 0 : index
    %131 = vector.load %arg19[%c0_141, %c0_142, %c0_143] : memref<16x16x144xf32, #tpu.memory_space<vmem>>, vector<8x8x144xf32>
    tpu.vector_store %arg19[%c0_141, %c0_142, %c0_143], %130 {strides = array<i32>} : memref<16x16x144xf32, #tpu.memory_space<vmem>>, vector<8x8x144xf32>,
    %132 = vector.extract_strided_slice %129 {offsets = [0, 0, 0], sizes = [7, 7, 16], strides = [1, 1, 1]} : vector<8x8x16xf32> to vector<7x7x16xf32>
    %c1_144 = arith.constant 1 : index
    %c1_145 = arith.constant 1 : index
    %c0_146 = arith.constant 0 : index
    %133 = vector.load %arg19[%c1_144, %c1_145, %c0_146] : memref<16x16x144xf32, #tpu.memory_space<vmem>>, vector<7x7x16xf32>
    tpu.vector_store %arg19[%c1_144, %c1_145, %c0_146], %132 {strides = array<i32>} : memref<16x16x144xf32, #tpu.memory_space<vmem>>, vector<7x7x16xf32>,
    %134 = vector.extract_strided_slice %129 {offsets = [0, 0, 0], sizes = [7, 8, 16], strides = [1, 1, 1]} : vector<8x8x16xf32> to vector<7x8x16xf32>
    %c1_147 = arith.constant 1 : index
    %c0_148 = arith.constant 0 : index
    %c16_149 = arith.constant 16 : index
    %135 = vector.load %arg19[%c1_147, %c0_148, %c16_149] : memref<16x16x144xf32, #tpu.memory_space<vmem>>, vector<7x8x16xf32>
    tpu.vector_store %arg19[%c1_147, %c0_148, %c16_149], %134 {strides = array<i32>} : memref<16x16x144xf32, #tpu.memory_space<vmem>>, vector<7x8x16xf32>,
    %136 = vector.extract_strided_slice %129 {offsets = [0, 1, 0], sizes = [7, 7, 16], strides = [1, 1, 1]} : vector<8x8x16xf32> to vector<7x7x16xf32>
    %c1_150 = arith.constant 1 : index
    %c0_151 = arith.constant 0 : index
    %c32_152 = arith.constant 32 : index
    %137 = vector.load %arg19[%c1_150, %c0_151, %c32_152] : memref<16x16x144xf32, #tpu.memory_space<vmem>>, vector<7x7x16xf32>
    tpu.vector_store %arg19[%c1_150, %c0_151, %c32_152], %136 {strides = array<i32>} : memref<16x16x144xf32, #tpu.memory_space<vmem>>, vector<7x7x16xf32>,
    %138 = vector.extract_strided_slice %129 {offsets = [0, 0, 0], sizes = [8, 7, 16], strides = [1, 1, 1]} : vector<8x8x16xf32> to vector<8x7x16xf32>
    %c0_153 = arith.constant 0 : index
    %c1_154 = arith.constant 1 : index
    %c48_155 = arith.constant 48 : index
    %139 = vector.load %arg19[%c0_153, %c1_154, %c48_155] : memref<16x16x144xf32, #tpu.memory_space<vmem>>, vector<8x7x16xf32>
    tpu.vector_store %arg19[%c0_153, %c1_154, %c48_155], %138 {strides = array<i32>} : memref<16x16x144xf32, #tpu.memory_space<vmem>>, vector<8x7x16xf32>,
    %c0_156 = arith.constant 0 : index
    %c0_157 = arith.constant 0 : index
    %c64_158 = arith.constant 64 : index
    %140 = vector.load %arg19[%c0_156, %c0_157, %c64_158] : memref<16x16x144xf32, #tpu.memory_space<vmem>>, vector<8x8x16xf32>
    tpu.vector_store %arg19[%c0_156, %c0_157, %c64_158], %129 {strides = array<i32>} : memref<16x16x144xf32, #tpu.memory_space<vmem>>, vector<8x8x16xf32>,
    %141 = vector.extract_strided_slice %129 {offsets = [0, 1, 0], sizes = [8, 7, 16], strides = [1, 1, 1]} : vector<8x8x16xf32> to vector<8x7x16xf32>
    %c0_159 = arith.constant 0 : index
    %c0_160 = arith.constant 0 : index
    %c80 = arith.constant 80 : index
    %142 = vector.load %arg19[%c0_159, %c0_160, %c80] : memref<16x16x144xf32, #tpu.memory_space<vmem>>, vector<8x7x16xf32>
    tpu.vector_store %arg19[%c0_159, %c0_160, %c80], %141 {strides = array<i32>} : memref<16x16x144xf32, #tpu.memory_space<vmem>>, vector<8x7x16xf32>,
    %143 = vector.extract_strided_slice %129 {offsets = [1, 0, 0], sizes = [7, 7, 16], strides = [1, 1, 1]} : vector<8x8x16xf32> to vector<7x7x16xf32>
    %c0_161 = arith.constant 0 : index
    %c1_162 = arith.constant 1 : index
    %c96 = arith.constant 96 : index
    %144 = vector.load %arg19[%c0_161, %c1_162, %c96] : memref<16x16x144xf32, #tpu.memory_space<vmem>>, vector<7x7x16xf32>
    tpu.vector_store %arg19[%c0_161, %c1_162, %c96], %143 {strides = array<i32>} : memref<16x16x144xf32, #tpu.memory_space<vmem>>, vector<7x7x16xf32>,
    %145 = vector.extract_strided_slice %129 {offsets = [1, 0, 0], sizes = [7, 8, 16], strides = [1, 1, 1]} : vector<8x8x16xf32> to vector<7x8x16xf32>
    %c0_163 = arith.constant 0 : index
    %c0_164 = arith.constant 0 : index
    %c112 = arith.constant 112 : index
    %146 = vector.load %arg19[%c0_163, %c0_164, %c112] : memref<16x16x144xf32, #tpu.memory_space<vmem>>, vector<7x8x16xf32>
    tpu.vector_store %arg19[%c0_163, %c0_164, %c112], %145 {strides = array<i32>} : memref<16x16x144xf32, #tpu.memory_space<vmem>>, vector<7x8x16xf32>,
    %147 = vector.extract_strided_slice %129 {offsets = [1, 1, 0], sizes = [7, 7, 16], strides = [1, 1, 1]} : vector<8x8x16xf32> to vector<7x7x16xf32>
    %c0_165 = arith.constant 0 : index
    %c0_166 = arith.constant 0 : index
    %c128 = arith.constant 128 : index
    %148 = vector.load %arg19[%c0_165, %c0_166, %c128] : memref<16x16x144xf32, #tpu.memory_space<vmem>>, vector<7x7x16xf32>
    tpu.vector_store %arg19[%c0_165, %c0_166, %c128], %147 {strides = array<i32>} : memref<16x16x144xf32, #tpu.memory_space<vmem>>, vector<7x7x16xf32>,
    %c0_167 = arith.constant 0 : index
    %c0_168 = arith.constant 0 : index
    %c0_169 = arith.constant 0 : index
    %149 = vector.load %arg19[%c0_167, %c0_168, %c0_169] : memref<16x16x144xf32, #tpu.memory_space<vmem>>, vector<8x8x144xf32>
    %150 = vector.shape_cast %149 : vector<8x8x144xf32> to vector<64x144xf32>
    %151 = arith.truncf %150 : vector<64x144xf32> to vector<64x144xbf16>
    %cst_170 = arith.constant dense<0.000000e+00> : vector<64x16xf32>
    %152 = tpu.matmul %151, %9, %cst_170 {dimension_numbers = #tpu.dot_dimension_numbers<[1], [0], [0], [1], [0, 0, 1, 1], [], []>} : vector<64x144xbf16>, vector<144x16xbf16>, vector<64x16xf32> -> vector<64x16xf32>
    %153 = vector.broadcast %10 : vector<1x16xf32> to vector<64x16xf32>
    %154 = arith.addf %152, %153 : vector<64x16xf32>
    %155 = vector.shape_cast %154 : vector<64x16xf32> to vector<8x8x16xf32>
    %156 = vector.shape_cast %155 : vector<8x8x16xf32> to vector<4x2x8x16xf32>
    %cst_171 = arith.constant dense<0.000000e+00> : vector<4x8x16xf32>
    %157 = vector.multi_reduction <add>, %156, %cst_171 [1] : vector<4x2x8x16xf32> to vector<4x8x16xf32>
    %158 = vector.shape_cast %157 : vector<4x8x16xf32> to vector<4x4x2x16xf32>
    %cst_172 = arith.constant dense<0.000000e+00> : vector<4x4x16xf32>
    %159 = vector.multi_reduction <add>, %158, %cst_172 [2] : vector<4x4x2x16xf32> to vector<4x4x16xf32>
    %cst_173 = arith.constant 2.500000e-01 : f32
    %160 = vector.broadcast %cst_173 : f32 to vector<4x4x16xf32>
    %161 = arith.mulf %159, %160 : vector<4x4x16xf32>
    %cst_174 = arith.constant 0.000000e+00 : f32
    %162 = vector.broadcast %cst_174 : f32 to vector<4x4x16xf32>
    %163 = arith.cmpf ogt, %161, %162 : vector<4x4x16xf32>
    %cst_175 = arith.constant 2.000000e-01 : f32
    %164 = vector.broadcast %cst_175 : f32 to vector<4x4x16xf32>
    %165 = arith.mulf %164, %161 : vector<4x4x16xf32>
    %166 = arith.select %163, %161, %165 : vector<4x4x16xi1>, vector<4x4x16xf32>
    %cst_176 = arith.constant 0.000000e+00 : f32
    %167 = vector.broadcast %cst_176 : f32 to vector<4x4x144xf32>
    %c0_177 = arith.constant 0 : index
    %c0_178 = arith.constant 0 : index
    %c0_179 = arith.constant 0 : index
    %168 = vector.load %arg19[%c0_177, %c0_178, %c0_179] : memref<16x16x144xf32, #tpu.memory_space<vmem>>, vector<4x4x144xf32>
    tpu.vector_store %arg19[%c0_177, %c0_178, %c0_179], %167 {strides = array<i32>} : memref<16x16x144xf32, #tpu.memory_space<vmem>>, vector<4x4x144xf32>,
    %169 = vector.extract_strided_slice %166 {offsets = [0, 0, 0], sizes = [3, 3, 16], strides = [1, 1, 1]} : vector<4x4x16xf32> to vector<3x3x16xf32>
    %c1_180 = arith.constant 1 : index
    %c1_181 = arith.constant 1 : index
    %c0_182 = arith.constant 0 : index
    %170 = vector.load %arg19[%c1_180, %c1_181, %c0_182] : memref<16x16x144xf32, #tpu.memory_space<vmem>>, vector<3x3x16xf32>
    tpu.vector_store %arg19[%c1_180, %c1_181, %c0_182], %169 {strides = array<i32>} : memref<16x16x144xf32, #tpu.memory_space<vmem>>, vector<3x3x16xf32>,
    %171 = vector.extract_strided_slice %166 {offsets = [0, 0, 0], sizes = [3, 4, 16], strides = [1, 1, 1]} : vector<4x4x16xf32> to vector<3x4x16xf32>
    %c1_183 = arith.constant 1 : index
    %c0_184 = arith.constant 0 : index
    %c16_185 = arith.constant 16 : index
    %172 = vector.load %arg19[%c1_183, %c0_184, %c16_185] : memref<16x16x144xf32, #tpu.memory_space<vmem>>, vector<3x4x16xf32>
    tpu.vector_store %arg19[%c1_183, %c0_184, %c16_185], %171 {strides = array<i32>} : memref<16x16x144xf32, #tpu.memory_space<vmem>>, vector<3x4x16xf32>,
    %173 = vector.extract_strided_slice %166 {offsets = [0, 1, 0], sizes = [3, 3, 16], strides = [1, 1, 1]} : vector<4x4x16xf32> to vector<3x3x16xf32>
    %c1_186 = arith.constant 1 : index
    %c0_187 = arith.constant 0 : index
    %c32_188 = arith.constant 32 : index
    %174 = vector.load %arg19[%c1_186, %c0_187, %c32_188] : memref<16x16x144xf32, #tpu.memory_space<vmem>>, vector<3x3x16xf32>
    tpu.vector_store %arg19[%c1_186, %c0_187, %c32_188], %173 {strides = array<i32>} : memref<16x16x144xf32, #tpu.memory_space<vmem>>, vector<3x3x16xf32>,
    %175 = vector.extract_strided_slice %166 {offsets = [0, 0, 0], sizes = [4, 3, 16], strides = [1, 1, 1]} : vector<4x4x16xf32> to vector<4x3x16xf32>
    %c0_189 = arith.constant 0 : index
    %c1_190 = arith.constant 1 : index
    %c48_191 = arith.constant 48 : index
    %176 = vector.load %arg19[%c0_189, %c1_190, %c48_191] : memref<16x16x144xf32, #tpu.memory_space<vmem>>, vector<4x3x16xf32>
    tpu.vector_store %arg19[%c0_189, %c1_190, %c48_191], %175 {strides = array<i32>} : memref<16x16x144xf32, #tpu.memory_space<vmem>>, vector<4x3x16xf32>,
    %c0_192 = arith.constant 0 : index
    %c0_193 = arith.constant 0 : index
    %c64_194 = arith.constant 64 : index
    %177 = vector.load %arg19[%c0_192, %c0_193, %c64_194] : memref<16x16x144xf32, #tpu.memory_space<vmem>>, vector<4x4x16xf32>
    tpu.vector_store %arg19[%c0_192, %c0_193, %c64_194], %166 {strides = array<i32>} : memref<16x16x144xf32, #tpu.memory_space<vmem>>, vector<4x4x16xf32>,
    %178 = vector.extract_strided_slice %166 {offsets = [0, 1, 0], sizes = [4, 3, 16], strides = [1, 1, 1]} : vector<4x4x16xf32> to vector<4x3x16xf32>
    %c0_195 = arith.constant 0 : index
    %c0_196 = arith.constant 0 : index
    %c80_197 = arith.constant 80 : index
    %179 = vector.load %arg19[%c0_195, %c0_196, %c80_197] : memref<16x16x144xf32, #tpu.memory_space<vmem>>, vector<4x3x16xf32>
    tpu.vector_store %arg19[%c0_195, %c0_196, %c80_197], %178 {strides = array<i32>} : memref<16x16x144xf32, #tpu.memory_space<vmem>>, vector<4x3x16xf32>,
    %180 = vector.extract_strided_slice %166 {offsets = [1, 0, 0], sizes = [3, 3, 16], strides = [1, 1, 1]} : vector<4x4x16xf32> to vector<3x3x16xf32>
    %c0_198 = arith.constant 0 : index
    %c1_199 = arith.constant 1 : index
    %c96_200 = arith.constant 96 : index
    %181 = vector.load %arg19[%c0_198, %c1_199, %c96_200] : memref<16x16x144xf32, #tpu.memory_space<vmem>>, vector<3x3x16xf32>
    tpu.vector_store %arg19[%c0_198, %c1_199, %c96_200], %180 {strides = array<i32>} : memref<16x16x144xf32, #tpu.memory_space<vmem>>, vector<3x3x16xf32>,
    %182 = vector.extract_strided_slice %166 {offsets = [1, 0, 0], sizes = [3, 4, 16], strides = [1, 1, 1]} : vector<4x4x16xf32> to vector<3x4x16xf32>
    %c0_201 = arith.constant 0 : index
    %c0_202 = arith.constant 0 : index
    %c112_203 = arith.constant 112 : index
    %183 = vector.load %arg19[%c0_201, %c0_202, %c112_203] : memref<16x16x144xf32, #tpu.memory_space<vmem>>, vector<3x4x16xf32>
    tpu.vector_store %arg19[%c0_201, %c0_202, %c112_203], %182 {strides = array<i32>} : memref<16x16x144xf32, #tpu.memory_space<vmem>>, vector<3x4x16xf32>,
    %184 = vector.extract_strided_slice %166 {offsets = [1, 1, 0], sizes = [3, 3, 16], strides = [1, 1, 1]} : vector<4x4x16xf32> to vector<3x3x16xf32>
    %c0_204 = arith.constant 0 : index
    %c0_205 = arith.constant 0 : index
    %c128_206 = arith.constant 128 : index
    %185 = vector.load %arg19[%c0_204, %c0_205, %c128_206] : memref<16x16x144xf32, #tpu.memory_space<vmem>>, vector<3x3x16xf32>
    tpu.vector_store %arg19[%c0_204, %c0_205, %c128_206], %184 {strides = array<i32>} : memref<16x16x144xf32, #tpu.memory_space<vmem>>, vector<3x3x16xf32>,
    %c0_207 = arith.constant 0 : index
    %c0_208 = arith.constant 0 : index
    %c0_209 = arith.constant 0 : index
    %186 = vector.load %arg19[%c0_207, %c0_208, %c0_209] : memref<16x16x144xf32, #tpu.memory_space<vmem>>, vector<4x4x144xf32>
    %187 = vector.shape_cast %186 : vector<4x4x144xf32> to vector<16x144xf32>
    %188 = arith.truncf %187 : vector<16x144xf32> to vector<16x144xbf16>
    %cst_210 = arith.constant dense<0.000000e+00> : vector<16x32xf32>
    %189 = tpu.matmul %188, %11, %cst_210 {dimension_numbers = #tpu.dot_dimension_numbers<[1], [0], [0], [1], [0, 0, 1, 1], [], []>} : vector<16x144xbf16>, vector<144x32xbf16>, vector<16x32xf32> -> vector<16x32xf32>
    %190 = vector.broadcast %12 : vector<1x32xf32> to vector<16x32xf32>
    %191 = arith.addf %189, %190 : vector<16x32xf32>
    %192 = vector.shape_cast %191 : vector<16x32xf32> to vector<4x4x32xf32>
    %193 = vector.shape_cast %124 : vector<8x8x16xf32> to vector<4x2x8x16xf32>
    %cst_211 = arith.constant dense<0.000000e+00> : vector<4x8x16xf32>
    %194 = vector.multi_reduction <add>, %193, %cst_211 [1] : vector<4x2x8x16xf32> to vector<4x8x16xf32>
    %195 = vector.shape_cast %194 : vector<4x8x16xf32> to vector<4x4x2x16xf32>
    %cst_212 = arith.constant dense<0.000000e+00> : vector<4x4x16xf32>
    %196 = vector.multi_reduction <add>, %195, %cst_212 [2] : vector<4x4x2x16xf32> to vector<4x4x16xf32>
    %cst_213 = arith.constant 2.500000e-01 : f32
    %197 = vector.broadcast %cst_213 : f32 to vector<4x4x16xf32>
    %198 = arith.mulf %196, %197 : vector<4x4x16xf32>
    %199 = vector.shape_cast %198 : vector<4x4x16xf32> to vector<16x16xf32>
    %200 = arith.truncf %199 : vector<16x16xf32> to vector<16x16xbf16>
    %cst_214 = arith.constant dense<0.000000e+00> : vector<16x32xf32>
    %201 = tpu.matmul %200, %13, %cst_214 {dimension_numbers = #tpu.dot_dimension_numbers<[1], [0], [0], [1], [0, 0, 1, 1], [], []>} : vector<16x16xbf16>, vector<16x32xbf16>, vector<16x32xf32> -> vector<16x32xf32>
    %202 = vector.shape_cast %201 : vector<16x32xf32> to vector<4x4x32xf32>
    %203 = arith.addf %192, %202 : vector<4x4x32xf32>
    %cst_215 = arith.constant 0.707106769 : f32
    %204 = vector.broadcast %cst_215 : f32 to vector<4x4x32xf32>
    %205 = arith.mulf %203, %204 : vector<4x4x32xf32>
    %cst_216 = arith.constant 0.000000e+00 : f32
    %206 = vector.broadcast %cst_216 : f32 to vector<4x4x32xf32>
    %207 = arith.cmpf ogt, %205, %206 : vector<4x4x32xf32>
    %cst_217 = arith.constant 2.000000e-01 : f32
    %208 = vector.broadcast %cst_217 : f32 to vector<4x4x32xf32>
    %209 = arith.mulf %208, %205 : vector<4x4x32xf32>
    %210 = arith.select %207, %205, %209 : vector<4x4x32xi1>, vector<4x4x32xf32>
    %211 = vector.extract_strided_slice %210 {offsets = [0, 0, 0], sizes = [1, 1, 32], strides = [1, 1, 1]} : vector<4x4x32xf32> to vector<1x1x32xf32>
    %212 = vector.shape_cast %211 : vector<1x1x32xf32> to vector<1x32xf32>
    %c0_218 = arith.constant 0 : index
    %c0_219 = arith.constant 0 : index
    %213 = vector.load %arg20[%c0_218, %c0_219] : memref<1x512xf32, #tpu.memory_space<vmem>>, vector<1x32xf32>
    tpu.vector_store %arg20[%c0_218, %c0_219], %212 {strides = array<i32>} : memref<1x512xf32, #tpu.memory_space<vmem>>, vector<1x32xf32>,
    %214 = vector.extract_strided_slice %210 {offsets = [0, 1, 0], sizes = [1, 1, 32], strides = [1, 1, 1]} : vector<4x4x32xf32> to vector<1x1x32xf32>
    %215 = vector.shape_cast %214 : vector<1x1x32xf32> to vector<1x32xf32>
    %c0_220 = arith.constant 0 : index
    %c32_221 = arith.constant 32 : index
    %216 = vector.load %arg20[%c0_220, %c32_221] : memref<1x512xf32, #tpu.memory_space<vmem>>, vector<1x32xf32>
    tpu.vector_store %arg20[%c0_220, %c32_221], %215 {strides = array<i32>} : memref<1x512xf32, #tpu.memory_space<vmem>>, vector<1x32xf32>,
    %217 = vector.extract_strided_slice %210 {offsets = [0, 2, 0], sizes = [1, 1, 32], strides = [1, 1, 1]} : vector<4x4x32xf32> to vector<1x1x32xf32>
    %218 = vector.shape_cast %217 : vector<1x1x32xf32> to vector<1x32xf32>
    %c0_222 = arith.constant 0 : index
    %c64_223 = arith.constant 64 : index
    %219 = vector.load %arg20[%c0_222, %c64_223] : memref<1x512xf32, #tpu.memory_space<vmem>>, vector<1x32xf32>
    tpu.vector_store %arg20[%c0_222, %c64_223], %218 {strides = array<i32>} : memref<1x512xf32, #tpu.memory_space<vmem>>, vector<1x32xf32>,
    %220 = vector.extract_strided_slice %210 {offsets = [0, 3, 0], sizes = [1, 1, 32], strides = [1, 1, 1]} : vector<4x4x32xf32> to vector<1x1x32xf32>
    %221 = vector.shape_cast %220 : vector<1x1x32xf32> to vector<1x32xf32>
    %c0_224 = arith.constant 0 : index
    %c96_225 = arith.constant 96 : index
    %222 = vector.load %arg20[%c0_224, %c96_225] : memref<1x512xf32, #tpu.memory_space<vmem>>, vector<1x32xf32>
    tpu.vector_store %arg20[%c0_224, %c96_225], %221 {strides = array<i32>} : memref<1x512xf32, #tpu.memory_space<vmem>>, vector<1x32xf32>,
    %223 = vector.extract_strided_slice %210 {offsets = [1, 0, 0], sizes = [1, 1, 32], strides = [1, 1, 1]} : vector<4x4x32xf32> to vector<1x1x32xf32>
    %224 = vector.shape_cast %223 : vector<1x1x32xf32> to vector<1x32xf32>
    %c0_226 = arith.constant 0 : index
    %c128_227 = arith.constant 128 : index
    %225 = vector.load %arg20[%c0_226, %c128_227] : memref<1x512xf32, #tpu.memory_space<vmem>>, vector<1x32xf32>
    tpu.vector_store %arg20[%c0_226, %c128_227], %224 {strides = array<i32>} : memref<1x512xf32, #tpu.memory_space<vmem>>, vector<1x32xf32>,
    %226 = vector.extract_strided_slice %210 {offsets = [1, 1, 0], sizes = [1, 1, 32], strides = [1, 1, 1]} : vector<4x4x32xf32> to vector<1x1x32xf32>
    %227 = vector.shape_cast %226 : vector<1x1x32xf32> to vector<1x32xf32>
    %c0_228 = arith.constant 0 : index
    %c160 = arith.constant 160 : index
    %228 = vector.load %arg20[%c0_228, %c160] : memref<1x512xf32, #tpu.memory_space<vmem>>, vector<1x32xf32>
    tpu.vector_store %arg20[%c0_228, %c160], %227 {strides = array<i32>} : memref<1x512xf32, #tpu.memory_space<vmem>>, vector<1x32xf32>,
    %229 = vector.extract_strided_slice %210 {offsets = [1, 2, 0], sizes = [1, 1, 32], strides = [1, 1, 1]} : vector<4x4x32xf32> to vector<1x1x32xf32>
    %230 = vector.shape_cast %229 : vector<1x1x32xf32> to vector<1x32xf32>
    %c0_229 = arith.constant 0 : index
    %c192 = arith.constant 192 : index
    %231 = vector.load %arg20[%c0_229, %c192] : memref<1x512xf32, #tpu.memory_space<vmem>>, vector<1x32xf32>
    tpu.vector_store %arg20[%c0_229, %c192], %230 {strides = array<i32>} : memref<1x512xf32, #tpu.memory_space<vmem>>, vector<1x32xf32>,
    %232 = vector.extract_strided_slice %210 {offsets = [1, 3, 0], sizes = [1, 1, 32], strides = [1, 1, 1]} : vector<4x4x32xf32> to vector<1x1x32xf32>
    %233 = vector.shape_cast %232 : vector<1x1x32xf32> to vector<1x32xf32>
    %c0_230 = arith.constant 0 : index
    %c224 = arith.constant 224 : index
    %234 = vector.load %arg20[%c0_230, %c224] : memref<1x512xf32, #tpu.memory_space<vmem>>, vector<1x32xf32>
    tpu.vector_store %arg20[%c0_230, %c224], %233 {strides = array<i32>} : memref<1x512xf32, #tpu.memory_space<vmem>>, vector<1x32xf32>,
    %235 = vector.extract_strided_slice %210 {offsets = [2, 0, 0], sizes = [1, 1, 32], strides = [1, 1, 1]} : vector<4x4x32xf32> to vector<1x1x32xf32>
    %236 = vector.shape_cast %235 : vector<1x1x32xf32> to vector<1x32xf32>
    %c0_231 = arith.constant 0 : index
    %c256 = arith.constant 256 : index
    %237 = vector.load %arg20[%c0_231, %c256] : memref<1x512xf32, #tpu.memory_space<vmem>>, vector<1x32xf32>
    tpu.vector_store %arg20[%c0_231, %c256], %236 {strides = array<i32>} : memref<1x512xf32, #tpu.memory_space<vmem>>, vector<1x32xf32>,
    %238 = vector.extract_strided_slice %210 {offsets = [2, 1, 0], sizes = [1, 1, 32], strides = [1, 1, 1]} : vector<4x4x32xf32> to vector<1x1x32xf32>
    %239 = vector.shape_cast %238 : vector<1x1x32xf32> to vector<1x32xf32>
    %c0_232 = arith.constant 0 : index
    %c288 = arith.constant 288 : index
    %240 = vector.load %arg20[%c0_232, %c288] : memref<1x512xf32, #tpu.memory_space<vmem>>, vector<1x32xf32>
    tpu.vector_store %arg20[%c0_232, %c288], %239 {strides = array<i32>} : memref<1x512xf32, #tpu.memory_space<vmem>>, vector<1x32xf32>,
    %241 = vector.extract_strided_slice %210 {offsets = [2, 2, 0], sizes = [1, 1, 32], strides = [1, 1, 1]} : vector<4x4x32xf32> to vector<1x1x32xf32>
    %242 = vector.shape_cast %241 : vector<1x1x32xf32> to vector<1x32xf32>
    %c0_233 = arith.constant 0 : index
    %c320 = arith.constant 320 : index
    %243 = vector.load %arg20[%c0_233, %c320] : memref<1x512xf32, #tpu.memory_space<vmem>>, vector<1x32xf32>
    tpu.vector_store %arg20[%c0_233, %c320], %242 {strides = array<i32>} : memref<1x512xf32, #tpu.memory_space<vmem>>, vector<1x32xf32>,
    %244 = vector.extract_strided_slice %210 {offsets = [2, 3, 0], sizes = [1, 1, 32], strides = [1, 1, 1]} : vector<4x4x32xf32> to vector<1x1x32xf32>
    %245 = vector.shape_cast %244 : vector<1x1x32xf32> to vector<1x32xf32>
    %c0_234 = arith.constant 0 : index
    %c352 = arith.constant 352 : index
    %246 = vector.load %arg20[%c0_234, %c352] : memref<1x512xf32, #tpu.memory_space<vmem>>, vector<1x32xf32>
    tpu.vector_store %arg20[%c0_234, %c352], %245 {strides = array<i32>} : memref<1x512xf32, #tpu.memory_space<vmem>>, vector<1x32xf32>,
    %247 = vector.extract_strided_slice %210 {offsets = [3, 0, 0], sizes = [1, 1, 32], strides = [1, 1, 1]} : vector<4x4x32xf32> to vector<1x1x32xf32>
    %248 = vector.shape_cast %247 : vector<1x1x32xf32> to vector<1x32xf32>
    %c0_235 = arith.constant 0 : index
    %c384 = arith.constant 384 : index
    %249 = vector.load %arg20[%c0_235, %c384] : memref<1x512xf32, #tpu.memory_space<vmem>>, vector<1x32xf32>
    tpu.vector_store %arg20[%c0_235, %c384], %248 {strides = array<i32>} : memref<1x512xf32, #tpu.memory_space<vmem>>, vector<1x32xf32>,
    %250 = vector.extract_strided_slice %210 {offsets = [3, 1, 0], sizes = [1, 1, 32], strides = [1, 1, 1]} : vector<4x4x32xf32> to vector<1x1x32xf32>
    %251 = vector.shape_cast %250 : vector<1x1x32xf32> to vector<1x32xf32>
    %c0_236 = arith.constant 0 : index
    %c416 = arith.constant 416 : index
    %252 = vector.load %arg20[%c0_236, %c416] : memref<1x512xf32, #tpu.memory_space<vmem>>, vector<1x32xf32>
    tpu.vector_store %arg20[%c0_236, %c416], %251 {strides = array<i32>} : memref<1x512xf32, #tpu.memory_space<vmem>>, vector<1x32xf32>,
    %253 = vector.extract_strided_slice %210 {offsets = [3, 2, 0], sizes = [1, 1, 32], strides = [1, 1, 1]} : vector<4x4x32xf32> to vector<1x1x32xf32>
    %254 = vector.shape_cast %253 : vector<1x1x32xf32> to vector<1x32xf32>
    %c0_237 = arith.constant 0 : index
    %c448 = arith.constant 448 : index
    %255 = vector.load %arg20[%c0_237, %c448] : memref<1x512xf32, #tpu.memory_space<vmem>>, vector<1x32xf32>
    tpu.vector_store %arg20[%c0_237, %c448], %254 {strides = array<i32>} : memref<1x512xf32, #tpu.memory_space<vmem>>, vector<1x32xf32>,
    %256 = vector.extract_strided_slice %210 {offsets = [3, 3, 0], sizes = [1, 1, 32], strides = [1, 1, 1]} : vector<4x4x32xf32> to vector<1x1x32xf32>
    %257 = vector.shape_cast %256 : vector<1x1x32xf32> to vector<1x32xf32>
    %c0_238 = arith.constant 0 : index
    %c480 = arith.constant 480 : index
    %258 = vector.load %arg20[%c0_238, %c480] : memref<1x512xf32, #tpu.memory_space<vmem>>, vector<1x32xf32>
    tpu.vector_store %arg20[%c0_238, %c480], %257 {strides = array<i32>} : memref<1x512xf32, #tpu.memory_space<vmem>>, vector<1x32xf32>,
    %c0_239 = arith.constant 0 : index
    %c0_240 = arith.constant 0 : index
    %259 = vector.load %arg20[%c0_239, %c0_240] : memref<1x512xf32, #tpu.memory_space<vmem>>, vector<1x512xf32>
    %260 = arith.truncf %259 : vector<1x512xf32> to vector<1x512xbf16>
    %cst_241 = arith.constant dense<0.000000e+00> : vector<1x32xf32>
    %261 = tpu.matmul %260, %14, %cst_241 {dimension_numbers = #tpu.dot_dimension_numbers<[1], [0], [0], [1], [0, 0, 1, 1], [], []>} : vector<1x512xbf16>, vector<512x32xbf16>, vector<1x32xf32> -> vector<1x32xf32>
    %262 = arith.addf %261, %15 : vector<1x32xf32>
    %cst_242 = arith.constant 0.000000e+00 : f32
    %263 = vector.broadcast %cst_242 : f32 to vector<1x32xf32>
    %264 = arith.cmpf ogt, %262, %263 : vector<1x32xf32>
    %cst_243 = arith.constant 2.000000e-01 : f32
    %265 = vector.broadcast %cst_243 : f32 to vector<1x32xf32>
    %266 = arith.mulf %265, %262 : vector<1x32xf32>
    %267 = arith.select %264, %262, %266 : vector<1x32xi1>, vector<1x32xf32>
    %268 = arith.truncf %267 : vector<1x32xf32> to vector<1x32xbf16>
    %cst_244 = arith.constant dense<0.000000e+00> : vector<1x16xf32>
    %269 = tpu.matmul %268, %16, %cst_244 {dimension_numbers = #tpu.dot_dimension_numbers<[1], [0], [0], [1], [0, 0, 1, 1], [], []>} : vector<1x32xbf16>, vector<32x16xbf16>, vector<1x16xf32> -> vector<1x16xf32>
    %270 = arith.addf %269, %17 : vector<1x16xf32>
    %c0_245 = arith.constant 0 : index
    %c0_246 = arith.constant 0 : index
    %c0_247 = arith.constant 0 : index
    %271 = vector.load %arg18[%c0_245, %c0_246, %c0_247] : memref<1x1x16xf32, #tpu.memory_space<vmem>>, vector<1x1x16xf32>
    %272 = vector.shape_cast %271 : vector<1x1x16xf32> to vector<1x16xf32>
    %273 = vector.shape_cast %270 : vector<1x16xf32> to vector<1x1x16xf32>
    tpu.vector_store %arg18[%c0_245, %c0_246, %c0_247], %273 {strides = array<i32>} : memref<1x1x16xf32, #tpu.memory_space<vmem>>, vector<1x1x16xf32>,
    return
  }
  func.func @transform_0(%arg0: i32) -> (i32, i32, i32, i32) {
    %c0_i32 = arith.constant 0 : i32
    %c0_i32_0 = arith.constant 0 : i32
    %c0_i32_1 = arith.constant 0 : i32
    %c0_i32_2 = arith.constant 0 : i32
    return %arg0, %c0_i32, %c0_i32_0, %c0_i32_1 : i32, i32, i32, i32
  }
  func.func @transform_1(%arg0: i32) -> (i32, i32) {
    %c0_i32 = arith.constant 0 : i32
    %c0_i32_0 = arith.constant 0 : i32
    %c0_i32_1 = arith.constant 0 : i32
    return %c0_i32, %c0_i32_0 : i32, i32
  }
  func.func @transform_2(%arg0: i32) -> (i32, i32) {
    %c0_i32 = arith.constant 0 : i32
    %c0_i32_0 = arith.constant 0 : i32
    %c0_i32_1 = arith.constant 0 : i32
    return %c0_i32, %c0_i32_0 : i32, i32
  }
  func.func @transform_3(%arg0: i32) -> (i32, i32) {
    %c0_i32 = arith.constant 0 : i32
    %c0_i32_0 = arith.constant 0 : i32
    %c0_i32_1 = arith.constant 0 : i32
    return %c0_i32, %c0_i32_0 : i32, i32
  }
  func.func @transform_4(%arg0: i32) -> (i32, i32) {
    %c0_i32 = arith.constant 0 : i32
    %c0_i32_0 = arith.constant 0 : i32
    %c0_i32_1 = arith.constant 0 : i32
    return %c0_i32, %c0_i32_0 : i32, i32
  }
  func.func @transform_5(%arg0: i32) -> (i32, i32) {
    %c0_i32 = arith.constant 0 : i32
    %c0_i32_0 = arith.constant 0 : i32
    %c0_i32_1 = arith.constant 0 : i32
    return %c0_i32, %c0_i32_0 : i32, i32
  }
  func.func @transform_6(%arg0: i32) -> (i32, i32) {
    %c0_i32 = arith.constant 0 : i32
    %c0_i32_0 = arith.constant 0 : i32
    %c0_i32_1 = arith.constant 0 : i32
    return %c0_i32, %c0_i32_0 : i32, i32
  }
  func.func @transform_7(%arg0: i32) -> (i32, i32) {
    %c0_i32 = arith.constant 0 : i32
    %c0_i32_0 = arith.constant 0 : i32
    %c0_i32_1 = arith.constant 0 : i32
    return %c0_i32, %c0_i32_0 : i32, i32
  }
  func.func @transform_8(%arg0: i32) -> (i32, i32) {
    %c0_i32 = arith.constant 0 : i32
    %c0_i32_0 = arith.constant 0 : i32
    %c0_i32_1 = arith.constant 0 : i32
    return %c0_i32, %c0_i32_0 : i32, i32
  }
  func.func @transform_9(%arg0: i32) -> (i32, i32) {
    %c0_i32 = arith.constant 0 : i32
    %c0_i32_0 = arith.constant 0 : i32
    %c0_i32_1 = arith.constant 0 : i32
    return %c0_i32, %c0_i32_0 : i32, i32
  }
  func.func @transform_10(%arg0: i32) -> (i32, i32) {
    %c0_i32 = arith.constant 0 : i32
    %c0_i32_0 = arith.constant 0 : i32
    %c0_i32_1 = arith.constant 0 : i32
    return %c0_i32, %c0_i32_0 : i32, i32
  }
  func.func @transform_11(%arg0: i32) -> (i32, i32) {
    %c0_i32 = arith.constant 0 : i32
    %c0_i32_0 = arith.constant 0 : i32
    %c0_i32_1 = arith.constant 0 : i32
    return %c0_i32, %c0_i32_0 : i32, i32
  }
  func.func @transform_12(%arg0: i32) -> (i32, i32) {
    %c0_i32 = arith.constant 0 : i32
    %c0_i32_0 = arith.constant 0 : i32
    %c0_i32_1 = arith.constant 0 : i32
    return %c0_i32, %c0_i32_0 : i32, i32
  }
  func.func @transform_13(%arg0: i32) -> (i32, i32) {
    %c0_i32 = arith.constant 0 : i32
    %c0_i32_0 = arith.constant 0 : i32
    %c0_i32_1 = arith.constant 0 : i32
    return %c0_i32, %c0_i32_0 : i32, i32
  }
  func.func @transform_14(%arg0: i32) -> (i32, i32) {
    %c0_i32 = arith.constant 0 : i32
    %c0_i32_0 = arith.constant 0 : i32
    %c0_i32_1 = arith.constant 0 : i32
    return %c0_i32, %c0_i32_0 : i32, i32
  }
  func.func @transform_15(%arg0: i32) -> (i32, i32) {
    %c0_i32 = arith.constant 0 : i32
    %c0_i32_0 = arith.constant 0 : i32
    %c0_i32_1 = arith.constant 0 : i32
    return %c0_i32, %c0_i32_0 : i32, i32
  }
  func.func @transform_16(%arg0: i32) -> (i32, i32) {
    %c0_i32 = arith.constant 0 : i32
    %c0_i32_0 = arith.constant 0 : i32
    %c0_i32_1 = arith.constant 0 : i32
    return %c0_i32, %c0_i32_0 : i32, i32
  }
  func.func @transform_17(%arg0: i32) -> (i32, i32, i32) {
    %c0_i32 = arith.constant 0 : i32
    %c0_i32_0 = arith.constant 0 : i32
    %c0_i32_1 = arith.constant 0 : i32
    return %arg0, %c0_i32, %c0_i32_0 : i32, i32, i32
  }
}

</mosaic_0001>

<llo_original>
// kernel: style_encoder_forward.1
$region0: #{style_encoder_forward.1}
  #allocation0 [shape = 'u32[]', space=smem, size = 0x4, offset = 0x4, fixed_abs, tag = 'smem constant byte address 0x4 - core index']
  #allocation1 [shape = 'u32[144,128]{1,0:T(1,128)}', space=vmem, size = 0x12000, scoped, tag = 'internal scratch']
  #allocation2 [shape = 'f32[16,16,144]{2,1,0:T(8,128)}', space=vmem, size = 0x40000, scoped, tag = 'scratch operand']
  #allocation3 [shape = 'f32[1,512]{1,0:T(1,128)}', space=vmem, size = 0x800, scoped, tag = 'scratch operand']
  %s0 = inlined_call_operand.vmem [shape: f32[2,16,16,4], index: 0, kind: input, shape index: {}]
  %s1 = inlined_call_operand.vmem [shape: bf16[36,8], index: 1, kind: input, shape index: {}]
  %s2 = inlined_call_operand.vmem [shape: f32[1,8], index: 2, kind: input, shape index: {}]
  %s3 = inlined_call_operand.vmem [shape: bf16[72,8], index: 3, kind: input, shape index: {}]
  %s4 = inlined_call_operand.vmem [shape: f32[1,8], index: 4, kind: input, shape index: {}]
  %s5 = inlined_call_operand.vmem [shape: bf16[72,16], index: 5, kind: input, shape index: {}]
  %s6 = inlined_call_operand.vmem [shape: f32[1,16], index: 6, kind: input, shape index: {}]
  %s7 = inlined_call_operand.vmem [shape: bf16[8,16], index: 7, kind: input, shape index: {}]
  %s8 = inlined_call_operand.vmem [shape: bf16[144,16], index: 8, kind: input, shape index: {}]
  %s9 = inlined_call_operand.vmem [shape: f32[1,16], index: 9, kind: input, shape index: {}]
  %s10 = inlined_call_operand.vmem [shape: bf16[144,32], index: 10, kind: input, shape index: {}]
  %s11 = inlined_call_operand.vmem [shape: f32[1,32], index: 11, kind: input, shape index: {}]
  %s12 = inlined_call_operand.vmem [shape: bf16[16,32], index: 12, kind: input, shape index: {}]
  %s13 = inlined_call_operand.vmem [shape: bf16[512,32], index: 13, kind: input, shape index: {}]
  %s14 = inlined_call_operand.vmem [shape: f32[1,32], index: 14, kind: input, shape index: {}]
  %s15 = inlined_call_operand.vmem [shape: bf16[32,16], index: 15, kind: input, shape index: {}]
  %s16 = inlined_call_operand.vmem [shape: f32[1,16], index: 16, kind: input, shape index: {}]
  %s17 = inlined_call_operand.hbm [shape: f32[2,1,16], index: 17, kind: output, shape index: {}]
  %s18 = sld [smem:[#allocation0]]
  $region101: #{style_encoder_forward.1} parent=0
    _
  %s20 = ssub.s32 1, %s18
  %s21 = scalar_select 0, %s20, %s18
  $region1: #{style_encoder_forward.1} parent=0
    #allocation4 [shape = 'u8[1024]{0}', space=vmem, size = 0x400, scoped, tag = 'output window, operand 0']
    #allocation5 [shape = 's32[2]{0}', space=sflag, size = 0x8, scoped, tag = 'scoped memory for style_encoder_forward.1']
    %22 = vsyncpa [#allocation5], 0
    %s23 = scalar_lea.sflag [#allocation5], 1
    %24 = vsyncpa %s23, 0
    loop: start=0, step=1, limit=4
    $region2: #{style_encoder_forward.1} parent=1 // loop_pre_header
      _
    $region3: #{style_encoder_forward.1} parent=1 // loop_header
      %s26 = sphi 0, %s30
      %p27 = scmp.ge.s32.totalorder %s26, 4
      %s36 = sphi 0, %s38
      %s39 = sphi 0, %s36
      %s40 = sphi 0, %s39
      %s56 = sphi 0, %s40
      %s60 = sphi 0, %s60
      %s62 = sphi 0, %s60
      %s63 = sphi 0, %s62
      %s77 = sphi 0, %s63
      %s81 = sphi 0, %s81
      %s83 = sphi 0, %s81
      %s84 = sphi 0, %s83
      %s98 = sphi 0, %s84
      %s102 = sphi 0, %s102
      %s104 = sphi 0, %s102
      %s105 = sphi 0, %s104
      %s119 = sphi 0, %s105
      %s123 = sphi 0, %s123
      %s125 = sphi 0, %s123
      %s126 = sphi 0, %s125
      %s140 = sphi 0, %s126
      %s144 = sphi 0, %s144
      %s146 = sphi 0, %s144
      %s147 = sphi 0, %s146
      %s161 = sphi 0, %s147
      %s165 = sphi 0, %s165
      %s167 = sphi 0, %s165
      %s168 = sphi 0, %s167
      %s182 = sphi 0, %s168
      %s186 = sphi 0, %s186
      %s188 = sphi 0, %s186
      %s189 = sphi 0, %s188
      %s203 = sphi 0, %s189
      %s207 = sphi 0, %s207
      %s209 = sphi 0, %s207
      %s210 = sphi 0, %s209
      %s224 = sphi 0, %s210
      %s228 = sphi 0, %s228
      %s230 = sphi 0, %s228
      %s231 = sphi 0, %s230
      %s245 = sphi 0, %s231
      %s249 = sphi 0, %s249
      %s251 = sphi 0, %s249
      %s252 = sphi 0, %s251
      %s266 = sphi 0, %s252
      %s270 = sphi 0, %s270
      %s272 = sphi 0, %s270
      %s273 = sphi 0, %s272
      %s287 = sphi 0, %s273
      %s291 = sphi 0, %s291
      %s293 = sphi 0, %s291
      %s294 = sphi 0, %s293
      %s308 = sphi 0, %s294
      %s312 = sphi 0, %s312
      %s314 = sphi 0, %s312
      %s315 = sphi 0, %s314
      %s329 = sphi 0, %s315
      %s333 = sphi 0, %s333
      %s335 = sphi 0, %s333
      %s336 = sphi 0, %s335
      %s350 = sphi 0, %s336
      %s354 = sphi 0, %s354
      %s356 = sphi 0, %s354
      %s357 = sphi 0, %s356
      %s371 = sphi 0, %s357
      %s375 = sphi 0, %s375
      %s377 = sphi 0, %s375
      %s378 = sphi 0, %s377
      %s392 = sphi 0, %s378
      %s398 = sphi 0, %s400
      %s401 = sphi 0, %s398
      %s402 = sphi 0, %s401
      %s418 = sphi 0, %s402
    $region4: #{style_encoder_forward.1} parent=1 // loop_header_branch
      %29 = sbr.rel (%p27) target = $region8
    $region5: #{style_encoder_forward.1} parent=1 // loop_body
      %s31 = ssub.s32 %s26, 1
      %s32 = ssub.s32 %s26, 2
      %s33 = sadd.s32 %s26, 1
      %s34 = ssub.s32 %s26, %s33
      %p35 = scmp.eq.s32.totalorder %s34, 0
      %s37 = sadd.s32 %s36, 1
      %s38 = scalar_select %p35, %s36, %s37
      %p41 = pneg %p35
      %p42 = scmp.eq.s32.totalorder %s26, 1
      %p43 = por %p41, %p42
      %p44 = scmp.ne.s32.totalorder %s36, %s39
      %p45 = scmp.eq.s32.totalorder %s26, 0
      %p46 = por %p44, %p45
      %p47 = scmp.ne.s32.totalorder %s36, %s39
      %p48 = scmp.eq.s32.totalorder %s31, 1
      %p49 = por %p47, %p48
      %p50 = scmp.ne.s32.totalorder %s39, %s40
      %p51 = scmp.eq.s32.totalorder %s31, 0
      %p52 = por %p50, %p51
      %p53 = scmp.ne.s32.totalorder %s39, %s40
      %p54 = scmp.eq.s32.totalorder %s32, 1
      %p55 = por %p53, %p54
      %p57 = scmp.ne.s32.totalorder %s40, %s56
      %p58 = scmp.eq.s32.totalorder %s32, 0
      %p59 = por %p57, %p58
      %s61 = sadd.s32 %s60, 1
      %p64 = scmp.eq.s32.totalorder %s26, 1
      %p65 = scmp.ne.s32.totalorder %s60, %s62
      %p66 = scmp.eq.s32.totalorder %s26, 0
      %p67 = por %p65, %p66
      %p68 = scmp.ne.s32.totalorder %s60, %s62
      %p69 = scmp.eq.s32.totalorder %s31, 1
      %p70 = por %p68, %p69
      %p71 = scmp.ne.s32.totalorder %s62, %s63
      %p72 = scmp.eq.s32.totalorder %s31, 0
      %p73 = por %p71, %p72
      %p74 = scmp.ne.s32.totalorder %s62, %s63
      %p75 = scmp.eq.s32.totalorder %s32, 1
      %p76 = por %p74, %p75
      %p78 = scmp.ne.s32.totalorder %s63, %s77
      %p79 = scmp.eq.s32.totalorder %s32, 0
      %p80 = por %p78, %p79
      %s82 = sadd.s32 %s81, 1
      %p85 = scmp.eq.s32.totalorder %s26, 1
      %p86 = scmp.ne.s32.totalorder %s81, %s83
      %p87 = scmp.eq.s32.totalorder %s26, 0
      %p88 = por %p86, %p87
      %p89 = scmp.ne.s32.totalorder %s81, %s83
      %p90 = scmp.eq.s32.totalorder %s31, 1
      %p91 = por %p89, %p90
      %p92 = scmp.ne.s32.totalorder %s83, %s84
      %p93 = scmp.eq.s32.totalorder %s31, 0
      %p94 = por %p92, %p93
      %p95 = scmp.ne.s32.totalorder %s83, %s84
      %p96 = scmp.eq.s32.totalorder %s32, 1
      %p97 = por %p95, %p96
      %p99 = scmp.ne.s32.totalorder %s84, %s98
      %p100 = scmp.eq.s32.totalorder %s32, 0
      %p101 = por %p99, %p100
      %s103 = sadd.s32 %s102, 1
      %p106 = scmp.eq.s32.totalorder %s26, 1
      %p107 = scmp.ne.s32.totalorder %s102, %s104
      %p108 = scmp.eq.s32.totalorder %s26, 0
      %p109 = por %p107, %p108
      %p110 = scmp.ne.s32.totalorder %s102, %s104
      %p111 = scmp.eq.s32.totalorder %s31, 1
      %p112 = por %p110, %p111
      %p113 = scmp.ne.s32.totalorder %s104, %s105
      %p114 = scmp.eq.s32.totalorder %s31, 0
      %p115 = por %p113, %p114
      %p116 = scmp.ne.s32.totalorder %s104, %s105
      %p117 = scmp.eq.s32.totalorder %s32, 1
      %p118 = por %p116, %p117
      %p120 = scmp.ne.s32.totalorder %s105, %s119
      %p121 = scmp.eq.s32.totalorder %s32, 0
      %p122 = por %p120, %p121
      %s124 = sadd.s32 %s123, 1
      %p127 = scmp.eq.s32.totalorder %s26, 1
      %p128 = scmp.ne.s32.totalorder %s123, %s125
      %p129 = scmp.eq.s32.totalorder %s26, 0
      %p130 = por %p128, %p129
      %p131 = scmp.ne.s32.totalorder %s123, %s125
      %p132 = scmp.eq.s32.totalorder %s31, 1
      %p133 = por %p131, %p132
      %p134 = scmp.ne.s32.totalorder %s125, %s126
      %p135 = scmp.eq.s32.totalorder %s31, 0
      %p136 = por %p134, %p135
      %p137 = scmp.ne.s32.totalorder %s125, %s126
      %p138 = scmp.eq.s32.totalorder %s32, 1
      %p139 = por %p137, %p138
      %p141 = scmp.ne.s32.totalorder %s126, %s140
      %p142 = scmp.eq.s32.totalorder %s32, 0
      %p143 = por %p141, %p142
      %s145 = sadd.s32 %s144, 1
      %p148 = scmp.eq.s32.totalorder %s26, 1
      %p149 = scmp.ne.s32.totalorder %s144, %s146
      %p150 = scmp.eq.s32.totalorder %s26, 0
      %p151 = por %p149, %p150
      %p152 = scmp.ne.s32.totalorder %s144, %s146
      %p153 = scmp.eq.s32.totalorder %s31, 1
      %p154 = por %p152, %p153
      %p155 = scmp.ne.s32.totalorder %s146, %s147
      %p156 = scmp.eq.s32.totalorder %s31, 0
      %p157 = por %p155, %p156
      %p158 = scmp.ne.s32.totalorder %s146, %s147
      %p159 = scmp.eq.s32.totalorder %s32, 1
      %p160 = por %p158, %p159
      %p162 = scmp.ne.s32.totalorder %s147, %s161
      %p163 = scmp.eq.s32.totalorder %s32, 0
      %p164 = por %p162, %p163
      %s166 = sadd.s32 %s165, 1
      %p169 = scmp.eq.s32.totalorder %s26, 1
      %p170 = scmp.ne.s32.totalorder %s165, %s167
      %p171 = scmp.eq.s32.totalorder %s26, 0
      %p172 = por %p170, %p171
      %p173 = scmp.ne.s32.totalorder %s165, %s167
      %p174 = scmp.eq.s32.totalorder %s31, 1
      %p175 = por %p173, %p174
      %p176 = scmp.ne.s32.totalorder %s167, %s168
      %p177 = scmp.eq.s32.totalorder %s31, 0
      %p178 = por %p176, %p177
      %p179 = scmp.ne.s32.totalorder %s167, %s168
      %p180 = scmp.eq.s32.totalorder %s32, 1
      %p181 = por %p179, %p180
      %p183 = scmp.ne.s32.totalorder %s168, %s182
      %p184 = scmp.eq.s32.totalorder %s32, 0
      %p185 = por %p183, %p184
      %s187 = sadd.s32 %s186, 1
      %p190 = scmp.eq.s32.totalorder %s26, 1
      %p191 = scmp.ne.s32.totalorder %s186, %s188
      %p192 = scmp.eq.s32.totalorder %s26, 0
      %p193 = por %p191, %p192
      %p194 = scmp.ne.s32.totalorder %s186, %s188
      %p195 = scmp.eq.s32.totalorder %s31, 1
      %p196 = por %p194, %p195
      %p197 = scmp.ne.s32.totalorder %s188, %s189
      %p198 = scmp.eq.s32.totalorder %s31, 0
      %p199 = por %p197, %p198
      %p200 = scmp.ne.s32.totalorder %s188, %s189
      %p201 = scmp.eq.s32.totalorder %s32, 1
      %p202 = por %p200, %p201
      %p204 = scmp.ne.s32.totalorder %s189, %s203
      %p205 = scmp.eq.s32.totalorder %s32, 0
      %p206 = por %p204, %p205
      %s208 = sadd.s32 %s207, 1
      %p211 = scmp.eq.s32.totalorder %s26, 1
      %p212 = scmp.ne.s32.totalorder %s207, %s209
      %p213 = scmp.eq.s32.totalorder %s26, 0
      %p214 = por %p212, %p213
      %p215 = scmp.ne.s32.totalorder %s207, %s209
      %p216 = scmp.eq.s32.totalorder %s31, 1
      %p217 = por %p215, %p216
      %p218 = scmp.ne.s32.totalorder %s209, %s210
      %p219 = scmp.eq.s32.totalorder %s31, 0
      %p220 = por %p218, %p219
      %p221 = scmp.ne.s32.totalorder %s209, %s210
      %p222 = scmp.eq.s32.totalorder %s32, 1
      %p223 = por %p221, %p222
      %p225 = scmp.ne.s32.totalorder %s210, %s224
      %p226 = scmp.eq.s32.totalorder %s32, 0
      %p227 = por %p225, %p226
      %s229 = sadd.s32 %s228, 1
      %p232 = scmp.eq.s32.totalorder %s26, 1
      %p233 = scmp.ne.s32.totalorder %s228, %s230
      %p234 = scmp.eq.s32.totalorder %s26, 0
      %p235 = por %p233, %p234
      %p236 = scmp.ne.s32.totalorder %s228, %s230
      %p237 = scmp.eq.s32.totalorder %s31, 1
      %p238 = por %p236, %p237
      %p239 = scmp.ne.s32.totalorder %s230, %s231
      %p240 = scmp.eq.s32.totalorder %s31, 0
      %p241 = por %p239, %p240
      %p242 = scmp.ne.s32.totalorder %s230, %s231
      %p243 = scmp.eq.s32.totalorder %s32, 1
      %p244 = por %p242, %p243
      %p246 = scmp.ne.s32.totalorder %s231, %s245
      %p247 = scmp.eq.s32.totalorder %s32, 0
      %p248 = por %p246, %p247
      %s250 = sadd.s32 %s249, 1
      %p253 = scmp.eq.s32.totalorder %s26, 1
      %p254 = scmp.ne.s32.totalorder %s249, %s251
      %p255 = scmp.eq.s32.totalorder %s26, 0
      %p256 = por %p254, %p255
      %p257 = scmp.ne.s32.totalorder %s249, %s251
      %p258 = scmp.eq.s32.totalorder %s31, 1
      %p259 = por %p257, %p258
      %p260 = scmp.ne.s32.totalorder %s251, %s252
      %p261 = scmp.eq.s32.totalorder %s31, 0
      %p262 = por %p260, %p261
      %p263 = scmp.ne.s32.totalorder %s251, %s252
      %p264 = scmp.eq.s32.totalorder %s32, 1
      %p265 = por %p263, %p264
      %p267 = scmp.ne.s32.totalorder %s252, %s266
      %p268 = scmp.eq.s32.totalorder %s32, 0
      %p269 = por %p267, %p268
      %s271 = sadd.s32 %s270, 1
      %p274 = scmp.eq.s32.totalorder %s26, 1
      %p275 = scmp.ne.s32.totalorder %s270, %s272
      %p276 = scmp.eq.s32.totalorder %s26, 0
      %p277 = por %p275, %p276
      %p278 = scmp.ne.s32.totalorder %s270, %s272
      %p279 = scmp.eq.s32.totalorder %s31, 1
      %p280 = por %p278, %p279
      %p281 = scmp.ne.s32.totalorder %s272, %s273
      %p282 = scmp.eq.s32.totalorder %s31, 0
      %p283 = por %p281, %p282
      %p284 = scmp.ne.s32.totalorder %s272, %s273
      %p285 = scmp.eq.s32.totalorder %s32, 1
      %p286 = por %p284, %p285
      %p288 = scmp.ne.s32.totalorder %s273, %s287
      %p289 = scmp.eq.s32.totalorder %s32, 0
      %p290 = por %p288, %p289
      %s292 = sadd.s32 %s291, 1
      %p295 = scmp.eq.s32.totalorder %s26, 1
      %p296 = scmp.ne.s32.totalorder %s291, %s293
      %p297 = scmp.eq.s32.totalorder %s26, 0
      %p298 = por %p296, %p297
      %p299 = scmp.ne.s32.totalorder %s291, %s293
      %p300 = scmp.eq.s32.totalorder %s31, 1
      %p301 = por %p299, %p300
      %p302 = scmp.ne.s32.totalorder %s293, %s294
      %p303 = scmp.eq.s32.totalorder %s31, 0
      %p304 = por %p302, %p303
      %p305 = scmp.ne.s32.totalorder %s293, %s294
      %p306 = scmp.eq.s32.totalorder %s32, 1
      %p307 = por %p305, %p306
      %p309 = scmp.ne.s32.totalorder %s294, %s308
      %p310 = scmp.eq.s32.totalorder %s32, 0
      %p311 = por %p309, %p310
      %s313 = sadd.s32 %s312, 1
      %p316 = scmp.eq.s32.totalorder %s26, 1
      %p317 = scmp.ne.s32.totalorder %s312, %s314
      %p318 = scmp.eq.s32.totalorder %s26, 0
      %p319 = por %p317, %p318
      %p320 = scmp.ne.s32.totalorder %s312, %s314
      %p321 = scmp.eq.s32.totalorder %s31, 1
      %p322 = por %p320, %p321
      %p323 = scmp.ne.s32.totalorder %s314, %s315
      %p324 = scmp.eq.s32.totalorder %s31, 0
      %p325 = por %p323, %p324
      %p326 = scmp.ne.s32.totalorder %s314, %s315
      %p327 = scmp.eq.s32.totalorder %s32, 1
      %p328 = por %p326, %p327
      %p330 = scmp.ne.s32.totalorder %s315, %s329
      %p331 = scmp.eq.s32.totalorder %s32, 0
      %p332 = por %p330, %p331
      %s334 = sadd.s32 %s333, 1
      %p337 = scmp.eq.s32.totalorder %s26, 1
      %p338 = scmp.ne.s32.totalorder %s333, %s335
      %p339 = scmp.eq.s32.totalorder %s26, 0
      %p340 = por %p338, %p339
      %p341 = scmp.ne.s32.totalorder %s333, %s335
      %p342 = scmp.eq.s32.totalorder %s31, 1
      %p343 = por %p341, %p342
      %p344 = scmp.ne.s32.totalorder %s335, %s336
      %p345 = scmp.eq.s32.totalorder %s31, 0
      %p346 = por %p344, %p345
      %p347 = scmp.ne.s32.totalorder %s335, %s336
      %p348 = scmp.eq.s32.totalorder %s32, 1
      %p349 = por %p347, %p348
      %p351 = scmp.ne.s32.totalorder %s336, %s350
      %p352 = scmp.eq.s32.totalorder %s32, 0
      %p353 = por %p351, %p352
      %s355 = sadd.s32 %s354, 1
      %p358 = scmp.eq.s32.totalorder %s26, 1
      %p359 = scmp.ne.s32.totalorder %s354, %s356
      %p360 = scmp.eq.s32.totalorder %s26, 0
      %p361 = por %p359, %p360
      %p362 = scmp.ne.s32.totalorder %s354, %s356
      %p363 = scmp.eq.s32.totalorder %s31, 1
      %p364 = por %p362, %p363
      %p365 = scmp.ne.s32.totalorder %s356, %s357
      %p366 = scmp.eq.s32.totalorder %s31, 0
      %p367 = por %p365, %p366
      %p368 = scmp.ne.s32.totalorder %s356, %s357
      %p369 = scmp.eq.s32.totalorder %s32, 1
      %p370 = por %p368, %p369
      %p372 = scmp.ne.s32.totalorder %s357, %s371
      %p373 = scmp.eq.s32.totalorder %s32, 0
      %p374 = por %p372, %p373
      %s376 = sadd.s32 %s375, 1
      %p379 = scmp.eq.s32.totalorder %s26, 1
      %p380 = scmp.ne.s32.totalorder %s375, %s377
      %p381 = scmp.eq.s32.totalorder %s26, 0
      %p382 = por %p380, %p381
      %p383 = scmp.ne.s32.totalorder %s375, %s377
      %p384 = scmp.eq.s32.totalorder %s31, 1
      %p385 = por %p383, %p384
      %p386 = scmp.ne.s32.totalorder %s377, %s378
      %p387 = scmp.eq.s32.totalorder %s31, 0
      %p388 = por %p386, %p387
      %p389 = scmp.ne.s32.totalorder %s377, %s378
      %p390 = scmp.eq.s32.totalorder %s32, 1
      %p391 = por %p389, %p390
      %p393 = scmp.ne.s32.totalorder %s378, %s392
      %p394 = scmp.eq.s32.totalorder %s32, 0
      %p395 = por %p393, %p394
      %s396 = ssub.s32 %s26, %s33
      %p397 = scmp.eq.s32.totalorder %s396, 0
      %s399 = sadd.s32 %s398, 1
      %s400 = scalar_select %p397, %s398, %s399
      %p403 = pneg %p397
      %p404 = scmp.eq.s32.totalorder %s26, 1
      %p405 = por %p403, %p404
      %p406 = scmp.ne.s32.totalorder %s398, %s401
      %p407 = scmp.eq.s32.totalorder %s26, 0
      %p408 = por %p406, %p407
      %p409 = scmp.ne.s32.totalorder %s398, %s401
      %p410 = scmp.eq.s32.totalorder %s31, 1
      %p411 = por %p409, %p410
      %p412 = scmp.ne.s32.totalorder %s401, %s402
      %p413 = scmp.eq.s32.totalorder %s31, 0
      %p414 = por %p412, %p413
      %p415 = scmp.ne.s32.totalorder %s401, %s402
      %p416 = scmp.eq.s32.totalorder %s32, 1
      %p417 = por %p415, %p416
      %p419 = scmp.ne.s32.totalorder %s402, %s418
      %p420 = scmp.eq.s32.totalorder %s32, 0
      %p421 = por %p419, %p420
      %p422 = scmp.le.s32.totalorder 1, %s26
      %p423 = scmp.lt.s32.totalorder %s26, 3
      %p424 = pnand %p422, %p423
      %p425 = pneg %p424
      // Predicated region
      $region9: #{style_encoder_forward.1} parent=5 // pred_check
        _
      $region10: #{style_encoder_forward.1} parent=5 // pred_check_branch
        %427 = sbr.rel (%p424) target = $region12
      $region11: #{style_encoder_forward.1} parent=5 // pred_region
        %s428 = ssub.s32 %s26, 1
        // Predicated region
        $region13: #{style_encoder_forward.1} parent=11 // pred_check
          %p429 = pneg %p73
        $region14: #{style_encoder_forward.1} parent=11 // pred_check_branch
          %431 = sbr.rel (%p429) target = $region16
        $region15: #{style_encoder_forward.1} parent=11 // pred_region
          _
        $region16: #{style_encoder_forward.1} parent=11 // pred_fallthru
          _
        // Predicated region
        $region17: #{style_encoder_forward.1} parent=11 // pred_check
          %p432 = pneg %p94
        $region18: #{style_encoder_forward.1} parent=11 // pred_check_branch
          %434 = sbr.rel (%p432) target = $region20
        $region19: #{style_encoder_forward.1} parent=11 // pred_region
          _
        $region20: #{style_encoder_forward.1} parent=11 // pred_fallthru
          _
        // Predicated region
        $region21: #{style_encoder_forward.1} parent=11 // pred_check
          %p435 = pneg %p115
        $region22: #{style_encoder_forward.1} parent=11 // pred_check_branch
          %437 = sbr.rel (%p435) target = $region24
        $region23: #{style_encoder_forward.1} parent=11 // pred_region
          _
        $region24: #{style_encoder_forward.1} parent=11 // pred_fallthru
          _
        // Predicated region
        $region25: #{style_encoder_forward.1} parent=11 // pred_check
          %p438 = pneg %p136
        $region26: #{style_encoder_forward.1} parent=11 // pred_check_branch
          %440 = sbr.rel (%p438) target = $region28
        $region27: #{style_encoder_forward.1} parent=11 // pred_region
          _
        $region28: #{style_encoder_forward.1} parent=11 // pred_fallthru
          _
        // Predicated region
        $region29: #{style_encoder_forward.1} parent=11 // pred_check
          %p441 = pneg %p157
        $region30: #{style_encoder_forward.1} parent=11 // pred_check_branch
          %443 = sbr.rel (%p441) target = $region32
        $region31: #{style_encoder_forward.1} parent=11 // pred_region
          _
        $region32: #{style_encoder_forward.1} parent=11 // pred_fallthru
          _
        // Predicated region
        $region33: #{style_encoder_forward.1} parent=11 // pred_check
          %p444 = pneg %p178
        $region34: #{style_encoder_forward.1} parent=11 // pred_check_branch
          %446 = sbr.rel (%p444) target = $region36
        $region35: #{style_encoder_forward.1} parent=11 // pred_region
          _
        $region36: #{style_encoder_forward.1} parent=11 // pred_fallthru
          _
        // Predicated region
        $region37: #{style_encoder_forward.1} parent=11 // pred_check
          %p447 = pneg %p199
        $region38: #{style_encoder_forward.1} parent=11 // pred_check_branch
          %449 = sbr.rel (%p447) target = $region40
        $region39: #{style_encoder_forward.1} parent=11 // pred_region
          _
        $region40: #{style_encoder_forward.1} parent=11 // pred_fallthru
          _
        // Predicated region
        $region41: #{style_encoder_forward.1} parent=11 // pred_check
          %p450 = pneg %p220
        $region42: #{style_encoder_forward.1} parent=11 // pred_check_branch
          %452 = sbr.rel (%p450) target = $region44
        $region43: #{style_encoder_forward.1} parent=11 // pred_region
          _
        $region44: #{style_encoder_forward.1} parent=11 // pred_fallthru
          _
        // Predicated region
        $region45: #{style_encoder_forward.1} parent=11 // pred_check
          %p453 = pneg %p241
        $region46: #{style_encoder_forward.1} parent=11 // pred_check_branch
          %455 = sbr.rel (%p453) target = $region48
        $region47: #{style_encoder_forward.1} parent=11 // pred_region
          _
        $region48: #{style_encoder_forward.1} parent=11 // pred_fallthru
          _
        // Predicated region
        $region49: #{style_encoder_forward.1} parent=11 // pred_check
          %p456 = pneg %p262
        $region50: #{style_encoder_forward.1} parent=11 // pred_check_branch
          %458 = sbr.rel (%p456) target = $region52
        $region51: #{style_encoder_forward.1} parent=11 // pred_region
          _
        $region52: #{style_encoder_forward.1} parent=11 // pred_fallthru
          _
        // Predicated region
        $region53: #{style_encoder_forward.1} parent=11 // pred_check
          %p459 = pneg %p283
        $region54: #{style_encoder_forward.1} parent=11 // pred_check_branch
          %461 = sbr.rel (%p459) target = $region56
        $region55: #{style_encoder_forward.1} parent=11 // pred_region
          _
        $region56: #{style_encoder_forward.1} parent=11 // pred_fallthru
          _
        // Predicated region
        $region57: #{style_encoder_forward.1} parent=11 // pred_check
          %p462 = pneg %p304
        $region58: #{style_encoder_forward.1} parent=11 // pred_check_branch
          %464 = sbr.rel (%p462) target = $region60
        $region59: #{style_encoder_forward.1} parent=11 // pred_region
          _
        $region60: #{style_encoder_forward.1} parent=11 // pred_fallthru
          _
        // Predicated region
        $region61: #{style_encoder_forward.1} parent=11 // pred_check
          %p465 = pneg %p325
        $region62: #{style_encoder_forward.1} parent=11 // pred_check_branch
          %467 = sbr.rel (%p465) target = $region64
        $region63: #{style_encoder_forward.1} parent=11 // pred_region
          _
        $region64: #{style_encoder_forward.1} parent=11 // pred_fallthru
          _
        // Predicated region
        $region65: #{style_encoder_forward.1} parent=11 // pred_check
          %p468 = pneg %p346
        $region66: #{style_encoder_forward.1} parent=11 // pred_check_branch
          %470 = sbr.rel (%p468) target = $region68
        $region67: #{style_encoder_forward.1} parent=11 // pred_region
          _
        $region68: #{style_encoder_forward.1} parent=11 // pred_fallthru
          _
        // Predicated region
        $region69: #{style_encoder_forward.1} parent=11 // pred_check
          %p471 = pneg %p367
        $region70: #{style_encoder_forward.1} parent=11 // pred_check_branch
          %473 = sbr.rel (%p471) target = $region72
        $region71: #{style_encoder_forward.1} parent=11 // pred_region
          _
        $region72: #{style_encoder_forward.1} parent=11 // pred_fallthru
          _
        // Predicated region
        $region73: #{style_encoder_forward.1} parent=11 // pred_check
          %p474 = pneg %p388
        $region74: #{style_encoder_forward.1} parent=11 // pred_check_branch
          %476 = sbr.rel (%p474) target = $region76
        $region75: #{style_encoder_forward.1} parent=11 // pred_region
          _
        $region76: #{style_encoder_forward.1} parent=11 // pred_fallthru
          _
      $region12: #{style_encoder_forward.1} parent=5 // pred_fallthru
        _
      %p477 = scmp.lt.s32.totalorder %s26, 2
      // Predicated region
      $region77: #{style_encoder_forward.1} parent=5 // pred_check
        %p478 = pneg %p477
      $region78: #{style_encoder_forward.1} parent=5 // pred_check_branch
        %480 = sbr.rel (%p478) target = $region80
      $region79: #{style_encoder_forward.1} parent=5 // pred_region
        // Predicated region
        $region81: #{style_encoder_forward.1} parent=79 // pred_check
          %p481 = pneg %p46
        $region82: #{style_encoder_forward.1} parent=79 // pred_check_branch
          %483 = sbr.rel (%p481) target = $region84
        $region83: #{style_encoder_forward.1} parent=79 // pred_region
          %p484 = scmp.lt.s32.totalorder %s26, 1
          %s485 = scalar_select %p484, %s26, 1
          %s486 = smul.addr %s485, 32
          %s487 = smul.addr %s486, 8
          %s488 = scalar_lea.vmem %s0, %s487
        $region84: #{style_encoder_forward.1} parent=79 // pred_fallthru
          _
      $region80: #{style_encoder_forward.1} parent=5 // pred_fallthru
        _
      %p489 = scmp.le.s32.totalorder 1, %s26
      %p490 = scmp.lt.s32.totalorder %s26, 3
      %p491 = pnand %p489, %p490
      %p492 = pneg %p491
      // Predicated region
      $region85: #{style_encoder_forward.1} parent=5 // pred_check
        _
      $region86: #{style_encoder_forward.1} parent=5 // pred_check_branch
        %494 = sbr.rel (%p491) target = $region88
      $region87: #{style_encoder_forward.1} parent=5 // pred_region
        %s495 = ssub.s32 %s26, 1
        %p496 = scmp.lt.s32.totalorder %s31, 1
        %s497 = scalar_select %p496, %s31, 1
        %s498 = smul.addr %s497, 32
        %s499 = smul.addr %s498, 8
        %s500 = scalar_lea.vmem %s0, %s499
        %p501 = pneg %p52
        %p502 = pneg %p49
        %p503 = pneg %p73
        %p504 = pneg %p70
        %p505 = pneg %p94
        %p506 = pneg %p91
        %p507 = pneg %p115
        %p508 = pneg %p112
        %p509 = pneg %p136
        %p510 = pneg %p133
        %p511 = pneg %p157
        %p512 = pneg %p154
        %p513 = pneg %p178
        %p514 = pneg %p175
        %p515 = pneg %p199
        %p516 = pneg %p196
        %p517 = pneg %p220
        %p518 = pneg %p217
        %p519 = pneg %p241
        %p520 = pneg %p238
        %p521 = pneg %p262
        %p522 = pneg %p259
        %p523 = pneg %p283
        %p524 = pneg %p280
        %p525 = pneg %p304
        %p526 = pneg %p301
        %p527 = pneg %p325
        %p528 = pneg %p322
        %p529 = pneg %p346
        %p530 = pneg %p343
        %p531 = pneg %p367
        %p532 = pneg %p364
        %p533 = pneg %p388
        %p534 = pneg %p385
        %p535 = pneg %p414
        %p536 = pneg %p411
        %s537 = sand.u32 %s401, 1
        %s538 = scalar_lea.sflag [#allocation5], %s537
        %s539 = sand.u32 %s401, 1
        %s540 = scalar_lea.vmem [#allocation4], %s539
        %p541 = scmp.lt.s32.totalorder %s31, 1
        %s542 = scalar_select %p541, %s31, 1
        %s543 = smul.addr %s542, 32
        %s544 = smul.addr %s543, 8
        %s545 = scalar_lea.vmem %s0, %s544
        %v547 = vld [vmem:[%s545] sm:$0xff]
        %v548 = vld [vmem:[%s545 + $0x8] sm:$0xff]
        %v549 = vld [vmem:[%s545 + $0x10] sm:$0xff]
        %v550 = vld [vmem:[%s545 + $0x18] sm:$0xff]
        %v551 = vld [vmem:[%s545 + $0x20] sm:$0xff]
        %v552 = vld [vmem:[%s545 + $0x28] sm:$0xff]
        %v553 = vld [vmem:[%s545 + $0x30] sm:$0xff]
        %v554 = vld [vmem:[%s545 + $0x38] sm:$0xff]
        %v555 = vld [vmem:[%s545 + $0x40] sm:$0xff]
        %v556 = vld [vmem:[%s545 + $0x48] sm:$0xff]
        %v557 = vld [vmem:[%s545 + $0x50] sm:$0xff]
        %v558 = vld [vmem:[%s545 + $0x58] sm:$0xff]
        %v559 = vld [vmem:[%s545 + $0x60] sm:$0xff]
        %v560 = vld [vmem:[%s545 + $0x68] sm:$0xff]
        %v561 = vld [vmem:[%s545 + $0x70] sm:$0xff]
        %v562 = vld [vmem:[%s545 + $0x78] sm:$0xff]
        %v563 = vld [vmem:[%s545 + $0x80] sm:$0xff]
        %v564 = vld [vmem:[%s545 + $0x88] sm:$0xff]
        %v565 = vld [vmem:[%s545 + $0x90] sm:$0xff]
        %v566 = vld [vmem:[%s545 + $0x98] sm:$0xff]
        %v567 = vld [vmem:[%s545 + $0xa0] sm:$0xff]
        %v568 = vld [vmem:[%s545 + $0xa8] sm:$0xff]
        %v569 = vld [vmem:[%s545 + $0xb0] sm:$0xff]
        %v570 = vld [vmem:[%s545 + $0xb8] sm:$0xff]
        %v571 = vld [vmem:[%s545 + $0xc0] sm:$0xff]
        %v572 = vld [vmem:[%s545 + $0xc8] sm:$0xff]
        %v573 = vld [vmem:[%s545 + $0xd0] sm:$0xff]
        %v574 = vld [vmem:[%s545 + $0xd8] sm:$0xff]
        %v575 = vld [vmem:[%s545 + $0xe0] sm:$0xff]
        %v576 = vld [vmem:[%s545 + $0xe8] sm:$0xff]
        %v577 = vld [vmem:[%s545 + $0xf0] sm:$0xff]
        %v578 = vld [vmem:[%s545 + $0xf8] sm:$0xff]
        %v579 = vld [vmem:[%s1] sm:$0xf]
        %v580 = vld [vmem:[%s1 + $0x4] sm:$0xf]
        %v581 = vld [vmem:[%s1 + $0x8] sm:$0xf]
        %v582 = vld [vmem:[%s1 + $0xc] sm:$0xf]
        %v583 = vld [vmem:[%s1 + $0x10] sm:$0x3]
        %v584 = vld [vmem:[%s2] sm:$0x1]
        %v585 = vld [vmem:[%s3] sm:$0xf]
        %v586 = vld [vmem:[%s3 + $0x4] sm:$0xf]
        %v587 = vld [vmem:[%s3 + $0x8] sm:$0xf]
        %v588 = vld [vmem:[%s3 + $0xc] sm:$0xf]
        %v589 = vld [vmem:[%s3 + $0x10] sm:$0xf]
        %v590 = vld [vmem:[%s3 + $0x14] sm:$0xf]
        %v591 = vld [vmem:[%s3 + $0x18] sm:$0xf]
        %v592 = vld [vmem:[%s3 + $0x1c] sm:$0xf]
        %v593 = vld [vmem:[%s3 + $0x20] sm:$0xf]
        %v594 = vld [vmem:[%s4] sm:$0x1]
        %v595 = vld [vmem:[%s5] sm:$0xf]
        %v596 = vld [vmem:[%s5 + $0x4] sm:$0xf]
        %v597 = vld [vmem:[%s5 + $0x8] sm:$0xf]
        %v598 = vld [vmem:[%s5 + $0xc] sm:$0xf]
        %v599 = vld [vmem:[%s5 + $0x10] sm:$0xf]
        %v600 = vld [vmem:[%s5 + $0x14] sm:$0xf]
        %v601 = vld [vmem:[%s5 + $0x18] sm:$0xf]
        %v602 = vld [vmem:[%s5 + $0x1c] sm:$0xf]
        %v603 = vld [vmem:[%s5 + $0x20] sm:$0xf]
        %v604 = vld [vmem:[%s6] sm:$0x1]
        %v605 = vld [vmem:[%s7] sm:$0xf]
        %v606 = vld [vmem:[%s8] sm:$0xf]
        %v607 = vld [vmem:[%s8 + $0x4] sm:$0xf]
        %v608 = vld [vmem:[%s8 + $0x8] sm:$0xf]
        %v609 = vld [vmem:[%s8 + $0xc] sm:$0xf]
        %v610 = vld [vmem:[%s8 + $0x10] sm:$0xf]
        %v611 = vld [vmem:[%s8 + $0x14] sm:$0xf]
        %v612 = vld [vmem:[%s8 + $0x18] sm:$0xf]
        %v613 = vld [vmem:[%s8 + $0x1c] sm:$0xf]
        %v614 = vld [vmem:[%s8 + $0x20] sm:$0xf]
        %v615 = vld [vmem:[%s8 + $0x24] sm:$0xf]
        %v616 = vld [vmem:[%s8 + $0x28] sm:$0xf]
        %v617 = vld [vmem:[%s8 + $0x2c] sm:$0xf]
        %v618 = vld [vmem:[%s8 + $0x30] sm:$0xf]
        %v619 = vld [vmem:[%s8 + $0x34] sm:$0xf]
        %v620 = vld [vmem:[%s8 + $0x38] sm:$0xf]
        %v621 = vld [vmem:[%s8 + $0x3c] sm:$0xf]
        %v622 = vld [vmem:[%s8 + $0x40] sm:$0xf]
        %v623 = vld [vmem:[%s8 + $0x44] sm:$0xf]
        %v624 = vld [vmem:[%s9] sm:$0x1]
        %v625 = vld [vmem:[%s10] sm:$0xf]
        %v626 = vld [vmem:[%s10 + $0x4] sm:$0xf]
        %v627 = vld [vmem:[%s10 + $0x8] sm:$0xf]
        %v628 = vld [vmem:[%s10 + $0xc] sm:$0xf]
        %v629 = vld [vmem:[%s10 + $0x10] sm:$0xf]
        %v630 = vld [vmem:[%s10 + $0x14] sm:$0xf]
        %v631 = vld [vmem:[%s10 + $0x18] sm:$0xf]
        %v632 = vld [vmem:[%s10 + $0x1c] sm:$0xf]
        %v633 = vld [vmem:[%s10 + $0x20] sm:$0xf]
        %v634 = vld [vmem:[%s10 + $0x24] sm:$0xf]
        %v635 = vld [vmem:[%s10 + $0x28] sm:$0xf]
        %v636 = vld [vmem:[%s10 + $0x2c] sm:$0xf]
        %v637 = vld [vmem:[%s10 + $0x30] sm:$0xf]
        %v638 = vld [vmem:[%s10 + $0x34] sm:$0xf]
        %v639 = vld [vmem:[%s10 + $0x38] sm:$0xf]
        %v640 = vld [vmem:[%s10 + $0x3c] sm:$0xf]
        %v641 = vld [vmem:[%s10 + $0x40] sm:$0xf]
        %v642 = vld [vmem:[%s10 + $0x44] sm:$0xf]
        %v643 = vld [vmem:[%s11] sm:$0x1]
        %v644 = vld [vmem:[%s12] sm:$0xf]
        %v645 = vld [vmem:[%s12 + $0x4] sm:$0xf]
        %v646 = vld [vmem:[%s13] sm:$0xf]
        %v647 = vld [vmem:[%s13 + $0x4] sm:$0xf]
        %v648 = vld [vmem:[%s13 + $0x8] sm:$0xf]
        %v649 = vld [vmem:[%s13 + $0xc] sm:$0xf]
        %v650 = vld [vmem:[%s13 + $0x10] sm:$0xf]
        %v651 = vld [vmem:[%s13 + $0x14] sm:$0xf]
        %v652 = vld [vmem:[%s13 + $0x18] sm:$0xf]
        %v653 = vld [vmem:[%s13 + $0x1c] sm:$0xf]
        %v654 = vld [vmem:[%s13 + $0x20] sm:$0xf]
        %v655 = vld [vmem:[%s13 + $0x24] sm:$0xf]
        %v656 = vld [vmem:[%s13 + $0x28] sm:$0xf]
        %v657 = vld [vmem:[%s13 + $0x2c] sm:$0xf]
        %v658 = vld [vmem:[%s13 + $0x30] sm:$0xf]
        %v659 = vld [vmem:[%s13 + $0x34] sm:$0xf]
        %v660 = vld [vmem:[%s13 + $0x38] sm:$0xf]
        %v661 = vld [vmem:[%s13 + $0x3c] sm:$0xf]
        %v662 = vld [vmem:[%s13 + $0x40] sm:$0xf]
        %v663 = vld [vmem:[%s13 + $0x44] sm:$0xf]
        %v664 = vld [vmem:[%s13 + $0x48] sm:$0xf]
        %v665 = vld [vmem:[%s13 + $0x4c] sm:$0xf]
        %v666 = vld [vmem:[%s13 + $0x50] sm:$0xf]
        %v667 = vld [vmem:[%s13 + $0x54] sm:$0xf]
        %v668 = vld [vmem:[%s13 + $0x58] sm:$0xf]
        %v669 = vld [vmem:[%s13 + $0x5c] sm:$0xf]
        %v670 = vld [vmem:[%s13 + $0x60] sm:$0xf]
        %v671 = vld [vmem:[%s13 + $0x64] sm:$0xf]
        %v672 = vld [vmem:[%s13 + $0x68] sm:$0xf]
        %v673 = vld [vmem:[%s13 + $0x6c] sm:$0xf]
        %v674 = vld [vmem:[%s13 + $0x70] sm:$0xf]
        %v675 = vld [vmem:[%s13 + $0x74] sm:$0xf]
        %v676 = vld [vmem:[%s13 + $0x78] sm:$0xf]
        %v677 = vld [vmem:[%s13 + $0x7c] sm:$0xf]
        %v678 = vld [vmem:[%s13 + $0x80] sm:$0xf]
        %v679 = vld [vmem:[%s13 + $0x84] sm:$0xf]
        %v680 = vld [vmem:[%s13 + $0x88] sm:$0xf]
        %v681 = vld [vmem:[%s13 + $0x8c] sm:$0xf]
        %v682 = vld [vmem:[%s13 + $0x90] sm:$0xf]
        %v683 = vld [vmem:[%s13 + $0x94] sm:$0xf]
        %v684 = vld [vmem:[%s13 + $0x98] sm:$0xf]
        %v685 = vld [vmem:[%s13 + $0x9c] sm:$0xf]
        %v686 = vld [vmem:[%s13 + $0xa0] sm:$0xf]
        %v687 = vld [vmem:[%s13 + $0xa4] sm:$0xf]
        %v688 = vld [vmem:[%s13 + $0xa8] sm:$0xf]
        %v689 = vld [vmem:[%s13 + $0xac] sm:$0xf]
        %v690 = vld [vmem:[%s13 + $0xb0] sm:$0xf]
        %v691 = vld [vmem:[%s13 + $0xb4] sm:$0xf]
        %v692 = vld [vmem:[%s13 + $0xb8] sm:$0xf]
        %v693 = vld [vmem:[%s13 + $0xbc] sm:$0xf]
        %v694 = vld [vmem:[%s13 + $0xc0] sm:$0xf]
        %v695 = vld [vmem:[%s13 + $0xc4] sm:$0xf]
        %v696 = vld [vmem:[%s13 + $0xc8] sm:$0xf]
        %v697 = vld [vmem:[%s13 + $0xcc] sm:$0xf]
        %v698 = vld [vmem:[%s13 + $0xd0] sm:$0xf]
        %v699 = vld [vmem:[%s13 + $0xd4] sm:$0xf]
        %v700 = vld [vmem:[%s13 + $0xd8] sm:$0xf]
        %v701 = vld [vmem:[%s13 + $0xdc] sm:$0xf]
        %v702 = vld [vmem:[%s13 + $0xe0] sm:$0xf]
        %v703 = vld [vmem:[%s13 + $0xe4] sm:$0xf]
        %v704 = vld [vmem:[%s13 + $0xe8] sm:$0xf]
        %v705 = vld [vmem:[%s13 + $0xec] sm:$0xf]
        %v706 = vld [vmem:[%s13 + $0xf0] sm:$0xf]
        %v707 = vld [vmem:[%s13 + $0xf4] sm:$0xf]
        %v708 = vld [vmem:[%s13 + $0xf8] sm:$0xf]
        %v709 = vld [vmem:[%s13 + $0xfc] sm:$0xf]
        %v710 = vld [vmem:[%s14] sm:$0x1]
        %v711 = vld [vmem:[%s15] sm:$0xf]
        %v712 = vld [vmem:[%s15 + $0x4] sm:$0xf]
        %v713 = vld [vmem:[%s15 + $0x8] sm:$0xf]
        %v714 = vld [vmem:[%s15 + $0xc] sm:$0xf]
        %v715 = vld [vmem:[%s16] sm:$0x1]
        %vm716 = vcmask 293888
        %717 = vst.msk [vmem:[#allocation2] sm:$0xff] %vm716, 0.0
        %718 = vst.msk [vmem:[#allocation2 + $0x10] sm:$0xff] %vm716, 0.0
        %719 = vst.msk [vmem:[#allocation2 + $0x20] sm:$0xff] %vm716, 0.0
        %720 = vst.msk [vmem:[#allocation2 + $0x30] sm:$0xff] %vm716, 0.0
        %721 = vst.msk [vmem:[#allocation2 + $0x40] sm:$0xff] %vm716, 0.0
        %722 = vst.msk [vmem:[#allocation2 + $0x50] sm:$0xff] %vm716, 0.0
        %723 = vst.msk [vmem:[#allocation2 + $0x60] sm:$0xff] %vm716, 0.0
        %724 = vst.msk [vmem:[#allocation2 + $0x70] sm:$0xff] %vm716, 0.0
        %725 = vst.msk [vmem:[#allocation2 + $0x80] sm:$0xff] %vm716, 0.0
        %726 = vst.msk [vmem:[#allocation2 + $0x90] sm:$0xff] %vm716, 0.0
        %727 = vst.msk [vmem:[#allocation2 + $0xa0] sm:$0xff] %vm716, 0.0
        %728 = vst.msk [vmem:[#allocation2 + $0xb0] sm:$0xff] %vm716, 0.0
        %729 = vst.msk [vmem:[#allocation2 + $0xc0] sm:$0xff] %vm716, 0.0
        %730 = vst.msk [vmem:[#allocation2 + $0xd0] sm:$0xff] %vm716, 0.0
        %731 = vst.msk [vmem:[#allocation2 + $0xe0] sm:$0xff] %vm716, 0.0
        %732 = vst.msk [vmem:[#allocation2 + $0xf0] sm:$0xff] %vm716, 0.0
        %733 = vst.msk [vmem:[#allocation2 + $0x100] sm:$0xff] %vm716, 0.0
        %734 = vst.msk [vmem:[#allocation2 + $0x110] sm:$0xff] %vm716, 0.0
        %735 = vst.msk [vmem:[#allocation2 + $0x120] sm:$0xff] %vm716, 0.0
        %736 = vst.msk [vmem:[#allocation2 + $0x130] sm:$0xff] %vm716, 0.0
        %737 = vst.msk [vmem:[#allocation2 + $0x140] sm:$0xff] %vm716, 0.0
        %738 = vst.msk [vmem:[#allocation2 + $0x150] sm:$0xff] %vm716, 0.0
        %739 = vst.msk [vmem:[#allocation2 + $0x160] sm:$0xff] %vm716, 0.0
        %740 = vst.msk [vmem:[#allocation2 + $0x170] sm:$0xff] %vm716, 0.0
        %741 = vst.msk [vmem:[#allocation2 + $0x180] sm:$0xff] %vm716, 0.0
        %742 = vst.msk [vmem:[#allocation2 + $0x190] sm:$0xff] %vm716, 0.0
        %743 = vst.msk [vmem:[#allocation2 + $0x1a0] sm:$0xff] %vm716, 0.0
        %744 = vst.msk [vmem:[#allocation2 + $0x1b0] sm:$0xff] %vm716, 0.0
        %745 = vst.msk [vmem:[#allocation2 + $0x1c0] sm:$0xff] %vm716, 0.0
        %746 = vst.msk [vmem:[#allocation2 + $0x1d0] sm:$0xff] %vm716, 0.0
        %747 = vst.msk [vmem:[#allocation2 + $0x1e0] sm:$0xff] %vm716, 0.0
        %748 = vst.msk [vmem:[#allocation2 + $0x1f0] sm:$0xff] %vm716, 0.0
        %vm779 = vcmask 1040384
        %v780 = vrot.slane %v547, 7
        %v781 = vrot.slane %v548, 7
        %v782 = vsel %vm779, %v780, %v781
        %v783 = vrot.slane %v549, 7
        %v784 = vrot.slane %v550, 7
        %v785 = vsel %vm779, %v783, %v784
        %v786 = vrot.slane %v551, 7
        %v787 = vrot.slane %v552, 7
        %v788 = vsel %vm779, %v786, %v787
        %v789 = vrot.slane %v553, 7
        %v790 = vrot.slane %v554, 7
        %v791 = vsel %vm779, %v789, %v790
        %v792 = vrot.slane %v555, 7
        %v793 = vrot.slane %v556, 7
        %v794 = vsel %vm779, %v792, %v793
        %v795 = vrot.slane %v557, 7
        %v796 = vrot.slane %v558, 7
        %v797 = vsel %vm779, %v795, %v796
        %v798 = vrot.slane %v559, 7
        %v799 = vrot.slane %v560, 7
        %v800 = vsel %vm779, %v798, %v799
        %v801 = vrot.slane %v561, 7
        %v802 = vrot.slane %v562, 7
        %v803 = vsel %vm779, %v801, %v802
        %v804 = vrot.slane %v563, 7
        %v805 = vrot.slane %v564, 7
        %v806 = vsel %vm779, %v804, %v805
        %v807 = vrot.slane %v565, 7
        %v808 = vrot.slane %v566, 7
        %v809 = vsel %vm779, %v807, %v808
        %v810 = vrot.slane %v567, 7
        %v811 = vrot.slane %v568, 7
        %v812 = vsel %vm779, %v810, %v811
        %v813 = vrot.slane %v569, 7
        %v814 = vrot.slane %v570, 7
        %v815 = vsel %vm779, %v813, %v814
        %v816 = vrot.slane %v571, 7
        %v817 = vrot.slane %v572, 7
        %v818 = vsel %vm779, %v816, %v817
        %v819 = vrot.slane %v573, 7
        %v820 = vrot.slane %v574, 7
        %v821 = vsel %vm779, %v819, %v820
        %v822 = vrot.slane %v575, 7
        %v823 = vrot.slane %v576, 7
        %v824 = vsel %vm779, %v822, %v823
        %s855 = scalar_lea.vmem [#allocation2], 32
        %vm856 = vcmask 31745
        %857 = vst.msk [vmem:[%s855] sm:$0xfe] %vm856, %v780
        %vm858 = vcmask 31744
        %859 = vst.msk [vmem:[%s855 + $0x10] sm:$0xff] %vm858, %v782
        %860 = vst.msk [vmem:[%s855 + $0x20] sm:$0xfe] %vm856, %v783
        %861 = vst.msk [vmem:[%s855 + $0x30] sm:$0xff] %vm858, %v785
        %862 = vst.msk [vmem:[%s855 + $0x40] sm:$0xfe] %vm856, %v786
        %863 = vst.msk [vmem:[%s855 + $0x50] sm:$0xff] %vm858, %v788
        %864 = vst.msk [vmem:[%s855 + $0x60] sm:$0xfe] %vm856, %v789
        %865 = vst.msk [vmem:[%s855 + $0x70] sm:$0xff] %vm858, %v791
        %866 = vst.msk [vmem:[%s855 + $0x80] sm:$0xfe] %vm856, %v792
        %867 = vst.msk [vmem:[%s855 + $0x90] sm:$0xff] %vm858, %v794
        %868 = vst.msk [vmem:[%s855 + $0xa0] sm:$0xfe] %vm856, %v795
        %869 = vst.msk [vmem:[%s855 + $0xb0] sm:$0xff] %vm858, %v797
        %870 = vst.msk [vmem:[%s855 + $0xc0] sm:$0xfe] %vm856, %v798
        %871 = vst.msk [vmem:[%s855 + $0xd0] sm:$0xff] %vm858, %v800
        %872 = vst.msk [vmem:[%s855 + $0xe0] sm:$0xfe] %vm856, %v801
        %873 = vst.msk [vmem:[%s855 + $0xf0] sm:$0xff] %vm858, %v803
        %874 = vst.msk [vmem:[%s855 + $0x100] sm:$0xfe] %vm856, %v804
        %875 = vst.msk [vmem:[%s855 + $0x110] sm:$0xff] %vm858, %v806
        %876 = vst.msk [vmem:[%s855 + $0x120] sm:$0xfe] %vm856, %v807
        %877 = vst.msk [vmem:[%s855 + $0x130] sm:$0xff] %vm858, %v809
        %878 = vst.msk [vmem:[%s855 + $0x140] sm:$0xfe] %vm856, %v810
        %879 = vst.msk [vmem:[%s855 + $0x150] sm:$0xff] %vm858, %v812
        %880 = vst.msk [vmem:[%s855 + $0x160] sm:$0xfe] %vm856, %v813
        %881 = vst.msk [vmem:[%s855 + $0x170] sm:$0xff] %vm858, %v815
        %882 = vst.msk [vmem:[%s855 + $0x180] sm:$0xfe] %vm856, %v816
        %883 = vst.msk [vmem:[%s855 + $0x190] sm:$0xff] %vm858, %v818
        %884 = vst.msk [vmem:[%s855 + $0x1a0] sm:$0xfe] %vm856, %v819
        %885 = vst.msk [vmem:[%s855 + $0x1b0] sm:$0xff] %vm858, %v821
        %886 = vst.msk [vmem:[%s855 + $0x1c0] sm:$0xfe] %vm856, %v822
        %887 = vst.msk [vmem:[%s855 + $0x1d0] sm:$0xff] %vm858, %v824
        %888 = vrot.lane.b32.xlu0 %v547, 4
        %v889 = vpop.permute.xlu0 %888
        %890 = vrot.lane.b32.xlu0 %v548, 4
        %v891 = vpop.permute.xlu0 %890
        %892 = vrot.lane.b32.xlu0 %v549, 4
        %v893 = vpop.permute.xlu0 %892
        %894 = vrot.lane.b32.xlu0 %v550, 4
        %v895 = vpop.permute.xlu0 %894
        %896 = vrot.lane.b32.xlu0 %v551, 4
        %v897 = vpop.permute.xlu0 %896
        %898 = vrot.lane.b32.xlu0 %v552, 4
        %v899 = vpop.permute.xlu0 %898
        %900 = vrot.lane.b32.xlu0 %v553, 4
        %v901 = vpop.permute.xlu0 %900
        %902 = vrot.lane.b32.xlu0 %v554, 4
        %v903 = vpop.permute.xlu0 %902
        %904 = vrot.lane.b32.xlu0 %v555, 4
        %v905 = vpop.permute.xlu0 %904
        %906 = vrot.lane.b32.xlu0 %v556, 4
        %v907 = vpop.permute.xlu0 %906
        %908 = vrot.lane.b32.xlu0 %v557, 4
        %v909 = vpop.permute.xlu0 %908
        %910 = vrot.lane.b32.xlu0 %v558, 4
        %v911 = vpop.permute.xlu0 %910
        %912 = vrot.lane.b32.xlu0 %v559, 4
        %v913 = vpop.permute.xlu0 %912
        %914 = vrot.lane.b32.xlu0 %v560, 4
        %v915 = vpop.permute.xlu0 %914
        %916 = vrot.lane.b32.xlu0 %v561, 4
        %v917 = vpop.permute.xlu0 %916
        %918 = vrot.lane.b32.xlu0 %v562, 4
        %v919 = vpop.permute.xlu0 %918
        %920 = vrot.lane.b32.xlu0 %v563, 4
        %v921 = vpop.permute.xlu0 %920
        %922 = vrot.lane.b32.xlu0 %v564, 4
        %v923 = vpop.permute.xlu0 %922
        %924 = vrot.lane.b32.xlu0 %v565, 4
        %v925 = vpop.permute.xlu0 %924
        %926 = vrot.lane.b32.xlu0 %v566, 4
        %v927 = vpop.permute.xlu0 %926
        %928 = vrot.lane.b32.xlu0 %v567, 4
        %v929 = vpop.permute.xlu0 %928
        %930 = vrot.lane.b32.xlu0 %v568, 4
        %v931 = vpop.permute.xlu0 %930
        %932 = vrot.lane.b32.xlu0 %v569, 4
        %v933 = vpop.permute.xlu0 %932
        %934 = vrot.lane.b32.xlu0 %v570, 4
        %v935 = vpop.permute.xlu0 %934
        %936 = vrot.lane.b32.xlu0 %v571, 4
        %v937 = vpop.permute.xlu0 %936
        %938 = vrot.lane.b32.xlu0 %v572, 4
        %v939 = vpop.permute.xlu0 %938
        %940 = vrot.lane.b32.xlu0 %v573, 4
        %v941 = vpop.permute.xlu0 %940
        %942 = vrot.lane.b32.xlu0 %v574, 4
        %v943 = vpop.permute.xlu0 %942
        %944 = vrot.lane.b32.xlu0 %v575, 4
        %v945 = vpop.permute.xlu0 %944
        %946 = vrot.lane.b32.xlu0 %v576, 4
        %v947 = vpop.permute.xlu0 %946
        %vm978 = vcmask 64544
        %979 = vst.msk [vmem:[%s855] sm:$0xff] %vm978, %v889
        %980 = vst.msk [vmem:[%s855 + $0x10] sm:$0xff] %vm978, %v891
        %981 = vst.msk [vmem:[%s855 + $0x20] sm:$0xff] %vm978, %v893
        %982 = vst.msk [vmem:[%s855 + $0x30] sm:$0xff] %vm978, %v895
        %983 = vst.msk [vmem:[%s855 + $0x40] sm:$0xff] %vm978, %v897
        %984 = vst.msk [vmem:[%s855 + $0x50] sm:$0xff] %vm978, %v899
        %985 = vst.msk [vmem:[%s855 + $0x60] sm:$0xff] %vm978, %v901
        %986 = vst.msk [vmem:[%s855 + $0x70] sm:$0xff] %vm978, %v903
        %987 = vst.msk [vmem:[%s855 + $0x80] sm:$0xff] %vm978, %v905
        %988 = vst.msk [vmem:[%s855 + $0x90] sm:$0xff] %vm978, %v907
        %989 = vst.msk [vmem:[%s855 + $0xa0] sm:$0xff] %vm978, %v909
        %990 = vst.msk [vmem:[%s855 + $0xb0] sm:$0xff] %vm978, %v911
        %991 = vst.msk [vmem:[%s855 + $0xc0] sm:$0xff] %vm978, %v913
        %992 = vst.msk [vmem:[%s855 + $0xd0] sm:$0xff] %vm978, %v915
        %993 = vst.msk [vmem:[%s855 + $0xe0] sm:$0xff] %vm978, %v917
        %994 = vst.msk [vmem:[%s855 + $0xf0] sm:$0xff] %vm978, %v919
        %995 = vst.msk [vmem:[%s855 + $0x100] sm:$0xff] %vm978, %v921
        %996 = vst.msk [vmem:[%s855 + $0x110] sm:$0xff] %vm978, %v923
        %997 = vst.msk [vmem:[%s855 + $0x120] sm:$0xff] %vm978, %v925
        %998 = vst.msk [vmem:[%s855 + $0x130] sm:$0xff] %vm978, %v927
        %999 = vst.msk [vmem:[%s855 + $0x140] sm:$0xff] %vm978, %v929
        %1000 = vst.msk [vmem:[%s855 + $0x150] sm:$0xff] %vm978, %v931
        %1001 = vst.msk [vmem:[%s855 + $0x160] sm:$0xff] %vm978, %v933
        %1002 = vst.msk [vmem:[%s855 + $0x170] sm:$0xff] %vm978, %v935
        %1003 = vst.msk [vmem:[%s855 + $0x180] sm:$0xff] %vm978, %v937
        %1004 = vst.msk [vmem:[%s855 + $0x190] sm:$0xff] %vm978, %v939
        %1005 = vst.msk [vmem:[%s855 + $0x1a0] sm:$0xff] %vm978, %v941
        %1006 = vst.msk [vmem:[%s855 + $0x1b0] sm:$0xff] %vm978, %v943
        %1007 = vst.msk [vmem:[%s855 + $0x1c0] sm:$0xff] %vm978, %v945
        %1008 = vst.msk [vmem:[%s855 + $0x1d0] sm:$0xff] %vm978, %v947
        %vm1009 = vcmask 1046528
        %v1010 = vrot.slane %v547, 1
        %v1011 = vrot.slane %v548, 1
        %v1012 = vsel %vm1009, %v1010, %v1011
        %v1013 = vrot.slane %v549, 1
        %v1014 = vrot.slane %v550, 1
        %v1015 = vsel %vm1009, %v1013, %v1014
        %v1016 = vrot.slane %v551, 1
        %v1017 = vrot.slane %v552, 1
        %v1018 = vsel %vm1009, %v1016, %v1017
        %v1019 = vrot.slane %v553, 1
        %v1020 = vrot.slane %v554, 1
        %v1021 = vsel %vm1009, %v1019, %v1020
        %v1022 = vrot.slane %v555, 1
        %v1023 = vrot.slane %v556, 1
        %v1024 = vsel %vm1009, %v1022, %v1023
        %v1025 = vrot.slane %v557, 1
        %v1026 = vrot.slane %v558, 1
        %v1027 = vsel %vm1009, %v1025, %v1026
        %v1028 = vrot.slane %v559, 1
        %v1029 = vrot.slane %v560, 1
        %v1030 = vsel %vm1009, %v1028, %v1029
        %v1031 = vrot.slane %v561, 1
        %v1032 = vrot.slane %v562, 1
        %v1033 = vsel %vm1009, %v1031, %v1032
        %v1034 = vrot.slane %v563, 1
        %v1035 = vrot.slane %v564, 1
        %v1036 = vsel %vm1009, %v1034, %v1035
        %v1037 = vrot.slane %v565, 1
        %v1038 = vrot.slane %v566, 1
        %v1039 = vsel %vm1009, %v1037, %v1038
        %v1040 = vrot.slane %v567, 1
        %v1041 = vrot.slane %v568, 1
        %v1042 = vsel %vm1009, %v1040, %v1041
        %v1043 = vrot.slane %v569, 1
        %v1044 = vrot.slane %v570, 1
        %v1045 = vsel %vm1009, %v1043, %v1044
        %v1046 = vrot.slane %v571, 1
        %v1047 = vrot.slane %v572, 1
        %v1048 = vsel %vm1009, %v1046, %v1047
        %v1049 = vrot.slane %v573, 1
        %v1050 = vrot.slane %v574, 1
        %v1051 = vsel %vm1009, %v1049, %v1050
        %v1052 = vrot.slane %v575, 1
        %v1053 = vrot.slane %v576, 1
        %v1054 = vsel %vm1009, %v1052, %v1053
        %1055 = vrot.lane.b32.xlu0 %v1012, 8
        %v1056 = vpop.permute.xlu0 %1055
        %1057 = vrot.lane.b32.xlu0 %v1011, 8
        %v1058 = vpop.permute.xlu0 %1057
        %1059 = vrot.lane.b32.xlu0 %v1015, 8
        %v1060 = vpop.permute.xlu0 %1059
        %1061 = vrot.lane.b32.xlu0 %v1014, 8
        %v1062 = vpop.permute.xlu0 %1061
        %1063 = vrot.lane.b32.xlu0 %v1018, 8
        %v1064 = vpop.permute.xlu0 %1063
        %1065 = vrot.lane.b32.xlu0 %v1017, 8
        %v1066 = vpop.permute.xlu0 %1065
        %1067 = vrot.lane.b32.xlu0 %v1021, 8
        %v1068 = vpop.permute.xlu0 %1067
        %1069 = vrot.lane.b32.xlu0 %v1020, 8
        %v1070 = vpop.permute.xlu0 %1069
        %1071 = vrot.lane.b32.xlu0 %v1024, 8
        %v1072 = vpop.permute.xlu0 %1071
        %1073 = vrot.lane.b32.xlu0 %v1023, 8
        %v1074 = vpop.permute.xlu0 %1073
        %1075 = vrot.lane.b32.xlu0 %v1027, 8
        %v1076 = vpop.permute.xlu0 %1075
        %1077 = vrot.lane.b32.xlu0 %v1026, 8
        %v1078 = vpop.permute.xlu0 %1077
        %1079 = vrot.lane.b32.xlu0 %v1030, 8
        %v1080 = vpop.permute.xlu0 %1079
        %1081 = vrot.lane.b32.xlu0 %v1029, 8
        %v1082 = vpop.permute.xlu0 %1081
        %1083 = vrot.lane.b32.xlu0 %v1033, 8
        %v1084 = vpop.permute.xlu0 %1083
        %1085 = vrot.lane.b32.xlu0 %v1032, 8
        %v1086 = vpop.permute.xlu0 %1085
        %1087 = vrot.lane.b32.xlu0 %v1036, 8
        %v1088 = vpop.permute.xlu0 %1087
        %1089 = vrot.lane.b32.xlu0 %v1035, 8
        %v1090 = vpop.permute.xlu0 %1089
        %1091 = vrot.lane.b32.xlu0 %v1039, 8
        %v1092 = vpop.permute.xlu0 %1091
        %1093 = vrot.lane.b32.xlu0 %v1038, 8
        %v1094 = vpop.permute.xlu0 %1093
        %1095 = vrot.lane.b32.xlu0 %v1042, 8
        %v1096 = vpop.permute.xlu0 %1095
        %1097 = vrot.lane.b32.xlu0 %v1041, 8
        %v1098 = vpop.permute.xlu0 %1097
        %1099 = vrot.lane.b32.xlu0 %v1045, 8
        %v1100 = vpop.permute.xlu0 %1099
        %1101 = vrot.lane.b32.xlu0 %v1044, 8
        %v1102 = vpop.permute.xlu0 %1101
        %1103 = vrot.lane.b32.xlu0 %v1048, 8
        %v1104 = vpop.permute.xlu0 %1103
        %1105 = vrot.lane.b32.xlu0 %v1047, 8
        %v1106 = vpop.permute.xlu0 %1105
        %1107 = vrot.lane.b32.xlu0 %v1051, 8
        %v1108 = vpop.permute.xlu0 %1107
        %1109 = vrot.lane.b32.xlu0 %v1050, 8
        %v1110 = vpop.permute.xlu0 %1109
        %1111 = vrot.lane.b32.xlu0 %v1054, 8
        %v1112 = vpop.permute.xlu0 %1111
        %1113 = vrot.lane.b32.xlu0 %v1053, 8
        %v1114 = vpop.permute.xlu0 %1113
        %vm1145 = vcmask 97344
        %1146 = vst.msk [vmem:[%s855] sm:$0xff] %vm1145, %v1056
        %vm1147 = vcmask 96320
        %1148 = vst.msk [vmem:[%s855 + $0x10] sm:$0x7f] %vm1147, %v1058
        %1149 = vst.msk [vmem:[%s855 + $0x20] sm:$0xff] %vm1145, %v1060
        %1150 = vst.msk [vmem:[%s855 + $0x30] sm:$0x7f] %vm1147, %v1062
        %1151 = vst.msk [vmem:[%s855 + $0x40] sm:$0xff] %vm1145, %v1064
        %1152 = vst.msk [vmem:[%s855 + $0x50] sm:$0x7f] %vm1147, %v1066
        %1153 = vst.msk [vmem:[%s855 + $0x60] sm:$0xff] %vm1145, %v1068
        %1154 = vst.msk [vmem:[%s855 + $0x70] sm:$0x7f] %vm1147, %v1070
        %1155 = vst.msk [vmem:[%s855 + $0x80] sm:$0xff] %vm1145, %v1072
        %1156 = vst.msk [vmem:[%s855 + $0x90] sm:$0x7f] %vm1147, %v1074
        %1157 = vst.msk [vmem:[%s855 + $0xa0] sm:$0xff] %vm1145, %v1076
        %1158 = vst.msk [vmem:[%s855 + $0xb0] sm:$0x7f] %vm1147, %v1078
        %1159 = vst.msk [vmem:[%s855 + $0xc0] sm:$0xff] %vm1145, %v1080
        %1160 = vst.msk [vmem:[%s855 + $0xd0] sm:$0x7f] %vm1147, %v1082
        %1161 = vst.msk [vmem:[%s855 + $0xe0] sm:$0xff] %vm1145, %v1084
        %1162 = vst.msk [vmem:[%s855 + $0xf0] sm:$0x7f] %vm1147, %v1086
        %1163 = vst.msk [vmem:[%s855 + $0x100] sm:$0xff] %vm1145, %v1088
        %1164 = vst.msk [vmem:[%s855 + $0x110] sm:$0x7f] %vm1147, %v1090
        %1165 = vst.msk [vmem:[%s855 + $0x120] sm:$0xff] %vm1145, %v1092
        %1166 = vst.msk [vmem:[%s855 + $0x130] sm:$0x7f] %vm1147, %v1094
        %1167 = vst.msk [vmem:[%s855 + $0x140] sm:$0xff] %vm1145, %v1096
        %1168 = vst.msk [vmem:[%s855 + $0x150] sm:$0x7f] %vm1147, %v1098
        %1169 = vst.msk [vmem:[%s855 + $0x160] sm:$0xff] %vm1145, %v1100
        %1170 = vst.msk [vmem:[%s855 + $0x170] sm:$0x7f] %vm1147, %v1102
        %1171 = vst.msk [vmem:[%s855 + $0x180] sm:$0xff] %vm1145, %v1104
        %1172 = vst.msk [vmem:[%s855 + $0x190] sm:$0x7f] %vm1147, %v1106
        %1173 = vst.msk [vmem:[%s855 + $0x1a0] sm:$0xff] %vm1145, %v1108
        %1174 = vst.msk [vmem:[%s855 + $0x1b0] sm:$0x7f] %vm1147, %v1110
        %1175 = vst.msk [vmem:[%s855 + $0x1c0] sm:$0xff] %vm1145, %v1112
        %1176 = vst.msk [vmem:[%s855 + $0x1d0] sm:$0x7f] %vm1147, %v1114
        %v1179 = vrot.slane %v577, 7
        %v1180 = vrot.slane %v578, 7
        %v1181 = vsel %vm779, %v1179, %v1180
        %1182 = vrot.lane.b32.xlu0 %v780, 12
        %v1183 = vpop.permute.xlu0 %1182
        %1184 = vrot.lane.b32.xlu0 %v782, 12
        %v1185 = vpop.permute.xlu0 %1184
        %1186 = vrot.lane.b32.xlu0 %v783, 12
        %v1187 = vpop.permute.xlu0 %1186
        %1188 = vrot.lane.b32.xlu0 %v785, 12
        %v1189 = vpop.permute.xlu0 %1188
        %1190 = vrot.lane.b32.xlu0 %v786, 12
        %v1191 = vpop.permute.xlu0 %1190
        %1192 = vrot.lane.b32.xlu0 %v788, 12
        %v1193 = vpop.permute.xlu0 %1192
        %1194 = vrot.lane.b32.xlu0 %v789, 12
        %v1195 = vpop.permute.xlu0 %1194
        %1196 = vrot.lane.b32.xlu0 %v791, 12
        %v1197 = vpop.permute.xlu0 %1196
        %1198 = vrot.lane.b32.xlu0 %v792, 12
        %v1199 = vpop.permute.xlu0 %1198
        %1200 = vrot.lane.b32.xlu0 %v794, 12
        %v1201 = vpop.permute.xlu0 %1200
        %1202 = vrot.lane.b32.xlu0 %v795, 12
        %v1203 = vpop.permute.xlu0 %1202
        %1204 = vrot.lane.b32.xlu0 %v797, 12
        %v1205 = vpop.permute.xlu0 %1204
        %1206 = vrot.lane.b32.xlu0 %v798, 12
        %v1207 = vpop.permute.xlu0 %1206
        %1208 = vrot.lane.b32.xlu0 %v800, 12
        %v1209 = vpop.permute.xlu0 %1208
        %1210 = vrot.lane.b32.xlu0 %v801, 12
        %v1211 = vpop.permute.xlu0 %1210
        %1212 = vrot.lane.b32.xlu0 %v803, 12
        %v1213 = vpop.permute.xlu0 %1212
        %1214 = vrot.lane.b32.xlu0 %v804, 12
        %v1215 = vpop.permute.xlu0 %1214
        %1216 = vrot.lane.b32.xlu0 %v806, 12
        %v1217 = vpop.permute.xlu0 %1216
        %1218 = vrot.lane.b32.xlu0 %v807, 12
        %v1219 = vpop.permute.xlu0 %1218
        %1220 = vrot.lane.b32.xlu0 %v809, 12
        %v1221 = vpop.permute.xlu0 %1220
        %1222 = vrot.lane.b32.xlu0 %v810, 12
        %v1223 = vpop.permute.xlu0 %1222
        %1224 = vrot.lane.b32.xlu0 %v812, 12
        %v1225 = vpop.permute.xlu0 %1224
        %1226 = vrot.lane.b32.xlu0 %v813, 12
        %v1227 = vpop.permute.xlu0 %1226
        %1228 = vrot.lane.b32.xlu0 %v815, 12
        %v1229 = vpop.permute.xlu0 %1228
        %1230 = vrot.lane.b32.xlu0 %v816, 12
        %v1231 = vpop.permute.xlu0 %1230
        %1232 = vrot.lane.b32.xlu0 %v818, 12
        %v1233 = vpop.permute.xlu0 %1232
        %1234 = vrot.lane.b32.xlu0 %v819, 12
        %v1235 = vpop.permute.xlu0 %1234
        %1236 = vrot.lane.b32.xlu0 %v821, 12
        %v1237 = vpop.permute.xlu0 %1236
        %1238 = vrot.lane.b32.xlu0 %v822, 12
        %v1239 = vpop.permute.xlu0 %1238
        %1240 = vrot.lane.b32.xlu0 %v824, 12
        %v1241 = vpop.permute.xlu0 %1240
        %1242 = vrot.lane.b32.xlu0 %v1179, 12
        %v1243 = vpop.permute.xlu0 %1242
        %1244 = vrot.lane.b32.xlu0 %v1181, 12
        %v1245 = vpop.permute.xlu0 %1244
        %vm1278 = vcmask 130145
        %1279 = vst.msk [vmem:[#allocation2] sm:$0xfe] %vm1278, %v1183
        %vm1280 = vcmask 130144
        %1281 = vst.msk [vmem:[#allocation2 + $0x10] sm:$0xff] %vm1280, %v1185
        %1282 = vst.msk [vmem:[#allocation2 + $0x20] sm:$0xfe] %vm1278, %v1187
        %1283 = vst.msk [vmem:[#allocation2 + $0x30] sm:$0xff] %vm1280, %v1189
        %1284 = vst.msk [vmem:[#allocation2 + $0x40] sm:$0xfe] %vm1278, %v1191
        %1285 = vst.msk [vmem:[#allocation2 + $0x50] sm:$0xff] %vm1280, %v1193
        %1286 = vst.msk [vmem:[#allocation2 + $0x60] sm:$0xfe] %vm1278, %v1195
        %1287 = vst.msk [vmem:[#allocation2 + $0x70] sm:$0xff] %vm1280, %v1197
        %1288 = vst.msk [vmem:[#allocation2 + $0x80] sm:$0xfe] %vm1278, %v1199
        %1289 = vst.msk [vmem:[#allocation2 + $0x90] sm:$0xff] %vm1280, %v1201
        %1290 = vst.msk [vmem:[#allocation2 + $0xa0] sm:$0xfe] %vm1278, %v1203
        %1291 = vst.msk [vmem:[#allocation2 + $0xb0] sm:$0xff] %vm1280, %v1205
        %1292 = vst.msk [vmem:[#allocation2 + $0xc0] sm:$0xfe] %vm1278, %v1207
        %1293 = vst.msk [vmem:[#allocation2 + $0xd0] sm:$0xff] %vm1280, %v1209
        %1294 = vst.msk [vmem:[#allocation2 + $0xe0] sm:$0xfe] %vm1278, %v1211
        %1295 = vst.msk [vmem:[#allocation2 + $0xf0] sm:$0xff] %vm1280, %v1213
        %1296 = vst.msk [vmem:[#allocation2 + $0x100] sm:$0xfe] %vm1278, %v1215
        %1297 = vst.msk [vmem:[#allocation2 + $0x110] sm:$0xff] %vm1280, %v1217
        %1298 = vst.msk [vmem:[#allocation2 + $0x120] sm:$0xfe] %vm1278, %v1219
        %1299 = vst.msk [vmem:[#allocation2 + $0x130] sm:$0xff] %vm1280, %v1221
        %1300 = vst.msk [vmem:[#allocation2 + $0x140] sm:$0xfe] %vm1278, %v1223
        %1301 = vst.msk [vmem:[#allocation2 + $0x150] sm:$0xff] %vm1280, %v1225
        %1302 = vst.msk [vmem:[#allocation2 + $0x160] sm:$0xfe] %vm1278, %v1227
        %1303 = vst.msk [vmem:[#allocation2 + $0x170] sm:$0xff] %vm1280, %v1229
        %1304 = vst.msk [vmem:[#allocation2 + $0x180] sm:$0xfe] %vm1278, %v1231
        %1305 = vst.msk [vmem:[#allocation2 + $0x190] sm:$0xff] %vm1280, %v1233
        %1306 = vst.msk [vmem:[#allocation2 + $0x1a0] sm:$0xfe] %vm1278, %v1235
        %1307 = vst.msk [vmem:[#allocation2 + $0x1b0] sm:$0xff] %vm1280, %v1237
        %1308 = vst.msk [vmem:[#allocation2 + $0x1c0] sm:$0xfe] %vm1278, %v1239
        %1309 = vst.msk [vmem:[#allocation2 + $0x1d0] sm:$0xff] %vm1280, %v1241
        %1310 = vst.msk [vmem:[#allocation2 + $0x1e0] sm:$0xfe] %vm1278, %v1243
        %1311 = vst.msk [vmem:[#allocation2 + $0x1f0] sm:$0xff] %vm1280, %v1245
        %1312 = vrot.lane.b32.xlu0 %v547, 16
        %v1313 = vpop.permute.xlu0 %1312
        %1314 = vrot.lane.b32.xlu0 %v548, 16
        %v1315 = vpop.permute.xlu0 %1314
        %1316 = vrot.lane.b32.xlu0 %v549, 16
        %v1317 = vpop.permute.xlu0 %1316
        %1318 = vrot.lane.b32.xlu0 %v550, 16
        %v1319 = vpop.permute.xlu0 %1318
        %1320 = vrot.lane.b32.xlu0 %v551, 16
        %v1321 = vpop.permute.xlu0 %1320
        %1322 = vrot.lane.b32.xlu0 %v552, 16
        %v1323 = vpop.permute.xlu0 %1322
        %1324 = vrot.lane.b32.xlu0 %v553, 16
        %v1325 = vpop.permute.xlu0 %1324
        %1326 = vrot.lane.b32.xlu0 %v554, 16
        %v1327 = vpop.permute.xlu0 %1326
        %1328 = vrot.lane.b32.xlu0 %v555, 16
        %v1329 = vpop.permute.xlu0 %1328
        %1330 = vrot.lane.b32.xlu0 %v556, 16
        %v1331 = vpop.permute.xlu0 %1330
        %1332 = vrot.lane.b32.xlu0 %v557, 16
        %v1333 = vpop.permute.xlu0 %1332
        %1334 = vrot.lane.b32.xlu0 %v558, 16
        %v1335 = vpop.permute.xlu0 %1334
        %1336 = vrot.lane.b32.xlu0 %v559, 16
        %v1337 = vpop.permute.xlu0 %1336
        %1338 = vrot.lane.b32.xlu0 %v560, 16
        %v1339 = vpop.permute.xlu0 %1338
        %1340 = vrot.lane.b32.xlu0 %v561, 16
        %v1341 = vpop.permute.xlu0 %1340
        %1342 = vrot.lane.b32.xlu0 %v562, 16
        %v1343 = vpop.permute.xlu0 %1342
        %1344 = vrot.lane.b32.xlu0 %v563, 16
        %v1345 = vpop.permute.xlu0 %1344
        %1346 = vrot.lane.b32.xlu0 %v564, 16
        %v1347 = vpop.permute.xlu0 %1346
        %1348 = vrot.lane.b32.xlu0 %v565, 16
        %v1349 = vpop.permute.xlu0 %1348
        %1350 = vrot.lane.b32.xlu0 %v566, 16
        %v1351 = vpop.permute.xlu0 %1350
        %1352 = vrot.lane.b32.xlu0 %v567, 16
        %v1353 = vpop.permute.xlu0 %1352
        %1354 = vrot.lane.b32.xlu0 %v568, 16
        %v1355 = vpop.permute.xlu0 %1354
        %1356 = vrot.lane.b32.xlu0 %v569, 16
        %v1357 = vpop.permute.xlu0 %1356
        %1358 = vrot.lane.b32.xlu0 %v570, 16
        %v1359 = vpop.permute.xlu0 %1358
        %1360 = vrot.lane.b32.xlu0 %v571, 16
        %v1361 = vpop.permute.xlu0 %1360
        %1362 = vrot.lane.b32.xlu0 %v572, 16
        %v1363 = vpop.permute.xlu0 %1362
        %1364 = vrot.lane.b32.xlu0 %v573, 16
        %v1365 = vpop.permute.xlu0 %1364
        %1366 = vrot.lane.b32.xlu0 %v574, 16
        %v1367 = vpop.permute.xlu0 %1366
        %1368 = vrot.lane.b32.xlu0 %v575, 16
        %v1369 = vpop.permute.xlu0 %1368
        %1370 = vrot.lane.b32.xlu0 %v576, 16
        %v1371 = vpop.permute.xlu0 %1370
        %1372 = vrot.lane.b32.xlu0 %v577, 16
        %v1373 = vpop.permute.xlu0 %1372
        %1374 = vrot.lane.b32.xlu0 %v578, 16
        %v1375 = vpop.permute.xlu0 %1374
        %vm1408 = vcmask 162944
        %1409 = vst.msk [vmem:[#allocation2] sm:$0xff] %vm1408, %v1313
        %1410 = vst.msk [vmem:[#allocation2 + $0x10] sm:$0xff] %vm1408, %v1315
        %1411 = vst.msk [vmem:[#allocation2 + $0x20] sm:$0xff] %vm1408, %v1317
        %1412 = vst.msk [vmem:[#allocation2 + $0x30] sm:$0xff] %vm1408, %v1319
        %1413 = vst.msk [vmem:[#allocation2 + $0x40] sm:$0xff] %vm1408, %v1321
        %1414 = vst.msk [vmem:[#allocation2 + $0x50] sm:$0xff] %vm1408, %v1323
        %1415 = vst.msk [vmem:[#allocation2 + $0x60] sm:$0xff] %vm1408, %v1325
        %1416 = vst.msk [vmem:[#allocation2 + $0x70] sm:$0xff] %vm1408, %v1327
        %1417 = vst.msk [vmem:[#allocation2 + $0x80] sm:$0xff] %vm1408, %v1329
        %1418 = vst.msk [vmem:[#allocation2 + $0x90] sm:$0xff] %vm1408, %v1331
        %1419 = vst.msk [vmem:[#allocation2 + $0xa0] sm:$0xff] %vm1408, %v1333
        %1420 = vst.msk [vmem:[#allocation2 + $0xb0] sm:$0xff] %vm1408, %v1335
        %1421 = vst.msk [vmem:[#allocation2 + $0xc0] sm:$0xff] %vm1408, %v1337
        %1422 = vst.msk [vmem:[#allocation2 + $0xd0] sm:$0xff] %vm1408, %v1339
        %1423 = vst.msk [vmem:[#allocation2 + $0xe0] sm:$0xff] %vm1408, %v1341
        %1424 = vst.msk [vmem:[#allocation2 + $0xf0] sm:$0xff] %vm1408, %v1343
        %1425 = vst.msk [vmem:[#allocation2 + $0x100] sm:$0xff] %vm1408, %v1345
        %1426 = vst.msk [vmem:[#allocation2 + $0x110] sm:$0xff] %vm1408, %v1347
        %1427 = vst.msk [vmem:[#allocation2 + $0x120] sm:$0xff] %vm1408, %v1349
        %1428 = vst.msk [vmem:[#allocation2 + $0x130] sm:$0xff] %vm1408, %v1351
        %1429 = vst.msk [vmem:[#allocation2 + $0x140] sm:$0xff] %vm1408, %v1353
        %1430 = vst.msk [vmem:[#allocation2 + $0x150] sm:$0xff] %vm1408, %v1355
        %1431 = vst.msk [vmem:[#allocation2 + $0x160] sm:$0xff] %vm1408, %v1357
        %1432 = vst.msk [vmem:[#allocation2 + $0x170] sm:$0xff] %vm1408, %v1359
        %1433 = vst.msk [vmem:[#allocation2 + $0x180] sm:$0xff] %vm1408, %v1361
        %1434 = vst.msk [vmem:[#allocation2 + $0x190] sm:$0xff] %vm1408, %v1363
        %1435 = vst.msk [vmem:[#allocation2 + $0x1a0] sm:$0xff] %vm1408, %v1365
        %1436 = vst.msk [vmem:[#allocation2 + $0x1b0] sm:$0xff] %vm1408, %v1367
        %1437 = vst.msk [vmem:[#allocation2 + $0x1c0] sm:$0xff] %vm1408, %v1369
        %1438 = vst.msk [vmem:[#allocation2 + $0x1d0] sm:$0xff] %vm1408, %v1371
        %1439 = vst.msk [vmem:[#allocation2 + $0x1e0] sm:$0xff] %vm1408, %v1373
        %1440 = vst.msk [vmem:[#allocation2 + $0x1f0] sm:$0xff] %vm1408, %v1375
        %v1441 = vrot.slane %v577, 1
        %v1442 = vrot.slane %v578, 1
        %v1443 = vsel %vm1009, %v1441, %v1442
        %1444 = vrot.lane.b32.xlu0 %v1012, 20
        %v1445 = vpop.permute.xlu0 %1444
        %1446 = vrot.lane.b32.xlu0 %v1011, 20
        %v1447 = vpop.permute.xlu0 %1446
        %1448 = vrot.lane.b32.xlu0 %v1015, 20
        %v1449 = vpop.permute.xlu0 %1448
        %1450 = vrot.lane.b32.xlu0 %v1014, 20
        %v1451 = vpop.permute.xlu0 %1450
        %1452 = vrot.lane.b32.xlu0 %v1018, 20
        %v1453 = vpop.permute.xlu0 %1452
        %1454 = vrot.lane.b32.xlu0 %v1017, 20
        %v1455 = vpop.permute.xlu0 %1454
        %1456 = vrot.lane.b32.xlu0 %v1021, 20
        %v1457 = vpop.permute.xlu0 %1456
        %1458 = vrot.lane.b32.xlu0 %v1020, 20
        %v1459 = vpop.permute.xlu0 %1458
        %1460 = vrot.lane.b32.xlu0 %v1024, 20
        %v1461 = vpop.permute.xlu0 %1460
        %1462 = vrot.lane.b32.xlu0 %v1023, 20
        %v1463 = vpop.permute.xlu0 %1462
        %1464 = vrot.lane.b32.xlu0 %v1027, 20
        %v1465 = vpop.permute.xlu0 %1464
        %1466 = vrot.lane.b32.xlu0 %v1026, 20
        %v1467 = vpop.permute.xlu0 %1466
        %1468 = vrot.lane.b32.xlu0 %v1030, 20
        %v1469 = vpop.permute.xlu0 %1468
        %1470 = vrot.lane.b32.xlu0 %v1029, 20
        %v1471 = vpop.permute.xlu0 %1470
        %1472 = vrot.lane.b32.xlu0 %v1033, 20
        %v1473 = vpop.permute.xlu0 %1472
        %1474 = vrot.lane.b32.xlu0 %v1032, 20
        %v1475 = vpop.permute.xlu0 %1474
        %1476 = vrot.lane.b32.xlu0 %v1036, 20
        %v1477 = vpop.permute.xlu0 %1476
        %1478 = vrot.lane.b32.xlu0 %v1035, 20
        %v1479 = vpop.permute.xlu0 %1478
        %1480 = vrot.lane.b32.xlu0 %v1039, 20
        %v1481 = vpop.permute.xlu0 %1480
        %1482 = vrot.lane.b32.xlu0 %v1038, 20
        %v1483 = vpop.permute.xlu0 %1482
        %1484 = vrot.lane.b32.xlu0 %v1042, 20
        %v1485 = vpop.permute.xlu0 %1484
        %1486 = vrot.lane.b32.xlu0 %v1041, 20
        %v1487 = vpop.permute.xlu0 %1486
        %1488 = vrot.lane.b32.xlu0 %v1045, 20
        %v1489 = vpop.permute.xlu0 %1488
        %1490 = vrot.lane.b32.xlu0 %v1044, 20
        %v1491 = vpop.permute.xlu0 %1490
        %1492 = vrot.lane.b32.xlu0 %v1048, 20
        %v1493 = vpop.permute.xlu0 %1492
        %1494 = vrot.lane.b32.xlu0 %v1047, 20
        %v1495 = vpop.permute.xlu0 %1494
        %1496 = vrot.lane.b32.xlu0 %v1051, 20
        %v1497 = vpop.permute.xlu0 %1496
        %1498 = vrot.lane.b32.xlu0 %v1050, 20
        %v1499 = vpop.permute.xlu0 %1498
        %1500 = vrot.lane.b32.xlu0 %v1054, 20
        %v1501 = vpop.permute.xlu0 %1500
        %1502 = vrot.lane.b32.xlu0 %v1053, 20
        %v1503 = vpop.permute.xlu0 %1502
        %1504 = vrot.lane.b32.xlu0 %v1443, 20
        %v1505 = vpop.permute.xlu0 %1504
        %1506 = vrot.lane.b32.xlu0 %v1442, 20
        %v1507 = vpop.permute.xlu0 %1506
        %vm1540 = vcmask 195744
        %1541 = vst.msk [vmem:[#allocation2] sm:$0xff] %vm1540, %v1445
        %vm1542 = vcmask 194720
        %1543 = vst.msk [vmem:[#allocation2 + $0x10] sm:$0x7f] %vm1542, %v1447
        %1544 = vst.msk [vmem:[#allocation2 + $0x20] sm:$0xff] %vm1540, %v1449
        %1545 = vst.msk [vmem:[#allocation2 + $0x30] sm:$0x7f] %vm1542, %v1451
        %1546 = vst.msk [vmem:[#allocation2 + $0x40] sm:$0xff] %vm1540, %v1453
        %1547 = vst.msk [vmem:[#allocation2 + $0x50] sm:$0x7f] %vm1542, %v1455
        %1548 = vst.msk [vmem:[#allocation2 + $0x60] sm:$0xff] %vm1540, %v1457
        %1549 = vst.msk [vmem:[#allocation2 + $0x70] sm:$0x7f] %vm1542, %v1459
        %1550 = vst.msk [vmem:[#allocation2 + $0x80] sm:$0xff] %vm1540, %v1461
        %1551 = vst.msk [vmem:[#allocation2 + $0x90] sm:$0x7f] %vm1542, %v1463
        %1552 = vst.msk [vmem:[#allocation2 + $0xa0] sm:$0xff] %vm1540, %v1465
        %1553 = vst.msk [vmem:[#allocation2 + $0xb0] sm:$0x7f] %vm1542, %v1467
        %1554 = vst.msk [vmem:[#allocation2 + $0xc0] sm:$0xff] %vm1540, %v1469
        %1555 = vst.msk [vmem:[#allocation2 + $0xd0] sm:$0x7f] %vm1542, %v1471
        %1556 = vst.msk [vmem:[#allocation2 + $0xe0] sm:$0xff] %vm1540, %v1473
        %1557 = vst.msk [vmem:[#allocation2 + $0xf0] sm:$0x7f] %vm1542, %v1475
        %1558 = vst.msk [vmem:[#allocation2 + $0x100] sm:$0xff] %vm1540, %v1477
        %1559 = vst.msk [vmem:[#allocation2 + $0x110] sm:$0x7f] %vm1542, %v1479
        %1560 = vst.msk [vmem:[#allocation2 + $0x120] sm:$0xff] %vm1540, %v1481
        %1561 = vst.msk [vmem:[#allocation2 + $0x130] sm:$0x7f] %vm1542, %v1483
        %1562 = vst.msk [vmem:[#allocation2 + $0x140] sm:$0xff] %vm1540, %v1485
        %1563 = vst.msk [vmem:[#allocation2 + $0x150] sm:$0x7f] %vm1542, %v1487
        %1564 = vst.msk [vmem:[#allocation2 + $0x160] sm:$0xff] %vm1540, %v1489
        %1565 = vst.msk [vmem:[#allocation2 + $0x170] sm:$0x7f] %vm1542, %v1491
        %1566 = vst.msk [vmem:[#allocation2 + $0x180] sm:$0xff] %vm1540, %v1493
        %1567 = vst.msk [vmem:[#allocation2 + $0x190] sm:$0x7f] %vm1542, %v1495
        %1568 = vst.msk [vmem:[#allocation2 + $0x1a0] sm:$0xff] %vm1540, %v1497
        %1569 = vst.msk [vmem:[#allocation2 + $0x1b0] sm:$0x7f] %vm1542, %v1499
        %1570 = vst.msk [vmem:[#allocation2 + $0x1c0] sm:$0xff] %vm1540, %v1501
        %1571 = vst.msk [vmem:[#allocation2 + $0x1d0] sm:$0x7f] %vm1542, %v1503
        %1572 = vst.msk [vmem:[#allocation2 + $0x1e0] sm:$0xff] %vm1540, %v1505
        %1573 = vst.msk [vmem:[#allocation2 + $0x1f0] sm:$0x7f] %vm1542, %v1507
        %1574 = vrot.lane.b32.xlu0 %v783, 24
        %v1575 = vpop.permute.xlu0 %1574
        %1576 = vrot.lane.b32.xlu0 %v785, 24
        %v1577 = vpop.permute.xlu0 %1576
        %1578 = vrot.lane.b32.xlu0 %v786, 24
        %v1579 = vpop.permute.xlu0 %1578
        %1580 = vrot.lane.b32.xlu0 %v788, 24
        %v1581 = vpop.permute.xlu0 %1580
        %1582 = vrot.lane.b32.xlu0 %v789, 24
        %v1583 = vpop.permute.xlu0 %1582
        %1584 = vrot.lane.b32.xlu0 %v791, 24
        %v1585 = vpop.permute.xlu0 %1584
        %1586 = vrot.lane.b32.xlu0 %v792, 24
        %v1587 = vpop.permute.xlu0 %1586
        %1588 = vrot.lane.b32.xlu0 %v794, 24
        %v1589 = vpop.permute.xlu0 %1588
        %1590 = vrot.lane.b32.xlu0 %v795, 24
        %v1591 = vpop.permute.xlu0 %1590
        %1592 = vrot.lane.b32.xlu0 %v797, 24
        %v1593 = vpop.permute.xlu0 %1592
        %1594 = vrot.lane.b32.xlu0 %v798, 24
        %v1595 = vpop.permute.xlu0 %1594
        %1596 = vrot.lane.b32.xlu0 %v800, 24
        %v1597 = vpop.permute.xlu0 %1596
        %1598 = vrot.lane.b32.xlu0 %v801, 24
        %v1599 = vpop.permute.xlu0 %1598
        %1600 = vrot.lane.b32.xlu0 %v803, 24
        %v1601 = vpop.permute.xlu0 %1600
        %1602 = vrot.lane.b32.xlu0 %v804, 24
        %v1603 = vpop.permute.xlu0 %1602
        %1604 = vrot.lane.b32.xlu0 %v806, 24
        %v1605 = vpop.permute.xlu0 %1604
        %1606 = vrot.lane.b32.xlu0 %v807, 24
        %v1607 = vpop.permute.xlu0 %1606
        %1608 = vrot.lane.b32.xlu0 %v809, 24
        %v1609 = vpop.permute.xlu0 %1608
        %1610 = vrot.lane.b32.xlu0 %v810, 24
        %v1611 = vpop.permute.xlu0 %1610
        %1612 = vrot.lane.b32.xlu0 %v812, 24
        %v1613 = vpop.permute.xlu0 %1612
        %1614 = vrot.lane.b32.xlu0 %v813, 24
        %v1615 = vpop.permute.xlu0 %1614
        %1616 = vrot.lane.b32.xlu0 %v815, 24
        %v1617 = vpop.permute.xlu0 %1616
        %1618 = vrot.lane.b32.xlu0 %v816, 24
        %v1619 = vpop.permute.xlu0 %1618
        %1620 = vrot.lane.b32.xlu0 %v818, 24
        %v1621 = vpop.permute.xlu0 %1620
        %1622 = vrot.lane.b32.xlu0 %v819, 24
        %v1623 = vpop.permute.xlu0 %1622
        %1624 = vrot.lane.b32.xlu0 %v821, 24
        %v1625 = vpop.permute.xlu0 %1624
        %1626 = vrot.lane.b32.xlu0 %v822, 24
        %v1627 = vpop.permute.xlu0 %1626
        %1628 = vrot.lane.b32.xlu0 %v824, 24
        %v1629 = vpop.permute.xlu0 %1628
        %1630 = vrot.lane.b32.xlu0 %v1179, 24
        %v1631 = vpop.permute.xlu0 %1630
        %1632 = vrot.lane.b32.xlu0 %v1181, 24
        %v1633 = vpop.permute.xlu0 %1632
        %vm1664 = vcmask 228545
        %1665 = vst.msk [vmem:[#allocation2] sm:$0xfe] %vm1664, %v1575
        %vm1666 = vcmask 228544
        %1667 = vst.msk [vmem:[#allocation2 + $0x10] sm:$0xff] %vm1666, %v1577
        %1668 = vst.msk [vmem:[#allocation2 + $0x20] sm:$0xfe] %vm1664, %v1579
        %1669 = vst.msk [vmem:[#allocation2 + $0x30] sm:$0xff] %vm1666, %v1581
        %1670 = vst.msk [vmem:[#allocation2 + $0x40] sm:$0xfe] %vm1664, %v1583
        %1671 = vst.msk [vmem:[#allocation2 + $0x50] sm:$0xff] %vm1666, %v1585
        %1672 = vst.msk [vmem:[#allocation2 + $0x60] sm:$0xfe] %vm1664, %v1587
        %1673 = vst.msk [vmem:[#allocation2 + $0x70] sm:$0xff] %vm1666, %v1589
        %1674 = vst.msk [vmem:[#allocation2 + $0x80] sm:$0xfe] %vm1664, %v1591
        %1675 = vst.msk [vmem:[#allocation2 + $0x90] sm:$0xff] %vm1666, %v1593
        %1676 = vst.msk [vmem:[#allocation2 + $0xa0] sm:$0xfe] %vm1664, %v1595
        %1677 = vst.msk [vmem:[#allocation2 + $0xb0] sm:$0xff] %vm1666, %v1597
        %1678 = vst.msk [vmem:[#allocation2 + $0xc0] sm:$0xfe] %vm1664, %v1599
        %1679 = vst.msk [vmem:[#allocation2 + $0xd0] sm:$0xff] %vm1666, %v1601
        %1680 = vst.msk [vmem:[#allocation2 + $0xe0] sm:$0xfe] %vm1664, %v1603
        %1681 = vst.msk [vmem:[#allocation2 + $0xf0] sm:$0xff] %vm1666, %v1605
        %1682 = vst.msk [vmem:[#allocation2 + $0x100] sm:$0xfe] %vm1664, %v1607
        %1683 = vst.msk [vmem:[#allocation2 + $0x110] sm:$0xff] %vm1666, %v1609
        %1684 = vst.msk [vmem:[#allocation2 + $0x120] sm:$0xfe] %vm1664, %v1611
        %1685 = vst.msk [vmem:[#allocation2 + $0x130] sm:$0xff] %vm1666, %v1613
        %1686 = vst.msk [vmem:[#allocation2 + $0x140] sm:$0xfe] %vm1664, %v1615
        %1687 = vst.msk [vmem:[#allocation2 + $0x150] sm:$0xff] %vm1666, %v1617
        %1688 = vst.msk [vmem:[#allocation2 + $0x160] sm:$0xfe] %vm1664, %v1619
        %1689 = vst.msk [vmem:[#allocation2 + $0x170] sm:$0xff] %vm1666, %v1621
        %1690 = vst.msk [vmem:[#allocation2 + $0x180] sm:$0xfe] %vm1664, %v1623
        %1691 = vst.msk [vmem:[#allocation2 + $0x190] sm:$0xff] %vm1666, %v1625
        %1692 = vst.msk [vmem:[#allocation2 + $0x1a0] sm:$0xfe] %vm1664, %v1627
        %1693 = vst.msk [vmem:[#allocation2 + $0x1b0] sm:$0xff] %vm1666, %v1629
        %1694 = vst.msk [vmem:[#allocation2 + $0x1c0] sm:$0xfe] %vm1664, %v1631
        %1695 = vst.msk [vmem:[#allocation2 + $0x1d0] sm:$0xff] %vm1666, %v1633
        %1696 = vrot.lane.b32.xlu0 %v549, 28
        %v1697 = vpop.permute.xlu0 %1696
        %1698 = vrot.lane.b32.xlu0 %v550, 28
        %v1699 = vpop.permute.xlu0 %1698
        %1700 = vrot.lane.b32.xlu0 %v551, 28
        %v1701 = vpop.permute.xlu0 %1700
        %1702 = vrot.lane.b32.xlu0 %v552, 28
        %v1703 = vpop.permute.xlu0 %1702
        %1704 = vrot.lane.b32.xlu0 %v553, 28
        %v1705 = vpop.permute.xlu0 %1704
        %1706 = vrot.lane.b32.xlu0 %v554, 28
        %v1707 = vpop.permute.xlu0 %1706
        %1708 = vrot.lane.b32.xlu0 %v555, 28
        %v1709 = vpop.permute.xlu0 %1708
        %1710 = vrot.lane.b32.xlu0 %v556, 28
        %v1711 = vpop.permute.xlu0 %1710
        %1712 = vrot.lane.b32.xlu0 %v557, 28
        %v1713 = vpop.permute.xlu0 %1712
        %1714 = vrot.lane.b32.xlu0 %v558, 28
        %v1715 = vpop.permute.xlu0 %1714
        %1716 = vrot.lane.b32.xlu0 %v559, 28
        %v1717 = vpop.permute.xlu0 %1716
        %1718 = vrot.lane.b32.xlu0 %v560, 28
        %v1719 = vpop.permute.xlu0 %1718
        %1720 = vrot.lane.b32.xlu0 %v561, 28
        %v1721 = vpop.permute.xlu0 %1720
        %1722 = vrot.lane.b32.xlu0 %v562, 28
        %v1723 = vpop.permute.xlu0 %1722
        %1724 = vrot.lane.b32.xlu0 %v563, 28
        %v1725 = vpop.permute.xlu0 %1724
        %1726 = vrot.lane.b32.xlu0 %v564, 28
        %v1727 = vpop.permute.xlu0 %1726
        %1728 = vrot.lane.b32.xlu0 %v565, 28
        %v1729 = vpop.permute.xlu0 %1728
        %1730 = vrot.lane.b32.xlu0 %v566, 28
        %v1731 = vpop.permute.xlu0 %1730
        %1732 = vrot.lane.b32.xlu0 %v567, 28
        %v1733 = vpop.permute.xlu0 %1732
        %1734 = vrot.lane.b32.xlu0 %v568, 28
        %v1735 = vpop.permute.xlu0 %1734
        %1736 = vrot.lane.b32.xlu0 %v569, 28
        %v1737 = vpop.permute.xlu0 %1736
        %1738 = vrot.lane.b32.xlu0 %v570, 28
        %v1739 = vpop.permute.xlu0 %1738
        %1740 = vrot.lane.b32.xlu0 %v571, 28
        %v1741 = vpop.permute.xlu0 %1740
        %1742 = vrot.lane.b32.xlu0 %v572, 28
        %v1743 = vpop.permute.xlu0 %1742
        %1744 = vrot.lane.b32.xlu0 %v573, 28
        %v1745 = vpop.permute.xlu0 %1744
        %1746 = vrot.lane.b32.xlu0 %v574, 28
        %v1747 = vpop.permute.xlu0 %1746
        %1748 = vrot.lane.b32.xlu0 %v575, 28
        %v1749 = vpop.permute.xlu0 %1748
        %1750 = vrot.lane.b32.xlu0 %v576, 28
        %v1751 = vpop.permute.xlu0 %1750
        %1752 = vrot.lane.b32.xlu0 %v577, 28
        %v1753 = vpop.permute.xlu0 %1752
        %1754 = vrot.lane.b32.xlu0 %v578, 28
        %v1755 = vpop.permute.xlu0 %1754
        %vm1786 = vcmask 261344
        %1787 = vst.msk [vmem:[#allocation2] sm:$0xff] %vm1786, %v1697
        %1788 = vst.msk [vmem:[#allocation2 + $0x10] sm:$0xff] %vm1786, %v1699
        %1789 = vst.msk [vmem:[#allocation2 + $0x20] sm:$0xff] %vm1786, %v1701
        %1790 = vst.msk [vmem:[#allocation2 + $0x30] sm:$0xff] %vm1786, %v1703
        %1791 = vst.msk [vmem:[#allocation2 + $0x40] sm:$0xff] %vm1786, %v1705
        %1792 = vst.msk [vmem:[#allocation2 + $0x50] sm:$0xff] %vm1786, %v1707
        %1793 = vst.msk [vmem:[#allocation2 + $0x60] sm:$0xff] %vm1786, %v1709
        %1794 = vst.msk [vmem:[#allocation2 + $0x70] sm:$0xff] %vm1786, %v1711
        %1795 = vst.msk [vmem:[#allocation2 + $0x80] sm:$0xff] %vm1786, %v1713
        %1796 = vst.msk [vmem:[#allocation2 + $0x90] sm:$0xff] %vm1786, %v1715
        %1797 = vst.msk [vmem:[#allocation2 + $0xa0] sm:$0xff] %vm1786, %v1717
        %1798 = vst.msk [vmem:[#allocation2 + $0xb0] sm:$0xff] %vm1786, %v1719
        %1799 = vst.msk [vmem:[#allocation2 + $0xc0] sm:$0xff] %vm1786, %v1721
        %1800 = vst.msk [vmem:[#allocation2 + $0xd0] sm:$0xff] %vm1786, %v1723
        %1801 = vst.msk [vmem:[#allocation2 + $0xe0] sm:$0xff] %vm1786, %v1725
        %1802 = vst.msk [vmem:[#allocation2 + $0xf0] sm:$0xff] %vm1786, %v1727
        %1803 = vst.msk [vmem:[#allocation2 + $0x100] sm:$0xff] %vm1786, %v1729
        %1804 = vst.msk [vmem:[#allocation2 + $0x110] sm:$0xff] %vm1786, %v1731
        %1805 = vst.msk [vmem:[#allocation2 + $0x120] sm:$0xff] %vm1786, %v1733
        %1806 = vst.msk [vmem:[#allocation2 + $0x130] sm:$0xff] %vm1786, %v1735
        %1807 = vst.msk [vmem:[#allocation2 + $0x140] sm:$0xff] %vm1786, %v1737
        %1808 = vst.msk [vmem:[#allocation2 + $0x150] sm:$0xff] %vm1786, %v1739
        %1809 = vst.msk [vmem:[#allocation2 + $0x160] sm:$0xff] %vm1786, %v1741
        %1810 = vst.msk [vmem:[#allocation2 + $0x170] sm:$0xff] %vm1786, %v1743
        %1811 = vst.msk [vmem:[#allocation2 + $0x180] sm:$0xff] %vm1786, %v1745
        %1812 = vst.msk [vmem:[#allocation2 + $0x190] sm:$0xff] %vm1786, %v1747
        %1813 = vst.msk [vmem:[#allocation2 + $0x1a0] sm:$0xff] %vm1786, %v1749
        %1814 = vst.msk [vmem:[#allocation2 + $0x1b0] sm:$0xff] %vm1786, %v1751
        %1815 = vst.msk [vmem:[#allocation2 + $0x1c0] sm:$0xff] %vm1786, %v1753
        %1816 = vst.msk [vmem:[#allocation2 + $0x1d0] sm:$0xff] %vm1786, %v1755
        %1817 = vrot.lane.b32.xlu0 %v1015, 32
        %v1818 = vpop.permute.xlu0 %1817
        %1819 = vrot.lane.b32.xlu0 %v1014, 32
        %v1820 = vpop.permute.xlu0 %1819
        %1821 = vrot.lane.b32.xlu0 %v1018, 32
        %v1822 = vpop.permute.xlu0 %1821
        %1823 = vrot.lane.b32.xlu0 %v1017, 32
        %v1824 = vpop.permute.xlu0 %1823
        %1825 = vrot.lane.b32.xlu0 %v1021, 32
        %v1826 = vpop.permute.xlu0 %1825
        %1827 = vrot.lane.b32.xlu0 %v1020, 32
        %v1828 = vpop.permute.xlu0 %1827
        %1829 = vrot.lane.b32.xlu0 %v1024, 32
        %v1830 = vpop.permute.xlu0 %1829
        %1831 = vrot.lane.b32.xlu0 %v1023, 32
        %v1832 = vpop.permute.xlu0 %1831
        %1833 = vrot.lane.b32.xlu0 %v1027, 32
        %v1834 = vpop.permute.xlu0 %1833
        %1835 = vrot.lane.b32.xlu0 %v1026, 32
        %v1836 = vpop.permute.xlu0 %1835
        %1837 = vrot.lane.b32.xlu0 %v1030, 32
        %v1838 = vpop.permute.xlu0 %1837
        %1839 = vrot.lane.b32.xlu0 %v1029, 32
        %v1840 = vpop.permute.xlu0 %1839
        %1841 = vrot.lane.b32.xlu0 %v1033, 32
        %v1842 = vpop.permute.xlu0 %1841
        %1843 = vrot.lane.b32.xlu0 %v1032, 32
        %v1844 = vpop.permute.xlu0 %1843
        %1845 = vrot.lane.b32.xlu0 %v1036, 32
        %v1846 = vpop.permute.xlu0 %1845
        %1847 = vrot.lane.b32.xlu0 %v1035, 32
        %v1848 = vpop.permute.xlu0 %1847
        %1849 = vrot.lane.b32.xlu0 %v1039, 32
        %v1850 = vpop.permute.xlu0 %1849
        %1851 = vrot.lane.b32.xlu0 %v1038, 32
        %v1852 = vpop.permute.xlu0 %1851
        %1853 = vrot.lane.b32.xlu0 %v1042, 32
        %v1854 = vpop.permute.xlu0 %1853
        %1855 = vrot.lane.b32.xlu0 %v1041, 32
        %v1856 = vpop.permute.xlu0 %1855
        %1857 = vrot.lane.b32.xlu0 %v1045, 32
        %v1858 = vpop.permute.xlu0 %1857
        %1859 = vrot.lane.b32.xlu0 %v1044, 32
        %v1860 = vpop.permute.xlu0 %1859
        %1861 = vrot.lane.b32.xlu0 %v1048, 32
        %v1862 = vpop.permute.xlu0 %1861
        %1863 = vrot.lane.b32.xlu0 %v1047, 32
        %v1864 = vpop.permute.xlu0 %1863
        %1865 = vrot.lane.b32.xlu0 %v1051, 32
        %v1866 = vpop.permute.xlu0 %1865
        %1867 = vrot.lane.b32.xlu0 %v1050, 32
        %v1868 = vpop.permute.xlu0 %1867
        %1869 = vrot.lane.b32.xlu0 %v1054, 32
        %v1870 = vpop.permute.xlu0 %1869
        %1871 = vrot.lane.b32.xlu0 %v1053, 32
        %v1872 = vpop.permute.xlu0 %1871
        %1873 = vrot.lane.b32.xlu0 %v1443, 32
        %v1874 = vpop.permute.xlu0 %1873
        %1875 = vrot.lane.b32.xlu0 %v1442, 32
        %v1876 = vpop.permute.xlu0 %1875
        %vm1907 = vcmask 294144
        %1908 = vst.msk [vmem:[#allocation2] sm:$0xff] %vm1907, %v1818
        %vm1909 = vcmask 293120
        %1910 = vst.msk [vmem:[#allocation2 + $0x10] sm:$0x7f] %vm1909, %v1820
        %1911 = vst.msk [vmem:[#allocation2 + $0x20] sm:$0xff] %vm1907, %v1822
        %1912 = vst.msk [vmem:[#allocation2 + $0x30] sm:$0x7f] %vm1909, %v1824
        %1913 = vst.msk [vmem:[#allocation2 + $0x40] sm:$0xff] %vm1907, %v1826
        %1914 = vst.msk [vmem:[#allocation2 + $0x50] sm:$0x7f] %vm1909, %v1828
        %1915 = vst.msk [vmem:[#allocation2 + $0x60] sm:$0xff] %vm1907, %v1830
        %1916 = vst.msk [vmem:[#allocation2 + $0x70] sm:$0x7f] %vm1909, %v1832
        %1917 = vst.msk [vmem:[#allocation2 + $0x80] sm:$0xff] %vm1907, %v1834
        %1918 = vst.msk [vmem:[#allocation2 + $0x90] sm:$0x7f] %vm1909, %v1836
        %1919 = vst.msk [vmem:[#allocation2 + $0xa0] sm:$0xff] %vm1907, %v1838
        %1920 = vst.msk [vmem:[#allocation2 + $0xb0] sm:$0x7f] %vm1909, %v1840
        %1921 = vst.msk [vmem:[#allocation2 + $0xc0] sm:$0xff] %vm1907, %v1842
        %1922 = vst.msk [vmem:[#allocation2 + $0xd0] sm:$0x7f] %vm1909, %v1844
        %1923 = vst.msk [vmem:[#allocation2 + $0xe0] sm:$0xff] %vm1907, %v1846
        %1924 = vst.msk [vmem:[#allocation2 + $0xf0] sm:$0x7f] %vm1909, %v1848
        %1925 = vst.msk [vmem:[#allocation2 + $0x100] sm:$0xff] %vm1907, %v1850
        %1926 = vst.msk [vmem:[#allocation2 + $0x110] sm:$0x7f] %vm1909, %v1852
        %1927 = vst.msk [vmem:[#allocation2 + $0x120] sm:$0xff] %vm1907, %v1854
        %1928 = vst.msk [vmem:[#allocation2 + $0x130] sm:$0x7f] %vm1909, %v1856
        %1929 = vst.msk [vmem:[#allocation2 + $0x140] sm:$0xff] %vm1907, %v1858
        %1930 = vst.msk [vmem:[#allocation2 + $0x150] sm:$0x7f] %vm1909, %v1860
        %1931 = vst.msk [vmem:[#allocation2 + $0x160] sm:$0xff] %vm1907, %v1862
        %1932 = vst.msk [vmem:[#allocation2 + $0x170] sm:$0x7f] %vm1909, %v1864
        %1933 = vst.msk [vmem:[#allocation2 + $0x180] sm:$0xff] %vm1907, %v1866
        %1934 = vst.msk [vmem:[#allocation2 + $0x190] sm:$0x7f] %vm1909, %v1868
        %1935 = vst.msk [vmem:[#allocation2 + $0x1a0] sm:$0xff] %vm1907, %v1870
        %1936 = vst.msk [vmem:[#allocation2 + $0x1b0] sm:$0x7f] %vm1909, %v1872
        %1937 = vst.msk [vmem:[#allocation2 + $0x1c0] sm:$0xff] %vm1907, %v1874
        %1938 = vst.msk [vmem:[#allocation2 + $0x1d0] sm:$0x7f] %vm1909, %v1876
        %v1939 = vld [vmem:[#allocation2] sm:$0xff]
        %v1940 = vld [vmem:[#allocation2 + $0x10] sm:$0xff]
        %v1941 = vld [vmem:[#allocation2 + $0x20] sm:$0xff]
        %v1942 = vld [vmem:[#allocation2 + $0x30] sm:$0xff]
        %v1943 = vld [vmem:[#allocation2 + $0x40] sm:$0xff]
        %v1944 = vld [vmem:[#allocation2 + $0x50] sm:$0xff]
        %v1945 = vld [vmem:[#allocation2 + $0x60] sm:$0xff]
        %v1946 = vld [vmem:[#allocation2 + $0x70] sm:$0xff]
        %v1947 = vld [vmem:[#allocation2 + $0x80] sm:$0xff]
        %v1948 = vld [vmem:[#allocation2 + $0x90] sm:$0xff]
        %v1949 = vld [vmem:[#allocation2 + $0xa0] sm:$0xff]
        %v1950 = vld [vmem:[#allocation2 + $0xb0] sm:$0xff]
        %v1951 = vld [vmem:[#allocation2 + $0xc0] sm:$0xff]
        %v1952 = vld [vmem:[#allocation2 + $0xd0] sm:$0xff]
        %v1953 = vld [vmem:[#allocation2 + $0xe0] sm:$0xff]
        %v1954 = vld [vmem:[#allocation2 + $0xf0] sm:$0xff]
        %v1955 = vld [vmem:[#allocation2 + $0x100] sm:$0xff]
        %v1956 = vld [vmem:[#allocation2 + $0x110] sm:$0xff]
        %v1957 = vld [vmem:[#allocation2 + $0x120] sm:$0xff]
        %v1958 = vld [vmem:[#allocation2 + $0x130] sm:$0xff]
        %v1959 = vld [vmem:[#allocation2 + $0x140] sm:$0xff]
        %v1960 = vld [vmem:[#allocation2 + $0x150] sm:$0xff]
        %v1961 = vld [vmem:[#allocation2 + $0x160] sm:$0xff]
        %v1962 = vld [vmem:[#allocation2 + $0x170] sm:$0xff]
        %v1963 = vld [vmem:[#allocation2 + $0x180] sm:$0xff]
        %v1964 = vld [vmem:[#allocation2 + $0x190] sm:$0xff]
        %v1965 = vld [vmem:[#allocation2 + $0x1a0] sm:$0xff]
        %v1966 = vld [vmem:[#allocation2 + $0x1b0] sm:$0xff]
        %v1967 = vld [vmem:[#allocation2 + $0x1c0] sm:$0xff]
        %v1968 = vld [vmem:[#allocation2 + $0x1d0] sm:$0xff]
        %v1969 = vld [vmem:[#allocation2 + $0x1e0] sm:$0xff]
        %v1970 = vld [vmem:[#allocation2 + $0x1f0] sm:$0xff]
        %v1971 = vpack.c.bf16 %v1940, %v1939
        %v1972 = vpack.c.bf16 %v1942, %v1941
        %v1973 = vpack.c.bf16 %v1944, %v1943
        %v1974 = vpack.c.bf16 %v1946, %v1945
        %v1975 = vpack.c.bf16 %v1948, %v1947
        %v1976 = vpack.c.bf16 %v1950, %v1949
        %v1977 = vpack.c.bf16 %v1952, %v1951
        %v1978 = vpack.c.bf16 %v1954, %v1953
        %v1979 = vpack.c.bf16 %v1956, %v1955
        %v1980 = vpack.c.bf16 %v1958, %v1957
        %v1981 = vpack.c.bf16 %v1960, %v1959
        %v1982 = vpack.c.bf16 %v1962, %v1961
        %v1983 = vpack.c.bf16 %v1964, %v1963
        %v1984 = vpack.c.bf16 %v1966, %v1965
        %v1985 = vpack.c.bf16 %v1968, %v1967
        %v1986 = vpack.c.bf16 %v1970, %v1969
        %v1988 = vlaneseq
        %v1989 = vshrl.u32 %v1988, 7
        %v1990 = vsub.s32 0, %v1989
        %v1991 = vrot.slane %v584, %v1990
        %v1998 = vunpack.c.l.b16 %v579
        %v1999 = vunpack.c.l.b16 %v580
        %v2000 = vunpack.c.l.b16 %v581
        %v2001 = vunpack.c.l.b16 %v582
        %v2002 = vunpack.c.l.b16 %v583
        %v2003 = vpack.c.b16 %v1999, %v1998
        %v2004 = vpack.c.b16 %v2001, %v2000
        %v2005 = vpack.c.b16 %v2002, %v2002
        %v2009 = vsel %vm716, %v1971, 0
        %v2012 = vsel %vm716, %v1972, 0
        %v2015 = vsel %vm716, %v1973, 0
        %v2018 = vsel %vm716, %v1974, 0
        %v2021 = vsel %vm716, %v1975, 0
        %v2024 = vsel %vm716, %v1976, 0
        %v2027 = vsel %vm716, %v1977, 0
        %v2030 = vsel %vm716, %v1978, 0
        %v2033 = vsel %vm716, %v1979, 0
        %v2036 = vsel %vm716, %v1980, 0
        %v2039 = vsel %vm716, %v1981, 0
        %v2042 = vsel %vm716, %v1982, 0
        %v2045 = vsel %vm716, %v1983, 0
        %v2048 = vsel %vm716, %v1984, 0
        %v2051 = vsel %vm716, %v1985, 0
        %v2054 = vsel %vm716, %v1986, 0
        %vm2056 = vcmask 1041408
        %v2058 = vsel %vm2056, %v2005, 0
        %2060 = vmatprep.subr.bf16.mxu0 0
        %2061 = vmatpush1.bf16.msra.mxu0 %v2003
        %2062 = vmatprep.subr.bf16.mxu0 0
        %2063 = vmatpush1.bf16.msra.mxu0 %v2004
        %2064 = vmatprep.subr.bf16.mxu0 0
        %2065 = vmatpush1.bf16.msra.mxu0 %v2058
        %2066 = vmatprep.subr.bf16.mxu0 0
        %2067 = vmatpush1.bf16.msra.mxu0 0
        %2068 = vmatprep.subr.bf16.mxu0 0
        %2069 = vmatpush1.bf16.msra.mxu0 0
        %2070 = vmatprep.subr.bf16.mxu0 0
        %2071 = vmatpush1.bf16.msra.mxu0 0
        %2072 = vmatprep.subr.bf16.mxu0 0
        %2073 = vmatpush1.bf16.msra.mxu0 0
        %2074 = vmatprep.subr.bf16.mxu0 0
        %2075 = vmatpush1.bf16.msra.mxu0 0
        %2076 = vmatprep.subr.bf16.mxu0 0
        %2077 = vmatpush1.bf16.msra.mxu0 0
        %2078 = vmatprep.subr.bf16.mxu0 0
        %2079 = vmatpush1.bf16.msra.mxu0 0
        %2080 = vmatprep.subr.bf16.mxu0 0
        %2081 = vmatpush1.bf16.msra.mxu0 0
        %2082 = vmatprep.subr.bf16.mxu0 0
        %2083 = vmatpush1.bf16.msra.mxu0 0
        %2084 = vmatprep.subr.bf16.mxu0 0
        %2085 = vmatpush1.bf16.msra.mxu0 0
        %2086 = vmatprep.subr.bf16.mxu0 0
        %2087 = vmatpush1.bf16.msra.mxu0 0
        %2088 = vmatprep.subr.bf16.mxu0 0
        %2089 = vmatpush1.bf16.msra.mxu0 0
        %2090 = vmatprep.subr.bf16.mxu0 0
        %2091 = vmatpush1.bf16.msra.mxu0 0
        %2092 = vmatprep.mubr.bf16.mxu0 0
        %2093 = vmatmul.mubr.bf16.gmra.mrb[0].mxu0 %v2009
        %v2094 = vpop.f32.mrb[0].mxu0
        %v2095 = vadd.f32 %v1991, %v2094
        %v2096 = vpop.f32.mrb[0].mxu0
        %v2097 = vpop.f32.mrb[0].mxu0
        %v2098 = vadd.f32 %v1991, %v2097
        %v2099 = vpop.f32.mrb[0].mxu0
        %2100 = vmatprep.mubr.bf16.mxu0 0
        %2101 = vmatmul.mubr.bf16.gmra.mrb[0].mxu0 %v2012
        %v2102 = vpop.f32.mrb[0].mxu0
        %v2103 = vadd.f32 %v1991, %v2102
        %v2104 = vpop.f32.mrb[0].mxu0
        %v2105 = vpop.f32.mrb[0].mxu0
        %v2106 = vadd.f32 %v1991, %v2105
        %v2107 = vpop.f32.mrb[0].mxu0
        %2108 = vmatprep.mubr.bf16.mxu0 0
        %2109 = vmatmul.mubr.bf16.gmra.mrb[0].mxu0 %v2015
        %v2110 = vpop.f32.mrb[0].mxu0
        %v2111 = vadd.f32 %v1991, %v2110
        %v2112 = vpop.f32.mrb[0].mxu0
        %v2113 = vpop.f32.mrb[0].mxu0
        %v2114 = vadd.f32 %v1991, %v2113
        %v2115 = vpop.f32.mrb[0].mxu0
        %2116 = vmatprep.mubr.bf16.mxu0 0
        %2117 = vmatmul.mubr.bf16.gmra.mrb[0].mxu0 %v2018
        %v2118 = vpop.f32.mrb[0].mxu0
        %v2119 = vadd.f32 %v1991, %v2118
        %v2120 = vpop.f32.mrb[0].mxu0
        %v2121 = vpop.f32.mrb[0].mxu0
        %v2122 = vadd.f32 %v1991, %v2121
        %v2123 = vpop.f32.mrb[0].mxu0
        %2124 = vmatprep.mubr.bf16.mxu0 0
        %2125 = vmatmul.mubr.bf16.gmra.mrb[0].mxu0 %v2021
        %v2126 = vpop.f32.mrb[0].mxu0
        %v2127 = vadd.f32 %v1991, %v2126
        %v2128 = vpop.f32.mrb[0].mxu0
        %v2129 = vpop.f32.mrb[0].mxu0
        %v2130 = vadd.f32 %v1991, %v2129
        %v2131 = vpop.f32.mrb[0].mxu0
        %2132 = vmatprep.mubr.bf16.mxu0 0
        %2133 = vmatmul.mubr.bf16.gmra.mrb[0].mxu0 %v2024
        %v2134 = vpop.f32.mrb[0].mxu0
        %v2135 = vadd.f32 %v1991, %v2134
        %v2136 = vpop.f32.mrb[0].mxu0
        %v2137 = vpop.f32.mrb[0].mxu0
        %v2138 = vadd.f32 %v1991, %v2137
        %v2139 = vpop.f32.mrb[0].mxu0
        %2140 = vmatprep.mubr.bf16.mxu0 0
        %2141 = vmatmul.mubr.bf16.gmra.mrb[0].mxu0 %v2027
        %v2142 = vpop.f32.mrb[0].mxu0
        %v2143 = vadd.f32 %v1991, %v2142
        %v2144 = vpop.f32.mrb[0].mxu0
        %v2145 = vpop.f32.mrb[0].mxu0
        %v2146 = vadd.f32 %v1991, %v2145
        %v2147 = vpop.f32.mrb[0].mxu0
        %2148 = vmatprep.mubr.bf16.mxu0 0
        %2149 = vmatmul.mubr.bf16.gmra.mrb[0].mxu0 %v2030
        %v2150 = vpop.f32.mrb[0].mxu0
        %v2151 = vadd.f32 %v1991, %v2150
        %v2152 = vpop.f32.mrb[0].mxu0
        %v2153 = vpop.f32.mrb[0].mxu0
        %v2154 = vadd.f32 %v1991, %v2153
        %v2155 = vpop.f32.mrb[0].mxu0
        %2156 = vmatprep.mubr.bf16.mxu0 0
        %2157 = vmatmul.mubr.bf16.gmra.mrb[0].mxu0 %v2033
        %v2158 = vpop.f32.mrb[0].mxu0
        %v2159 = vadd.f32 %v1991, %v2158
        %v2160 = vpop.f32.mrb[0].mxu0
        %v2161 = vpop.f32.mrb[0].mxu0
        %v2162 = vadd.f32 %v1991, %v2161
        %v2163 = vpop.f32.mrb[0].mxu0
        %2164 = vmatprep.mubr.bf16.mxu0 0
        %2165 = vmatmul.mubr.bf16.gmra.mrb[0].mxu0 %v2036
        %v2166 = vpop.f32.mrb[0].mxu0
        %v2167 = vadd.f32 %v1991, %v2166
        %v2168 = vpop.f32.mrb[0].mxu0
        %v2169 = vpop.f32.mrb[0].mxu0
        %v2170 = vadd.f32 %v1991, %v2169
        %v2171 = vpop.f32.mrb[0].mxu0
        %2172 = vmatprep.mubr.bf16.mxu0 0
        %2173 = vmatmul.mubr.bf16.gmra.mrb[0].mxu0 %v2039
        %v2174 = vpop.f32.mrb[0].mxu0
        %v2175 = vadd.f32 %v1991, %v2174
        %v2176 = vpop.f32.mrb[0].mxu0
        %v2177 = vpop.f32.mrb[0].mxu0
        %v2178 = vadd.f32 %v1991, %v2177
        %v2179 = vpop.f32.mrb[0].mxu0
        %2180 = vmatprep.mubr.bf16.mxu0 0
        %2181 = vmatmul.mubr.bf16.gmra.mrb[0].mxu0 %v2042
        %v2182 = vpop.f32.mrb[0].mxu0
        %v2183 = vadd.f32 %v1991, %v2182
        %v2184 = vpop.f32.mrb[0].mxu0
        %v2185 = vpop.f32.mrb[0].mxu0
        %v2186 = vadd.f32 %v1991, %v2185
        %v2187 = vpop.f32.mrb[0].mxu0
        %2188 = vmatprep.mubr.bf16.mxu0 0
        %2189 = vmatmul.mubr.bf16.gmra.mrb[0].mxu0 %v2045
        %v2190 = vpop.f32.mrb[0].mxu0
        %v2191 = vadd.f32 %v1991, %v2190
        %v2192 = vpop.f32.mrb[0].mxu0
        %v2193 = vpop.f32.mrb[0].mxu0
        %v2194 = vadd.f32 %v1991, %v2193
        %v2195 = vpop.f32.mrb[0].mxu0
        %2196 = vmatprep.mubr.bf16.mxu0 0
        %2197 = vmatmul.mubr.bf16.gmra.mrb[0].mxu0 %v2048
        %v2198 = vpop.f32.mrb[0].mxu0
        %v2199 = vadd.f32 %v1991, %v2198
        %v2200 = vpop.f32.mrb[0].mxu0
        %v2201 = vpop.f32.mrb[0].mxu0
        %v2202 = vadd.f32 %v1991, %v2201
        %v2203 = vpop.f32.mrb[0].mxu0
        %2204 = vmatprep.mubr.bf16.mxu0 0
        %2205 = vmatmul.mubr.bf16.gmra.mrb[0].mxu0 %v2051
        %v2206 = vpop.f32.mrb[0].mxu0
        %v2207 = vadd.f32 %v1991, %v2206
        %v2208 = vpop.f32.mrb[0].mxu0
        %v2209 = vpop.f32.mrb[0].mxu0
        %v2210 = vadd.f32 %v1991, %v2209
        %v2211 = vpop.f32.mrb[0].mxu0
        %2212 = vmatprep.mubr.bf16.mxu0 0
        %2213 = vmatmul.mubr.bf16.gmra.mrb[0].mxu0 %v2054
        %v2214 = vpop.f32.mrb[0].mxu0
        %v2215 = vadd.f32 %v1991, %v2214
        %v2216 = vpop.f32.mrb[0].mxu0
        %v2217 = vpop.f32.mrb[0].mxu0
        %v2218 = vadd.f32 %v1991, %v2217
        %v2219 = vpop.f32.mrb[0].mxu0
        %2220 = vdwg.mxu0
        %vm2221 = vcmp.gt.f32.partialorder %v2095, 0.0
        %vm2222 = vcmp.gt.f32.partialorder %v2098, 0.0
        %vm2223 = vcmp.gt.f32.partialorder %v2103, 0.0
        %vm2224 = vcmp.gt.f32.partialorder %v2106, 0.0
        %vm2225 = vcmp.gt.f32.partialorder %v2111, 0.0
        %vm2226 = vcmp.gt.f32.partialorder %v2114, 0.0
        %vm2227 = vcmp.gt.f32.partialorder %v2119, 0.0
        %vm2228 = vcmp.gt.f32.partialorder %v2122, 0.0
        %vm2229 = vcmp.gt.f32.partialorder %v2127, 0.0
        %vm2230 = vcmp.gt.f32.partialorder %v2130, 0.0
        %vm2231 = vcmp.gt.f32.partialorder %v2135, 0.0
        %vm2232 = vcmp.gt.f32.partialorder %v2138, 0.0
        %vm2233 = vcmp.gt.f32.partialorder %v2143, 0.0
        %vm2234 = vcmp.gt.f32.partialorder %v2146, 0.0
        %vm2235 = vcmp.gt.f32.partialorder %v2151, 0.0
        %vm2236 = vcmp.gt.f32.partialorder %v2154, 0.0
        %vm2237 = vcmp.gt.f32.partialorder %v2159, 0.0
        %vm2238 = vcmp.gt.f32.partialorder %v2162, 0.0
        %vm2239 = vcmp.gt.f32.partialorder %v2167, 0.0
        %vm2240 = vcmp.gt.f32.partialorder %v2170, 0.0
        %vm2241 = vcmp.gt.f32.partialorder %v2175, 0.0
        %vm2242 = vcmp.gt.f32.partialorder %v2178, 0.0
        %vm2243 = vcmp.gt.f32.partialorder %v2183, 0.0
        %vm2244 = vcmp.gt.f32.partialorder %v2186, 0.0
        %vm2245 = vcmp.gt.f32.partialorder %v2191, 0.0
        %vm2246 = vcmp.gt.f32.partialorder %v2194, 0.0
        %vm2247 = vcmp.gt.f32.partialorder %v2199, 0.0
        %vm2248 = vcmp.gt.f32.partialorder %v2202, 0.0
        %vm2249 = vcmp.gt.f32.partialorder %v2207, 0.0
        %vm2250 = vcmp.gt.f32.partialorder %v2210, 0.0
        %vm2251 = vcmp.gt.f32.partialorder %v2215, 0.0
        %vm2252 = vcmp.gt.f32.partialorder %v2218, 0.0
        %v2253 = vmul.f32 %v2095, 0.2
        %v2254 = vmul.f32 %v2098, 0.2
        %v2255 = vmul.f32 %v2103, 0.2
        %v2256 = vmul.f32 %v2106, 0.2
        %v2257 = vmul.f32 %v2111, 0.2
        %v2258 = vmul.f32 %v2114, 0.2
        %v2259 = vmul.f32 %v2119, 0.2
        %v2260 = vmul.f32 %v2122, 0.2
        %v2261 = vmul.f32 %v2127, 0.2
        %v2262 = vmul.f32 %v2130, 0.2
        %v2263 = vmul.f32 %v2135, 0.2
        %v2264 = vmul.f32 %v2138, 0.2
        %v2265 = vmul.f32 %v2143, 0.2
        %v2266 = vmul.f32 %v2146, 0.2
        %v2267 = vmul.f32 %v2151, 0.2
        %v2268 = vmul.f32 %v2154, 0.2
        %v2269 = vmul.f32 %v2159, 0.2
        %v2270 = vmul.f32 %v2162, 0.2
        %v2271 = vmul.f32 %v2167, 0.2
        %v2272 = vmul.f32 %v2170, 0.2
        %v2273 = vmul.f32 %v2175, 0.2
        %v2274 = vmul.f32 %v2178, 0.2
        %v2275 = vmul.f32 %v2183, 0.2
        %v2276 = vmul.f32 %v2186, 0.2
        %v2277 = vmul.f32 %v2191, 0.2
        %v2278 = vmul.f32 %v2194, 0.2
        %v2279 = vmul.f32 %v2199, 0.2
        %v2280 = vmul.f32 %v2202, 0.2
        %v2281 = vmul.f32 %v2207, 0.2
        %v2282 = vmul.f32 %v2210, 0.2
        %v2283 = vmul.f32 %v2215, 0.2
        %v2284 = vmul.f32 %v2218, 0.2
        %v2285 = vsel %vm2221, %v2095, %v2253
        %v2286 = vsel %vm2222, %v2098, %v2254
        %v2287 = vsel %vm2223, %v2103, %v2255
        %v2288 = vsel %vm2224, %v2106, %v2256
        %v2289 = vsel %vm2225, %v2111, %v2257
        %v2290 = vsel %vm2226, %v2114, %v2258
        %v2291 = vsel %vm2227, %v2119, %v2259
        %v2292 = vsel %vm2228, %v2122, %v2260
        %v2293 = vsel %vm2229, %v2127, %v2261
        %v2294 = vsel %vm2230, %v2130, %v2262
        %v2295 = vsel %vm2231, %v2135, %v2263
        %v2296 = vsel %vm2232, %v2138, %v2264
        %v2297 = vsel %vm2233, %v2143, %v2265
        %v2298 = vsel %vm2234, %v2146, %v2266
        %v2299 = vsel %vm2235, %v2151, %v2267
        %v2300 = vsel %vm2236, %v2154, %v2268
        %v2301 = vsel %vm2237, %v2159, %v2269
        %v2302 = vsel %vm2238, %v2162, %v2270
        %v2303 = vsel %vm2239, %v2167, %v2271
        %v2304 = vsel %vm2240, %v2170, %v2272
        %v2305 = vsel %vm2241, %v2175, %v2273
        %v2306 = vsel %vm2242, %v2178, %v2274
        %v2307 = vsel %vm2243, %v2183, %v2275
        %v2308 = vsel %vm2244, %v2186, %v2276
        %v2309 = vsel %vm2245, %v2191, %v2277
        %v2310 = vsel %vm2246, %v2194, %v2278
        %v2311 = vsel %vm2247, %v2199, %v2279
        %v2312 = vsel %vm2248, %v2202, %v2280
        %v2313 = vsel %vm2249, %v2207, %v2281
        %v2314 = vsel %vm2250, %v2210, %v2282
        %v2315 = vsel %vm2251, %v2215, %v2283
        %v2316 = vsel %vm2252, %v2218, %v2284
        %vm2317 = vcmask 588800
        %2318 = vst.msk [vmem:[#allocation2] sm:$0xff] %vm2317, 0.0
        %2319 = vst.msk [vmem:[#allocation2 + $0x10] sm:$0xff] %vm2317, 0.0
        %2320 = vst.msk [vmem:[#allocation2 + $0x20] sm:$0xff] %vm2317, 0.0
        %2321 = vst.msk [vmem:[#allocation2 + $0x30] sm:$0xff] %vm2317, 0.0
        %2322 = vst.msk [vmem:[#allocation2 + $0x40] sm:$0xff] %vm2317, 0.0
        %2323 = vst.msk [vmem:[#allocation2 + $0x50] sm:$0xff] %vm2317, 0.0
        %2324 = vst.msk [vmem:[#allocation2 + $0x60] sm:$0xff] %vm2317, 0.0
        %2325 = vst.msk [vmem:[#allocation2 + $0x70] sm:$0xff] %vm2317, 0.0
        %2326 = vst.msk [vmem:[#allocation2 + $0x80] sm:$0xff] %vm2317, 0.0
        %2327 = vst.msk [vmem:[#allocation2 + $0x90] sm:$0xff] %vm2317, 0.0
        %2328 = vst.msk [vmem:[#allocation2 + $0xa0] sm:$0xff] %vm2317, 0.0
        %2329 = vst.msk [vmem:[#allocation2 + $0xb0] sm:$0xff] %vm2317, 0.0
        %2330 = vst.msk [vmem:[#allocation2 + $0xc0] sm:$0xff] %vm2317, 0.0
        %2331 = vst.msk [vmem:[#allocation2 + $0xd0] sm:$0xff] %vm2317, 0.0
        %2332 = vst.msk [vmem:[#allocation2 + $0xe0] sm:$0xff] %vm2317, 0.0
        %2333 = vst.msk [vmem:[#allocation2 + $0xf0] sm:$0xff] %vm2317, 0.0
        %2334 = vst.msk [vmem:[#allocation2 + $0x100] sm:$0xff] %vm2317, 0.0
        %2335 = vst.msk [vmem:[#allocation2 + $0x110] sm:$0xff] %vm2317, 0.0
        %2336 = vst.msk [vmem:[#allocation2 + $0x120] sm:$0xff] %vm2317, 0.0
        %2337 = vst.msk [vmem:[#allocation2 + $0x130] sm:$0xff] %vm2317, 0.0
        %2338 = vst.msk [vmem:[#allocation2 + $0x140] sm:$0xff] %vm2317, 0.0
        %2339 = vst.msk [vmem:[#allocation2 + $0x150] sm:$0xff] %vm2317, 0.0
        %2340 = vst.msk [vmem:[#allocation2 + $0x160] sm:$0xff] %vm2317, 0.0
        %2341 = vst.msk [vmem:[#allocation2 + $0x170] sm:$0xff] %vm2317, 0.0
        %2342 = vst.msk [vmem:[#allocation2 + $0x180] sm:$0xff] %vm2317, 0.0
        %2343 = vst.msk [vmem:[#allocation2 + $0x190] sm:$0xff] %vm2317, 0.0
        %2344 = vst.msk [vmem:[#allocation2 + $0x1a0] sm:$0xff] %vm2317, 0.0
        %2345 = vst.msk [vmem:[#allocation2 + $0x1b0] sm:$0xff] %vm2317, 0.0
        %2346 = vst.msk [vmem:[#allocation2 + $0x1c0] sm:$0xff] %vm2317, 0.0
        %2347 = vst.msk [vmem:[#allocation2 + $0x1d0] sm:$0xff] %vm2317, 0.0
        %2348 = vst.msk [vmem:[#allocation2 + $0x1e0] sm:$0xff] %vm2317, 0.0
        %2349 = vst.msk [vmem:[#allocation2 + $0x1f0] sm:$0xff] %vm2317, 0.0
        %v2380 = vrot.slane %v2285, 7
        %v2381 = vrot.slane %v2286, 7
        %v2382 = vsel %vm779, %v2380, %v2381
        %v2383 = vrot.slane %v2287, 7
        %v2384 = vrot.slane %v2288, 7
        %v2385 = vsel %vm779, %v2383, %v2384
        %v2386 = vrot.slane %v2289, 7
        %v2387 = vrot.slane %v2290, 7
        %v2388 = vsel %vm779, %v2386, %v2387
        %v2389 = vrot.slane %v2291, 7
        %v2390 = vrot.slane %v2292, 7
        %v2391 = vsel %vm779, %v2389, %v2390
        %v2392 = vrot.slane %v2293, 7
        %v2393 = vrot.slane %v2294, 7
        %v2394 = vsel %vm779, %v2392, %v2393
        %v2395 = vrot.slane %v2295, 7
        %v2396 = vrot.slane %v2296, 7
        %v2397 = vsel %vm779, %v2395, %v2396
        %v2398 = vrot.slane %v2297, 7
        %v2399 = vrot.slane %v2298, 7
        %v2400 = vsel %vm779, %v2398, %v2399
        %v2401 = vrot.slane %v2299, 7
        %v2402 = vrot.slane %v2300, 7
        %v2403 = vsel %vm779, %v2401, %v2402
        %v2404 = vrot.slane %v2301, 7
        %v2405 = vrot.slane %v2302, 7
        %v2406 = vsel %vm779, %v2404, %v2405
        %v2407 = vrot.slane %v2303, 7
        %v2408 = vrot.slane %v2304, 7
        %v2409 = vsel %vm779, %v2407, %v2408
        %v2410 = vrot.slane %v2305, 7
        %v2411 = vrot.slane %v2306, 7
        %v2412 = vsel %vm779, %v2410, %v2411
        %v2413 = vrot.slane %v2307, 7
        %v2414 = vrot.slane %v2308, 7
        %v2415 = vsel %vm779, %v2413, %v2414
        %v2416 = vrot.slane %v2309, 7
        %v2417 = vrot.slane %v2310, 7
        %v2418 = vsel %vm779, %v2416, %v2417
        %v2419 = vrot.slane %v2311, 7
        %v2420 = vrot.slane %v2312, 7
        %v2421 = vsel %vm779, %v2419, %v2420
        %v2422 = vrot.slane %v2313, 7
        %v2423 = vrot.slane %v2314, 7
        %v2424 = vsel %vm779, %v2422, %v2423
        %vm2455 = vcmask 64513
        %2456 = vst.msk [vmem:[%s855] sm:$0xfe] %vm2455, %v2380
        %vm2457 = vcmask 64512
        %2458 = vst.msk [vmem:[%s855 + $0x10] sm:$0xff] %vm2457, %v2382
        %2459 = vst.msk [vmem:[%s855 + $0x20] sm:$0xfe] %vm2455, %v2383
        %2460 = vst.msk [vmem:[%s855 + $0x30] sm:$0xff] %vm2457, %v2385
        %2461 = vst.msk [vmem:[%s855 + $0x40] sm:$0xfe] %vm2455, %v2386
        %2462 = vst.msk [vmem:[%s855 + $0x50] sm:$0xff] %vm2457, %v2388
        %2463 = vst.msk [vmem:[%s855 + $0x60] sm:$0xfe] %vm2455, %v2389
        %2464 = vst.msk [vmem:[%s855 + $0x70] sm:$0xff] %vm2457, %v2391
        %2465 = vst.msk [vmem:[%s855 + $0x80] sm:$0xfe] %vm2455, %v2392
        %2466 = vst.msk [vmem:[%s855 + $0x90] sm:$0xff] %vm2457, %v2394
        %2467 = vst.msk [vmem:[%s855 + $0xa0] sm:$0xfe] %vm2455, %v2395
        %2468 = vst.msk [vmem:[%s855 + $0xb0] sm:$0xff] %vm2457, %v2397
        %2469 = vst.msk [vmem:[%s855 + $0xc0] sm:$0xfe] %vm2455, %v2398
        %2470 = vst.msk [vmem:[%s855 + $0xd0] sm:$0xff] %vm2457, %v2400
        %2471 = vst.msk [vmem:[%s855 + $0xe0] sm:$0xfe] %vm2455, %v2401
        %2472 = vst.msk [vmem:[%s855 + $0xf0] sm:$0xff] %vm2457, %v2403
        %2473 = vst.msk [vmem:[%s855 + $0x100] sm:$0xfe] %vm2455, %v2404
        %2474 = vst.msk [vmem:[%s855 + $0x110] sm:$0xff] %vm2457, %v2406
        %2475 = vst.msk [vmem:[%s855 + $0x120] sm:$0xfe] %vm2455, %v2407
        %2476 = vst.msk [vmem:[%s855 + $0x130] sm:$0xff] %vm2457, %v2409
        %2477 = vst.msk [vmem:[%s855 + $0x140] sm:$0xfe] %vm2455, %v2410
        %2478 = vst.msk [vmem:[%s855 + $0x150] sm:$0xff] %vm2457, %v2412
        %2479 = vst.msk [vmem:[%s855 + $0x160] sm:$0xfe] %vm2455, %v2413
        %2480 = vst.msk [vmem:[%s855 + $0x170] sm:$0xff] %vm2457, %v2415
        %2481 = vst.msk [vmem:[%s855 + $0x180] sm:$0xfe] %vm2455, %v2416
        %2482 = vst.msk [vmem:[%s855 + $0x190] sm:$0xff] %vm2457, %v2418
        %2483 = vst.msk [vmem:[%s855 + $0x1a0] sm:$0xfe] %vm2455, %v2419
        %2484 = vst.msk [vmem:[%s855 + $0x1b0] sm:$0xff] %vm2457, %v2421
        %2485 = vst.msk [vmem:[%s855 + $0x1c0] sm:$0xfe] %vm2455, %v2422
        %2486 = vst.msk [vmem:[%s855 + $0x1d0] sm:$0xff] %vm2457, %v2424
        %2487 = vrot.lane.b32.xlu0 %v2285, 8
        %v2488 = vpop.permute.xlu0 %2487
        %2489 = vrot.lane.b32.xlu0 %v2286, 8
        %v2490 = vpop.permute.xlu0 %2489
        %2491 = vrot.lane.b32.xlu0 %v2287, 8
        %v2492 = vpop.permute.xlu0 %2491
        %2493 = vrot.lane.b32.xlu0 %v2288, 8
        %v2494 = vpop.permute.xlu0 %2493
        %2495 = vrot.lane.b32.xlu0 %v2289, 8
        %v2496 = vpop.permute.xlu0 %2495
        %2497 = vrot.lane.b32.xlu0 %v2290, 8
        %v2498 = vpop.permute.xlu0 %2497
        %2499 = vrot.lane.b32.xlu0 %v2291, 8
        %v2500 = vpop.permute.xlu0 %2499
        %2501 = vrot.lane.b32.xlu0 %v2292, 8
        %v2502 = vpop.permute.xlu0 %2501
        %2503 = vrot.lane.b32.xlu0 %v2293, 8
        %v2504 = vpop.permute.xlu0 %2503
        %2505 = vrot.lane.b32.xlu0 %v2294, 8
        %v2506 = vpop.permute.xlu0 %2505
        %2507 = vrot.lane.b32.xlu0 %v2295, 8
        %v2508 = vpop.permute.xlu0 %2507
        %2509 = vrot.lane.b32.xlu0 %v2296, 8
        %v2510 = vpop.permute.xlu0 %2509
        %2511 = vrot.lane.b32.xlu0 %v2297, 8
        %v2512 = vpop.permute.xlu0 %2511
        %2513 = vrot.lane.b32.xlu0 %v2298, 8
        %v2514 = vpop.permute.xlu0 %2513
        %2515 = vrot.lane.b32.xlu0 %v2299, 8
        %v2516 = vpop.permute.xlu0 %2515
        %2517 = vrot.lane.b32.xlu0 %v2300, 8
        %v2518 = vpop.permute.xlu0 %2517
        %2519 = vrot.lane.b32.xlu0 %v2301, 8
        %v2520 = vpop.permute.xlu0 %2519
        %2521 = vrot.lane.b32.xlu0 %v2302, 8
        %v2522 = vpop.permute.xlu0 %2521
        %2523 = vrot.lane.b32.xlu0 %v2303, 8
        %v2524 = vpop.permute.xlu0 %2523
        %2525 = vrot.lane.b32.xlu0 %v2304, 8
        %v2526 = vpop.permute.xlu0 %2525
        %2527 = vrot.lane.b32.xlu0 %v2305, 8
        %v2528 = vpop.permute.xlu0 %2527
        %2529 = vrot.lane.b32.xlu0 %v2306, 8
        %v2530 = vpop.permute.xlu0 %2529
        %2531 = vrot.lane.b32.xlu0 %v2307, 8
        %v2532 = vpop.permute.xlu0 %2531
        %2533 = vrot.lane.b32.xlu0 %v2308, 8
        %v2534 = vpop.permute.xlu0 %2533
        %2535 = vrot.lane.b32.xlu0 %v2309, 8
        %v2536 = vpop.permute.xlu0 %2535
        %2537 = vrot.lane.b32.xlu0 %v2310, 8
        %v2538 = vpop.permute.xlu0 %2537
        %2539 = vrot.lane.b32.xlu0 %v2311, 8
        %v2540 = vpop.permute.xlu0 %2539
        %2541 = vrot.lane.b32.xlu0 %v2312, 8
        %v2542 = vpop.permute.xlu0 %2541
        %2543 = vrot.lane.b32.xlu0 %v2313, 8
        %v2544 = vpop.permute.xlu0 %2543
        %2545 = vrot.lane.b32.xlu0 %v2314, 8
        %v2546 = vpop.permute.xlu0 %2545
        %vm2577 = vcmask 130112
        %2578 = vst.msk [vmem:[%s855] sm:$0xff] %vm2577, %v2488
        %2579 = vst.msk [vmem:[%s855 + $0x10] sm:$0xff] %vm2577, %v2490
        %2580 = vst.msk [vmem:[%s855 + $0x20] sm:$0xff] %vm2577, %v2492
        %2581 = vst.msk [vmem:[%s855 + $0x30] sm:$0xff] %vm2577, %v2494
        %2582 = vst.msk [vmem:[%s855 + $0x40] sm:$0xff] %vm2577, %v2496
        %2583 = vst.msk [vmem:[%s855 + $0x50] sm:$0xff] %vm2577, %v2498
        %2584 = vst.msk [vmem:[%s855 + $0x60] sm:$0xff] %vm2577, %v2500
        %2585 = vst.msk [vmem:[%s855 + $0x70] sm:$0xff] %vm2577, %v2502
        %2586 = vst.msk [vmem:[%s855 + $0x80] sm:$0xff] %vm2577, %v2504
        %2587 = vst.msk [vmem:[%s855 + $0x90] sm:$0xff] %vm2577, %v2506
        %2588 = vst.msk [vmem:[%s855 + $0xa0] sm:$0xff] %vm2577, %v2508
        %2589 = vst.msk [vmem:[%s855 + $0xb0] sm:$0xff] %vm2577, %v2510
        %2590 = vst.msk [vmem:[%s855 + $0xc0] sm:$0xff] %vm2577, %v2512
        %2591 = vst.msk [vmem:[%s855 + $0xd0] sm:$0xff] %vm2577, %v2514
        %2592 = vst.msk [vmem:[%s855 + $0xe0] sm:$0xff] %vm2577, %v2516
        %2593 = vst.msk [vmem:[%s855 + $0xf0] sm:$0xff] %vm2577, %v2518
        %2594 = vst.msk [vmem:[%s855 + $0x100] sm:$0xff] %vm2577, %v2520
        %2595 = vst.msk [vmem:[%s855 + $0x110] sm:$0xff] %vm2577, %v2522
        %2596 = vst.msk [vmem:[%s855 + $0x120] sm:$0xff] %vm2577, %v2524
        %2597 = vst.msk [vmem:[%s855 + $0x130] sm:$0xff] %vm2577, %v2526
        %2598 = vst.msk [vmem:[%s855 + $0x140] sm:$0xff] %vm2577, %v2528
        %2599 = vst.msk [vmem:[%s855 + $0x150] sm:$0xff] %vm2577, %v2530
        %2600 = vst.msk [vmem:[%s855 + $0x160] sm:$0xff] %vm2577, %v2532
        %2601 = vst.msk [vmem:[%s855 + $0x170] sm:$0xff] %vm2577, %v2534
        %2602 = vst.msk [vmem:[%s855 + $0x180] sm:$0xff] %vm2577, %v2536
        %2603 = vst.msk [vmem:[%s855 + $0x190] sm:$0xff] %vm2577, %v2538
        %2604 = vst.msk [vmem:[%s855 + $0x1a0] sm:$0xff] %vm2577, %v2540
        %2605 = vst.msk [vmem:[%s855 + $0x1b0] sm:$0xff] %vm2577, %v2542
        %2606 = vst.msk [vmem:[%s855 + $0x1c0] sm:$0xff] %vm2577, %v2544
        %2607 = vst.msk [vmem:[%s855 + $0x1d0] sm:$0xff] %vm2577, %v2546
        %v2608 = vrot.slane %v2285, 1
        %v2609 = vrot.slane %v2286, 1
        %v2610 = vsel %vm1009, %v2608, %v2609
        %v2611 = vrot.slane %v2287, 1
        %v2612 = vrot.slane %v2288, 1
        %v2613 = vsel %vm1009, %v2611, %v2612
        %v2614 = vrot.slane %v2289, 1
        %v2615 = vrot.slane %v2290, 1
        %v2616 = vsel %vm1009, %v2614, %v2615
        %v2617 = vrot.slane %v2291, 1
        %v2618 = vrot.slane %v2292, 1
        %v2619 = vsel %vm1009, %v2617, %v2618
        %v2620 = vrot.slane %v2293, 1
        %v2621 = vrot.slane %v2294, 1
        %v2622 = vsel %vm1009, %v2620, %v2621
        %v2623 = vrot.slane %v2295, 1
        %v2624 = vrot.slane %v2296, 1
        %v2625 = vsel %vm1009, %v2623, %v2624
        %v2626 = vrot.slane %v2297, 1
        %v2627 = vrot.slane %v2298, 1
        %v2628 = vsel %vm1009, %v2626, %v2627
        %v2629 = vrot.slane %v2299, 1
        %v2630 = vrot.slane %v2300, 1
        %v2631 = vsel %vm1009, %v2629, %v2630
        %v2632 = vrot.slane %v2301, 1
        %v2633 = vrot.slane %v2302, 1
        %v2634 = vsel %vm1009, %v2632, %v2633
        %v2635 = vrot.slane %v2303, 1
        %v2636 = vrot.slane %v2304, 1
        %v2637 = vsel %vm1009, %v2635, %v2636
        %v2638 = vrot.slane %v2305, 1
        %v2639 = vrot.slane %v2306, 1
        %v2640 = vsel %vm1009, %v2638, %v2639
        %v2641 = vrot.slane %v2307, 1
        %v2642 = vrot.slane %v2308, 1
        %v2643 = vsel %vm1009, %v2641, %v2642
        %v2644 = vrot.slane %v2309, 1
        %v2645 = vrot.slane %v2310, 1
        %v2646 = vsel %vm1009, %v2644, %v2645
        %v2647 = vrot.slane %v2311, 1
        %v2648 = vrot.slane %v2312, 1
        %v2649 = vsel %vm1009, %v2647, %v2648
        %v2650 = vrot.slane %v2313, 1
        %v2651 = vrot.slane %v2314, 1
        %v2652 = vsel %vm1009, %v2650, %v2651
        %2653 = vrot.lane.b32.xlu0 %v2610, 16
        %v2654 = vpop.permute.xlu0 %2653
        %2655 = vrot.lane.b32.xlu0 %v2609, 16
        %v2656 = vpop.permute.xlu0 %2655
        %2657 = vrot.lane.b32.xlu0 %v2613, 16
        %v2658 = vpop.permute.xlu0 %2657
        %2659 = vrot.lane.b32.xlu0 %v2612, 16
        %v2660 = vpop.permute.xlu0 %2659
        %2661 = vrot.lane.b32.xlu0 %v2616, 16
        %v2662 = vpop.permute.xlu0 %2661
        %2663 = vrot.lane.b32.xlu0 %v2615, 16
        %v2664 = vpop.permute.xlu0 %2663
        %2665 = vrot.lane.b32.xlu0 %v2619, 16
        %v2666 = vpop.permute.xlu0 %2665
        %2667 = vrot.lane.b32.xlu0 %v2618, 16
        %v2668 = vpop.permute.xlu0 %2667
        %2669 = vrot.lane.b32.xlu0 %v2622, 16
        %v2670 = vpop.permute.xlu0 %2669
        %2671 = vrot.lane.b32.xlu0 %v2621, 16
        %v2672 = vpop.permute.xlu0 %2671
        %2673 = vrot.lane.b32.xlu0 %v2625, 16
        %v2674 = vpop.permute.xlu0 %2673
        %2675 = vrot.lane.b32.xlu0 %v2624, 16
        %v2676 = vpop.permute.xlu0 %2675
        %2677 = vrot.lane.b32.xlu0 %v2628, 16
        %v2678 = vpop.permute.xlu0 %2677
        %2679 = vrot.lane.b32.xlu0 %v2627, 16
        %v2680 = vpop.permute.xlu0 %2679
        %2681 = vrot.lane.b32.xlu0 %v2631, 16
        %v2682 = vpop.permute.xlu0 %2681
        %2683 = vrot.lane.b32.xlu0 %v2630, 16
        %v2684 = vpop.permute.xlu0 %2683
        %2685 = vrot.lane.b32.xlu0 %v2634, 16
        %v2686 = vpop.permute.xlu0 %2685
        %2687 = vrot.lane.b32.xlu0 %v2633, 16
        %v2688 = vpop.permute.xlu0 %2687
        %2689 = vrot.lane.b32.xlu0 %v2637, 16
        %v2690 = vpop.permute.xlu0 %2689
        %2691 = vrot.lane.b32.xlu0 %v2636, 16
        %v2692 = vpop.permute.xlu0 %2691
        %2693 = vrot.lane.b32.xlu0 %v2640, 16
        %v2694 = vpop.permute.xlu0 %2693
        %2695 = vrot.lane.b32.xlu0 %v2639, 16
        %v2696 = vpop.permute.xlu0 %2695
        %2697 = vrot.lane.b32.xlu0 %v2643, 16
        %v2698 = vpop.permute.xlu0 %2697
        %2699 = vrot.lane.b32.xlu0 %v2642, 16
        %v2700 = vpop.permute.xlu0 %2699
        %2701 = vrot.lane.b32.xlu0 %v2646, 16
        %v2702 = vpop.permute.xlu0 %2701
        %2703 = vrot.lane.b32.xlu0 %v2645, 16
        %v2704 = vpop.permute.xlu0 %2703
        %2705 = vrot.lane.b32.xlu0 %v2649, 16
        %v2706 = vpop.permute.xlu0 %2705
        %2707 = vrot.lane.b32.xlu0 %v2648, 16
        %v2708 = vpop.permute.xlu0 %2707
        %2709 = vrot.lane.b32.xlu0 %v2652, 16
        %v2710 = vpop.permute.xlu0 %2709
        %2711 = vrot.lane.b32.xlu0 %v2651, 16
        %v2712 = vpop.permute.xlu0 %2711
        %vm2743 = vcmask 195712
        %2744 = vst.msk [vmem:[%s855] sm:$0xff] %vm2743, %v2654
        %vm2745 = vcmask 194688
        %2746 = vst.msk [vmem:[%s855 + $0x10] sm:$0x7f] %vm2745, %v2656
        %2747 = vst.msk [vmem:[%s855 + $0x20] sm:$0xff] %vm2743, %v2658
        %2748 = vst.msk [vmem:[%s855 + $0x30] sm:$0x7f] %vm2745, %v2660
        %2749 = vst.msk [vmem:[%s855 + $0x40] sm:$0xff] %vm2743, %v2662
        %2750 = vst.msk [vmem:[%s855 + $0x50] sm:$0x7f] %vm2745, %v2664
        %2751 = vst.msk [vmem:[%s855 + $0x60] sm:$0xff] %vm2743, %v2666
        %2752 = vst.msk [vmem:[%s855 + $0x70] sm:$0x7f] %vm2745, %v2668
        %2753 = vst.msk [vmem:[%s855 + $0x80] sm:$0xff] %vm2743, %v2670
        %2754 = vst.msk [vmem:[%s855 + $0x90] sm:$0x7f] %vm2745, %v2672
        %2755 = vst.msk [vmem:[%s855 + $0xa0] sm:$0xff] %vm2743, %v2674
        %2756 = vst.msk [vmem:[%s855 + $0xb0] sm:$0x7f] %vm2745, %v2676
        %2757 = vst.msk [vmem:[%s855 + $0xc0] sm:$0xff] %vm2743, %v2678
        %2758 = vst.msk [vmem:[%s855 + $0xd0] sm:$0x7f] %vm2745, %v2680
        %2759 = vst.msk [vmem:[%s855 + $0xe0] sm:$0xff] %vm2743, %v2682
        %2760 = vst.msk [vmem:[%s855 + $0xf0] sm:$0x7f] %vm2745, %v2684
        %2761 = vst.msk [vmem:[%s855 + $0x100] sm:$0xff] %vm2743, %v2686
        %2762 = vst.msk [vmem:[%s855 + $0x110] sm:$0x7f] %vm2745, %v2688
        %2763 = vst.msk [vmem:[%s855 + $0x120] sm:$0xff] %vm2743, %v2690
        %2764 = vst.msk [vmem:[%s855 + $0x130] sm:$0x7f] %vm2745, %v2692
        %2765 = vst.msk [vmem:[%s855 + $0x140] sm:$0xff] %vm2743, %v2694
        %2766 = vst.msk [vmem:[%s855 + $0x150] sm:$0x7f] %vm2745, %v2696
        %2767 = vst.msk [vmem:[%s855 + $0x160] sm:$0xff] %vm2743, %v2698
        %2768 = vst.msk [vmem:[%s855 + $0x170] sm:$0x7f] %vm2745, %v2700
        %2769 = vst.msk [vmem:[%s855 + $0x180] sm:$0xff] %vm2743, %v2702
        %2770 = vst.msk [vmem:[%s855 + $0x190] sm:$0x7f] %vm2745, %v2704
        %2771 = vst.msk [vmem:[%s855 + $0x1a0] sm:$0xff] %vm2743, %v2706
        %2772 = vst.msk [vmem:[%s855 + $0x1b0] sm:$0x7f] %vm2745, %v2708
        %2773 = vst.msk [vmem:[%s855 + $0x1c0] sm:$0xff] %vm2743, %v2710
        %2774 = vst.msk [vmem:[%s855 + $0x1d0] sm:$0x7f] %vm2745, %v2712
        %v2777 = vrot.slane %v2315, 7
        %v2778 = vrot.slane %v2316, 7
        %v2779 = vsel %vm779, %v2777, %v2778
        %2780 = vrot.lane.b32.xlu0 %v2380, 24
        %v2781 = vpop.permute.xlu0 %2780
        %2782 = vrot.lane.b32.xlu0 %v2382, 24
        %v2783 = vpop.permute.xlu0 %2782
        %2784 = vrot.lane.b32.xlu0 %v2383, 24
        %v2785 = vpop.permute.xlu0 %2784
        %2786 = vrot.lane.b32.xlu0 %v2385, 24
        %v2787 = vpop.permute.xlu0 %2786
        %2788 = vrot.lane.b32.xlu0 %v2386, 24
        %v2789 = vpop.permute.xlu0 %2788
        %2790 = vrot.lane.b32.xlu0 %v2388, 24
        %v2791 = vpop.permute.xlu0 %2790
        %2792 = vrot.lane.b32.xlu0 %v2389, 24
        %v2793 = vpop.permute.xlu0 %2792
        %2794 = vrot.lane.b32.xlu0 %v2391, 24
        %v2795 = vpop.permute.xlu0 %2794
        %2796 = vrot.lane.b32.xlu0 %v2392, 24
        %v2797 = vpop.permute.xlu0 %2796
        %2798 = vrot.lane.b32.xlu0 %v2394, 24
        %v2799 = vpop.permute.xlu0 %2798
        %2800 = vrot.lane.b32.xlu0 %v2395, 24
        %v2801 = vpop.permute.xlu0 %2800
        %2802 = vrot.lane.b32.xlu0 %v2397, 24
        %v2803 = vpop.permute.xlu0 %2802
        %2804 = vrot.lane.b32.xlu0 %v2398, 24
        %v2805 = vpop.permute.xlu0 %2804
        %2806 = vrot.lane.b32.xlu0 %v2400, 24
        %v2807 = vpop.permute.xlu0 %2806
        %2808 = vrot.lane.b32.xlu0 %v2401, 24
        %v2809 = vpop.permute.xlu0 %2808
        %2810 = vrot.lane.b32.xlu0 %v2403, 24
        %v2811 = vpop.permute.xlu0 %2810
        %2812 = vrot.lane.b32.xlu0 %v2404, 24
        %v2813 = vpop.permute.xlu0 %2812
        %2814 = vrot.lane.b32.xlu0 %v2406, 24
        %v2815 = vpop.permute.xlu0 %2814
        %2816 = vrot.lane.b32.xlu0 %v2407, 24
        %v2817 = vpop.permute.xlu0 %2816
        %2818 = vrot.lane.b32.xlu0 %v2409, 24
        %v2819 = vpop.permute.xlu0 %2818
        %2820 = vrot.lane.b32.xlu0 %v2410, 24
        %v2821 = vpop.permute.xlu0 %2820
        %2822 = vrot.lane.b32.xlu0 %v2412, 24
        %v2823 = vpop.permute.xlu0 %2822
        %2824 = vrot.lane.b32.xlu0 %v2413, 24
        %v2825 = vpop.permute.xlu0 %2824
        %2826 = vrot.lane.b32.xlu0 %v2415, 24
        %v2827 = vpop.permute.xlu0 %2826
        %2828 = vrot.lane.b32.xlu0 %v2416, 24
        %v2829 = vpop.permute.xlu0 %2828
        %2830 = vrot.lane.b32.xlu0 %v2418, 24
        %v2831 = vpop.permute.xlu0 %2830
        %2832 = vrot.lane.b32.xlu0 %v2419, 24
        %v2833 = vpop.permute.xlu0 %2832
        %2834 = vrot.lane.b32.xlu0 %v2421, 24
        %v2835 = vpop.permute.xlu0 %2834
        %2836 = vrot.lane.b32.xlu0 %v2422, 24
        %v2837 = vpop.permute.xlu0 %2836
        %2838 = vrot.lane.b32.xlu0 %v2424, 24
        %v2839 = vpop.permute.xlu0 %2838
        %2840 = vrot.lane.b32.xlu0 %v2777, 24
        %v2841 = vpop.permute.xlu0 %2840
        %2842 = vrot.lane.b32.xlu0 %v2779, 24
        %v2843 = vpop.permute.xlu0 %2842
        %vm2876 = vcmask 261313
        %2877 = vst.msk [vmem:[#allocation2] sm:$0xfe] %vm2876, %v2781
        %vm2878 = vcmask 261312
        %2879 = vst.msk [vmem:[#allocation2 + $0x10] sm:$0xff] %vm2878, %v2783
        %2880 = vst.msk [vmem:[#allocation2 + $0x20] sm:$0xfe] %vm2876, %v2785
        %2881 = vst.msk [vmem:[#allocation2 + $0x30] sm:$0xff] %vm2878, %v2787
        %2882 = vst.msk [vmem:[#allocation2 + $0x40] sm:$0xfe] %vm2876, %v2789
        %2883 = vst.msk [vmem:[#allocation2 + $0x50] sm:$0xff] %vm2878, %v2791
        %2884 = vst.msk [vmem:[#allocation2 + $0x60] sm:$0xfe] %vm2876, %v2793
        %2885 = vst.msk [vmem:[#allocation2 + $0x70] sm:$0xff] %vm2878, %v2795
        %2886 = vst.msk [vmem:[#allocation2 + $0x80] sm:$0xfe] %vm2876, %v2797
        %2887 = vst.msk [vmem:[#allocation2 + $0x90] sm:$0xff] %vm2878, %v2799
        %2888 = vst.msk [vmem:[#allocation2 + $0xa0] sm:$0xfe] %vm2876, %v2801
        %2889 = vst.msk [vmem:[#allocation2 + $0xb0] sm:$0xff] %vm2878, %v2803
        %2890 = vst.msk [vmem:[#allocation2 + $0xc0] sm:$0xfe] %vm2876, %v2805
        %2891 = vst.msk [vmem:[#allocation2 + $0xd0] sm:$0xff] %vm2878, %v2807
        %2892 = vst.msk [vmem:[#allocation2 + $0xe0] sm:$0xfe] %vm2876, %v2809
        %2893 = vst.msk [vmem:[#allocation2 + $0xf0] sm:$0xff] %vm2878, %v2811
        %2894 = vst.msk [vmem:[#allocation2 + $0x100] sm:$0xfe] %vm2876, %v2813
        %2895 = vst.msk [vmem:[#allocation2 + $0x110] sm:$0xff] %vm2878, %v2815
        %2896 = vst.msk [vmem:[#allocation2 + $0x120] sm:$0xfe] %vm2876, %v2817
        %2897 = vst.msk [vmem:[#allocation2 + $0x130] sm:$0xff] %vm2878, %v2819
        %2898 = vst.msk [vmem:[#allocation2 + $0x140] sm:$0xfe] %vm2876, %v2821
        %2899 = vst.msk [vmem:[#allocation2 + $0x150] sm:$0xff] %vm2878, %v2823
        %2900 = vst.msk [vmem:[#allocation2 + $0x160] sm:$0xfe] %vm2876, %v2825
        %2901 = vst.msk [vmem:[#allocation2 + $0x170] sm:$0xff] %vm2878, %v2827
        %2902 = vst.msk [vmem:[#allocation2 + $0x180] sm:$0xfe] %vm2876, %v2829
        %2903 = vst.msk [vmem:[#allocation2 + $0x190] sm:$0xff] %vm2878, %v2831
        %2904 = vst.msk [vmem:[#allocation2 + $0x1a0] sm:$0xfe] %vm2876, %v2833
        %2905 = vst.msk [vmem:[#allocation2 + $0x1b0] sm:$0xff] %vm2878, %v2835
        %2906 = vst.msk [vmem:[#allocation2 + $0x1c0] sm:$0xfe] %vm2876, %v2837
        %2907 = vst.msk [vmem:[#allocation2 + $0x1d0] sm:$0xff] %vm2878, %v2839
        %2908 = vst.msk [vmem:[#allocation2 + $0x1e0] sm:$0xfe] %vm2876, %v2841
        %2909 = vst.msk [vmem:[#allocation2 + $0x1f0] sm:$0xff] %vm2878, %v2843
        %2910 = vrot.lane.b32.xlu0 %v2285, 32
        %v2911 = vpop.permute.xlu0 %2910
        %2912 = vrot.lane.b32.xlu0 %v2286, 32
        %v2913 = vpop.permute.xlu0 %2912
        %2914 = vrot.lane.b32.xlu0 %v2287, 32
        %v2915 = vpop.permute.xlu0 %2914
        %2916 = vrot.lane.b32.xlu0 %v2288, 32
        %v2917 = vpop.permute.xlu0 %2916
        %2918 = vrot.lane.b32.xlu0 %v2289, 32
        %v2919 = vpop.permute.xlu0 %2918
        %2920 = vrot.lane.b32.xlu0 %v2290, 32
        %v2921 = vpop.permute.xlu0 %2920
        %2922 = vrot.lane.b32.xlu0 %v2291, 32
        %v2923 = vpop.permute.xlu0 %2922
        %2924 = vrot.lane.b32.xlu0 %v2292, 32
        %v2925 = vpop.permute.xlu0 %2924
        %2926 = vrot.lane.b32.xlu0 %v2293, 32
        %v2927 = vpop.permute.xlu0 %2926
        %2928 = vrot.lane.b32.xlu0 %v2294, 32
        %v2929 = vpop.permute.xlu0 %2928
        %2930 = vrot.lane.b32.xlu0 %v2295, 32
        %v2931 = vpop.permute.xlu0 %2930
        %2932 = vrot.lane.b32.xlu0 %v2296, 32
        %v2933 = vpop.permute.xlu0 %2932
        %2934 = vrot.lane.b32.xlu0 %v2297, 32
        %v2935 = vpop.permute.xlu0 %2934
        %2936 = vrot.lane.b32.xlu0 %v2298, 32
        %v2937 = vpop.permute.xlu0 %2936
        %2938 = vrot.lane.b32.xlu0 %v2299, 32
        %v2939 = vpop.permute.xlu0 %2938
        %2940 = vrot.lane.b32.xlu0 %v2300, 32
        %v2941 = vpop.permute.xlu0 %2940
        %2942 = vrot.lane.b32.xlu0 %v2301, 32
        %v2943 = vpop.permute.xlu0 %2942
        %2944 = vrot.lane.b32.xlu0 %v2302, 32
        %v2945 = vpop.permute.xlu0 %2944
        %2946 = vrot.lane.b32.xlu0 %v2303, 32
        %v2947 = vpop.permute.xlu0 %2946
        %2948 = vrot.lane.b32.xlu0 %v2304, 32
        %v2949 = vpop.permute.xlu0 %2948
        %2950 = vrot.lane.b32.xlu0 %v2305, 32
        %v2951 = vpop.permute.xlu0 %2950
        %2952 = vrot.lane.b32.xlu0 %v2306, 32
        %v2953 = vpop.permute.xlu0 %2952
        %2954 = vrot.lane.b32.xlu0 %v2307, 32
        %v2955 = vpop.permute.xlu0 %2954
        %2956 = vrot.lane.b32.xlu0 %v2308, 32
        %v2957 = vpop.permute.xlu0 %2956
        %2958 = vrot.lane.b32.xlu0 %v2309, 32
        %v2959 = vpop.permute.xlu0 %2958
        %2960 = vrot.lane.b32.xlu0 %v2310, 32
        %v2961 = vpop.permute.xlu0 %2960
        %2962 = vrot.lane.b32.xlu0 %v2311, 32
        %v2963 = vpop.permute.xlu0 %2962
        %2964 = vrot.lane.b32.xlu0 %v2312, 32
        %v2965 = vpop.permute.xlu0 %2964
        %2966 = vrot.lane.b32.xlu0 %v2313, 32
        %v2967 = vpop.permute.xlu0 %2966
        %2968 = vrot.lane.b32.xlu0 %v2314, 32
        %v2969 = vpop.permute.xlu0 %2968
        %2970 = vrot.lane.b32.xlu0 %v2315, 32
        %v2971 = vpop.permute.xlu0 %2970
        %2972 = vrot.lane.b32.xlu0 %v2316, 32
        %v2973 = vpop.permute.xlu0 %2972
        %vm3006 = vcmask 326912
        %3007 = vst.msk [vmem:[#allocation2] sm:$0xff] %vm3006, %v2911
        %3008 = vst.msk [vmem:[#allocation2 + $0x10] sm:$0xff] %vm3006, %v2913
        %3009 = vst.msk [vmem:[#allocation2 + $0x20] sm:$0xff] %vm3006, %v2915
        %3010 = vst.msk [vmem:[#allocation2 + $0x30] sm:$0xff] %vm3006, %v2917
        %3011 = vst.msk [vmem:[#allocation2 + $0x40] sm:$0xff] %vm3006, %v2919
        %3012 = vst.msk [vmem:[#allocation2 + $0x50] sm:$0xff] %vm3006, %v2921
        %3013 = vst.msk [vmem:[#allocation2 + $0x60] sm:$0xff] %vm3006, %v2923
        %3014 = vst.msk [vmem:[#allocation2 + $0x70] sm:$0xff] %vm3006, %v2925
        %3015 = vst.msk [vmem:[#allocation2 + $0x80] sm:$0xff] %vm3006, %v2927
        %3016 = vst.msk [vmem:[#allocation2 + $0x90] sm:$0xff] %vm3006, %v2929
        %3017 = vst.msk [vmem:[#allocation2 + $0xa0] sm:$0xff] %vm3006, %v2931
        %3018 = vst.msk [vmem:[#allocation2 + $0xb0] sm:$0xff] %vm3006, %v2933
        %3019 = vst.msk [vmem:[#allocation2 + $0xc0] sm:$0xff] %vm3006, %v2935
        %3020 = vst.msk [vmem:[#allocation2 + $0xd0] sm:$0xff] %vm3006, %v2937
        %3021 = vst.msk [vmem:[#allocation2 + $0xe0] sm:$0xff] %vm3006, %v2939
        %3022 = vst.msk [vmem:[#allocation2 + $0xf0] sm:$0xff] %vm3006, %v2941
        %3023 = vst.msk [vmem:[#allocation2 + $0x100] sm:$0xff] %vm3006, %v2943
        %3024 = vst.msk [vmem:[#allocation2 + $0x110] sm:$0xff] %vm3006, %v2945
        %3025 = vst.msk [vmem:[#allocation2 + $0x120] sm:$0xff] %vm3006, %v2947
        %3026 = vst.msk [vmem:[#allocation2 + $0x130] sm:$0xff] %vm3006, %v2949
        %3027 = vst.msk [vmem:[#allocation2 + $0x140] sm:$0xff] %vm3006, %v2951
        %3028 = vst.msk [vmem:[#allocation2 + $0x150] sm:$0xff] %vm3006, %v2953
        %3029 = vst.msk [vmem:[#allocation2 + $0x160] sm:$0xff] %vm3006, %v2955
        %3030 = vst.msk [vmem:[#allocation2 + $0x170] sm:$0xff] %vm3006, %v2957
        %3031 = vst.msk [vmem:[#allocation2 + $0x180] sm:$0xff] %vm3006, %v2959
        %3032 = vst.msk [vmem:[#allocation2 + $0x190] sm:$0xff] %vm3006, %v2961
        %3033 = vst.msk [vmem:[#allocation2 + $0x1a0] sm:$0xff] %vm3006, %v2963
        %3034 = vst.msk [vmem:[#allocation2 + $0x1b0] sm:$0xff] %vm3006, %v2965
        %3035 = vst.msk [vmem:[#allocation2 + $0x1c0] sm:$0xff] %vm3006, %v2967
        %3036 = vst.msk [vmem:[#allocation2 + $0x1d0] sm:$0xff] %vm3006, %v2969
        %3037 = vst.msk [vmem:[#allocation2 + $0x1e0] sm:$0xff] %vm3006, %v2971
        %3038 = vst.msk [vmem:[#allocation2 + $0x1f0] sm:$0xff] %vm3006, %v2973
        %v3039 = vrot.slane %v2315, 1
        %v3040 = vrot.slane %v2316, 1
        %v3041 = vsel %vm1009, %v3039, %v3040
        %3042 = vrot.lane.b32.xlu0 %v2610, 40
        %v3043 = vpop.permute.xlu0 %3042
        %3044 = vrot.lane.b32.xlu0 %v2609, 40
        %v3045 = vpop.permute.xlu0 %3044
        %3046 = vrot.lane.b32.xlu0 %v2613, 40
        %v3047 = vpop.permute.xlu0 %3046
        %3048 = vrot.lane.b32.xlu0 %v2612, 40
        %v3049 = vpop.permute.xlu0 %3048
        %3050 = vrot.lane.b32.xlu0 %v2616, 40
        %v3051 = vpop.permute.xlu0 %3050
        %3052 = vrot.lane.b32.xlu0 %v2615, 40
        %v3053 = vpop.permute.xlu0 %3052
        %3054 = vrot.lane.b32.xlu0 %v2619, 40
        %v3055 = vpop.permute.xlu0 %3054
        %3056 = vrot.lane.b32.xlu0 %v2618, 40
        %v3057 = vpop.permute.xlu0 %3056
        %3058 = vrot.lane.b32.xlu0 %v2622, 40
        %v3059 = vpop.permute.xlu0 %3058
        %3060 = vrot.lane.b32.xlu0 %v2621, 40
        %v3061 = vpop.permute.xlu0 %3060
        %3062 = vrot.lane.b32.xlu0 %v2625, 40
        %v3063 = vpop.permute.xlu0 %3062
        %3064 = vrot.lane.b32.xlu0 %v2624, 40
        %v3065 = vpop.permute.xlu0 %3064
        %3066 = vrot.lane.b32.xlu0 %v2628, 40
        %v3067 = vpop.permute.xlu0 %3066
        %3068 = vrot.lane.b32.xlu0 %v2627, 40
        %v3069 = vpop.permute.xlu0 %3068
        %3070 = vrot.lane.b32.xlu0 %v2631, 40
        %v3071 = vpop.permute.xlu0 %3070
        %3072 = vrot.lane.b32.xlu0 %v2630, 40
        %v3073 = vpop.permute.xlu0 %3072
        %3074 = vrot.lane.b32.xlu0 %v2634, 40
        %v3075 = vpop.permute.xlu0 %3074
        %3076 = vrot.lane.b32.xlu0 %v2633, 40
        %v3077 = vpop.permute.xlu0 %3076
        %3078 = vrot.lane.b32.xlu0 %v2637, 40
        %v3079 = vpop.permute.xlu0 %3078
        %3080 = vrot.lane.b32.xlu0 %v2636, 40
        %v3081 = vpop.permute.xlu0 %3080
        %3082 = vrot.lane.b32.xlu0 %v2640, 40
        %v3083 = vpop.permute.xlu0 %3082
        %3084 = vrot.lane.b32.xlu0 %v2639, 40
        %v3085 = vpop.permute.xlu0 %3084
        %3086 = vrot.lane.b32.xlu0 %v2643, 40
        %v3087 = vpop.permute.xlu0 %3086
        %3088 = vrot.lane.b32.xlu0 %v2642, 40
        %v3089 = vpop.permute.xlu0 %3088
        %3090 = vrot.lane.b32.xlu0 %v2646, 40
        %v3091 = vpop.permute.xlu0 %3090
        %3092 = vrot.lane.b32.xlu0 %v2645, 40
        %v3093 = vpop.permute.xlu0 %3092
        %3094 = vrot.lane.b32.xlu0 %v2649, 40
        %v3095 = vpop.permute.xlu0 %3094
        %3096 = vrot.lane.b32.xlu0 %v2648, 40
        %v3097 = vpop.permute.xlu0 %3096
        %3098 = vrot.lane.b32.xlu0 %v2652, 40
        %v3099 = vpop.permute.xlu0 %3098
        %3100 = vrot.lane.b32.xlu0 %v2651, 40
        %v3101 = vpop.permute.xlu0 %3100
        %3102 = vrot.lane.b32.xlu0 %v3041, 40
        %v3103 = vpop.permute.xlu0 %3102
        %3104 = vrot.lane.b32.xlu0 %v3040, 40
        %v3105 = vpop.permute.xlu0 %3104
        %vm3138 = vcmask 392512
        %3139 = vst.msk [vmem:[#allocation2] sm:$0xff] %vm3138, %v3043
        %vm3140 = vcmask 391488
        %3141 = vst.msk [vmem:[#allocation2 + $0x10] sm:$0x7f] %vm3140, %v3045
        %3142 = vst.msk [vmem:[#allocation2 + $0x20] sm:$0xff] %vm3138, %v3047
        %3143 = vst.msk [vmem:[#allocation2 + $0x30] sm:$0x7f] %vm3140, %v3049
        %3144 = vst.msk [vmem:[#allocation2 + $0x40] sm:$0xff] %vm3138, %v3051
        %3145 = vst.msk [vmem:[#allocation2 + $0x50] sm:$0x7f] %vm3140, %v3053
        %3146 = vst.msk [vmem:[#allocation2 + $0x60] sm:$0xff] %vm3138, %v3055
        %3147 = vst.msk [vmem:[#allocation2 + $0x70] sm:$0x7f] %vm3140, %v3057
        %3148 = vst.msk [vmem:[#allocation2 + $0x80] sm:$0xff] %vm3138, %v3059
        %3149 = vst.msk [vmem:[#allocation2 + $0x90] sm:$0x7f] %vm3140, %v3061
        %3150 = vst.msk [vmem:[#allocation2 + $0xa0] sm:$0xff] %vm3138, %v3063
        %3151 = vst.msk [vmem:[#allocation2 + $0xb0] sm:$0x7f] %vm3140, %v3065
        %3152 = vst.msk [vmem:[#allocation2 + $0xc0] sm:$0xff] %vm3138, %v3067
        %3153 = vst.msk [vmem:[#allocation2 + $0xd0] sm:$0x7f] %vm3140, %v3069
        %3154 = vst.msk [vmem:[#allocation2 + $0xe0] sm:$0xff] %vm3138, %v3071
        %3155 = vst.msk [vmem:[#allocation2 + $0xf0] sm:$0x7f] %vm3140, %v3073
        %3156 = vst.msk [vmem:[#allocation2 + $0x100] sm:$0xff] %vm3138, %v3075
        %3157 = vst.msk [vmem:[#allocation2 + $0x110] sm:$0x7f] %vm3140, %v3077
        %3158 = vst.msk [vmem:[#allocation2 + $0x120] sm:$0xff] %vm3138, %v3079
        %3159 = vst.msk [vmem:[#allocation2 + $0x130] sm:$0x7f] %vm3140, %v3081
        %3160 = vst.msk [vmem:[#allocation2 + $0x140] sm:$0xff] %vm3138, %v3083
        %3161 = vst.msk [vmem:[#allocation2 + $0x150] sm:$0x7f] %vm3140, %v3085
        %3162 = vst.msk [vmem:[#allocation2 + $0x160] sm:$0xff] %vm3138, %v3087
        %3163 = vst.msk [vmem:[#allocation2 + $0x170] sm:$0x7f] %vm3140, %v3089
        %3164 = vst.msk [vmem:[#allocation2 + $0x180] sm:$0xff] %vm3138, %v3091
        %3165 = vst.msk [vmem:[#allocation2 + $0x190] sm:$0x7f] %vm3140, %v3093
        %3166 = vst.msk [vmem:[#allocation2 + $0x1a0] sm:$0xff] %vm3138, %v3095
        %3167 = vst.msk [vmem:[#allocation2 + $0x1b0] sm:$0x7f] %vm3140, %v3097
        %3168 = vst.msk [vmem:[#allocation2 + $0x1c0] sm:$0xff] %vm3138, %v3099
        %3169 = vst.msk [vmem:[#allocation2 + $0x1d0] sm:$0x7f] %vm3140, %v3101
        %3170 = vst.msk [vmem:[#allocation2 + $0x1e0] sm:$0xff] %vm3138, %v3103
        %3171 = vst.msk [vmem:[#allocation2 + $0x1f0] sm:$0x7f] %vm3140, %v3105
        %3172 = vrot.lane.b32.xlu0 %v2383, 48
        %v3173 = vpop.permute.xlu0 %3172
        %3174 = vrot.lane.b32.xlu0 %v2385, 48
        %v3175 = vpop.permute.xlu0 %3174
        %3176 = vrot.lane.b32.xlu0 %v2386, 48
        %v3177 = vpop.permute.xlu0 %3176
        %3178 = vrot.lane.b32.xlu0 %v2388, 48
        %v3179 = vpop.permute.xlu0 %3178
        %3180 = vrot.lane.b32.xlu0 %v2389, 48
        %v3181 = vpop.permute.xlu0 %3180
        %3182 = vrot.lane.b32.xlu0 %v2391, 48
        %v3183 = vpop.permute.xlu0 %3182
        %3184 = vrot.lane.b32.xlu0 %v2392, 48
        %v3185 = vpop.permute.xlu0 %3184
        %3186 = vrot.lane.b32.xlu0 %v2394, 48
        %v3187 = vpop.permute.xlu0 %3186
        %3188 = vrot.lane.b32.xlu0 %v2395, 48
        %v3189 = vpop.permute.xlu0 %3188
        %3190 = vrot.lane.b32.xlu0 %v2397, 48
        %v3191 = vpop.permute.xlu0 %3190
        %3192 = vrot.lane.b32.xlu0 %v2398, 48
        %v3193 = vpop.permute.xlu0 %3192
        %3194 = vrot.lane.b32.xlu0 %v2400, 48
        %v3195 = vpop.permute.xlu0 %3194
        %3196 = vrot.lane.b32.xlu0 %v2401, 48
        %v3197 = vpop.permute.xlu0 %3196
        %3198 = vrot.lane.b32.xlu0 %v2403, 48
        %v3199 = vpop.permute.xlu0 %3198
        %3200 = vrot.lane.b32.xlu0 %v2404, 48
        %v3201 = vpop.permute.xlu0 %3200
        %3202 = vrot.lane.b32.xlu0 %v2406, 48
        %v3203 = vpop.permute.xlu0 %3202
        %3204 = vrot.lane.b32.xlu0 %v2407, 48
        %v3205 = vpop.permute.xlu0 %3204
        %3206 = vrot.lane.b32.xlu0 %v2409, 48
        %v3207 = vpop.permute.xlu0 %3206
        %3208 = vrot.lane.b32.xlu0 %v2410, 48
        %v3209 = vpop.permute.xlu0 %3208
        %3210 = vrot.lane.b32.xlu0 %v2412, 48
        %v3211 = vpop.permute.xlu0 %3210
        %3212 = vrot.lane.b32.xlu0 %v2413, 48
        %v3213 = vpop.permute.xlu0 %3212
        %3214 = vrot.lane.b32.xlu0 %v2415, 48
        %v3215 = vpop.permute.xlu0 %3214
        %3216 = vrot.lane.b32.xlu0 %v2416, 48
        %v3217 = vpop.permute.xlu0 %3216
        %3218 = vrot.lane.b32.xlu0 %v2418, 48
        %v3219 = vpop.permute.xlu0 %3218
        %3220 = vrot.lane.b32.xlu0 %v2419, 48
        %v3221 = vpop.permute.xlu0 %3220
        %3222 = vrot.lane.b32.xlu0 %v2421, 48
        %v3223 = vpop.permute.xlu0 %3222
        %3224 = vrot.lane.b32.xlu0 %v2422, 48
        %v3225 = vpop.permute.xlu0 %3224
        %3226 = vrot.lane.b32.xlu0 %v2424, 48
        %v3227 = vpop.permute.xlu0 %3226
        %3228 = vrot.lane.b32.xlu0 %v2777, 48
        %v3229 = vpop.permute.xlu0 %3228
        %3230 = vrot.lane.b32.xlu0 %v2779, 48
        %v3231 = vpop.permute.xlu0 %3230
        %vm3262 = vcmask 458113
        %3263 = vst.msk [vmem:[#allocation2] sm:$0xfe] %vm3262, %v3173
        %vm3264 = vcmask 458112
        %3265 = vst.msk [vmem:[#allocation2 + $0x10] sm:$0xff] %vm3264, %v3175
        %3266 = vst.msk [vmem:[#allocation2 + $0x20] sm:$0xfe] %vm3262, %v3177
        %3267 = vst.msk [vmem:[#allocation2 + $0x30] sm:$0xff] %vm3264, %v3179
        %3268 = vst.msk [vmem:[#allocation2 + $0x40] sm:$0xfe] %vm3262, %v3181
        %3269 = vst.msk [vmem:[#allocation2 + $0x50] sm:$0xff] %vm3264, %v3183
        %3270 = vst.msk [vmem:[#allocation2 + $0x60] sm:$0xfe] %vm3262, %v3185
        %3271 = vst.msk [vmem:[#allocation2 + $0x70] sm:$0xff] %vm3264, %v3187
        %3272 = vst.msk [vmem:[#allocation2 + $0x80] sm:$0xfe] %vm3262, %v3189
        %3273 = vst.msk [vmem:[#allocation2 + $0x90] sm:$0xff] %vm3264, %v3191
        %3274 = vst.msk [vmem:[#allocation2 + $0xa0] sm:$0xfe] %vm3262, %v3193
        %3275 = vst.msk [vmem:[#allocation2 + $0xb0] sm:$0xff] %vm3264, %v3195
        %3276 = vst.msk [vmem:[#allocation2 + $0xc0] sm:$0xfe] %vm3262, %v3197
        %3277 = vst.msk [vmem:[#allocation2 + $0xd0] sm:$0xff] %vm3264, %v3199
        %3278 = vst.msk [vmem:[#allocation2 + $0xe0] sm:$0xfe] %vm3262, %v3201
        %3279 = vst.msk [vmem:[#allocation2 + $0xf0] sm:$0xff] %vm3264, %v3203
        %3280 = vst.msk [vmem:[#allocation2 + $0x100] sm:$0xfe] %vm3262, %v3205
        %3281 = vst.msk [vmem:[#allocation2 + $0x110] sm:$0xff] %vm3264, %v3207
        %3282 = vst.msk [vmem:[#allocation2 + $0x120] sm:$0xfe] %vm3262, %v3209
        %3283 = vst.msk [vmem:[#allocation2 + $0x130] sm:$0xff] %vm3264, %v3211
        %3284 = vst.msk [vmem:[#allocation2 + $0x140] sm:$0xfe] %vm3262, %v3213
        %3285 = vst.msk [vmem:[#allocation2 + $0x150] sm:$0xff] %vm3264, %v3215
        %3286 = vst.msk [vmem:[#allocation2 + $0x160] sm:$0xfe] %vm3262, %v3217
        %3287 = vst.msk [vmem:[#allocation2 + $0x170] sm:$0xff] %vm3264, %v3219
        %3288 = vst.msk [vmem:[#allocation2 + $0x180] sm:$0xfe] %vm3262, %v3221
        %3289 = vst.msk [vmem:[#allocation2 + $0x190] sm:$0xff] %vm3264, %v3223
        %3290 = vst.msk [vmem:[#allocation2 + $0x1a0] sm:$0xfe] %vm3262, %v3225
        %3291 = vst.msk [vmem:[#allocation2 + $0x1b0] sm:$0xff] %vm3264, %v3227
        %3292 = vst.msk [vmem:[#allocation2 + $0x1c0] sm:$0xfe] %vm3262, %v3229
        %3293 = vst.msk [vmem:[#allocation2 + $0x1d0] sm:$0xff] %vm3264, %v3231
        %3294 = vrot.lane.b32.xlu0 %v2287, 56
        %v3295 = vpop.permute.xlu0 %3294
        %3296 = vrot.lane.b32.xlu0 %v2288, 56
        %v3297 = vpop.permute.xlu0 %3296
        %3298 = vrot.lane.b32.xlu0 %v2289, 56
        %v3299 = vpop.permute.xlu0 %3298
        %3300 = vrot.lane.b32.xlu0 %v2290, 56
        %v3301 = vpop.permute.xlu0 %3300
        %3302 = vrot.lane.b32.xlu0 %v2291, 56
        %v3303 = vpop.permute.xlu0 %3302
        %3304 = vrot.lane.b32.xlu0 %v2292, 56
        %v3305 = vpop.permute.xlu0 %3304
        %3306 = vrot.lane.b32.xlu0 %v2293, 56
        %v3307 = vpop.permute.xlu0 %3306
        %3308 = vrot.lane.b32.xlu0 %v2294, 56
        %v3309 = vpop.permute.xlu0 %3308
        %3310 = vrot.lane.b32.xlu0 %v2295, 56
        %v3311 = vpop.permute.xlu0 %3310
        %3312 = vrot.lane.b32.xlu0 %v2296, 56
        %v3313 = vpop.permute.xlu0 %3312
        %3314 = vrot.lane.b32.xlu0 %v2297, 56
        %v3315 = vpop.permute.xlu0 %3314
        %3316 = vrot.lane.b32.xlu0 %v2298, 56
        %v3317 = vpop.permute.xlu0 %3316
        %3318 = vrot.lane.b32.xlu0 %v2299, 56
        %v3319 = vpop.permute.xlu0 %3318
        %3320 = vrot.lane.b32.xlu0 %v2300, 56
        %v3321 = vpop.permute.xlu0 %3320
        %3322 = vrot.lane.b32.xlu0 %v2301, 56
        %v3323 = vpop.permute.xlu0 %3322
        %3324 = vrot.lane.b32.xlu0 %v2302, 56
        %v3325 = vpop.permute.xlu0 %3324
        %3326 = vrot.lane.b32.xlu0 %v2303, 56
        %v3327 = vpop.permute.xlu0 %3326
        %3328 = vrot.lane.b32.xlu0 %v2304, 56
        %v3329 = vpop.permute.xlu0 %3328
        %3330 = vrot.lane.b32.xlu0 %v2305, 56
        %v3331 = vpop.permute.xlu0 %3330
        %3332 = vrot.lane.b32.xlu0 %v2306, 56
        %v3333 = vpop.permute.xlu0 %3332
        %3334 = vrot.lane.b32.xlu0 %v2307, 56
        %v3335 = vpop.permute.xlu0 %3334
        %3336 = vrot.lane.b32.xlu0 %v2308, 56
        %v3337 = vpop.permute.xlu0 %3336
        %3338 = vrot.lane.b32.xlu0 %v2309, 56
        %v3339 = vpop.permute.xlu0 %3338
        %3340 = vrot.lane.b32.xlu0 %v2310, 56
        %v3341 = vpop.permute.xlu0 %3340
        %3342 = vrot.lane.b32.xlu0 %v2311, 56
        %v3343 = vpop.permute.xlu0 %3342
        %3344 = vrot.lane.b32.xlu0 %v2312, 56
        %v3345 = vpop.permute.xlu0 %3344
        %3346 = vrot.lane.b32.xlu0 %v2313, 56
        %v3347 = vpop.permute.xlu0 %3346
        %3348 = vrot.lane.b32.xlu0 %v2314, 56
        %v3349 = vpop.permute.xlu0 %3348
        %3350 = vrot.lane.b32.xlu0 %v2315, 56
        %v3351 = vpop.permute.xlu0 %3350
        %3352 = vrot.lane.b32.xlu0 %v2316, 56
        %v3353 = vpop.permute.xlu0 %3352
        %vm3384 = vcmask 523712
        %3385 = vst.msk [vmem:[#allocation2] sm:$0xff] %vm3384, %v3295
        %3386 = vst.msk [vmem:[#allocation2 + $0x10] sm:$0xff] %vm3384, %v3297
        %3387 = vst.msk [vmem:[#allocation2 + $0x20] sm:$0xff] %vm3384, %v3299
        %3388 = vst.msk [vmem:[#allocation2 + $0x30] sm:$0xff] %vm3384, %v3301
        %3389 = vst.msk [vmem:[#allocation2 + $0x40] sm:$0xff] %vm3384, %v3303
        %3390 = vst.msk [vmem:[#allocation2 + $0x50] sm:$0xff] %vm3384, %v3305
        %3391 = vst.msk [vmem:[#allocation2 + $0x60] sm:$0xff] %vm3384, %v3307
        %3392 = vst.msk [vmem:[#allocation2 + $0x70] sm:$0xff] %vm3384, %v3309
        %3393 = vst.msk [vmem:[#allocation2 + $0x80] sm:$0xff] %vm3384, %v3311
        %3394 = vst.msk [vmem:[#allocation2 + $0x90] sm:$0xff] %vm3384, %v3313
        %3395 = vst.msk [vmem:[#allocation2 + $0xa0] sm:$0xff] %vm3384, %v3315
        %3396 = vst.msk [vmem:[#allocation2 + $0xb0] sm:$0xff] %vm3384, %v3317
        %3397 = vst.msk [vmem:[#allocation2 + $0xc0] sm:$0xff] %vm3384, %v3319
        %3398 = vst.msk [vmem:[#allocation2 + $0xd0] sm:$0xff] %vm3384, %v3321
        %3399 = vst.msk [vmem:[#allocation2 + $0xe0] sm:$0xff] %vm3384, %v3323
        %3400 = vst.msk [vmem:[#allocation2 + $0xf0] sm:$0xff] %vm3384, %v3325
        %3401 = vst.msk [vmem:[#allocation2 + $0x100] sm:$0xff] %vm3384, %v3327
        %3402 = vst.msk [vmem:[#allocation2 + $0x110] sm:$0xff] %vm3384, %v3329
        %3403 = vst.msk [vmem:[#allocation2 + $0x120] sm:$0xff] %vm3384, %v3331
        %3404 = vst.msk [vmem:[#allocation2 + $0x130] sm:$0xff] %vm3384, %v3333
        %3405 = vst.msk [vmem:[#allocation2 + $0x140] sm:$0xff] %vm3384, %v3335
        %3406 = vst.msk [vmem:[#allocation2 + $0x150] sm:$0xff] %vm3384, %v3337
        %3407 = vst.msk [vmem:[#allocation2 + $0x160] sm:$0xff] %vm3384, %v3339
        %3408 = vst.msk [vmem:[#allocation2 + $0x170] sm:$0xff] %vm3384, %v3341
        %3409 = vst.msk [vmem:[#allocation2 + $0x180] sm:$0xff] %vm3384, %v3343
        %3410 = vst.msk [vmem:[#allocation2 + $0x190] sm:$0xff] %vm3384, %v3345
        %3411 = vst.msk [vmem:[#allocation2 + $0x1a0] sm:$0xff] %vm3384, %v3347
        %3412 = vst.msk [vmem:[#allocation2 + $0x1b0] sm:$0xff] %vm3384, %v3349
        %3413 = vst.msk [vmem:[#allocation2 + $0x1c0] sm:$0xff] %vm3384, %v3351
        %3414 = vst.msk [vmem:[#allocation2 + $0x1d0] sm:$0xff] %vm3384, %v3353
        %3415 = vrot.lane.b32.xlu0 %v2613, 64
        %v3416 = vpop.permute.xlu0 %3415
        %3417 = vrot.lane.b32.xlu0 %v2612, 64
        %v3418 = vpop.permute.xlu0 %3417
        %3419 = vrot.lane.b32.xlu0 %v2616, 64
        %v3420 = vpop.permute.xlu0 %3419
        %3421 = vrot.lane.b32.xlu0 %v2615, 64
        %v3422 = vpop.permute.xlu0 %3421
        %3423 = vrot.lane.b32.xlu0 %v2619, 64
        %v3424 = vpop.permute.xlu0 %3423
        %3425 = vrot.lane.b32.xlu0 %v2618, 64
        %v3426 = vpop.permute.xlu0 %3425
        %3427 = vrot.lane.b32.xlu0 %v2622, 64
        %v3428 = vpop.permute.xlu0 %3427
        %3429 = vrot.lane.b32.xlu0 %v2621, 64
        %v3430 = vpop.permute.xlu0 %3429
        %3431 = vrot.lane.b32.xlu0 %v2625, 64
        %v3432 = vpop.permute.xlu0 %3431
        %3433 = vrot.lane.b32.xlu0 %v2624, 64
        %v3434 = vpop.permute.xlu0 %3433
        %3435 = vrot.lane.b32.xlu0 %v2628, 64
        %v3436 = vpop.permute.xlu0 %3435
        %3437 = vrot.lane.b32.xlu0 %v2627, 64
        %v3438 = vpop.permute.xlu0 %3437
        %3439 = vrot.lane.b32.xlu0 %v2631, 64
        %v3440 = vpop.permute.xlu0 %3439
        %3441 = vrot.lane.b32.xlu0 %v2630, 64
        %v3442 = vpop.permute.xlu0 %3441
        %3443 = vrot.lane.b32.xlu0 %v2634, 64
        %v3444 = vpop.permute.xlu0 %3443
        %3445 = vrot.lane.b32.xlu0 %v2633, 64
        %v3446 = vpop.permute.xlu0 %3445
        %3447 = vrot.lane.b32.xlu0 %v2637, 64
        %v3448 = vpop.permute.xlu0 %3447
        %3449 = vrot.lane.b32.xlu0 %v2636, 64
        %v3450 = vpop.permute.xlu0 %3449
        %3451 = vrot.lane.b32.xlu0 %v2640, 64
        %v3452 = vpop.permute.xlu0 %3451
        %3453 = vrot.lane.b32.xlu0 %v2639, 64
        %v3454 = vpop.permute.xlu0 %3453
        %3455 = vrot.lane.b32.xlu0 %v2643, 64
        %v3456 = vpop.permute.xlu0 %3455
        %3457 = vrot.lane.b32.xlu0 %v2642, 64
        %v3458 = vpop.permute.xlu0 %3457
        %3459 = vrot.lane.b32.xlu0 %v2646, 64
        %v3460 = vpop.permute.xlu0 %3459
        %3461 = vrot.lane.b32.xlu0 %v2645, 64
        %v3462 = vpop.permute.xlu0 %3461
        %3463 = vrot.lane.b32.xlu0 %v2649, 64
        %v3464 = vpop.permute.xlu0 %3463
        %3465 = vrot.lane.b32.xlu0 %v2648, 64
        %v3466 = vpop.permute.xlu0 %3465
        %3467 = vrot.lane.b32.xlu0 %v2652, 64
        %v3468 = vpop.permute.xlu0 %3467
        %3469 = vrot.lane.b32.xlu0 %v2651, 64
        %v3470 = vpop.permute.xlu0 %3469
        %3471 = vrot.lane.b32.xlu0 %v3041, 64
        %v3472 = vpop.permute.xlu0 %3471
        %3473 = vrot.lane.b32.xlu0 %v3040, 64
        %v3474 = vpop.permute.xlu0 %3473
        %vm3505 = vcmask 589312
        %3506 = vst.msk [vmem:[#allocation2] sm:$0xff] %vm3505, %v3416
        %vm3507 = vcmask 588288
        %3508 = vst.msk [vmem:[#allocation2 + $0x10] sm:$0x7f] %vm3507, %v3418
        %3509 = vst.msk [vmem:[#allocation2 + $0x20] sm:$0xff] %vm3505, %v3420
        %3510 = vst.msk [vmem:[#allocation2 + $0x30] sm:$0x7f] %vm3507, %v3422
        %3511 = vst.msk [vmem:[#allocation2 + $0x40] sm:$0xff] %vm3505, %v3424
        %3512 = vst.msk [vmem:[#allocation2 + $0x50] sm:$0x7f] %vm3507, %v3426
        %3513 = vst.msk [vmem:[#allocation2 + $0x60] sm:$0xff] %vm3505, %v3428
        %3514 = vst.msk [vmem:[#allocation2 + $0x70] sm:$0x7f] %vm3507, %v3430
        %3515 = vst.msk [vmem:[#allocation2 + $0x80] sm:$0xff] %vm3505, %v3432
        %3516 = vst.msk [vmem:[#allocation2 + $0x90] sm:$0x7f] %vm3507, %v3434
        %3517 = vst.msk [vmem:[#allocation2 + $0xa0] sm:$0xff] %vm3505, %v3436
        %3518 = vst.msk [vmem:[#allocation2 + $0xb0] sm:$0x7f] %vm3507, %v3438
        %3519 = vst.msk [vmem:[#allocation2 + $0xc0] sm:$0xff] %vm3505, %v3440
        %3520 = vst.msk [vmem:[#allocation2 + $0xd0] sm:$0x7f] %vm3507, %v3442
        %3521 = vst.msk [vmem:[#allocation2 + $0xe0] sm:$0xff] %vm3505, %v3444
        %3522 = vst.msk [vmem:[#allocation2 + $0xf0] sm:$0x7f] %vm3507, %v3446
        %3523 = vst.msk [vmem:[#allocation2 + $0x100] sm:$0xff] %vm3505, %v3448
        %3524 = vst.msk [vmem:[#allocation2 + $0x110] sm:$0x7f] %vm3507, %v3450
        %3525 = vst.msk [vmem:[#allocation2 + $0x120] sm:$0xff] %vm3505, %v3452
        %3526 = vst.msk [vmem:[#allocation2 + $0x130] sm:$0x7f] %vm3507, %v3454
        %3527 = vst.msk [vmem:[#allocation2 + $0x140] sm:$0xff] %vm3505, %v3456
        %3528 = vst.msk [vmem:[#allocation2 + $0x150] sm:$0x7f] %vm3507, %v3458
        %3529 = vst.msk [vmem:[#allocation2 + $0x160] sm:$0xff] %vm3505, %v3460
        %3530 = vst.msk [vmem:[#allocation2 + $0x170] sm:$0x7f] %vm3507, %v3462
        %3531 = vst.msk [vmem:[#allocation2 + $0x180] sm:$0xff] %vm3505, %v3464
        %3532 = vst.msk [vmem:[#allocation2 + $0x190] sm:$0x7f] %vm3507, %v3466
        %3533 = vst.msk [vmem:[#allocation2 + $0x1a0] sm:$0xff] %vm3505, %v3468
        %3534 = vst.msk [vmem:[#allocation2 + $0x1b0] sm:$0x7f] %vm3507, %v3470
        %3535 = vst.msk [vmem:[#allocation2 + $0x1c0] sm:$0xff] %vm3505, %v3472
        %3536 = vst.msk [vmem:[#allocation2 + $0x1d0] sm:$0x7f] %vm3507, %v3474
        %v3537 = vld [vmem:[#allocation2] sm:$0xff]
        %v3538 = vld [vmem:[#allocation2 + $0x10] sm:$0xff]
        %v3539 = vld [vmem:[#allocation2 + $0x20] sm:$0xff]
        %v3540 = vld [vmem:[#allocation2 + $0x30] sm:$0xff]
        %v3541 = vld [vmem:[#allocation2 + $0x40] sm:$0xff]
        %v3542 = vld [vmem:[#allocation2 + $0x50] sm:$0xff]
        %v3543 = vld [vmem:[#allocation2 + $0x60] sm:$0xff]
        %v3544 = vld [vmem:[#allocation2 + $0x70] sm:$0xff]
        %v3545 = vld [vmem:[#allocation2 + $0x80] sm:$0xff]
        %v3546 = vld [vmem:[#allocation2 + $0x90] sm:$0xff]
        %v3547 = vld [vmem:[#allocation2 + $0xa0] sm:$0xff]
        %v3548 = vld [vmem:[#allocation2 + $0xb0] sm:$0xff]
        %v3549 = vld [vmem:[#allocation2 + $0xc0] sm:$0xff]
        %v3550 = vld [vmem:[#allocation2 + $0xd0] sm:$0xff]
        %v3551 = vld [vmem:[#allocation2 + $0xe0] sm:$0xff]
        %v3552 = vld [vmem:[#allocation2 + $0xf0] sm:$0xff]
        %v3553 = vld [vmem:[#allocation2 + $0x100] sm:$0xff]
        %v3554 = vld [vmem:[#allocation2 + $0x110] sm:$0xff]
        %v3555 = vld [vmem:[#allocation2 + $0x120] sm:$0xff]
        %v3556 = vld [vmem:[#allocation2 + $0x130] sm:$0xff]
        %v3557 = vld [vmem:[#allocation2 + $0x140] sm:$0xff]
        %v3558 = vld [vmem:[#allocation2 + $0x150] sm:$0xff]
        %v3559 = vld [vmem:[#allocation2 + $0x160] sm:$0xff]
        %v3560 = vld [vmem:[#allocation2 + $0x170] sm:$0xff]
        %v3561 = vld [vmem:[#allocation2 + $0x180] sm:$0xff]
        %v3562 = vld [vmem:[#allocation2 + $0x190] sm:$0xff]
        %v3563 = vld [vmem:[#allocation2 + $0x1a0] sm:$0xff]
        %v3564 = vld [vmem:[#allocation2 + $0x1b0] sm:$0xff]
        %v3565 = vld [vmem:[#allocation2 + $0x1c0] sm:$0xff]
        %v3566 = vld [vmem:[#allocation2 + $0x1d0] sm:$0xff]
        %v3567 = vld [vmem:[#allocation2 + $0x1e0] sm:$0xff]
        %v3568 = vld [vmem:[#allocation2 + $0x1f0] sm:$0xff]
        %v3569 = vpack.c.bf16 %v3538, %v3537
        %v3570 = vpack.c.bf16 %v3540, %v3539
        %v3571 = vpack.c.bf16 %v3542, %v3541
        %v3572 = vpack.c.bf16 %v3544, %v3543
        %v3573 = vpack.c.bf16 %v3546, %v3545
        %v3574 = vpack.c.bf16 %v3548, %v3547
        %v3575 = vpack.c.bf16 %v3550, %v3549
        %v3576 = vpack.c.bf16 %v3552, %v3551
        %v3577 = vpack.c.bf16 %v3554, %v3553
        %v3578 = vpack.c.bf16 %v3556, %v3555
        %v3579 = vpack.c.bf16 %v3558, %v3557
        %v3580 = vpack.c.bf16 %v3560, %v3559
        %v3581 = vpack.c.bf16 %v3562, %v3561
        %v3582 = vpack.c.bf16 %v3564, %v3563
        %v3583 = vpack.c.bf16 %v3566, %v3565
        %v3584 = vpack.c.bf16 %v3568, %v3567
        %v3586 = vlaneseq
        %v3587 = vshrl.u32 %v3586, 7
        %v3588 = vsub.s32 0, %v3587
        %v3589 = vrot.slane %v594, %v3588
        %v3600 = vunpack.c.l.b16 %v585
        %v3601 = vunpack.c.l.b16 %v586
        %v3602 = vunpack.c.l.b16 %v587
        %v3603 = vunpack.c.l.b16 %v588
        %v3604 = vunpack.c.l.b16 %v589
        %v3605 = vunpack.c.l.b16 %v590
        %v3606 = vunpack.c.l.b16 %v591
        %v3607 = vunpack.c.l.b16 %v592
        %v3608 = vunpack.c.l.b16 %v593
        %v3609 = vpack.c.b16 %v3601, %v3600
        %v3610 = vpack.c.b16 %v3603, %v3602
        %v3611 = vpack.c.b16 %v3605, %v3604
        %v3612 = vpack.c.b16 %v3607, %v3606
        %v3613 = vpack.c.b16 %v3608, %v3608
        %v3619 = vsel %vm2317, %v3569, 0
        %v3622 = vsel %vm2317, %v3570, 0
        %v3625 = vsel %vm2317, %v3571, 0
        %v3628 = vsel %vm2317, %v3572, 0
        %v3631 = vsel %vm2317, %v3573, 0
        %v3634 = vsel %vm2317, %v3574, 0
        %v3637 = vsel %vm2317, %v3575, 0
        %v3640 = vsel %vm2317, %v3576, 0
        %v3643 = vsel %vm2317, %v3577, 0
        %v3646 = vsel %vm2317, %v3578, 0
        %v3649 = vsel %vm2317, %v3579, 0
        %v3652 = vsel %vm2317, %v3580, 0
        %v3655 = vsel %vm2317, %v3581, 0
        %v3658 = vsel %vm2317, %v3582, 0
        %v3661 = vsel %vm2317, %v3583, 0
        %v3664 = vsel %vm2317, %v3584, 0
        %vm3666 = vcmask 1043456
        %v3668 = vsel %vm3666, %v3613, 0
        %3670 = vmatprep.subr.bf16.mxu0 0
        %3671 = vmatpush1.bf16.msra.mxu0 %v3609
        %3672 = vmatprep.subr.bf16.mxu0 0
        %3673 = vmatpush1.bf16.msra.mxu0 %v3610
        %3674 = vmatprep.subr.bf16.mxu0 0
        %3675 = vmatpush1.bf16.msra.mxu0 %v3611
        %3676 = vmatprep.subr.bf16.mxu0 0
        %3677 = vmatpush1.bf16.msra.mxu0 %v3612
        %3678 = vmatprep.subr.bf16.mxu0 0
        %3679 = vmatpush1.bf16.msra.mxu0 %v3668
        %3680 = vmatprep.subr.bf16.mxu0 0
        %3681 = vmatpush1.bf16.msra.mxu0 0
        %3682 = vmatprep.subr.bf16.mxu0 0
        %3683 = vmatpush1.bf16.msra.mxu0 0
        %3684 = vmatprep.subr.bf16.mxu0 0
        %3685 = vmatpush1.bf16.msra.mxu0 0
        %3686 = vmatprep.subr.bf16.mxu0 0
        %3687 = vmatpush1.bf16.msra.mxu0 0
        %3688 = vmatprep.subr.bf16.mxu0 0
        %3689 = vmatpush1.bf16.msra.mxu0 0
        %3690 = vmatprep.subr.bf16.mxu0 0
        %3691 = vmatpush1.bf16.msra.mxu0 0
        %3692 = vmatprep.subr.bf16.mxu0 0
        %3693 = vmatpush1.bf16.msra.mxu0 0
        %3694 = vmatprep.subr.bf16.mxu0 0
        %3695 = vmatpush1.bf16.msra.mxu0 0
        %3696 = vmatprep.subr.bf16.mxu0 0
        %3697 = vmatpush1.bf16.msra.mxu0 0
        %3698 = vmatprep.subr.bf16.mxu0 0
        %3699 = vmatpush1.bf16.msra.mxu0 0
        %3700 = vmatprep.subr.bf16.mxu0 0
        %3701 = vmatpush1.bf16.msra.mxu0 0
        %3702 = vmatprep.mubr.bf16.mxu0 0
        %3703 = vmatmul.mubr.bf16.gmra.mrb[0].mxu0 %v3619
        %v3704 = vpop.f32.mrb[0].mxu0
        %v3705 = vadd.f32 %v3589, %v3704
        %v3706 = vpop.f32.mrb[0].mxu0
        %v3707 = vpop.f32.mrb[0].mxu0
        %v3708 = vadd.f32 %v3589, %v3707
        %v3709 = vpop.f32.mrb[0].mxu0
        %3710 = vmatprep.mubr.bf16.mxu0 0
        %3711 = vmatmul.mubr.bf16.gmra.mrb[0].mxu0 %v3622
        %v3712 = vpop.f32.mrb[0].mxu0
        %v3713 = vadd.f32 %v3589, %v3712
        %v3714 = vpop.f32.mrb[0].mxu0
        %v3715 = vpop.f32.mrb[0].mxu0
        %v3716 = vadd.f32 %v3589, %v3715
        %v3717 = vpop.f32.mrb[0].mxu0
        %3718 = vmatprep.mubr.bf16.mxu0 0
        %3719 = vmatmul.mubr.bf16.gmra.mrb[0].mxu0 %v3625
        %v3720 = vpop.f32.mrb[0].mxu0
        %v3721 = vadd.f32 %v3589, %v3720
        %v3722 = vpop.f32.mrb[0].mxu0
        %v3723 = vpop.f32.mrb[0].mxu0
        %v3724 = vadd.f32 %v3589, %v3723
        %v3725 = vpop.f32.mrb[0].mxu0
        %3726 = vmatprep.mubr.bf16.mxu0 0
        %3727 = vmatmul.mubr.bf16.gmra.mrb[0].mxu0 %v3628
        %v3728 = vpop.f32.mrb[0].mxu0
        %v3729 = vadd.f32 %v3589, %v3728
        %v3730 = vpop.f32.mrb[0].mxu0
        %v3731 = vpop.f32.mrb[0].mxu0
        %v3732 = vadd.f32 %v3589, %v3731
        %v3733 = vpop.f32.mrb[0].mxu0
        %3734 = vmatprep.mubr.bf16.mxu0 0
        %3735 = vmatmul.mubr.bf16.gmra.mrb[0].mxu0 %v3631
        %v3736 = vpop.f32.mrb[0].mxu0
        %v3737 = vadd.f32 %v3589, %v3736
        %v3738 = vpop.f32.mrb[0].mxu0
        %v3739 = vpop.f32.mrb[0].mxu0
        %v3740 = vadd.f32 %v3589, %v3739
        %v3741 = vpop.f32.mrb[0].mxu0
        %3742 = vmatprep.mubr.bf16.mxu0 0
        %3743 = vmatmul.mubr.bf16.gmra.mrb[0].mxu0 %v3634
        %v3744 = vpop.f32.mrb[0].mxu0
        %v3745 = vadd.f32 %v3589, %v3744
        %v3746 = vpop.f32.mrb[0].mxu0
        %v3747 = vpop.f32.mrb[0].mxu0
        %v3748 = vadd.f32 %v3589, %v3747
        %v3749 = vpop.f32.mrb[0].mxu0
        %3750 = vmatprep.mubr.bf16.mxu0 0
        %3751 = vmatmul.mubr.bf16.gmra.mrb[0].mxu0 %v3637
        %v3752 = vpop.f32.mrb[0].mxu0
        %v3753 = vadd.f32 %v3589, %v3752
        %v3754 = vpop.f32.mrb[0].mxu0
        %v3755 = vpop.f32.mrb[0].mxu0
        %v3756 = vadd.f32 %v3589, %v3755
        %v3757 = vpop.f32.mrb[0].mxu0
        %3758 = vmatprep.mubr.bf16.mxu0 0
        %3759 = vmatmul.mubr.bf16.gmra.mrb[0].mxu0 %v3640
        %v3760 = vpop.f32.mrb[0].mxu0
        %v3761 = vadd.f32 %v3589, %v3760
        %v3762 = vpop.f32.mrb[0].mxu0
        %v3763 = vpop.f32.mrb[0].mxu0
        %v3764 = vadd.f32 %v3589, %v3763
        %v3765 = vpop.f32.mrb[0].mxu0
        %3766 = vmatprep.mubr.bf16.mxu0 0
        %3767 = vmatmul.mubr.bf16.gmra.mrb[0].mxu0 %v3643
        %v3768 = vpop.f32.mrb[0].mxu0
        %v3769 = vadd.f32 %v3589, %v3768
        %v3770 = vpop.f32.mrb[0].mxu0
        %v3771 = vpop.f32.mrb[0].mxu0
        %v3772 = vadd.f32 %v3589, %v3771
        %v3773 = vpop.f32.mrb[0].mxu0
        %3774 = vmatprep.mubr.bf16.mxu0 0
        %3775 = vmatmul.mubr.bf16.gmra.mrb[0].mxu0 %v3646
        %v3776 = vpop.f32.mrb[0].mxu0
        %v3777 = vadd.f32 %v3589, %v3776
        %v3778 = vpop.f32.mrb[0].mxu0
        %v3779 = vpop.f32.mrb[0].mxu0
        %v3780 = vadd.f32 %v3589, %v3779
        %v3781 = vpop.f32.mrb[0].mxu0
        %3782 = vmatprep.mubr.bf16.mxu0 0
        %3783 = vmatmul.mubr.bf16.gmra.mrb[0].mxu0 %v3649
        %v3784 = vpop.f32.mrb[0].mxu0
        %v3785 = vadd.f32 %v3589, %v3784
        %v3786 = vpop.f32.mrb[0].mxu0
        %v3787 = vpop.f32.mrb[0].mxu0
        %v3788 = vadd.f32 %v3589, %v3787
        %v3789 = vpop.f32.mrb[0].mxu0
        %3790 = vmatprep.mubr.bf16.mxu0 0
        %3791 = vmatmul.mubr.bf16.gmra.mrb[0].mxu0 %v3652
        %v3792 = vpop.f32.mrb[0].mxu0
        %v3793 = vadd.f32 %v3589, %v3792
        %v3794 = vpop.f32.mrb[0].mxu0
        %v3795 = vpop.f32.mrb[0].mxu0
        %v3796 = vadd.f32 %v3589, %v3795
        %v3797 = vpop.f32.mrb[0].mxu0
        %3798 = vmatprep.mubr.bf16.mxu0 0
        %3799 = vmatmul.mubr.bf16.gmra.mrb[0].mxu0 %v3655
        %v3800 = vpop.f32.mrb[0].mxu0
        %v3801 = vadd.f32 %v3589, %v3800
        %v3802 = vpop.f32.mrb[0].mxu0
        %v3803 = vpop.f32.mrb[0].mxu0
        %v3804 = vadd.f32 %v3589, %v3803
        %v3805 = vpop.f32.mrb[0].mxu0
        %3806 = vmatprep.mubr.bf16.mxu0 0
        %3807 = vmatmul.mubr.bf16.gmra.mrb[0].mxu0 %v3658
        %v3808 = vpop.f32.mrb[0].mxu0
        %v3809 = vadd.f32 %v3589, %v3808
        %v3810 = vpop.f32.mrb[0].mxu0
        %v3811 = vpop.f32.mrb[0].mxu0
        %v3812 = vadd.f32 %v3589, %v3811
        %v3813 = vpop.f32.mrb[0].mxu0
        %3814 = vmatprep.mubr.bf16.mxu0 0
        %3815 = vmatmul.mubr.bf16.gmra.mrb[0].mxu0 %v3661
        %v3816 = vpop.f32.mrb[0].mxu0
        %v3817 = vadd.f32 %v3589, %v3816
        %v3818 = vpop.f32.mrb[0].mxu0
        %v3819 = vpop.f32.mrb[0].mxu0
        %v3820 = vadd.f32 %v3589, %v3819
        %v3821 = vpop.f32.mrb[0].mxu0
        %3822 = vmatprep.mubr.bf16.mxu0 0
        %3823 = vmatmul.mubr.bf16.gmra.mrb[0].mxu0 %v3664
        %v3824 = vpop.f32.mrb[0].mxu0
        %v3825 = vadd.f32 %v3589, %v3824
        %v3826 = vpop.f32.mrb[0].mxu0
        %v3827 = vpop.f32.mrb[0].mxu0
        %v3828 = vadd.f32 %v3589, %v3827
        %v3829 = vpop.f32.mrb[0].mxu0
        %3830 = vdwg.mxu0
        %v3831 = vsel %vm2457, %v3705, 0.0
        %v3832 = vsel %vm2457, %v3713, 0.0
        %v3833 = vadd.f32 %v3831, %v3832
        %v3834 = vsel %vm2457, %v3708, 0.0
        %v3835 = vsel %vm2457, %v3716, 0.0
        %v3836 = vadd.f32 %v3834, %v3835
        %v3837 = vsel %vm2457, %v3721, 0.0
        %v3838 = vsel %vm2457, %v3729, 0.0
        %v3839 = vadd.f32 %v3837, %v3838
        %v3840 = vsel %vm2457, %v3724, 0.0
        %v3841 = vsel %vm2457, %v3732, 0.0
        %v3842 = vadd.f32 %v3840, %v3841
        %v3843 = vsel %vm2457, %v3737, 0.0
        %v3844 = vsel %vm2457, %v3745, 0.0
        %v3845 = vadd.f32 %v3843, %v3844
        %v3846 = vsel %vm2457, %v3740, 0.0
        %v3847 = vsel %vm2457, %v3748, 0.0
        %v3848 = vadd.f32 %v3846, %v3847
        %v3849 = vsel %vm2457, %v3753, 0.0
        %v3850 = vsel %vm2457, %v3761, 0.0
        %v3851 = vadd.f32 %v3849, %v3850
        %v3852 = vsel %vm2457, %v3756, 0.0
        %v3853 = vsel %vm2457, %v3764, 0.0
        %v3854 = vadd.f32 %v3852, %v3853
        %v3855 = vsel %vm2457, %v3769, 0.0
        %v3856 = vsel %vm2457, %v3777, 0.0
        %v3857 = vadd.f32 %v3855, %v3856
        %v3858 = vsel %vm2457, %v3772, 0.0
        %v3859 = vsel %vm2457, %v3780, 0.0
        %v3860 = vadd.f32 %v3858, %v3859
        %v3861 = vsel %vm2457, %v3785, 0.0
        %v3862 = vsel %vm2457, %v3793, 0.0
        %v3863 = vadd.f32 %v3861, %v3862
        %v3864 = vsel %vm2457, %v3788, 0.0
        %v3865 = vsel %vm2457, %v3796, 0.0
        %v3866 = vadd.f32 %v3864, %v3865
        %v3867 = vsel %vm2457, %v3801, 0.0
        %v3868 = vsel %vm2457, %v3809, 0.0
        %v3869 = vadd.f32 %v3867, %v3868
        %v3870 = vsel %vm2457, %v3804, 0.0
        %v3871 = vsel %vm2457, %v3812, 0.0
        %v3872 = vadd.f32 %v3870, %v3871
        %v3873 = vsel %vm2457, %v3817, 0.0
        %v3874 = vsel %vm2457, %v3825, 0.0
        %v3875 = vadd.f32 %v3873, %v3874
        %v3876 = vsel %vm2457, %v3820, 0.0
        %v3877 = vsel %vm2457, %v3828, 0.0
        %v3878 = vadd.f32 %v3876, %v3877
        %v3895 = vcombine.high %v3833, %v3833
        %v3897 = vunpack.c.l.s4 1983009808
        %v3898 = vunpack.c.0.s8 %v3897
        %v3899 = vlaneseq
        %v3900 = vshrl.u32 %v3899, 7
        %v3901 = vsub.s32 %v3898, %v3900
        %v3902 = vrot.slane %v3833, %v3901
        %v3904 = vunpack.c.l.s4 1983009808
        %v3905 = vunpack.c.0.s8 %v3904
        %v3906 = vlaneseq
        %v3907 = vshrl.u32 %v3906, 7
        %v3908 = vsub.s32 %v3905, %v3907
        %v3909 = vrot.slane %v3895, %v3908
        %v3910 = vcombine.high %v3902, %v3902
        %v3911 = vcombine.high %v3909, %v3909
        %v3912 = vcombine.high %v3836, %v3836
        %v3914 = vunpack.c.l.s4 1983009808
        %v3915 = vunpack.c.0.s8 %v3914
        %v3916 = vlaneseq
        %v3917 = vshrl.u32 %v3916, 7
        %v3918 = vsub.s32 %v3915, %v3917
        %v3919 = vrot.slane %v3836, %v3918
        %v3921 = vunpack.c.l.s4 1983009808
        %v3922 = vunpack.c.0.s8 %v3921
        %v3923 = vlaneseq
        %v3924 = vshrl.u32 %v3923, 7
        %v3925 = vsub.s32 %v3922, %v3924
        %v3926 = vrot.slane %v3912, %v3925
        %v3927 = vcombine.high %v3919, %v3919
        %v3928 = vcombine.high %v3926, %v3926
        %v3929 = vcombine.high %v3839, %v3839
        %v3931 = vunpack.c.l.s4 1983009808
        %v3932 = vunpack.c.0.s8 %v3931
        %v3933 = vlaneseq
        %v3934 = vshrl.u32 %v3933, 7
        %v3935 = vsub.s32 %v3932, %v3934
        %v3936 = vrot.slane %v3839, %v3935
        %v3938 = vunpack.c.l.s4 1983009808
        %v3939 = vunpack.c.0.s8 %v3938
        %v3940 = vlaneseq
        %v3941 = vshrl.u32 %v3940, 7
        %v3942 = vsub.s32 %v3939, %v3941
        %v3943 = vrot.slane %v3929, %v3942
        %v3944 = vcombine.high %v3936, %v3936
        %v3945 = vcombine.high %v3943, %v3943
        %v3946 = vcombine.high %v3842, %v3842
        %v3948 = vunpack.c.l.s4 1983009808
        %v3949 = vunpack.c.0.s8 %v3948
        %v3950 = vlaneseq
        %v3951 = vshrl.u32 %v3950, 7
        %v3952 = vsub.s32 %v3949, %v3951
        %v3953 = vrot.slane %v3842, %v3952
        %v3955 = vunpack.c.l.s4 1983009808
        %v3956 = vunpack.c.0.s8 %v3955
        %v3957 = vlaneseq
        %v3958 = vshrl.u32 %v3957, 7
        %v3959 = vsub.s32 %v3956, %v3958
        %v3960 = vrot.slane %v3946, %v3959
        %v3961 = vcombine.high %v3953, %v3953
        %v3962 = vcombine.high %v3960, %v3960
        %v3963 = vcombine.high %v3845, %v3845
        %v3965 = vunpack.c.l.s4 1983009808
        %v3966 = vunpack.c.0.s8 %v3965
        %v3967 = vlaneseq
        %v3968 = vshrl.u32 %v3967, 7
        %v3969 = vsub.s32 %v3966, %v3968
        %v3970 = vrot.slane %v3845, %v3969
        %v3972 = vunpack.c.l.s4 1983009808
        %v3973 = vunpack.c.0.s8 %v3972
        %v3974 = vlaneseq
        %v3975 = vshrl.u32 %v3974, 7
        %v3976 = vsub.s32 %v3973, %v3975
        %v3977 = vrot.slane %v3963, %v3976
        %v3978 = vcombine.high %v3970, %v3970
        %v3979 = vcombine.high %v3977, %v3977
        %v3980 = vcombine.high %v3848, %v3848
        %v3982 = vunpack.c.l.s4 1983009808
        %v3983 = vunpack.c.0.s8 %v3982
        %v3984 = vlaneseq
        %v3985 = vshrl.u32 %v3984, 7
        %v3986 = vsub.s32 %v3983, %v3985
        %v3987 = vrot.slane %v3848, %v3986
        %v3989 = vunpack.c.l.s4 1983009808
        %v3990 = vunpack.c.0.s8 %v3989
        %v3991 = vlaneseq
        %v3992 = vshrl.u32 %v3991, 7
        %v3993 = vsub.s32 %v3990, %v3992
        %v3994 = vrot.slane %v3980, %v3993
        %v3995 = vcombine.high %v3987, %v3987
        %v3996 = vcombine.high %v3994, %v3994
        %v3997 = vcombine.high %v3851, %v3851
        %v3999 = vunpack.c.l.s4 1983009808
        %v4000 = vunpack.c.0.s8 %v3999
        %v4001 = vlaneseq
        %v4002 = vshrl.u32 %v4001, 7
        %v4003 = vsub.s32 %v4000, %v4002
        %v4004 = vrot.slane %v3851, %v4003
        %v4006 = vunpack.c.l.s4 1983009808
        %v4007 = vunpack.c.0.s8 %v4006
        %v4008 = vlaneseq
        %v4009 = vshrl.u32 %v4008, 7
        %v4010 = vsub.s32 %v4007, %v4009
        %v4011 = vrot.slane %v3997, %v4010
        %v4012 = vcombine.high %v4004, %v4004
        %v4013 = vcombine.high %v4011, %v4011
        %v4014 = vcombine.high %v3854, %v3854
        %v4016 = vunpack.c.l.s4 1983009808
        %v4017 = vunpack.c.0.s8 %v4016
        %v4018 = vlaneseq
        %v4019 = vshrl.u32 %v4018, 7
        %v4020 = vsub.s32 %v4017, %v4019
        %v4021 = vrot.slane %v3854, %v4020
        %v4023 = vunpack.c.l.s4 1983009808
        %v4024 = vunpack.c.0.s8 %v4023
        %v4025 = vlaneseq
        %v4026 = vshrl.u32 %v4025, 7
        %v4027 = vsub.s32 %v4024, %v4026
        %v4028 = vrot.slane %v4014, %v4027
        %v4029 = vcombine.high %v4021, %v4021
        %v4030 = vcombine.high %v4028, %v4028
        %v4031 = vcombine.high %v3857, %v3857
        %v4033 = vunpack.c.l.s4 1983009808
        %v4034 = vunpack.c.0.s8 %v4033
        %v4035 = vlaneseq
        %v4036 = vshrl.u32 %v4035, 7
        %v4037 = vsub.s32 %v4034, %v4036
        %v4038 = vrot.slane %v3857, %v4037
        %v4040 = vunpack.c.l.s4 1983009808
        %v4041 = vunpack.c.0.s8 %v4040
        %v4042 = vlaneseq
        %v4043 = vshrl.u32 %v4042, 7
        %v4044 = vsub.s32 %v4041, %v4043
        %v4045 = vrot.slane %v4031, %v4044
        %v4046 = vcombine.high %v4038, %v4038
        %v4047 = vcombine.high %v4045, %v4045
        %v4048 = vcombine.high %v3860, %v3860
        %v4050 = vunpack.c.l.s4 1983009808
        %v4051 = vunpack.c.0.s8 %v4050
        %v4052 = vlaneseq
        %v4053 = vshrl.u32 %v4052, 7
        %v4054 = vsub.s32 %v4051, %v4053
        %v4055 = vrot.slane %v3860, %v4054
        %v4057 = vunpack.c.l.s4 1983009808
        %v4058 = vunpack.c.0.s8 %v4057
        %v4059 = vlaneseq
        %v4060 = vshrl.u32 %v4059, 7
        %v4061 = vsub.s32 %v4058, %v4060
        %v4062 = vrot.slane %v4048, %v4061
        %v4063 = vcombine.high %v4055, %v4055
        %v4064 = vcombine.high %v4062, %v4062
        %v4065 = vcombine.high %v3863, %v3863
        %v4067 = vunpack.c.l.s4 1983009808
        %v4068 = vunpack.c.0.s8 %v4067
        %v4069 = vlaneseq
        %v4070 = vshrl.u32 %v4069, 7
        %v4071 = vsub.s32 %v4068, %v4070
        %v4072 = vrot.slane %v3863, %v4071
        %v4074 = vunpack.c.l.s4 1983009808
        %v4075 = vunpack.c.0.s8 %v4074
        %v4076 = vlaneseq
        %v4077 = vshrl.u32 %v4076, 7
        %v4078 = vsub.s32 %v4075, %v4077
        %v4079 = vrot.slane %v4065, %v4078
        %v4080 = vcombine.high %v4072, %v4072
        %v4081 = vcombine.high %v4079, %v4079
        %v4082 = vcombine.high %v3866, %v3866
        %v4084 = vunpack.c.l.s4 1983009808
        %v4085 = vunpack.c.0.s8 %v4084
        %v4086 = vlaneseq
        %v4087 = vshrl.u32 %v4086, 7
        %v4088 = vsub.s32 %v4085, %v4087
        %v4089 = vrot.slane %v3866, %v4088
        %v4091 = vunpack.c.l.s4 1983009808
        %v4092 = vunpack.c.0.s8 %v4091
        %v4093 = vlaneseq
        %v4094 = vshrl.u32 %v4093, 7
        %v4095 = vsub.s32 %v4092, %v4094
        %v4096 = vrot.slane %v4082, %v4095
        %v4097 = vcombine.high %v4089, %v4089
        %v4098 = vcombine.high %v4096, %v4096
        %v4099 = vcombine.high %v3869, %v3869
        %v4101 = vunpack.c.l.s4 1983009808
        %v4102 = vunpack.c.0.s8 %v4101
        %v4103 = vlaneseq
        %v4104 = vshrl.u32 %v4103, 7
        %v4105 = vsub.s32 %v4102, %v4104
        %v4106 = vrot.slane %v3869, %v4105
        %v4108 = vunpack.c.l.s4 1983009808
        %v4109 = vunpack.c.0.s8 %v4108
        %v4110 = vlaneseq
        %v4111 = vshrl.u32 %v4110, 7
        %v4112 = vsub.s32 %v4109, %v4111
        %v4113 = vrot.slane %v4099, %v4112
        %v4114 = vcombine.high %v4106, %v4106
        %v4115 = vcombine.high %v4113, %v4113
        %v4116 = vcombine.high %v3872, %v3872
        %v4118 = vunpack.c.l.s4 1983009808
        %v4119 = vunpack.c.0.s8 %v4118
        %v4120 = vlaneseq
        %v4121 = vshrl.u32 %v4120, 7
        %v4122 = vsub.s32 %v4119, %v4121
        %v4123 = vrot.slane %v3872, %v4122
        %v4125 = vunpack.c.l.s4 1983009808
        %v4126 = vunpack.c.0.s8 %v4125
        %v4127 = vlaneseq
        %v4128 = vshrl.u32 %v4127, 7
        %v4129 = vsub.s32 %v4126, %v4128
        %v4130 = vrot.slane %v4116, %v4129
        %v4131 = vcombine.high %v4123, %v4123
        %v4132 = vcombine.high %v4130, %v4130
        %v4133 = vcombine.high %v3875, %v3875
        %v4135 = vunpack.c.l.s4 1983009808
        %v4136 = vunpack.c.0.s8 %v4135
        %v4137 = vlaneseq
        %v4138 = vshrl.u32 %v4137, 7
        %v4139 = vsub.s32 %v4136, %v4138
        %v4140 = vrot.slane %v3875, %v4139
        %v4142 = vunpack.c.l.s4 1983009808
        %v4143 = vunpack.c.0.s8 %v4142
        %v4144 = vlaneseq
        %v4145 = vshrl.u32 %v4144, 7
        %v4146 = vsub.s32 %v4143, %v4145
        %v4147 = vrot.slane %v4133, %v4146
        %v4148 = vcombine.high %v4140, %v4140
        %v4149 = vcombine.high %v4147, %v4147
        %v4150 = vcombine.high %v3878, %v3878
        %v4152 = vunpack.c.l.s4 1983009808
        %v4153 = vunpack.c.0.s8 %v4152
        %v4154 = vlaneseq
        %v4155 = vshrl.u32 %v4154, 7
        %v4156 = vsub.s32 %v4153, %v4155
        %v4157 = vrot.slane %v3878, %v4156
        %v4159 = vunpack.c.l.s4 1983009808
        %v4160 = vunpack.c.0.s8 %v4159
        %v4161 = vlaneseq
        %v4162 = vshrl.u32 %v4161, 7
        %v4163 = vsub.s32 %v4160, %v4162
        %v4164 = vrot.slane %v4150, %v4163
        %v4165 = vcombine.high %v4157, %v4157
        %v4166 = vcombine.high %v4164, %v4164
        %vm4231 = vcmask 58368
        %v4232 = vsel %vm4231, %v3902, 0.0
        %v4233 = vrot.slane %v4232, 4
        %v4234 = vadd.f32 %v4232, %v4233
        %v4235 = vrot.slane %v4234, 2
        %v4236 = vadd.f32 %v4234, %v4235
        %v4237 = vrot.slane %v4236, 1
        %v4238 = vadd.f32 %v4236, %v4237
        %v4239 = vsel %vm4231, %v3910, 0.0
        %v4240 = vrot.slane %v4239, 4
        %v4241 = vadd.f32 %v4239, %v4240
        %v4242 = vrot.slane %v4241, 2
        %v4243 = vadd.f32 %v4241, %v4242
        %v4244 = vrot.slane %v4243, 1
        %v4245 = vadd.f32 %v4243, %v4244
        %v4246 = vsel %vm4231, %v3909, 0.0
        %v4247 = vrot.slane %v4246, 4
        %v4248 = vadd.f32 %v4246, %v4247
        %v4249 = vrot.slane %v4248, 2
        %v4250 = vadd.f32 %v4248, %v4249
        %v4251 = vrot.slane %v4250, 1
        %v4252 = vadd.f32 %v4250, %v4251
        %v4253 = vsel %vm4231, %v3911, 0.0
        %v4254 = vrot.slane %v4253, 4
        %v4255 = vadd.f32 %v4253, %v4254
        %v4256 = vrot.slane %v4255, 2
        %v4257 = vadd.f32 %v4255, %v4256
        %v4258 = vrot.slane %v4257, 1
        %v4259 = vadd.f32 %v4257, %v4258
        %v4260 = vsel %vm4231, %v3919, 0.0
        %v4261 = vrot.slane %v4260, 4
        %v4262 = vadd.f32 %v4260, %v4261
        %v4263 = vrot.slane %v4262, 2
        %v4264 = vadd.f32 %v4262, %v4263
        %v4265 = vrot.slane %v4264, 1
        %v4266 = vadd.f32 %v4264, %v4265
        %v4267 = vsel %vm4231, %v3927, 0.0
        %v4268 = vrot.slane %v4267, 4
        %v4269 = vadd.f32 %v4267, %v4268
        %v4270 = vrot.slane %v4269, 2
        %v4271 = vadd.f32 %v4269, %v4270
        %v4272 = vrot.slane %v4271, 1
        %v4273 = vadd.f32 %v4271, %v4272
        %v4274 = vsel %vm4231, %v3926, 0.0
        %v4275 = vrot.slane %v4274, 4
        %v4276 = vadd.f32 %v4274, %v4275
        %v4277 = vrot.slane %v4276, 2
        %v4278 = vadd.f32 %v4276, %v4277
        %v4279 = vrot.slane %v4278, 1
        %v4280 = vadd.f32 %v4278, %v4279
        %v4281 = vsel %vm4231, %v3928, 0.0
        %v4282 = vrot.slane %v4281, 4
        %v4283 = vadd.f32 %v4281, %v4282
        %v4284 = vrot.slane %v4283, 2
        %v4285 = vadd.f32 %v4283, %v4284
        %v4286 = vrot.slane %v4285, 1
        %v4287 = vadd.f32 %v4285, %v4286
        %v4288 = vsel %vm4231, %v3936, 0.0
        %v4289 = vrot.slane %v4288, 4
        %v4290 = vadd.f32 %v4288, %v4289
        %v4291 = vrot.slane %v4290, 2
        %v4292 = vadd.f32 %v4290, %v4291
        %v4293 = vrot.slane %v4292, 1
        %v4294 = vadd.f32 %v4292, %v4293
        %v4295 = vsel %vm4231, %v3944, 0.0
        %v4296 = vrot.slane %v4295, 4
        %v4297 = vadd.f32 %v4295, %v4296
        %v4298 = vrot.slane %v4297, 2
        %v4299 = vadd.f32 %v4297, %v4298
        %v4300 = vrot.slane %v4299, 1
        %v4301 = vadd.f32 %v4299, %v4300
        %v4302 = vsel %vm4231, %v3943, 0.0
        %v4303 = vrot.slane %v4302, 4
        %v4304 = vadd.f32 %v4302, %v4303
        %v4305 = vrot.slane %v4304, 2
        %v4306 = vadd.f32 %v4304, %v4305
        %v4307 = vrot.slane %v4306, 1
        %v4308 = vadd.f32 %v4306, %v4307
        %v4309 = vsel %vm4231, %v3945, 0.0
        %v4310 = vrot.slane %v4309, 4
        %v4311 = vadd.f32 %v4309, %v4310
        %v4312 = vrot.slane %v4311, 2
        %v4313 = vadd.f32 %v4311, %v4312
        %v4314 = vrot.slane %v4313, 1
        %v4315 = vadd.f32 %v4313, %v4314
        %v4316 = vsel %vm4231, %v3953, 0.0
        %v4317 = vrot.slane %v4316, 4
        %v4318 = vadd.f32 %v4316, %v4317
        %v4319 = vrot.slane %v4318, 2
        %v4320 = vadd.f32 %v4318, %v4319
        %v4321 = vrot.slane %v4320, 1
        %v4322 = vadd.f32 %v4320, %v4321
        %v4323 = vsel %vm4231, %v3961, 0.0
        %v4324 = vrot.slane %v4323, 4
        %v4325 = vadd.f32 %v4323, %v4324
        %v4326 = vrot.slane %v4325, 2
        %v4327 = vadd.f32 %v4325, %v4326
        %v4328 = vrot.slane %v4327, 1
        %v4329 = vadd.f32 %v4327, %v4328
        %v4330 = vsel %vm4231, %v3960, 0.0
        %v4331 = vrot.slane %v4330, 4
        %v4332 = vadd.f32 %v4330, %v4331
        %v4333 = vrot.slane %v4332, 2
        %v4334 = vadd.f32 %v4332, %v4333
        %v4335 = vrot.slane %v4334, 1
        %v4336 = vadd.f32 %v4334, %v4335
        %v4337 = vsel %vm4231, %v3962, 0.0
        %v4338 = vrot.slane %v4337, 4
        %v4339 = vadd.f32 %v4337, %v4338
        %v4340 = vrot.slane %v4339, 2
        %v4341 = vadd.f32 %v4339, %v4340
        %v4342 = vrot.slane %v4341, 1
        %v4343 = vadd.f32 %v4341, %v4342
        %v4344 = vsel %vm4231, %v3970, 0.0
        %v4345 = vrot.slane %v4344, 4
        %v4346 = vadd.f32 %v4344, %v4345
        %v4347 = vrot.slane %v4346, 2
        %v4348 = vadd.f32 %v4346, %v4347
        %v4349 = vrot.slane %v4348, 1
        %v4350 = vadd.f32 %v4348, %v4349
        %v4351 = vsel %vm4231, %v3978, 0.0
        %v4352 = vrot.slane %v4351, 4
        %v4353 = vadd.f32 %v4351, %v4352
        %v4354 = vrot.slane %v4353, 2
        %v4355 = vadd.f32 %v4353, %v4354
        %v4356 = vrot.slane %v4355, 1
        %v4357 = vadd.f32 %v4355, %v4356
        %v4358 = vsel %vm4231, %v3977, 0.0
        %v4359 = vrot.slane %v4358, 4
        %v4360 = vadd.f32 %v4358, %v4359
        %v4361 = vrot.slane %v4360, 2
        %v4362 = vadd.f32 %v4360, %v4361
        %v4363 = vrot.slane %v4362, 1
        %v4364 = vadd.f32 %v4362, %v4363
        %v4365 = vsel %vm4231, %v3979, 0.0
        %v4366 = vrot.slane %v4365, 4
        %v4367 = vadd.f32 %v4365, %v4366
        %v4368 = vrot.slane %v4367, 2
        %v4369 = vadd.f32 %v4367, %v4368
        %v4370 = vrot.slane %v4369, 1
        %v4371 = vadd.f32 %v4369, %v4370
        %v4372 = vsel %vm4231, %v3987, 0.0
        %v4373 = vrot.slane %v4372, 4
        %v4374 = vadd.f32 %v4372, %v4373
        %v4375 = vrot.slane %v4374, 2
        %v4376 = vadd.f32 %v4374, %v4375
        %v4377 = vrot.slane %v4376, 1
        %v4378 = vadd.f32 %v4376, %v4377
        %v4379 = vsel %vm4231, %v3995, 0.0
        %v4380 = vrot.slane %v4379, 4
        %v4381 = vadd.f32 %v4379, %v4380
        %v4382 = vrot.slane %v4381, 2
        %v4383 = vadd.f32 %v4381, %v4382
        %v4384 = vrot.slane %v4383, 1
        %v4385 = vadd.f32 %v4383, %v4384
        %v4386 = vsel %vm4231, %v3994, 0.0
        %v4387 = vrot.slane %v4386, 4
        %v4388 = vadd.f32 %v4386, %v4387
        %v4389 = vrot.slane %v4388, 2
        %v4390 = vadd.f32 %v4388, %v4389
        %v4391 = vrot.slane %v4390, 1
        %v4392 = vadd.f32 %v4390, %v4391
        %v4393 = vsel %vm4231, %v3996, 0.0
        %v4394 = vrot.slane %v4393, 4
        %v4395 = vadd.f32 %v4393, %v4394
        %v4396 = vrot.slane %v4395, 2
        %v4397 = vadd.f32 %v4395, %v4396
        %v4398 = vrot.slane %v4397, 1
        %v4399 = vadd.f32 %v4397, %v4398
        %v4400 = vsel %vm4231, %v4004, 0.0
        %v4401 = vrot.slane %v4400, 4
        %v4402 = vadd.f32 %v4400, %v4401
        %v4403 = vrot.slane %v4402, 2
        %v4404 = vadd.f32 %v4402, %v4403
        %v4405 = vrot.slane %v4404, 1
        %v4406 = vadd.f32 %v4404, %v4405
        %v4407 = vsel %vm4231, %v4012, 0.0
        %v4408 = vrot.slane %v4407, 4
        %v4409 = vadd.f32 %v4407, %v4408
        %v4410 = vrot.slane %v4409, 2
        %v4411 = vadd.f32 %v4409, %v4410
        %v4412 = vrot.slane %v4411, 1
        %v4413 = vadd.f32 %v4411, %v4412
        %v4414 = vsel %vm4231, %v4011, 0.0
        %v4415 = vrot.slane %v4414, 4
        %v4416 = vadd.f32 %v4414, %v4415
        %v4417 = vrot.slane %v4416, 2
        %v4418 = vadd.f32 %v4416, %v4417
        %v4419 = vrot.slane %v4418, 1
        %v4420 = vadd.f32 %v4418, %v4419
        %v4421 = vsel %vm4231, %v4013, 0.0
        %v4422 = vrot.slane %v4421, 4
        %v4423 = vadd.f32 %v4421, %v4422
        %v4424 = vrot.slane %v4423, 2
        %v4425 = vadd.f32 %v4423, %v4424
        %v4426 = vrot.slane %v4425, 1
        %v4427 = vadd.f32 %v4425, %v4426
        %v4428 = vsel %vm4231, %v4021, 0.0
        %v4429 = vrot.slane %v4428, 4
        %v4430 = vadd.f32 %v4428, %v4429
        %v4431 = vrot.slane %v4430, 2
        %v4432 = vadd.f32 %v4430, %v4431
        %v4433 = vrot.slane %v4432, 1
        %v4434 = vadd.f32 %v4432, %v4433
        %v4435 = vsel %vm4231, %v4029, 0.0
        %v4436 = vrot.slane %v4435, 4
        %v4437 = vadd.f32 %v4435, %v4436
        %v4438 = vrot.slane %v4437, 2
        %v4439 = vadd.f32 %v4437, %v4438
        %v4440 = vrot.slane %v4439, 1
        %v4441 = vadd.f32 %v4439, %v4440
        %v4442 = vsel %vm4231, %v4028, 0.0
        %v4443 = vrot.slane %v4442, 4
        %v4444 = vadd.f32 %v4442, %v4443
        %v4445 = vrot.slane %v4444, 2
        %v4446 = vadd.f32 %v4444, %v4445
        %v4447 = vrot.slane %v4446, 1
        %v4448 = vadd.f32 %v4446, %v4447
        %v4449 = vsel %vm4231, %v4030, 0.0
        %v4450 = vrot.slane %v4449, 4
        %v4451 = vadd.f32 %v4449, %v4450
        %v4452 = vrot.slane %v4451, 2
        %v4453 = vadd.f32 %v4451, %v4452
        %v4454 = vrot.slane %v4453, 1
        %v4455 = vadd.f32 %v4453, %v4454
        %v4456 = vsel %vm4231, %v4038, 0.0
        %v4457 = vrot.slane %v4456, 4
        %v4458 = vadd.f32 %v4456, %v4457
        %v4459 = vrot.slane %v4458, 2
        %v4460 = vadd.f32 %v4458, %v4459
        %v4461 = vrot.slane %v4460, 1
        %v4462 = vadd.f32 %v4460, %v4461
        %v4463 = vsel %vm4231, %v4046, 0.0
        %v4464 = vrot.slane %v4463, 4
        %v4465 = vadd.f32 %v4463, %v4464
        %v4466 = vrot.slane %v4465, 2
        %v4467 = vadd.f32 %v4465, %v4466
        %v4468 = vrot.slane %v4467, 1
        %v4469 = vadd.f32 %v4467, %v4468
        %v4470 = vsel %vm4231, %v4045, 0.0
        %v4471 = vrot.slane %v4470, 4
        %v4472 = vadd.f32 %v4470, %v4471
        %v4473 = vrot.slane %v4472, 2
        %v4474 = vadd.f32 %v4472, %v4473
        %v4475 = vrot.slane %v4474, 1
        %v4476 = vadd.f32 %v4474, %v4475
        %v4477 = vsel %vm4231, %v4047, 0.0
        %v4478 = vrot.slane %v4477, 4
        %v4479 = vadd.f32 %v4477, %v4478
        %v4480 = vrot.slane %v4479, 2
        %v4481 = vadd.f32 %v4479, %v4480
        %v4482 = vrot.slane %v4481, 1
        %v4483 = vadd.f32 %v4481, %v4482
        %v4484 = vsel %vm4231, %v4055, 0.0
        %v4485 = vrot.slane %v4484, 4
        %v4486 = vadd.f32 %v4484, %v4485
        %v4487 = vrot.slane %v4486, 2
        %v4488 = vadd.f32 %v4486, %v4487
        %v4489 = vrot.slane %v4488, 1
        %v4490 = vadd.f32 %v4488, %v4489
        %v4491 = vsel %vm4231, %v4063, 0.0
        %v4492 = vrot.slane %v4491, 4
        %v4493 = vadd.f32 %v4491, %v4492
        %v4494 = vrot.slane %v4493, 2
        %v4495 = vadd.f32 %v4493, %v4494
        %v4496 = vrot.slane %v4495, 1
        %v4497 = vadd.f32 %v4495, %v4496
        %v4498 = vsel %vm4231, %v4062, 0.0
        %v4499 = vrot.slane %v4498, 4
        %v4500 = vadd.f32 %v4498, %v4499
        %v4501 = vrot.slane %v4500, 2
        %v4502 = vadd.f32 %v4500, %v4501
        %v4503 = vrot.slane %v4502, 1
        %v4504 = vadd.f32 %v4502, %v4503
        %v4505 = vsel %vm4231, %v4064, 0.0
        %v4506 = vrot.slane %v4505, 4
        %v4507 = vadd.f32 %v4505, %v4506
        %v4508 = vrot.slane %v4507, 2
        %v4509 = vadd.f32 %v4507, %v4508
        %v4510 = vrot.slane %v4509, 1
        %v4511 = vadd.f32 %v4509, %v4510
        %v4512 = vsel %vm4231, %v4072, 0.0
        %v4513 = vrot.slane %v4512, 4
        %v4514 = vadd.f32 %v4512, %v4513
        %v4515 = vrot.slane %v4514, 2
        %v4516 = vadd.f32 %v4514, %v4515
        %v4517 = vrot.slane %v4516, 1
        %v4518 = vadd.f32 %v4516, %v4517
        %v4519 = vsel %vm4231, %v4080, 0.0
        %v4520 = vrot.slane %v4519, 4
        %v4521 = vadd.f32 %v4519, %v4520
        %v4522 = vrot.slane %v4521, 2
        %v4523 = vadd.f32 %v4521, %v4522
        %v4524 = vrot.slane %v4523, 1
        %v4525 = vadd.f32 %v4523, %v4524
        %v4526 = vsel %vm4231, %v4079, 0.0
        %v4527 = vrot.slane %v4526, 4
        %v4528 = vadd.f32 %v4526, %v4527
        %v4529 = vrot.slane %v4528, 2
        %v4530 = vadd.f32 %v4528, %v4529
        %v4531 = vrot.slane %v4530, 1
        %v4532 = vadd.f32 %v4530, %v4531
        %v4533 = vsel %vm4231, %v4081, 0.0
        %v4534 = vrot.slane %v4533, 4
        %v4535 = vadd.f32 %v4533, %v4534
        %v4536 = vrot.slane %v4535, 2
        %v4537 = vadd.f32 %v4535, %v4536
        %v4538 = vrot.slane %v4537, 1
        %v4539 = vadd.f32 %v4537, %v4538
        %v4540 = vsel %vm4231, %v4089, 0.0
        %v4541 = vrot.slane %v4540, 4
        %v4542 = vadd.f32 %v4540, %v4541
        %v4543 = vrot.slane %v4542, 2
        %v4544 = vadd.f32 %v4542, %v4543
        %v4545 = vrot.slane %v4544, 1
        %v4546 = vadd.f32 %v4544, %v4545
        %v4547 = vsel %vm4231, %v4097, 0.0
        %v4548 = vrot.slane %v4547, 4
        %v4549 = vadd.f32 %v4547, %v4548
        %v4550 = vrot.slane %v4549, 2
        %v4551 = vadd.f32 %v4549, %v4550
        %v4552 = vrot.slane %v4551, 1
        %v4553 = vadd.f32 %v4551, %v4552
        %v4554 = vsel %vm4231, %v4096, 0.0
        %v4555 = vrot.slane %v4554, 4
        %v4556 = vadd.f32 %v4554, %v4555
        %v4557 = vrot.slane %v4556, 2
        %v4558 = vadd.f32 %v4556, %v4557
        %v4559 = vrot.slane %v4558, 1
        %v4560 = vadd.f32 %v4558, %v4559
        %v4561 = vsel %vm4231, %v4098, 0.0
        %v4562 = vrot.slane %v4561, 4
        %v4563 = vadd.f32 %v4561, %v4562
        %v4564 = vrot.slane %v4563, 2
        %v4565 = vadd.f32 %v4563, %v4564
        %v4566 = vrot.slane %v4565, 1
        %v4567 = vadd.f32 %v4565, %v4566
        %v4568 = vsel %vm4231, %v4106, 0.0
        %v4569 = vrot.slane %v4568, 4
        %v4570 = vadd.f32 %v4568, %v4569
        %v4571 = vrot.slane %v4570, 2
        %v4572 = vadd.f32 %v4570, %v4571
        %v4573 = vrot.slane %v4572, 1
        %v4574 = vadd.f32 %v4572, %v4573
        %v4575 = vsel %vm4231, %v4114, 0.0
        %v4576 = vrot.slane %v4575, 4
        %v4577 = vadd.f32 %v4575, %v4576
        %v4578 = vrot.slane %v4577, 2
        %v4579 = vadd.f32 %v4577, %v4578
        %v4580 = vrot.slane %v4579, 1
        %v4581 = vadd.f32 %v4579, %v4580
        %v4582 = vsel %vm4231, %v4113, 0.0
        %v4583 = vrot.slane %v4582, 4
        %v4584 = vadd.f32 %v4582, %v4583
        %v4585 = vrot.slane %v4584, 2
        %v4586 = vadd.f32 %v4584, %v4585
        %v4587 = vrot.slane %v4586, 1
        %v4588 = vadd.f32 %v4586, %v4587
        %v4589 = vsel %vm4231, %v4115, 0.0
        %v4590 = vrot.slane %v4589, 4
        %v4591 = vadd.f32 %v4589, %v4590
        %v4592 = vrot.slane %v4591, 2
        %v4593 = vadd.f32 %v4591, %v4592
        %v4594 = vrot.slane %v4593, 1
        %v4595 = vadd.f32 %v4593, %v4594
        %v4596 = vsel %vm4231, %v4123, 0.0
        %v4597 = vrot.slane %v4596, 4
        %v4598 = vadd.f32 %v4596, %v4597
        %v4599 = vrot.slane %v4598, 2
        %v4600 = vadd.f32 %v4598, %v4599
        %v4601 = vrot.slane %v4600, 1
        %v4602 = vadd.f32 %v4600, %v4601
        %v4603 = vsel %vm4231, %v4131, 0.0
        %v4604 = vrot.slane %v4603, 4
        %v4605 = vadd.f32 %v4603, %v4604
        %v4606 = vrot.slane %v4605, 2
        %v4607 = vadd.f32 %v4605, %v4606
        %v4608 = vrot.slane %v4607, 1
        %v4609 = vadd.f32 %v4607, %v4608
        %v4610 = vsel %vm4231, %v4130, 0.0
        %v4611 = vrot.slane %v4610, 4
        %v4612 = vadd.f32 %v4610, %v4611
        %v4613 = vrot.slane %v4612, 2
        %v4614 = vadd.f32 %v4612, %v4613
        %v4615 = vrot.slane %v4614, 1
        %v4616 = vadd.f32 %v4614, %v4615
        %v4617 = vsel %vm4231, %v4132, 0.0
        %v4618 = vrot.slane %v4617, 4
        %v4619 = vadd.f32 %v4617, %v4618
        %v4620 = vrot.slane %v4619, 2
        %v4621 = vadd.f32 %v4619, %v4620
        %v4622 = vrot.slane %v4621, 1
        %v4623 = vadd.f32 %v4621, %v4622
        %v4624 = vsel %vm4231, %v4140, 0.0
        %v4625 = vrot.slane %v4624, 4
        %v4626 = vadd.f32 %v4624, %v4625
        %v4627 = vrot.slane %v4626, 2
        %v4628 = vadd.f32 %v4626, %v4627
        %v4629 = vrot.slane %v4628, 1
        %v4630 = vadd.f32 %v4628, %v4629
        %v4631 = vsel %vm4231, %v4148, 0.0
        %v4632 = vrot.slane %v4631, 4
        %v4633 = vadd.f32 %v4631, %v4632
        %v4634 = vrot.slane %v4633, 2
        %v4635 = vadd.f32 %v4633, %v4634
        %v4636 = vrot.slane %v4635, 1
        %v4637 = vadd.f32 %v4635, %v4636
        %v4638 = vsel %vm4231, %v4147, 0.0
        %v4639 = vrot.slane %v4638, 4
        %v4640 = vadd.f32 %v4638, %v4639
        %v4641 = vrot.slane %v4640, 2
        %v4642 = vadd.f32 %v4640, %v4641
        %v4643 = vrot.slane %v4642, 1
        %v4644 = vadd.f32 %v4642, %v4643
        %v4645 = vsel %vm4231, %v4149, 0.0
        %v4646 = vrot.slane %v4645, 4
        %v4647 = vadd.f32 %v4645, %v4646
        %v4648 = vrot.slane %v4647, 2
        %v4649 = vadd.f32 %v4647, %v4648
        %v4650 = vrot.slane %v4649, 1
        %v4651 = vadd.f32 %v4649, %v4650
        %v4652 = vsel %vm4231, %v4157, 0.0
        %v4653 = vrot.slane %v4652, 4
        %v4654 = vadd.f32 %v4652, %v4653
        %v4655 = vrot.slane %v4654, 2
        %v4656 = vadd.f32 %v4654, %v4655
        %v4657 = vrot.slane %v4656, 1
        %v4658 = vadd.f32 %v4656, %v4657
        %v4659 = vsel %vm4231, %v4165, 0.0
        %v4660 = vrot.slane %v4659, 4
        %v4661 = vadd.f32 %v4659, %v4660
        %v4662 = vrot.slane %v4661, 2
        %v4663 = vadd.f32 %v4661, %v4662
        %v4664 = vrot.slane %v4663, 1
        %v4665 = vadd.f32 %v4663, %v4664
        %v4666 = vsel %vm4231, %v4164, 0.0
        %v4667 = vrot.slane %v4666, 4
        %v4668 = vadd.f32 %v4666, %v4667
        %v4669 = vrot.slane %v4668, 2
        %v4670 = vadd.f32 %v4668, %v4669
        %v4671 = vrot.slane %v4670, 1
        %v4672 = vadd.f32 %v4670, %v4671
        %v4673 = vsel %vm4231, %v4166, 0.0
        %v4674 = vrot.slane %v4673, 4
        %v4675 = vadd.f32 %v4673, %v4674
        %v4676 = vrot.slane %v4675, 2
        %v4677 = vadd.f32 %v4675, %v4676
        %v4678 = vrot.slane %v4677, 1
        %v4679 = vadd.f32 %v4677, %v4678
        %v4680 = vmul.f32 %v4238, 0.25
        %v4681 = vmul.f32 %v4245, 0.25
        %v4682 = vmul.f32 %v4252, 0.25
        %v4683 = vmul.f32 %v4259, 0.25
        %v4684 = vmul.f32 %v4266, 0.25
        %v4685 = vmul.f32 %v4273, 0.25
        %v4686 = vmul.f32 %v4280, 0.25
        %v4687 = vmul.f32 %v4287, 0.25
        %v4688 = vmul.f32 %v4294, 0.25
        %v4689 = vmul.f32 %v4301, 0.25
        %v4690 = vmul.f32 %v4308, 0.25
        %v4691 = vmul.f32 %v4315, 0.25
        %v4692 = vmul.f32 %v4322, 0.25
        %v4693 = vmul.f32 %v4329, 0.25
        %v4694 = vmul.f32 %v4336, 0.25
        %v4695 = vmul.f32 %v4343, 0.25
        %v4696 = vmul.f32 %v4350, 0.25
        %v4697 = vmul.f32 %v4357, 0.25
        %v4698 = vmul.f32 %v4364, 0.25
        %v4699 = vmul.f32 %v4371, 0.25
        %v4700 = vmul.f32 %v4378, 0.25
        %v4701 = vmul.f32 %v4385, 0.25
        %v4702 = vmul.f32 %v4392, 0.25
        %v4703 = vmul.f32 %v4399, 0.25
        %v4704 = vmul.f32 %v4406, 0.25
        %v4705 = vmul.f32 %v4413, 0.25
        %v4706 = vmul.f32 %v4420, 0.25
        %v4707 = vmul.f32 %v4427, 0.25
        %v4708 = vmul.f32 %v4434, 0.25
        %v4709 = vmul.f32 %v4441, 0.25
        %v4710 = vmul.f32 %v4448, 0.25
        %v4711 = vmul.f32 %v4455, 0.25
        %v4712 = vmul.f32 %v4462, 0.25
        %v4713 = vmul.f32 %v4469, 0.25
        %v4714 = vmul.f32 %v4476, 0.25
        %v4715 = vmul.f32 %v4483, 0.25
        %v4716 = vmul.f32 %v4490, 0.25
        %v4717 = vmul.f32 %v4497, 0.25
        %v4718 = vmul.f32 %v4504, 0.25
        %v4719 = vmul.f32 %v4511, 0.25
        %v4720 = vmul.f32 %v4518, 0.25
        %v4721 = vmul.f32 %v4525, 0.25
        %v4722 = vmul.f32 %v4532, 0.25
        %v4723 = vmul.f32 %v4539, 0.25
        %v4724 = vmul.f32 %v4546, 0.25
        %v4725 = vmul.f32 %v4553, 0.25
        %v4726 = vmul.f32 %v4560, 0.25
        %v4727 = vmul.f32 %v4567, 0.25
        %v4728 = vmul.f32 %v4574, 0.25
        %v4729 = vmul.f32 %v4581, 0.25
        %v4730 = vmul.f32 %v4588, 0.25
        %v4731 = vmul.f32 %v4595, 0.25
        %v4732 = vmul.f32 %v4602, 0.25
        %v4733 = vmul.f32 %v4609, 0.25
        %v4734 = vmul.f32 %v4616, 0.25
        %v4735 = vmul.f32 %v4623, 0.25
        %v4736 = vmul.f32 %v4630, 0.25
        %v4737 = vmul.f32 %v4637, 0.25
        %v4738 = vmul.f32 %v4644, 0.25
        %v4739 = vmul.f32 %v4651, 0.25
        %v4740 = vmul.f32 %v4658, 0.25
        %v4741 = vmul.f32 %v4665, 0.25
        %v4742 = vmul.f32 %v4672, 0.25
        %v4743 = vmul.f32 %v4679, 0.25
        %vm4744 = vcmp.gt.f32.partialorder %v4680, 0.0
        %vm4745 = vcmp.gt.f32.partialorder %v4681, 0.0
        %vm4746 = vcmp.gt.f32.partialorder %v4682, 0.0
        %vm4747 = vcmp.gt.f32.partialorder %v4683, 0.0
        %vm4748 = vcmp.gt.f32.partialorder %v4684, 0.0
        %vm4749 = vcmp.gt.f32.partialorder %v4685, 0.0
        %vm4750 = vcmp.gt.f32.partialorder %v4686, 0.0
        %vm4751 = vcmp.gt.f32.partialorder %v4687, 0.0
        %vm4752 = vcmp.gt.f32.partialorder %v4688, 0.0
        %vm4753 = vcmp.gt.f32.partialorder %v4689, 0.0
        %vm4754 = vcmp.gt.f32.partialorder %v4690, 0.0
        %vm4755 = vcmp.gt.f32.partialorder %v4691, 0.0
        %vm4756 = vcmp.gt.f32.partialorder %v4692, 0.0
        %vm4757 = vcmp.gt.f32.partialorder %v4693, 0.0
        %vm4758 = vcmp.gt.f32.partialorder %v4694, 0.0
        %vm4759 = vcmp.gt.f32.partialorder %v4695, 0.0
        %vm4760 = vcmp.gt.f32.partialorder %v4696, 0.0
        %vm4761 = vcmp.gt.f32.partialorder %v4697, 0.0
        %vm4762 = vcmp.gt.f32.partialorder %v4698, 0.0
        %vm4763 = vcmp.gt.f32.partialorder %v4699, 0.0
        %vm4764 = vcmp.gt.f32.partialorder %v4700, 0.0
        %vm4765 = vcmp.gt.f32.partialorder %v4701, 0.0
        %vm4766 = vcmp.gt.f32.partialorder %v4702, 0.0
        %vm4767 = vcmp.gt.f32.partialorder %v4703, 0.0
        %vm4768 = vcmp.gt.f32.partialorder %v4704, 0.0
        %vm4769 = vcmp.gt.f32.partialorder %v4705, 0.0
        %vm4770 = vcmp.gt.f32.partialorder %v4706, 0.0
        %vm4771 = vcmp.gt.f32.partialorder %v4707, 0.0
        %vm4772 = vcmp.gt.f32.partialorder %v4708, 0.0
        %vm4773 = vcmp.gt.f32.partialorder %v4709, 0.0
        %vm4774 = vcmp.gt.f32.partialorder %v4710, 0.0
        %vm4775 = vcmp.gt.f32.partialorder %v4711, 0.0
        %vm4776 = vcmp.gt.f32.partialorder %v4712, 0.0
        %vm4777 = vcmp.gt.f32.partialorder %v4713, 0.0
        %vm4778 = vcmp.gt.f32.partialorder %v4714, 0.0
        %vm4779 = vcmp.gt.f32.partialorder %v4715, 0.0
        %vm4780 = vcmp.gt.f32.partialorder %v4716, 0.0
        %vm4781 = vcmp.gt.f32.partialorder %v4717, 0.0
        %vm4782 = vcmp.gt.f32.partialorder %v4718, 0.0
        %vm4783 = vcmp.gt.f32.partialorder %v4719, 0.0
        %vm4784 = vcmp.gt.f32.partialorder %v4720, 0.0
        %vm4785 = vcmp.gt.f32.partialorder %v4721, 0.0
        %vm4786 = vcmp.gt.f32.partialorder %v4722, 0.0
        %vm4787 = vcmp.gt.f32.partialorder %v4723, 0.0
        %vm4788 = vcmp.gt.f32.partialorder %v4724, 0.0
        %vm4789 = vcmp.gt.f32.partialorder %v4725, 0.0
        %vm4790 = vcmp.gt.f32.partialorder %v4726, 0.0
        %vm4791 = vcmp.gt.f32.partialorder %v4727, 0.0
        %vm4792 = vcmp.gt.f32.partialorder %v4728, 0.0
        %vm4793 = vcmp.gt.f32.partialorder %v4729, 0.0
        %vm4794 = vcmp.gt.f32.partialorder %v4730, 0.0
        %vm4795 = vcmp.gt.f32.partialorder %v4731, 0.0
        %vm4796 = vcmp.gt.f32.partialorder %v4732, 0.0
        %vm4797 = vcmp.gt.f32.partialorder %v4733, 0.0
        %vm4798 = vcmp.gt.f32.partialorder %v4734, 0.0
        %vm4799 = vcmp.gt.f32.partialorder %v4735, 0.0
        %vm4800 = vcmp.gt.f32.partialorder %v4736, 0.0
        %vm4801 = vcmp.gt.f32.partialorder %v4737, 0.0
        %vm4802 = vcmp.gt.f32.partialorder %v4738, 0.0
        %vm4803 = vcmp.gt.f32.partialorder %v4739, 0.0
        %vm4804 = vcmp.gt.f32.partialorder %v4740, 0.0
        %vm4805 = vcmp.gt.f32.partialorder %v4741, 0.0
        %vm4806 = vcmp.gt.f32.partialorder %v4742, 0.0
        %vm4807 = vcmp.gt.f32.partialorder %v4743, 0.0
        %v4808 = vmul.f32 %v4680, 0.2
        %v4809 = vmul.f32 %v4681, 0.2
        %v4810 = vmul.f32 %v4682, 0.2
        %v4811 = vmul.f32 %v4683, 0.2
        %v4812 = vmul.f32 %v4684, 0.2
        %v4813 = vmul.f32 %v4685, 0.2
        %v4814 = vmul.f32 %v4686, 0.2
        %v4815 = vmul.f32 %v4687, 0.2
        %v4816 = vmul.f32 %v4688, 0.2
        %v4817 = vmul.f32 %v4689, 0.2
        %v4818 = vmul.f32 %v4690, 0.2
        %v4819 = vmul.f32 %v4691, 0.2
        %v4820 = vmul.f32 %v4692, 0.2
        %v4821 = vmul.f32 %v4693, 0.2
        %v4822 = vmul.f32 %v4694, 0.2
        %v4823 = vmul.f32 %v4695, 0.2
        %v4824 = vmul.f32 %v4696, 0.2
        %v4825 = vmul.f32 %v4697, 0.2
        %v4826 = vmul.f32 %v4698, 0.2
        %v4827 = vmul.f32 %v4699, 0.2
        %v4828 = vmul.f32 %v4700, 0.2
        %v4829 = vmul.f32 %v4701, 0.2
        %v4830 = vmul.f32 %v4702, 0.2
        %v4831 = vmul.f32 %v4703, 0.2
        %v4832 = vmul.f32 %v4704, 0.2
        %v4833 = vmul.f32 %v4705, 0.2
        %v4834 = vmul.f32 %v4706, 0.2
        %v4835 = vmul.f32 %v4707, 0.2
        %v4836 = vmul.f32 %v4708, 0.2
        %v4837 = vmul.f32 %v4709, 0.2
        %v4838 = vmul.f32 %v4710, 0.2
        %v4839 = vmul.f32 %v4711, 0.2
        %v4840 = vmul.f32 %v4712, 0.2
        %v4841 = vmul.f32 %v4713, 0.2
        %v4842 = vmul.f32 %v4714, 0.2
        %v4843 = vmul.f32 %v4715, 0.2
        %v4844 = vmul.f32 %v4716, 0.2
        %v4845 = vmul.f32 %v4717, 0.2
        %v4846 = vmul.f32 %v4718, 0.2
        %v4847 = vmul.f32 %v4719, 0.2
        %v4848 = vmul.f32 %v4720, 0.2
        %v4849 = vmul.f32 %v4721, 0.2
        %v4850 = vmul.f32 %v4722, 0.2
        %v4851 = vmul.f32 %v4723, 0.2
        %v4852 = vmul.f32 %v4724, 0.2
        %v4853 = vmul.f32 %v4725, 0.2
        %v4854 = vmul.f32 %v4726, 0.2
        %v4855 = vmul.f32 %v4727, 0.2
        %v4856 = vmul.f32 %v4728, 0.2
        %v4857 = vmul.f32 %v4729, 0.2
        %v4858 = vmul.f32 %v4730, 0.2
        %v4859 = vmul.f32 %v4731, 0.2
        %v4860 = vmul.f32 %v4732, 0.2
        %v4861 = vmul.f32 %v4733, 0.2
        %v4862 = vmul.f32 %v4734, 0.2
        %v4863 = vmul.f32 %v4735, 0.2
        %v4864 = vmul.f32 %v4736, 0.2
        %v4865 = vmul.f32 %v4737, 0.2
        %v4866 = vmul.f32 %v4738, 0.2
        %v4867 = vmul.f32 %v4739, 0.2
        %v4868 = vmul.f32 %v4740, 0.2
        %v4869 = vmul.f32 %v4741, 0.2
        %v4870 = vmul.f32 %v4742, 0.2
        %v4871 = vmul.f32 %v4743, 0.2
        %v4872 = vsel %vm4744, %v4680, %v4808
        %v4873 = vsel %vm4745, %v4681, %v4809
        %v4874 = vsel %vm4746, %v4682, %v4810
        %v4875 = vsel %vm4747, %v4683, %v4811
        %v4876 = vsel %vm4748, %v4684, %v4812
        %v4877 = vsel %vm4749, %v4685, %v4813
        %v4878 = vsel %vm4750, %v4686, %v4814
        %v4879 = vsel %vm4751, %v4687, %v4815
        %v4880 = vsel %vm4752, %v4688, %v4816
        %v4881 = vsel %vm4753, %v4689, %v4817
        %v4882 = vsel %vm4754, %v4690, %v4818
        %v4883 = vsel %vm4755, %v4691, %v4819
        %v4884 = vsel %vm4756, %v4692, %v4820
        %v4885 = vsel %vm4757, %v4693, %v4821
        %v4886 = vsel %vm4758, %v4694, %v4822
        %v4887 = vsel %vm4759, %v4695, %v4823
        %v4888 = vsel %vm4760, %v4696, %v4824
        %v4889 = vsel %vm4761, %v4697, %v4825
        %v4890 = vsel %vm4762, %v4698, %v4826
        %v4891 = vsel %vm4763, %v4699, %v4827
        %v4892 = vsel %vm4764, %v4700, %v4828
        %v4893 = vsel %vm4765, %v4701, %v4829
        %v4894 = vsel %vm4766, %v4702, %v4830
        %v4895 = vsel %vm4767, %v4703, %v4831
        %v4896 = vsel %vm4768, %v4704, %v4832
        %v4897 = vsel %vm4769, %v4705, %v4833
        %v4898 = vsel %vm4770, %v4706, %v4834
        %v4899 = vsel %vm4771, %v4707, %v4835
        %v4900 = vsel %vm4772, %v4708, %v4836
        %v4901 = vsel %vm4773, %v4709, %v4837
        %v4902 = vsel %vm4774, %v4710, %v4838
        %v4903 = vsel %vm4775, %v4711, %v4839
        %v4904 = vsel %vm4776, %v4712, %v4840
        %v4905 = vsel %vm4777, %v4713, %v4841
        %v4906 = vsel %vm4778, %v4714, %v4842
        %v4907 = vsel %vm4779, %v4715, %v4843
        %v4908 = vsel %vm4780, %v4716, %v4844
        %v4909 = vsel %vm4781, %v4717, %v4845
        %v4910 = vsel %vm4782, %v4718, %v4846
        %v4911 = vsel %vm4783, %v4719, %v4847
        %v4912 = vsel %vm4784, %v4720, %v4848
        %v4913 = vsel %vm4785, %v4721, %v4849
        %v4914 = vsel %vm4786, %v4722, %v4850
        %v4915 = vsel %vm4787, %v4723, %v4851
        %v4916 = vsel %vm4788, %v4724, %v4852
        %v4917 = vsel %vm4789, %v4725, %v4853
        %v4918 = vsel %vm4790, %v4726, %v4854
        %v4919 = vsel %vm4791, %v4727, %v4855
        %v4920 = vsel %vm4792, %v4728, %v4856
        %v4921 = vsel %vm4793, %v4729, %v4857
        %v4922 = vsel %vm4794, %v4730, %v4858
        %v4923 = vsel %vm4795, %v4731, %v4859
        %v4924 = vsel %vm4796, %v4732, %v4860
        %v4925 = vsel %vm4797, %v4733, %v4861
        %v4926 = vsel %vm4798, %v4734, %v4862
        %v4927 = vsel %vm4799, %v4735, %v4863
        %v4928 = vsel %vm4800, %v4736, %v4864
        %v4929 = vsel %vm4801, %v4737, %v4865
        %v4930 = vsel %vm4802, %v4738, %v4866
        %v4931 = vsel %vm4803, %v4739, %v4867
        %v4932 = vsel %vm4804, %v4740, %v4868
        %v4933 = vsel %vm4805, %v4741, %v4869
        %v4934 = vsel %vm4806, %v4742, %v4870
        %v4935 = vsel %vm4807, %v4743, %v4871
        %4936 = vst.msk [vmem:[#allocation2] sm:$0xff] %vm2317, 0.0
        %4937 = vst.msk [vmem:[#allocation2 + $0x20] sm:$0xff] %vm2317, 0.0
        %4938 = vst.msk [vmem:[#allocation2 + $0x40] sm:$0xff] %vm2317, 0.0
        %4939 = vst.msk [vmem:[#allocation2 + $0x60] sm:$0xff] %vm2317, 0.0
        %4940 = vst.msk [vmem:[#allocation2 + $0x80] sm:$0xff] %vm2317, 0.0
        %4941 = vst.msk [vmem:[#allocation2 + $0xa0] sm:$0xff] %vm2317, 0.0
        %4942 = vst.msk [vmem:[#allocation2 + $0xc0] sm:$0xff] %vm2317, 0.0
        %4943 = vst.msk [vmem:[#allocation2 + $0xe0] sm:$0xff] %vm2317, 0.0
        %vm4993 = vcmask 1042434
        %v4994 = vsel %vm4993, %v4873, %v4872
        %vm4995 = vcmask 1043459
        %v4996 = vsel %vm4995, %v4874, %v4994
        %vm4997 = vcmask 1044484
        %v4998 = vsel %vm4997, %v4875, %v4996
        %vm4999 = vcmask 1045509
        %v5000 = vsel %vm4999, %v4876, %v4998
        %vm5001 = vcmask 1046534
        %v5002 = vsel %vm5001, %v4877, %v5000
        %vm5003 = vcmask 1047559
        %v5004 = vsel %vm5003, %v4878, %v5002
        %v5005 = vsel %vm4993, %v4881, %v4880
        %v5006 = vsel %vm4995, %v4882, %v5005
        %v5007 = vsel %vm4997, %v4883, %v5006
        %v5008 = vsel %vm4999, %v4884, %v5007
        %v5009 = vsel %vm5001, %v4885, %v5008
        %v5010 = vsel %vm5003, %v4886, %v5009
        %v5011 = vsel %vm4993, %v4889, %v4888
        %v5012 = vsel %vm4995, %v4890, %v5011
        %v5013 = vsel %vm4997, %v4891, %v5012
        %v5014 = vsel %vm4999, %v4892, %v5013
        %v5015 = vsel %vm5001, %v4893, %v5014
        %v5016 = vsel %vm5003, %v4894, %v5015
        %v5017 = vsel %vm4993, %v4897, %v4896
        %v5018 = vsel %vm4995, %v4898, %v5017
        %v5019 = vsel %vm4997, %v4899, %v5018
        %v5020 = vsel %vm4999, %v4900, %v5019
        %v5021 = vsel %vm5001, %v4901, %v5020
        %v5022 = vsel %vm5003, %v4902, %v5021
        %v5023 = vsel %vm4993, %v4905, %v4904
        %v5024 = vsel %vm4995, %v4906, %v5023
        %v5025 = vsel %vm4997, %v4907, %v5024
        %v5026 = vsel %vm4999, %v4908, %v5025
        %v5027 = vsel %vm5001, %v4909, %v5026
        %v5028 = vsel %vm5003, %v4910, %v5027
        %v5029 = vsel %vm4993, %v4913, %v4912
        %v5030 = vsel %vm4995, %v4914, %v5029
        %v5031 = vsel %vm4997, %v4915, %v5030
        %v5032 = vsel %vm4999, %v4916, %v5031
        %v5033 = vsel %vm5001, %v4917, %v5032
        %v5034 = vsel %vm5003, %v4918, %v5033
        %v5035 = vsel %vm4993, %v4921, %v4920
        %v5036 = vsel %vm4995, %v4922, %v5035
        %v5037 = vsel %vm4997, %v4923, %v5036
        %v5038 = vsel %vm4999, %v4924, %v5037
        %v5039 = vsel %vm5001, %v4925, %v5038
        %v5040 = vsel %vm5003, %v4926, %v5039
        %5048 = vst.msk [vmem:[%s855] sm:$0xfe] %vm2455, %v5004
        %5049 = vst.msk [vmem:[%s855 + $0x20] sm:$0xfe] %vm2455, %v5010
        %5050 = vst.msk [vmem:[%s855 + $0x40] sm:$0xfe] %vm2455, %v5016
        %5051 = vst.msk [vmem:[%s855 + $0x60] sm:$0xfe] %vm2455, %v5022
        %5052 = vst.msk [vmem:[%s855 + $0x80] sm:$0xfe] %vm2455, %v5028
        %5053 = vst.msk [vmem:[%s855 + $0xa0] sm:$0xfe] %vm2455, %v5034
        %5054 = vst.msk [vmem:[%s855 + $0xc0] sm:$0xfe] %vm2455, %v5040
        %vm5062 = vcmask 1041409
        %v5063 = vsel %vm5062, %v4873, %v4872
        %v5064 = vsel %vm4993, %v4874, %v5063
        %v5065 = vsel %vm4995, %v4875, %v5064
        %v5066 = vsel %vm4997, %v4876, %v5065
        %v5067 = vsel %vm4999, %v4877, %v5066
        %v5068 = vsel %vm5001, %v4878, %v5067
        %v5069 = vsel %vm5003, %v4879, %v5068
        %v5070 = vsel %vm5062, %v4881, %v4880
        %v5071 = vsel %vm4993, %v4882, %v5070
        %v5072 = vsel %vm4995, %v4883, %v5071
        %v5073 = vsel %vm4997, %v4884, %v5072
        %v5074 = vsel %vm4999, %v4885, %v5073
        %v5075 = vsel %vm5001, %v4886, %v5074
        %v5076 = vsel %vm5003, %v4887, %v5075
        %v5077 = vsel %vm5062, %v4889, %v4888
        %v5078 = vsel %vm4993, %v4890, %v5077
        %v5079 = vsel %vm4995, %v4891, %v5078
        %v5080 = vsel %vm4997, %v4892, %v5079
        %v5081 = vsel %vm4999, %v4893, %v5080
        %v5082 = vsel %vm5001, %v4894, %v5081
        %v5083 = vsel %vm5003, %v4895, %v5082
        %v5084 = vsel %vm5062, %v4897, %v4896
        %v5085 = vsel %vm4993, %v4898, %v5084
        %v5086 = vsel %vm4995, %v4899, %v5085
        %v5087 = vsel %vm4997, %v4900, %v5086
        %v5088 = vsel %vm4999, %v4901, %v5087
        %v5089 = vsel %vm5001, %v4902, %v5088
        %v5090 = vsel %vm5003, %v4903, %v5089
        %v5091 = vsel %vm5062, %v4905, %v4904
        %v5092 = vsel %vm4993, %v4906, %v5091
        %v5093 = vsel %vm4995, %v4907, %v5092
        %v5094 = vsel %vm4997, %v4908, %v5093
        %v5095 = vsel %vm4999, %v4909, %v5094
        %v5096 = vsel %vm5001, %v4910, %v5095
        %v5097 = vsel %vm5003, %v4911, %v5096
        %v5098 = vsel %vm5062, %v4913, %v4912
        %v5099 = vsel %vm4993, %v4914, %v5098
        %v5100 = vsel %vm4995, %v4915, %v5099
        %v5101 = vsel %vm4997, %v4916, %v5100
        %v5102 = vsel %vm4999, %v4917, %v5101
        %v5103 = vsel %vm5001, %v4918, %v5102
        %v5104 = vsel %vm5003, %v4919, %v5103
        %v5105 = vsel %vm5062, %v4921, %v4920
        %v5106 = vsel %vm4993, %v4922, %v5105
        %v5107 = vsel %vm4995, %v4923, %v5106
        %v5108 = vsel %vm4997, %v4924, %v5107
        %v5109 = vsel %vm4999, %v4925, %v5108
        %v5110 = vsel %vm5001, %v4926, %v5109
        %v5111 = vsel %vm5003, %v4927, %v5110
        %5112 = vrot.lane.b32.xlu0 %v5069, 8
        %v5113 = vpop.permute.xlu0 %5112
        %5114 = vrot.lane.b32.xlu0 %v5076, 8
        %v5115 = vpop.permute.xlu0 %5114
        %5116 = vrot.lane.b32.xlu0 %v5083, 8
        %v5117 = vpop.permute.xlu0 %5116
        %5118 = vrot.lane.b32.xlu0 %v5090, 8
        %v5119 = vpop.permute.xlu0 %5118
        %5120 = vrot.lane.b32.xlu0 %v5097, 8
        %v5121 = vpop.permute.xlu0 %5120
        %5122 = vrot.lane.b32.xlu0 %v5104, 8
        %v5123 = vpop.permute.xlu0 %5122
        %5124 = vrot.lane.b32.xlu0 %v5111, 8
        %v5125 = vpop.permute.xlu0 %5124
        %5133 = vst.msk [vmem:[%s855] sm:$0xff] %vm2577, %v5113
        %5134 = vst.msk [vmem:[%s855 + $0x20] sm:$0xff] %vm2577, %v5115
        %5135 = vst.msk [vmem:[%s855 + $0x40] sm:$0xff] %vm2577, %v5117
        %5136 = vst.msk [vmem:[%s855 + $0x60] sm:$0xff] %vm2577, %v5119
        %5137 = vst.msk [vmem:[%s855 + $0x80] sm:$0xff] %vm2577, %v5121
        %5138 = vst.msk [vmem:[%s855 + $0xa0] sm:$0xff] %vm2577, %v5123
        %5139 = vst.msk [vmem:[%s855 + $0xc0] sm:$0xff] %vm2577, %v5125
        %v5140 = vsel %vm5062, %v4874, %v4873
        %v5141 = vsel %vm4993, %v4875, %v5140
        %v5142 = vsel %vm4995, %v4876, %v5141
        %v5143 = vsel %vm4997, %v4877, %v5142
        %v5144 = vsel %vm4999, %v4878, %v5143
        %v5145 = vsel %vm5001, %v4879, %v5144
        %v5146 = vsel %vm5062, %v4882, %v4881
        %v5147 = vsel %vm4993, %v4883, %v5146
        %v5148 = vsel %vm4995, %v4884, %v5147
        %v5149 = vsel %vm4997, %v4885, %v5148
        %v5150 = vsel %vm4999, %v4886, %v5149
        %v5151 = vsel %vm5001, %v4887, %v5150
        %v5152 = vsel %vm5062, %v4890, %v4889
        %v5153 = vsel %vm4993, %v4891, %v5152
        %v5154 = vsel %vm4995, %v4892, %v5153
        %v5155 = vsel %vm4997, %v4893, %v5154
        %v5156 = vsel %vm4999, %v4894, %v5155
        %v5157 = vsel %vm5001, %v4895, %v5156
        %v5158 = vsel %vm5062, %v4898, %v4897
        %v5159 = vsel %vm4993, %v4899, %v5158
        %v5160 = vsel %vm4995, %v4900, %v5159
        %v5161 = vsel %vm4997, %v4901, %v5160
        %v5162 = vsel %vm4999, %v4902, %v5161
        %v5163 = vsel %vm5001, %v4903, %v5162
        %v5164 = vsel %vm5062, %v4906, %v4905
        %v5165 = vsel %vm4993, %v4907, %v5164
        %v5166 = vsel %vm4995, %v4908, %v5165
        %v5167 = vsel %vm4997, %v4909, %v5166
        %v5168 = vsel %vm4999, %v4910, %v5167
        %v5169 = vsel %vm5001, %v4911, %v5168
        %v5170 = vsel %vm5062, %v4914, %v4913
        %v5171 = vsel %vm4993, %v4915, %v5170
        %v5172 = vsel %vm4995, %v4916, %v5171
        %v5173 = vsel %vm4997, %v4917, %v5172
        %v5174 = vsel %vm4999, %v4918, %v5173
        %v5175 = vsel %vm5001, %v4919, %v5174
        %v5176 = vsel %vm5062, %v4922, %v4921
        %v5177 = vsel %vm4993, %v4923, %v5176
        %v5178 = vsel %vm4995, %v4924, %v5177
        %v5179 = vsel %vm4997, %v4925, %v5178
        %v5180 = vsel %vm4999, %v4926, %v5179
        %v5181 = vsel %vm5001, %v4927, %v5180
        %5182 = vrot.lane.b32.xlu0 %v5145, 16
        %v5183 = vpop.permute.xlu0 %5182
        %5184 = vrot.lane.b32.xlu0 %v5151, 16
        %v5185 = vpop.permute.xlu0 %5184
        %5186 = vrot.lane.b32.xlu0 %v5157, 16
        %v5187 = vpop.permute.xlu0 %5186
        %5188 = vrot.lane.b32.xlu0 %v5163, 16
        %v5189 = vpop.permute.xlu0 %5188
        %5190 = vrot.lane.b32.xlu0 %v5169, 16
        %v5191 = vpop.permute.xlu0 %5190
        %5192 = vrot.lane.b32.xlu0 %v5175, 16
        %v5193 = vpop.permute.xlu0 %5192
        %5194 = vrot.lane.b32.xlu0 %v5181, 16
        %v5195 = vpop.permute.xlu0 %5194
        %5203 = vst.msk [vmem:[%s855] sm:$0x7f] %vm2745, %v5183
        %5204 = vst.msk [vmem:[%s855 + $0x20] sm:$0x7f] %vm2745, %v5185
        %5205 = vst.msk [vmem:[%s855 + $0x40] sm:$0x7f] %vm2745, %v5187
        %5206 = vst.msk [vmem:[%s855 + $0x60] sm:$0x7f] %vm2745, %v5189
        %5207 = vst.msk [vmem:[%s855 + $0x80] sm:$0x7f] %vm2745, %v5191
        %5208 = vst.msk [vmem:[%s855 + $0xa0] sm:$0x7f] %vm2745, %v5193
        %5209 = vst.msk [vmem:[%s855 + $0xc0] sm:$0x7f] %vm2745, %v5195
        %v5217 = vsel %vm4993, %v4929, %v4928
        %v5218 = vsel %vm4995, %v4930, %v5217
        %v5219 = vsel %vm4997, %v4931, %v5218
        %v5220 = vsel %vm4999, %v4932, %v5219
        %v5221 = vsel %vm5001, %v4933, %v5220
        %v5222 = vsel %vm5003, %v4934, %v5221
        %5223 = vrot.lane.b32.xlu0 %v5004, 24
        %v5224 = vpop.permute.xlu0 %5223
        %5225 = vrot.lane.b32.xlu0 %v5010, 24
        %v5226 = vpop.permute.xlu0 %5225
        %5227 = vrot.lane.b32.xlu0 %v5016, 24
        %v5228 = vpop.permute.xlu0 %5227
        %5229 = vrot.lane.b32.xlu0 %v5022, 24
        %v5230 = vpop.permute.xlu0 %5229
        %5231 = vrot.lane.b32.xlu0 %v5028, 24
        %v5232 = vpop.permute.xlu0 %5231
        %5233 = vrot.lane.b32.xlu0 %v5034, 24
        %v5234 = vpop.permute.xlu0 %5233
        %5235 = vrot.lane.b32.xlu0 %v5040, 24
        %v5236 = vpop.permute.xlu0 %5235
        %5237 = vrot.lane.b32.xlu0 %v5222, 24
        %v5238 = vpop.permute.xlu0 %5237
        %5247 = vst.msk [vmem:[#allocation2] sm:$0xfe] %vm2876, %v5224
        %5248 = vst.msk [vmem:[#allocation2 + $0x20] sm:$0xfe] %vm2876, %v5226
        %5249 = vst.msk [vmem:[#allocation2 + $0x40] sm:$0xfe] %vm2876, %v5228
        %5250 = vst.msk [vmem:[#allocation2 + $0x60] sm:$0xfe] %vm2876, %v5230
        %5251 = vst.msk [vmem:[#allocation2 + $0x80] sm:$0xfe] %vm2876, %v5232
        %5252 = vst.msk [vmem:[#allocation2 + $0xa0] sm:$0xfe] %vm2876, %v5234
        %5253 = vst.msk [vmem:[#allocation2 + $0xc0] sm:$0xfe] %vm2876, %v5236
        %5254 = vst.msk [vmem:[#allocation2 + $0xe0] sm:$0xfe] %vm2876, %v5238
        %v5256 = vsel %vm5062, %v4929, %v4928
        %v5257 = vsel %vm4993, %v4930, %v5256
        %v5258 = vsel %vm4995, %v4931, %v5257
        %v5259 = vsel %vm4997, %v4932, %v5258
        %v5260 = vsel %vm4999, %v4933, %v5259
        %v5261 = vsel %vm5001, %v4934, %v5260
        %v5262 = vsel %vm5003, %v4935, %v5261
        %5263 = vrot.lane.b32.xlu0 %v5069, 32
        %v5264 = vpop.permute.xlu0 %5263
        %5265 = vrot.lane.b32.xlu0 %v5076, 32
        %v5266 = vpop.permute.xlu0 %5265
        %5267 = vrot.lane.b32.xlu0 %v5083, 32
        %v5268 = vpop.permute.xlu0 %5267
        %5269 = vrot.lane.b32.xlu0 %v5090, 32
        %v5270 = vpop.permute.xlu0 %5269
        %5271 = vrot.lane.b32.xlu0 %v5097, 32
        %v5272 = vpop.permute.xlu0 %5271
        %5273 = vrot.lane.b32.xlu0 %v5104, 32
        %v5274 = vpop.permute.xlu0 %5273
        %5275 = vrot.lane.b32.xlu0 %v5111, 32
        %v5276 = vpop.permute.xlu0 %5275
        %5277 = vrot.lane.b32.xlu0 %v5262, 32
        %v5278 = vpop.permute.xlu0 %5277
        %5287 = vst.msk [vmem:[#allocation2] sm:$0xff] %vm3006, %v5264
        %5288 = vst.msk [vmem:[#allocation2 + $0x20] sm:$0xff] %vm3006, %v5266
        %5289 = vst.msk [vmem:[#allocation2 + $0x40] sm:$0xff] %vm3006, %v5268
        %5290 = vst.msk [vmem:[#allocation2 + $0x60] sm:$0xff] %vm3006, %v5270
        %5291 = vst.msk [vmem:[#allocation2 + $0x80] sm:$0xff] %vm3006, %v5272
        %5292 = vst.msk [vmem:[#allocation2 + $0xa0] sm:$0xff] %vm3006, %v5274
        %5293 = vst.msk [vmem:[#allocation2 + $0xc0] sm:$0xff] %vm3006, %v5276
        %5294 = vst.msk [vmem:[#allocation2 + $0xe0] sm:$0xff] %vm3006, %v5278
        %v5295 = vsel %vm5062, %v4930, %v4929
        %v5296 = vsel %vm4993, %v4931, %v5295
        %v5297 = vsel %vm4995, %v4932, %v5296
        %v5298 = vsel %vm4997, %v4933, %v5297
        %v5299 = vsel %vm4999, %v4934, %v5298
        %v5300 = vsel %vm5001, %v4935, %v5299
        %5301 = vrot.lane.b32.xlu0 %v5145, 40
        %v5302 = vpop.permute.xlu0 %5301
        %5303 = vrot.lane.b32.xlu0 %v5151, 40
        %v5304 = vpop.permute.xlu0 %5303
        %5305 = vrot.lane.b32.xlu0 %v5157, 40
        %v5306 = vpop.permute.xlu0 %5305
        %5307 = vrot.lane.b32.xlu0 %v5163, 40
        %v5308 = vpop.permute.xlu0 %5307
        %5309 = vrot.lane.b32.xlu0 %v5169, 40
        %v5310 = vpop.permute.xlu0 %5309
        %5311 = vrot.lane.b32.xlu0 %v5175, 40
        %v5312 = vpop.permute.xlu0 %5311
        %5313 = vrot.lane.b32.xlu0 %v5181, 40
        %v5314 = vpop.permute.xlu0 %5313
        %5315 = vrot.lane.b32.xlu0 %v5300, 40
        %v5316 = vpop.permute.xlu0 %5315
        %5325 = vst.msk [vmem:[#allocation2] sm:$0x7f] %vm3140, %v5302
        %5326 = vst.msk [vmem:[#allocation2 + $0x20] sm:$0x7f] %vm3140, %v5304
        %5327 = vst.msk [vmem:[#allocation2 + $0x40] sm:$0x7f] %vm3140, %v5306
        %5328 = vst.msk [vmem:[#allocation2 + $0x60] sm:$0x7f] %vm3140, %v5308
        %5329 = vst.msk [vmem:[#allocation2 + $0x80] sm:$0x7f] %vm3140, %v5310
        %5330 = vst.msk [vmem:[#allocation2 + $0xa0] sm:$0x7f] %vm3140, %v5312
        %5331 = vst.msk [vmem:[#allocation2 + $0xc0] sm:$0x7f] %vm3140, %v5314
        %5332 = vst.msk [vmem:[#allocation2 + $0xe0] sm:$0x7f] %vm3140, %v5316
        %5333 = vrot.lane.b32.xlu0 %v5010, 48
        %v5334 = vpop.permute.xlu0 %5333
        %5335 = vrot.lane.b32.xlu0 %v5016, 48
        %v5336 = vpop.permute.xlu0 %5335
        %5337 = vrot.lane.b32.xlu0 %v5022, 48
        %v5338 = vpop.permute.xlu0 %5337
        %5339 = vrot.lane.b32.xlu0 %v5028, 48
        %v5340 = vpop.permute.xlu0 %5339
        %5341 = vrot.lane.b32.xlu0 %v5034, 48
        %v5342 = vpop.permute.xlu0 %5341
        %5343 = vrot.lane.b32.xlu0 %v5040, 48
        %v5344 = vpop.permute.xlu0 %5343
        %5345 = vrot.lane.b32.xlu0 %v5222, 48
        %v5346 = vpop.permute.xlu0 %5345
        %5354 = vst.msk [vmem:[#allocation2] sm:$0xfe] %vm3262, %v5334
        %5355 = vst.msk [vmem:[#allocation2 + $0x20] sm:$0xfe] %vm3262, %v5336
        %5356 = vst.msk [vmem:[#allocation2 + $0x40] sm:$0xfe] %vm3262, %v5338
        %5357 = vst.msk [vmem:[#allocation2 + $0x60] sm:$0xfe] %vm3262, %v5340
        %5358 = vst.msk [vmem:[#allocation2 + $0x80] sm:$0xfe] %vm3262, %v5342
        %5359 = vst.msk [vmem:[#allocation2 + $0xa0] sm:$0xfe] %vm3262, %v5344
        %5360 = vst.msk [vmem:[#allocation2 + $0xc0] sm:$0xfe] %vm3262, %v5346
        %5361 = vrot.lane.b32.xlu0 %v5076, 56
        %v5362 = vpop.permute.xlu0 %5361
        %5363 = vrot.lane.b32.xlu0 %v5083, 56
        %v5364 = vpop.permute.xlu0 %5363
        %5365 = vrot.lane.b32.xlu0 %v5090, 56
        %v5366 = vpop.permute.xlu0 %5365
        %5367 = vrot.lane.b32.xlu0 %v5097, 56
        %v5368 = vpop.permute.xlu0 %5367
        %5369 = vrot.lane.b32.xlu0 %v5104, 56
        %v5370 = vpop.permute.xlu0 %5369
        %5371 = vrot.lane.b32.xlu0 %v5111, 56
        %v5372 = vpop.permute.xlu0 %5371
        %5373 = vrot.lane.b32.xlu0 %v5262, 56
        %v5374 = vpop.permute.xlu0 %5373
        %5382 = vst.msk [vmem:[#allocation2] sm:$0xff] %vm3384, %v5362
        %5383 = vst.msk [vmem:[#allocation2 + $0x20] sm:$0xff] %vm3384, %v5364
        %5384 = vst.msk [vmem:[#allocation2 + $0x40] sm:$0xff] %vm3384, %v5366
        %5385 = vst.msk [vmem:[#allocation2 + $0x60] sm:$0xff] %vm3384, %v5368
        %5386 = vst.msk [vmem:[#allocation2 + $0x80] sm:$0xff] %vm3384, %v5370
        %5387 = vst.msk [vmem:[#allocation2 + $0xa0] sm:$0xff] %vm3384, %v5372
        %5388 = vst.msk [vmem:[#allocation2 + $0xc0] sm:$0xff] %vm3384, %v5374
        %5389 = vrot.lane.b32.xlu0 %v5151, 64
        %v5390 = vpop.permute.xlu0 %5389
        %5391 = vrot.lane.b32.xlu0 %v5157, 64
        %v5392 = vpop.permute.xlu0 %5391
        %5393 = vrot.lane.b32.xlu0 %v5163, 64
        %v5394 = vpop.permute.xlu0 %5393
        %5395 = vrot.lane.b32.xlu0 %v5169, 64
        %v5396 = vpop.permute.xlu0 %5395
        %5397 = vrot.lane.b32.xlu0 %v5175, 64
        %v5398 = vpop.permute.xlu0 %5397
        %5399 = vrot.lane.b32.xlu0 %v5181, 64
        %v5400 = vpop.permute.xlu0 %5399
        %5401 = vrot.lane.b32.xlu0 %v5300, 64
        %v5402 = vpop.permute.xlu0 %5401
        %5410 = vst.msk [vmem:[#allocation2] sm:$0x7f] %vm3507, %v5390
        %5411 = vst.msk [vmem:[#allocation2 + $0x20] sm:$0x7f] %vm3507, %v5392
        %5412 = vst.msk [vmem:[#allocation2 + $0x40] sm:$0x7f] %vm3507, %v5394
        %5413 = vst.msk [vmem:[#allocation2 + $0x60] sm:$0x7f] %vm3507, %v5396
        %5414 = vst.msk [vmem:[#allocation2 + $0x80] sm:$0x7f] %vm3507, %v5398
        %5415 = vst.msk [vmem:[#allocation2 + $0xa0] sm:$0x7f] %vm3507, %v5400
        %5416 = vst.msk [vmem:[#allocation2 + $0xc0] sm:$0x7f] %vm3507, %v5402
        %v5417 = vld [vmem:[#allocation2] sm:$0xff]
        %v5418 = vld [vmem:[#allocation2 + $0x20] sm:$0xff]
        %v5419 = vld [vmem:[#allocation2 + $0x40] sm:$0xff]
        %v5420 = vld [vmem:[#allocation2 + $0x60] sm:$0xff]
        %v5421 = vld [vmem:[#allocation2 + $0x80] sm:$0xff]
        %v5422 = vld [vmem:[#allocation2 + $0xa0] sm:$0xff]
        %v5423 = vld [vmem:[#allocation2 + $0xc0] sm:$0xff]
        %v5424 = vld [vmem:[#allocation2 + $0xe0] sm:$0xff]
        %v5425 = vpack.c.bf16 %v5418, %v5417
        %v5426 = vpack.c.bf16 %v5420, %v5419
        %v5427 = vpack.c.bf16 %v5422, %v5421
        %v5428 = vpack.c.bf16 %v5424, %v5423
        %v5430 = vlaneseq
        %v5431 = vshrl.u32 %v5430, 7
        %v5432 = vsub.s32 0, %v5431
        %v5433 = vrot.slane %v604, %v5432
        %v5444 = vunpack.c.l.b16 %v595
        %v5445 = vunpack.c.l.b16 %v596
        %v5446 = vunpack.c.l.b16 %v597
        %v5447 = vunpack.c.l.b16 %v598
        %v5448 = vunpack.c.l.b16 %v599
        %v5449 = vunpack.c.l.b16 %v600
        %v5450 = vunpack.c.l.b16 %v601
        %v5451 = vunpack.c.l.b16 %v602
        %v5452 = vunpack.c.l.b16 %v603
        %v5453 = vpack.c.b16 %v5445, %v5444
        %v5454 = vpack.c.b16 %v5447, %v5446
        %v5455 = vpack.c.b16 %v5449, %v5448
        %v5456 = vpack.c.b16 %v5451, %v5450
        %v5457 = vpack.c.b16 %v5452, %v5452
        %v5463 = vsel %vm2317, %v5425, 0
        %v5466 = vsel %vm2317, %v5426, 0
        %v5469 = vsel %vm2317, %v5427, 0
        %v5472 = vsel %vm2317, %v5428, 0
        %v5475 = vsel %vm3666, %v5457, 0
        %5477 = vmatprep.subr.bf16.mxu0 0
        %5478 = vmatpush1.bf16.msra.mxu0 %v5453
        %5479 = vmatprep.subr.bf16.mxu0 0
        %5480 = vmatpush1.bf16.msra.mxu0 %v5454
        %5481 = vmatprep.subr.bf16.mxu0 0
        %5482 = vmatpush1.bf16.msra.mxu0 %v5455
        %5483 = vmatprep.subr.bf16.mxu0 0
        %5484 = vmatpush1.bf16.msra.mxu0 %v5456
        %5485 = vmatprep.subr.bf16.mxu0 0
        %5486 = vmatpush1.bf16.msra.mxu0 %v5475
        %5487 = vmatprep.subr.bf16.mxu0 0
        %5488 = vmatpush1.bf16.msra.mxu0 0
        %5489 = vmatprep.subr.bf16.mxu0 0
        %5490 = vmatpush1.bf16.msra.mxu0 0
        %5491 = vmatprep.subr.bf16.mxu0 0
        %5492 = vmatpush1.bf16.msra.mxu0 0
        %5493 = vmatprep.subr.bf16.mxu0 0
        %5494 = vmatpush1.bf16.msra.mxu0 0
        %5495 = vmatprep.subr.bf16.mxu0 0
        %5496 = vmatpush1.bf16.msra.mxu0 0
        %5497 = vmatprep.subr.bf16.mxu0 0
        %5498 = vmatpush1.bf16.msra.mxu0 0
        %5499 = vmatprep.subr.bf16.mxu0 0
        %5500 = vmatpush1.bf16.msra.mxu0 0
        %5501 = vmatprep.subr.bf16.mxu0 0
        %5502 = vmatpush1.bf16.msra.mxu0 0
        %5503 = vmatprep.subr.bf16.mxu0 0
        %5504 = vmatpush1.bf16.msra.mxu0 0
        %5505 = vmatprep.subr.bf16.mxu0 0
        %5506 = vmatpush1.bf16.msra.mxu0 0
        %5507 = vmatprep.subr.bf16.mxu0 0
        %5508 = vmatpush1.bf16.msra.mxu0 0
        %5509 = vmatprep.mubr.bf16.mxu0 0
        %5510 = vmatmul.mubr.bf16.gmra.mrb[0].mxu0 %v5463
        %v5511 = vpop.f32.mrb[0].mxu0
        %v5512 = vadd.f32 %v5433, %v5511
        %v5513 = vpop.f32.mrb[0].mxu0
        %v5514 = vpop.f32.mrb[0].mxu0
        %v5515 = vadd.f32 %v5433, %v5514
        %v5516 = vpop.f32.mrb[0].mxu0
        %5517 = vmatprep.mubr.bf16.mxu0 0
        %5518 = vmatmul.mubr.bf16.gmra.mrb[0].mxu0 %v5466
        %v5519 = vpop.f32.mrb[0].mxu0
        %v5520 = vadd.f32 %v5433, %v5519
        %v5521 = vpop.f32.mrb[0].mxu0
        %v5522 = vpop.f32.mrb[0].mxu0
        %v5523 = vadd.f32 %v5433, %v5522
        %v5524 = vpop.f32.mrb[0].mxu0
        %5525 = vmatprep.mubr.bf16.mxu0 0
        %5526 = vmatmul.mubr.bf16.gmra.mrb[0].mxu0 %v5469
        %v5527 = vpop.f32.mrb[0].mxu0
        %v5528 = vadd.f32 %v5433, %v5527
        %v5529 = vpop.f32.mrb[0].mxu0
        %v5530 = vpop.f32.mrb[0].mxu0
        %v5531 = vadd.f32 %v5433, %v5530
        %v5532 = vpop.f32.mrb[0].mxu0
        %5533 = vmatprep.mubr.bf16.mxu0 0
        %5534 = vmatmul.mubr.bf16.gmra.mrb[0].mxu0 %v5472
        %v5535 = vpop.f32.mrb[0].mxu0
        %v5536 = vadd.f32 %v5433, %v5535
        %v5537 = vpop.f32.mrb[0].mxu0
        %v5538 = vpop.f32.mrb[0].mxu0
        %v5539 = vadd.f32 %v5433, %v5538
        %v5540 = vpop.f32.mrb[0].mxu0
        %5541 = vdwg.mxu0
        %v5542 = vsel %vm2457, %v2095, 0.0
        %v5543 = vsel %vm2457, %v2103, 0.0
        %v5544 = vadd.f32 %v5542, %v5543
        %v5545 = vsel %vm2457, %v2098, 0.0
        %v5546 = vsel %vm2457, %v2106, 0.0
        %v5547 = vadd.f32 %v5545, %v5546
        %v5548 = vsel %vm2457, %v2111, 0.0
        %v5549 = vsel %vm2457, %v2119, 0.0
        %v5550 = vadd.f32 %v5548, %v5549
        %v5551 = vsel %vm2457, %v2114, 0.0
        %v5552 = vsel %vm2457, %v2122, 0.0
        %v5553 = vadd.f32 %v5551, %v5552
        %v5554 = vsel %vm2457, %v2127, 0.0
        %v5555 = vsel %vm2457, %v2135, 0.0
        %v5556 = vadd.f32 %v5554, %v5555
        %v5557 = vsel %vm2457, %v2130, 0.0
        %v5558 = vsel %vm2457, %v2138, 0.0
        %v5559 = vadd.f32 %v5557, %v5558
        %v5560 = vsel %vm2457, %v2143, 0.0
        %v5561 = vsel %vm2457, %v2151, 0.0
        %v5562 = vadd.f32 %v5560, %v5561
        %v5563 = vsel %vm2457, %v2146, 0.0
        %v5564 = vsel %vm2457, %v2154, 0.0
        %v5565 = vadd.f32 %v5563, %v5564
        %v5566 = vsel %vm2457, %v2159, 0.0
        %v5567 = vsel %vm2457, %v2167, 0.0
        %v5568 = vadd.f32 %v5566, %v5567
        %v5569 = vsel %vm2457, %v2162, 0.0
        %v5570 = vsel %vm2457, %v2170, 0.0
        %v5571 = vadd.f32 %v5569, %v5570
        %v5572 = vsel %vm2457, %v2175, 0.0
        %v5573 = vsel %vm2457, %v2183, 0.0
        %v5574 = vadd.f32 %v5572, %v5573
        %v5575 = vsel %vm2457, %v2178, 0.0
        %v5576 = vsel %vm2457, %v2186, 0.0
        %v5577 = vadd.f32 %v5575, %v5576
        %v5578 = vsel %vm2457, %v2191, 0.0
        %v5579 = vsel %vm2457, %v2199, 0.0
        %v5580 = vadd.f32 %v5578, %v5579
        %v5581 = vsel %vm2457, %v2194, 0.0
        %v5582 = vsel %vm2457, %v2202, 0.0
        %v5583 = vadd.f32 %v5581, %v5582
        %v5584 = vsel %vm2457, %v2207, 0.0
        %v5585 = vsel %vm2457, %v2215, 0.0
        %v5586 = vadd.f32 %v5584, %v5585
        %v5587 = vsel %vm2457, %v2210, 0.0
        %v5588 = vsel %vm2457, %v2218, 0.0
        %v5589 = vadd.f32 %v5587, %v5588
        %v5606 = vcombine.high %v5544, %v5544
        %v5608 = vunpack.c.l.s4 1983009808
        %v5609 = vunpack.c.0.s8 %v5608
        %v5610 = vlaneseq
        %v5611 = vshrl.u32 %v5610, 7
        %v5612 = vsub.s32 %v5609, %v5611
        %v5613 = vrot.slane %v5544, %v5612
        %v5615 = vunpack.c.l.s4 1983009808
        %v5616 = vunpack.c.0.s8 %v5615
        %v5617 = vlaneseq
        %v5618 = vshrl.u32 %v5617, 7
        %v5619 = vsub.s32 %v5616, %v5618
        %v5620 = vrot.slane %v5606, %v5619
        %v5621 = vcombine.high %v5613, %v5613
        %v5622 = vcombine.high %v5620, %v5620
        %v5623 = vcombine.high %v5547, %v5547
        %v5625 = vunpack.c.l.s4 1983009808
        %v5626 = vunpack.c.0.s8 %v5625
        %v5627 = vlaneseq
        %v5628 = vshrl.u32 %v5627, 7
        %v5629 = vsub.s32 %v5626, %v5628
        %v5630 = vrot.slane %v5547, %v5629
        %v5632 = vunpack.c.l.s4 1983009808
        %v5633 = vunpack.c.0.s8 %v5632
        %v5634 = vlaneseq
        %v5635 = vshrl.u32 %v5634, 7
        %v5636 = vsub.s32 %v5633, %v5635
        %v5637 = vrot.slane %v5623, %v5636
        %v5638 = vcombine.high %v5630, %v5630
        %v5639 = vcombine.high %v5637, %v5637
        %v5640 = vcombine.high %v5550, %v5550
        %v5642 = vunpack.c.l.s4 1983009808
        %v5643 = vunpack.c.0.s8 %v5642
        %v5644 = vlaneseq
        %v5645 = vshrl.u32 %v5644, 7
        %v5646 = vsub.s32 %v5643, %v5645
        %v5647 = vrot.slane %v5550, %v5646
        %v5649 = vunpack.c.l.s4 1983009808
        %v5650 = vunpack.c.0.s8 %v5649
        %v5651 = vlaneseq
        %v5652 = vshrl.u32 %v5651, 7
        %v5653 = vsub.s32 %v5650, %v5652
        %v5654 = vrot.slane %v5640, %v5653
        %v5655 = vcombine.high %v5647, %v5647
        %v5656 = vcombine.high %v5654, %v5654
        %v5657 = vcombine.high %v5553, %v5553
        %v5659 = vunpack.c.l.s4 1983009808
        %v5660 = vunpack.c.0.s8 %v5659
        %v5661 = vlaneseq
        %v5662 = vshrl.u32 %v5661, 7
        %v5663 = vsub.s32 %v5660, %v5662
        %v5664 = vrot.slane %v5553, %v5663
        %v5666 = vunpack.c.l.s4 1983009808
        %v5667 = vunpack.c.0.s8 %v5666
        %v5668 = vlaneseq
        %v5669 = vshrl.u32 %v5668, 7
        %v5670 = vsub.s32 %v5667, %v5669
        %v5671 = vrot.slane %v5657, %v5670
        %v5672 = vcombine.high %v5664, %v5664
        %v5673 = vcombine.high %v5671, %v5671
        %v5674 = vcombine.high %v5556, %v5556
        %v5676 = vunpack.c.l.s4 1983009808
        %v5677 = vunpack.c.0.s8 %v5676
        %v5678 = vlaneseq
        %v5679 = vshrl.u32 %v5678, 7
        %v5680 = vsub.s32 %v5677, %v5679
        %v5681 = vrot.slane %v5556, %v5680
        %v5683 = vunpack.c.l.s4 1983009808
        %v5684 = vunpack.c.0.s8 %v5683
        %v5685 = vlaneseq
        %v5686 = vshrl.u32 %v5685, 7
        %v5687 = vsub.s32 %v5684, %v5686
        %v5688 = vrot.slane %v5674, %v5687
        %v5689 = vcombine.high %v5681, %v5681
        %v5690 = vcombine.high %v5688, %v5688
        %v5691 = vcombine.high %v5559, %v5559
        %v5693 = vunpack.c.l.s4 1983009808
        %v5694 = vunpack.c.0.s8 %v5693
        %v5695 = vlaneseq
        %v5696 = vshrl.u32 %v5695, 7
        %v5697 = vsub.s32 %v5694, %v5696
        %v5698 = vrot.slane %v5559, %v5697
        %v5700 = vunpack.c.l.s4 1983009808
        %v5701 = vunpack.c.0.s8 %v5700
        %v5702 = vlaneseq
        %v5703 = vshrl.u32 %v5702, 7
        %v5704 = vsub.s32 %v5701, %v5703
        %v5705 = vrot.slane %v5691, %v5704
        %v5706 = vcombine.high %v5698, %v5698
        %v5707 = vcombine.high %v5705, %v5705
        %v5708 = vcombine.high %v5562, %v5562
        %v5710 = vunpack.c.l.s4 1983009808
        %v5711 = vunpack.c.0.s8 %v5710
        %v5712 = vlaneseq
        %v5713 = vshrl.u32 %v5712, 7
        %v5714 = vsub.s32 %v5711, %v5713
        %v5715 = vrot.slane %v5562, %v5714
        %v5717 = vunpack.c.l.s4 1983009808
        %v5718 = vunpack.c.0.s8 %v5717
        %v5719 = vlaneseq
        %v5720 = vshrl.u32 %v5719, 7
        %v5721 = vsub.s32 %v5718, %v5720
        %v5722 = vrot.slane %v5708, %v5721
        %v5723 = vcombine.high %v5715, %v5715
        %v5724 = vcombine.high %v5722, %v5722
        %v5725 = vcombine.high %v5565, %v5565
        %v5727 = vunpack.c.l.s4 1983009808
        %v5728 = vunpack.c.0.s8 %v5727
        %v5729 = vlaneseq
        %v5730 = vshrl.u32 %v5729, 7
        %v5731 = vsub.s32 %v5728, %v5730
        %v5732 = vrot.slane %v5565, %v5731
        %v5734 = vunpack.c.l.s4 1983009808
        %v5735 = vunpack.c.0.s8 %v5734
        %v5736 = vlaneseq
        %v5737 = vshrl.u32 %v5736, 7
        %v5738 = vsub.s32 %v5735, %v5737
        %v5739 = vrot.slane %v5725, %v5738
        %v5740 = vcombine.high %v5732, %v5732
        %v5741 = vcombine.high %v5739, %v5739
        %v5742 = vcombine.high %v5568, %v5568
        %v5744 = vunpack.c.l.s4 1983009808
        %v5745 = vunpack.c.0.s8 %v5744
        %v5746 = vlaneseq
        %v5747 = vshrl.u32 %v5746, 7
        %v5748 = vsub.s32 %v5745, %v5747
        %v5749 = vrot.slane %v5568, %v5748
        %v5751 = vunpack.c.l.s4 1983009808
        %v5752 = vunpack.c.0.s8 %v5751
        %v5753 = vlaneseq
        %v5754 = vshrl.u32 %v5753, 7
        %v5755 = vsub.s32 %v5752, %v5754
        %v5756 = vrot.slane %v5742, %v5755
        %v5757 = vcombine.high %v5749, %v5749
        %v5758 = vcombine.high %v5756, %v5756
        %v5759 = vcombine.high %v5571, %v5571
        %v5761 = vunpack.c.l.s4 1983009808
        %v5762 = vunpack.c.0.s8 %v5761
        %v5763 = vlaneseq
        %v5764 = vshrl.u32 %v5763, 7
        %v5765 = vsub.s32 %v5762, %v5764
        %v5766 = vrot.slane %v5571, %v5765
        %v5768 = vunpack.c.l.s4 1983009808
        %v5769 = vunpack.c.0.s8 %v5768
        %v5770 = vlaneseq
        %v5771 = vshrl.u32 %v5770, 7
        %v5772 = vsub.s32 %v5769, %v5771
        %v5773 = vrot.slane %v5759, %v5772
        %v5774 = vcombine.high %v5766, %v5766
        %v5775 = vcombine.high %v5773, %v5773
        %v5776 = vcombine.high %v5574, %v5574
        %v5778 = vunpack.c.l.s4 1983009808
        %v5779 = vunpack.c.0.s8 %v5778
        %v5780 = vlaneseq
        %v5781 = vshrl.u32 %v5780, 7
        %v5782 = vsub.s32 %v5779, %v5781
        %v5783 = vrot.slane %v5574, %v5782
        %v5785 = vunpack.c.l.s4 1983009808
        %v5786 = vunpack.c.0.s8 %v5785
        %v5787 = vlaneseq
        %v5788 = vshrl.u32 %v5787, 7
        %v5789 = vsub.s32 %v5786, %v5788
        %v5790 = vrot.slane %v5776, %v5789
        %v5791 = vcombine.high %v5783, %v5783
        %v5792 = vcombine.high %v5790, %v5790
        %v5793 = vcombine.high %v5577, %v5577
        %v5795 = vunpack.c.l.s4 1983009808
        %v5796 = vunpack.c.0.s8 %v5795
        %v5797 = vlaneseq
        %v5798 = vshrl.u32 %v5797, 7
        %v5799 = vsub.s32 %v5796, %v5798
        %v5800 = vrot.slane %v5577, %v5799
        %v5802 = vunpack.c.l.s4 1983009808
        %v5803 = vunpack.c.0.s8 %v5802
        %v5804 = vlaneseq
        %v5805 = vshrl.u32 %v5804, 7
        %v5806 = vsub.s32 %v5803, %v5805
        %v5807 = vrot.slane %v5793, %v5806
        %v5808 = vcombine.high %v5800, %v5800
        %v5809 = vcombine.high %v5807, %v5807
        %v5810 = vcombine.high %v5580, %v5580
        %v5812 = vunpack.c.l.s4 1983009808
        %v5813 = vunpack.c.0.s8 %v5812
        %v5814 = vlaneseq
        %v5815 = vshrl.u32 %v5814, 7
        %v5816 = vsub.s32 %v5813, %v5815
        %v5817 = vrot.slane %v5580, %v5816
        %v5819 = vunpack.c.l.s4 1983009808
        %v5820 = vunpack.c.0.s8 %v5819
        %v5821 = vlaneseq
        %v5822 = vshrl.u32 %v5821, 7
        %v5823 = vsub.s32 %v5820, %v5822
        %v5824 = vrot.slane %v5810, %v5823
        %v5825 = vcombine.high %v5817, %v5817
        %v5826 = vcombine.high %v5824, %v5824
        %v5827 = vcombine.high %v5583, %v5583
        %v5829 = vunpack.c.l.s4 1983009808
        %v5830 = vunpack.c.0.s8 %v5829
        %v5831 = vlaneseq
        %v5832 = vshrl.u32 %v5831, 7
        %v5833 = vsub.s32 %v5830, %v5832
        %v5834 = vrot.slane %v5583, %v5833
        %v5836 = vunpack.c.l.s4 1983009808
        %v5837 = vunpack.c.0.s8 %v5836
        %v5838 = vlaneseq
        %v5839 = vshrl.u32 %v5838, 7
        %v5840 = vsub.s32 %v5837, %v5839
        %v5841 = vrot.slane %v5827, %v5840
        %v5842 = vcombine.high %v5834, %v5834
        %v5843 = vcombine.high %v5841, %v5841
        %v5844 = vcombine.high %v5586, %v5586
        %v5846 = vunpack.c.l.s4 1983009808
        %v5847 = vunpack.c.0.s8 %v5846
        %v5848 = vlaneseq
        %v5849 = vshrl.u32 %v5848, 7
        %v5850 = vsub.s32 %v5847, %v5849
        %v5851 = vrot.slane %v5586, %v5850
        %v5853 = vunpack.c.l.s4 1983009808
        %v5854 = vunpack.c.0.s8 %v5853
        %v5855 = vlaneseq
        %v5856 = vshrl.u32 %v5855, 7
        %v5857 = vsub.s32 %v5854, %v5856
        %v5858 = vrot.slane %v5844, %v5857
        %v5859 = vcombine.high %v5851, %v5851
        %v5860 = vcombine.high %v5858, %v5858
        %v5861 = vcombine.high %v5589, %v5589
        %v5863 = vunpack.c.l.s4 1983009808
        %v5864 = vunpack.c.0.s8 %v5863
        %v5865 = vlaneseq
        %v5866 = vshrl.u32 %v5865, 7
        %v5867 = vsub.s32 %v5864, %v5866
        %v5868 = vrot.slane %v5589, %v5867
        %v5870 = vunpack.c.l.s4 1983009808
        %v5871 = vunpack.c.0.s8 %v5870
        %v5872 = vlaneseq
        %v5873 = vshrl.u32 %v5872, 7
        %v5874 = vsub.s32 %v5871, %v5873
        %v5875 = vrot.slane %v5861, %v5874
        %v5876 = vcombine.high %v5868, %v5868
        %v5877 = vcombine.high %v5875, %v5875
        %v5942 = vsel %vm4231, %v5613, 0.0
        %v5943 = vrot.slane %v5942, 4
        %v5944 = vadd.f32 %v5942, %v5943
        %v5945 = vrot.slane %v5944, 2
        %v5946 = vadd.f32 %v5944, %v5945
        %v5947 = vrot.slane %v5946, 1
        %v5948 = vadd.f32 %v5946, %v5947
        %v5949 = vsel %vm4231, %v5621, 0.0
        %v5950 = vrot.slane %v5949, 4
        %v5951 = vadd.f32 %v5949, %v5950
        %v5952 = vrot.slane %v5951, 2
        %v5953 = vadd.f32 %v5951, %v5952
        %v5954 = vrot.slane %v5953, 1
        %v5955 = vadd.f32 %v5953, %v5954
        %v5956 = vsel %vm4231, %v5620, 0.0
        %v5957 = vrot.slane %v5956, 4
        %v5958 = vadd.f32 %v5956, %v5957
        %v5959 = vrot.slane %v5958, 2
        %v5960 = vadd.f32 %v5958, %v5959
        %v5961 = vrot.slane %v5960, 1
        %v5962 = vadd.f32 %v5960, %v5961
        %v5963 = vsel %vm4231, %v5622, 0.0
        %v5964 = vrot.slane %v5963, 4
        %v5965 = vadd.f32 %v5963, %v5964
        %v5966 = vrot.slane %v5965, 2
        %v5967 = vadd.f32 %v5965, %v5966
        %v5968 = vrot.slane %v5967, 1
        %v5969 = vadd.f32 %v5967, %v5968
        %v5970 = vsel %vm4231, %v5630, 0.0
        %v5971 = vrot.slane %v5970, 4
        %v5972 = vadd.f32 %v5970, %v5971
        %v5973 = vrot.slane %v5972, 2
        %v5974 = vadd.f32 %v5972, %v5973
        %v5975 = vrot.slane %v5974, 1
        %v5976 = vadd.f32 %v5974, %v5975
        %v5977 = vsel %vm4231, %v5638, 0.0
        %v5978 = vrot.slane %v5977, 4
        %v5979 = vadd.f32 %v5977, %v5978
        %v5980 = vrot.slane %v5979, 2
        %v5981 = vadd.f32 %v5979, %v5980
        %v5982 = vrot.slane %v5981, 1
        %v5983 = vadd.f32 %v5981, %v5982
        %v5984 = vsel %vm4231, %v5637, 0.0
        %v5985 = vrot.slane %v5984, 4
        %v5986 = vadd.f32 %v5984, %v5985
        %v5987 = vrot.slane %v5986, 2
        %v5988 = vadd.f32 %v5986, %v5987
        %v5989 = vrot.slane %v5988, 1
        %v5990 = vadd.f32 %v5988, %v5989
        %v5991 = vsel %vm4231, %v5639, 0.0
        %v5992 = vrot.slane %v5991, 4
        %v5993 = vadd.f32 %v5991, %v5992
        %v5994 = vrot.slane %v5993, 2
        %v5995 = vadd.f32 %v5993, %v5994
        %v5996 = vrot.slane %v5995, 1
        %v5997 = vadd.f32 %v5995, %v5996
        %v5998 = vsel %vm4231, %v5647, 0.0
        %v5999 = vrot.slane %v5998, 4
        %v6000 = vadd.f32 %v5998, %v5999
        %v6001 = vrot.slane %v6000, 2
        %v6002 = vadd.f32 %v6000, %v6001
        %v6003 = vrot.slane %v6002, 1
        %v6004 = vadd.f32 %v6002, %v6003
        %v6005 = vsel %vm4231, %v5655, 0.0
        %v6006 = vrot.slane %v6005, 4
        %v6007 = vadd.f32 %v6005, %v6006
        %v6008 = vrot.slane %v6007, 2
        %v6009 = vadd.f32 %v6007, %v6008
        %v6010 = vrot.slane %v6009, 1
        %v6011 = vadd.f32 %v6009, %v6010
        %v6012 = vsel %vm4231, %v5654, 0.0
        %v6013 = vrot.slane %v6012, 4
        %v6014 = vadd.f32 %v6012, %v6013
        %v6015 = vrot.slane %v6014, 2
        %v6016 = vadd.f32 %v6014, %v6015
        %v6017 = vrot.slane %v6016, 1
        %v6018 = vadd.f32 %v6016, %v6017
        %v6019 = vsel %vm4231, %v5656, 0.0
        %v6020 = vrot.slane %v6019, 4
        %v6021 = vadd.f32 %v6019, %v6020
        %v6022 = vrot.slane %v6021, 2
        %v6023 = vadd.f32 %v6021, %v6022
        %v6024 = vrot.slane %v6023, 1
        %v6025 = vadd.f32 %v6023, %v6024
        %v6026 = vsel %vm4231, %v5664, 0.0
        %v6027 = vrot.slane %v6026, 4
        %v6028 = vadd.f32 %v6026, %v6027
        %v6029 = vrot.slane %v6028, 2
        %v6030 = vadd.f32 %v6028, %v6029
        %v6031 = vrot.slane %v6030, 1
        %v6032 = vadd.f32 %v6030, %v6031
        %v6033 = vsel %vm4231, %v5672, 0.0
        %v6034 = vrot.slane %v6033, 4
        %v6035 = vadd.f32 %v6033, %v6034
        %v6036 = vrot.slane %v6035, 2
        %v6037 = vadd.f32 %v6035, %v6036
        %v6038 = vrot.slane %v6037, 1
        %v6039 = vadd.f32 %v6037, %v6038
        %v6040 = vsel %vm4231, %v5671, 0.0
        %v6041 = vrot.slane %v6040, 4
        %v6042 = vadd.f32 %v6040, %v6041
        %v6043 = vrot.slane %v6042, 2
        %v6044 = vadd.f32 %v6042, %v6043
        %v6045 = vrot.slane %v6044, 1
        %v6046 = vadd.f32 %v6044, %v6045
        %v6047 = vsel %vm4231, %v5673, 0.0
        %v6048 = vrot.slane %v6047, 4
        %v6049 = vadd.f32 %v6047, %v6048
        %v6050 = vrot.slane %v6049, 2
        %v6051 = vadd.f32 %v6049, %v6050
        %v6052 = vrot.slane %v6051, 1
        %v6053 = vadd.f32 %v6051, %v6052
        %v6054 = vsel %vm4231, %v5681, 0.0
        %v6055 = vrot.slane %v6054, 4
        %v6056 = vadd.f32 %v6054, %v6055
        %v6057 = vrot.slane %v6056, 2
        %v6058 = vadd.f32 %v6056, %v6057
        %v6059 = vrot.slane %v6058, 1
        %v6060 = vadd.f32 %v6058, %v6059
        %v6061 = vsel %vm4231, %v5689, 0.0
        %v6062 = vrot.slane %v6061, 4
        %v6063 = vadd.f32 %v6061, %v6062
        %v6064 = vrot.slane %v6063, 2
        %v6065 = vadd.f32 %v6063, %v6064
        %v6066 = vrot.slane %v6065, 1
        %v6067 = vadd.f32 %v6065, %v6066
        %v6068 = vsel %vm4231, %v5688, 0.0
        %v6069 = vrot.slane %v6068, 4
        %v6070 = vadd.f32 %v6068, %v6069
        %v6071 = vrot.slane %v6070, 2
        %v6072 = vadd.f32 %v6070, %v6071
        %v6073 = vrot.slane %v6072, 1
        %v6074 = vadd.f32 %v6072, %v6073
        %v6075 = vsel %vm4231, %v5690, 0.0
        %v6076 = vrot.slane %v6075, 4
        %v6077 = vadd.f32 %v6075, %v6076
        %v6078 = vrot.slane %v6077, 2
        %v6079 = vadd.f32 %v6077, %v6078
        %v6080 = vrot.slane %v6079, 1
        %v6081 = vadd.f32 %v6079, %v6080
        %v6082 = vsel %vm4231, %v5698, 0.0
        %v6083 = vrot.slane %v6082, 4
        %v6084 = vadd.f32 %v6082, %v6083
        %v6085 = vrot.slane %v6084, 2
        %v6086 = vadd.f32 %v6084, %v6085
        %v6087 = vrot.slane %v6086, 1
        %v6088 = vadd.f32 %v6086, %v6087
        %v6089 = vsel %vm4231, %v5706, 0.0
        %v6090 = vrot.slane %v6089, 4
        %v6091 = vadd.f32 %v6089, %v6090
        %v6092 = vrot.slane %v6091, 2
        %v6093 = vadd.f32 %v6091, %v6092
        %v6094 = vrot.slane %v6093, 1
        %v6095 = vadd.f32 %v6093, %v6094
        %v6096 = vsel %vm4231, %v5705, 0.0
        %v6097 = vrot.slane %v6096, 4
        %v6098 = vadd.f32 %v6096, %v6097
        %v6099 = vrot.slane %v6098, 2
        %v6100 = vadd.f32 %v6098, %v6099
        %v6101 = vrot.slane %v6100, 1
        %v6102 = vadd.f32 %v6100, %v6101
        %v6103 = vsel %vm4231, %v5707, 0.0
        %v6104 = vrot.slane %v6103, 4
        %v6105 = vadd.f32 %v6103, %v6104
        %v6106 = vrot.slane %v6105, 2
        %v6107 = vadd.f32 %v6105, %v6106
        %v6108 = vrot.slane %v6107, 1
        %v6109 = vadd.f32 %v6107, %v6108
        %v6110 = vsel %vm4231, %v5715, 0.0
        %v6111 = vrot.slane %v6110, 4
        %v6112 = vadd.f32 %v6110, %v6111
        %v6113 = vrot.slane %v6112, 2
        %v6114 = vadd.f32 %v6112, %v6113
        %v6115 = vrot.slane %v6114, 1
        %v6116 = vadd.f32 %v6114, %v6115
        %v6117 = vsel %vm4231, %v5723, 0.0
        %v6118 = vrot.slane %v6117, 4
        %v6119 = vadd.f32 %v6117, %v6118
        %v6120 = vrot.slane %v6119, 2
        %v6121 = vadd.f32 %v6119, %v6120
        %v6122 = vrot.slane %v6121, 1
        %v6123 = vadd.f32 %v6121, %v6122
        %v6124 = vsel %vm4231, %v5722, 0.0
        %v6125 = vrot.slane %v6124, 4
        %v6126 = vadd.f32 %v6124, %v6125
        %v6127 = vrot.slane %v6126, 2
        %v6128 = vadd.f32 %v6126, %v6127
        %v6129 = vrot.slane %v6128, 1
        %v6130 = vadd.f32 %v6128, %v6129
        %v6131 = vsel %vm4231, %v5724, 0.0
        %v6132 = vrot.slane %v6131, 4
        %v6133 = vadd.f32 %v6131, %v6132
        %v6134 = vrot.slane %v6133, 2
        %v6135 = vadd.f32 %v6133, %v6134
        %v6136 = vrot.slane %v6135, 1
        %v6137 = vadd.f32 %v6135, %v6136
        %v6138 = vsel %vm4231, %v5732, 0.0
        %v6139 = vrot.slane %v6138, 4
        %v6140 = vadd.f32 %v6138, %v6139
        %v6141 = vrot.slane %v6140, 2
        %v6142 = vadd.f32 %v6140, %v6141
        %v6143 = vrot.slane %v6142, 1
        %v6144 = vadd.f32 %v6142, %v6143
        %v6145 = vsel %vm4231, %v5740, 0.0
        %v6146 = vrot.slane %v6145, 4
        %v6147 = vadd.f32 %v6145, %v6146
        %v6148 = vrot.slane %v6147, 2
        %v6149 = vadd.f32 %v6147, %v6148
        %v6150 = vrot.slane %v6149, 1
        %v6151 = vadd.f32 %v6149, %v6150
        %v6152 = vsel %vm4231, %v5739, 0.0
        %v6153 = vrot.slane %v6152, 4
        %v6154 = vadd.f32 %v6152, %v6153
        %v6155 = vrot.slane %v6154, 2
        %v6156 = vadd.f32 %v6154, %v6155
        %v6157 = vrot.slane %v6156, 1
        %v6158 = vadd.f32 %v6156, %v6157
        %v6159 = vsel %vm4231, %v5741, 0.0
        %v6160 = vrot.slane %v6159, 4
        %v6161 = vadd.f32 %v6159, %v6160
        %v6162 = vrot.slane %v6161, 2
        %v6163 = vadd.f32 %v6161, %v6162
        %v6164 = vrot.slane %v6163, 1
        %v6165 = vadd.f32 %v6163, %v6164
        %v6166 = vsel %vm4231, %v5749, 0.0
        %v6167 = vrot.slane %v6166, 4
        %v6168 = vadd.f32 %v6166, %v6167
        %v6169 = vrot.slane %v6168, 2
        %v6170 = vadd.f32 %v6168, %v6169
        %v6171 = vrot.slane %v6170, 1
        %v6172 = vadd.f32 %v6170, %v6171
        %v6173 = vsel %vm4231, %v5757, 0.0
        %v6174 = vrot.slane %v6173, 4
        %v6175 = vadd.f32 %v6173, %v6174
        %v6176 = vrot.slane %v6175, 2
        %v6177 = vadd.f32 %v6175, %v6176
        %v6178 = vrot.slane %v6177, 1
        %v6179 = vadd.f32 %v6177, %v6178
        %v6180 = vsel %vm4231, %v5756, 0.0
        %v6181 = vrot.slane %v6180, 4
        %v6182 = vadd.f32 %v6180, %v6181
        %v6183 = vrot.slane %v6182, 2
        %v6184 = vadd.f32 %v6182, %v6183
        %v6185 = vrot.slane %v6184, 1
        %v6186 = vadd.f32 %v6184, %v6185
        %v6187 = vsel %vm4231, %v5758, 0.0
        %v6188 = vrot.slane %v6187, 4
        %v6189 = vadd.f32 %v6187, %v6188
        %v6190 = vrot.slane %v6189, 2
        %v6191 = vadd.f32 %v6189, %v6190
        %v6192 = vrot.slane %v6191, 1
        %v6193 = vadd.f32 %v6191, %v6192
        %v6194 = vsel %vm4231, %v5766, 0.0
        %v6195 = vrot.slane %v6194, 4
        %v6196 = vadd.f32 %v6194, %v6195
        %v6197 = vrot.slane %v6196, 2
        %v6198 = vadd.f32 %v6196, %v6197
        %v6199 = vrot.slane %v6198, 1
        %v6200 = vadd.f32 %v6198, %v6199
        %v6201 = vsel %vm4231, %v5774, 0.0
        %v6202 = vrot.slane %v6201, 4
        %v6203 = vadd.f32 %v6201, %v6202
        %v6204 = vrot.slane %v6203, 2
        %v6205 = vadd.f32 %v6203, %v6204
        %v6206 = vrot.slane %v6205, 1
        %v6207 = vadd.f32 %v6205, %v6206
        %v6208 = vsel %vm4231, %v5773, 0.0
        %v6209 = vrot.slane %v6208, 4
        %v6210 = vadd.f32 %v6208, %v6209
        %v6211 = vrot.slane %v6210, 2
        %v6212 = vadd.f32 %v6210, %v6211
        %v6213 = vrot.slane %v6212, 1
        %v6214 = vadd.f32 %v6212, %v6213
        %v6215 = vsel %vm4231, %v5775, 0.0
        %v6216 = vrot.slane %v6215, 4
        %v6217 = vadd.f32 %v6215, %v6216
        %v6218 = vrot.slane %v6217, 2
        %v6219 = vadd.f32 %v6217, %v6218
        %v6220 = vrot.slane %v6219, 1
        %v6221 = vadd.f32 %v6219, %v6220
        %v6222 = vsel %vm4231, %v5783, 0.0
        %v6223 = vrot.slane %v6222, 4
        %v6224 = vadd.f32 %v6222, %v6223
        %v6225 = vrot.slane %v6224, 2
        %v6226 = vadd.f32 %v6224, %v6225
        %v6227 = vrot.slane %v6226, 1
        %v6228 = vadd.f32 %v6226, %v6227
        %v6229 = vsel %vm4231, %v5791, 0.0
        %v6230 = vrot.slane %v6229, 4
        %v6231 = vadd.f32 %v6229, %v6230
        %v6232 = vrot.slane %v6231, 2
        %v6233 = vadd.f32 %v6231, %v6232
        %v6234 = vrot.slane %v6233, 1
        %v6235 = vadd.f32 %v6233, %v6234
        %v6236 = vsel %vm4231, %v5790, 0.0
        %v6237 = vrot.slane %v6236, 4
        %v6238 = vadd.f32 %v6236, %v6237
        %v6239 = vrot.slane %v6238, 2
        %v6240 = vadd.f32 %v6238, %v6239
        %v6241 = vrot.slane %v6240, 1
        %v6242 = vadd.f32 %v6240, %v6241
        %v6243 = vsel %vm4231, %v5792, 0.0
        %v6244 = vrot.slane %v6243, 4
        %v6245 = vadd.f32 %v6243, %v6244
        %v6246 = vrot.slane %v6245, 2
        %v6247 = vadd.f32 %v6245, %v6246
        %v6248 = vrot.slane %v6247, 1
        %v6249 = vadd.f32 %v6247, %v6248
        %v6250 = vsel %vm4231, %v5800, 0.0
        %v6251 = vrot.slane %v6250, 4
        %v6252 = vadd.f32 %v6250, %v6251
        %v6253 = vrot.slane %v6252, 2
        %v6254 = vadd.f32 %v6252, %v6253
        %v6255 = vrot.slane %v6254, 1
        %v6256 = vadd.f32 %v6254, %v6255
        %v6257 = vsel %vm4231, %v5808, 0.0
        %v6258 = vrot.slane %v6257, 4
        %v6259 = vadd.f32 %v6257, %v6258
        %v6260 = vrot.slane %v6259, 2
        %v6261 = vadd.f32 %v6259, %v6260
        %v6262 = vrot.slane %v6261, 1
        %v6263 = vadd.f32 %v6261, %v6262
        %v6264 = vsel %vm4231, %v5807, 0.0
        %v6265 = vrot.slane %v6264, 4
        %v6266 = vadd.f32 %v6264, %v6265
        %v6267 = vrot.slane %v6266, 2
        %v6268 = vadd.f32 %v6266, %v6267
        %v6269 = vrot.slane %v6268, 1
        %v6270 = vadd.f32 %v6268, %v6269
        %v6271 = vsel %vm4231, %v5809, 0.0
        %v6272 = vrot.slane %v6271, 4
        %v6273 = vadd.f32 %v6271, %v6272
        %v6274 = vrot.slane %v6273, 2
        %v6275 = vadd.f32 %v6273, %v6274
        %v6276 = vrot.slane %v6275, 1
        %v6277 = vadd.f32 %v6275, %v6276
        %v6278 = vsel %vm4231, %v5817, 0.0
        %v6279 = vrot.slane %v6278, 4
        %v6280 = vadd.f32 %v6278, %v6279
        %v6281 = vrot.slane %v6280, 2
        %v6282 = vadd.f32 %v6280, %v6281
        %v6283 = vrot.slane %v6282, 1
        %v6284 = vadd.f32 %v6282, %v6283
        %v6285 = vsel %vm4231, %v5825, 0.0
        %v6286 = vrot.slane %v6285, 4
        %v6287 = vadd.f32 %v6285, %v6286
        %v6288 = vrot.slane %v6287, 2
        %v6289 = vadd.f32 %v6287, %v6288
        %v6290 = vrot.slane %v6289, 1
        %v6291 = vadd.f32 %v6289, %v6290
        %v6292 = vsel %vm4231, %v5824, 0.0
        %v6293 = vrot.slane %v6292, 4
        %v6294 = vadd.f32 %v6292, %v6293
        %v6295 = vrot.slane %v6294, 2
        %v6296 = vadd.f32 %v6294, %v6295
        %v6297 = vrot.slane %v6296, 1
        %v6298 = vadd.f32 %v6296, %v6297
        %v6299 = vsel %vm4231, %v5826, 0.0
        %v6300 = vrot.slane %v6299, 4
        %v6301 = vadd.f32 %v6299, %v6300
        %v6302 = vrot.slane %v6301, 2
        %v6303 = vadd.f32 %v6301, %v6302
        %v6304 = vrot.slane %v6303, 1
        %v6305 = vadd.f32 %v6303, %v6304
        %v6306 = vsel %vm4231, %v5834, 0.0
        %v6307 = vrot.slane %v6306, 4
        %v6308 = vadd.f32 %v6306, %v6307
        %v6309 = vrot.slane %v6308, 2
        %v6310 = vadd.f32 %v6308, %v6309
        %v6311 = vrot.slane %v6310, 1
        %v6312 = vadd.f32 %v6310, %v6311
        %v6313 = vsel %vm4231, %v5842, 0.0
        %v6314 = vrot.slane %v6313, 4
        %v6315 = vadd.f32 %v6313, %v6314
        %v6316 = vrot.slane %v6315, 2
        %v6317 = vadd.f32 %v6315, %v6316
        %v6318 = vrot.slane %v6317, 1
        %v6319 = vadd.f32 %v6317, %v6318
        %v6320 = vsel %vm4231, %v5841, 0.0
        %v6321 = vrot.slane %v6320, 4
        %v6322 = vadd.f32 %v6320, %v6321
        %v6323 = vrot.slane %v6322, 2
        %v6324 = vadd.f32 %v6322, %v6323
        %v6325 = vrot.slane %v6324, 1
        %v6326 = vadd.f32 %v6324, %v6325
        %v6327 = vsel %vm4231, %v5843, 0.0
        %v6328 = vrot.slane %v6327, 4
        %v6329 = vadd.f32 %v6327, %v6328
        %v6330 = vrot.slane %v6329, 2
        %v6331 = vadd.f32 %v6329, %v6330
        %v6332 = vrot.slane %v6331, 1
        %v6333 = vadd.f32 %v6331, %v6332
        %v6334 = vsel %vm4231, %v5851, 0.0
        %v6335 = vrot.slane %v6334, 4
        %v6336 = vadd.f32 %v6334, %v6335
        %v6337 = vrot.slane %v6336, 2
        %v6338 = vadd.f32 %v6336, %v6337
        %v6339 = vrot.slane %v6338, 1
        %v6340 = vadd.f32 %v6338, %v6339
        %v6341 = vsel %vm4231, %v5859, 0.0
        %v6342 = vrot.slane %v6341, 4
        %v6343 = vadd.f32 %v6341, %v6342
        %v6344 = vrot.slane %v6343, 2
        %v6345 = vadd.f32 %v6343, %v6344
        %v6346 = vrot.slane %v6345, 1
        %v6347 = vadd.f32 %v6345, %v6346
        %v6348 = vsel %vm4231, %v5858, 0.0
        %v6349 = vrot.slane %v6348, 4
        %v6350 = vadd.f32 %v6348, %v6349
        %v6351 = vrot.slane %v6350, 2
        %v6352 = vadd.f32 %v6350, %v6351
        %v6353 = vrot.slane %v6352, 1
        %v6354 = vadd.f32 %v6352, %v6353
        %v6355 = vsel %vm4231, %v5860, 0.0
        %v6356 = vrot.slane %v6355, 4
        %v6357 = vadd.f32 %v6355, %v6356
        %v6358 = vrot.slane %v6357, 2
        %v6359 = vadd.f32 %v6357, %v6358
        %v6360 = vrot.slane %v6359, 1
        %v6361 = vadd.f32 %v6359, %v6360
        %v6362 = vsel %vm4231, %v5868, 0.0
        %v6363 = vrot.slane %v6362, 4
        %v6364 = vadd.f32 %v6362, %v6363
        %v6365 = vrot.slane %v6364, 2
        %v6366 = vadd.f32 %v6364, %v6365
        %v6367 = vrot.slane %v6366, 1
        %v6368 = vadd.f32 %v6366, %v6367
        %v6369 = vsel %vm4231, %v5876, 0.0
        %v6370 = vrot.slane %v6369, 4
        %v6371 = vadd.f32 %v6369, %v6370
        %v6372 = vrot.slane %v6371, 2
        %v6373 = vadd.f32 %v6371, %v6372
        %v6374 = vrot.slane %v6373, 1
        %v6375 = vadd.f32 %v6373, %v6374
        %v6376 = vsel %vm4231, %v5875, 0.0
        %v6377 = vrot.slane %v6376, 4
        %v6378 = vadd.f32 %v6376, %v6377
        %v6379 = vrot.slane %v6378, 2
        %v6380 = vadd.f32 %v6378, %v6379
        %v6381 = vrot.slane %v6380, 1
        %v6382 = vadd.f32 %v6380, %v6381
        %v6383 = vsel %vm4231, %v5877, 0.0
        %v6384 = vrot.slane %v6383, 4
        %v6385 = vadd.f32 %v6383, %v6384
        %v6386 = vrot.slane %v6385, 2
        %v6387 = vadd.f32 %v6385, %v6386
        %v6388 = vrot.slane %v6387, 1
        %v6389 = vadd.f32 %v6387, %v6388
        %v6390 = vmul.f32 %v5948, 0.25
        %v6391 = vmul.f32 %v5955, 0.25
        %v6392 = vmul.f32 %v5962, 0.25
        %v6393 = vmul.f32 %v5969, 0.25
        %v6394 = vmul.f32 %v5976, 0.25
        %v6395 = vmul.f32 %v5983, 0.25
        %v6396 = vmul.f32 %v5990, 0.25
        %v6397 = vmul.f32 %v5997, 0.25
        %v6398 = vmul.f32 %v6004, 0.25
        %v6399 = vmul.f32 %v6011, 0.25
        %v6400 = vmul.f32 %v6018, 0.25
        %v6401 = vmul.f32 %v6025, 0.25
        %v6402 = vmul.f32 %v6032, 0.25
        %v6403 = vmul.f32 %v6039, 0.25
        %v6404 = vmul.f32 %v6046, 0.25
        %v6405 = vmul.f32 %v6053, 0.25
        %v6406 = vmul.f32 %v6060, 0.25
        %v6407 = vmul.f32 %v6067, 0.25
        %v6408 = vmul.f32 %v6074, 0.25
        %v6409 = vmul.f32 %v6081, 0.25
        %v6410 = vmul.f32 %v6088, 0.25
        %v6411 = vmul.f32 %v6095, 0.25
        %v6412 = vmul.f32 %v6102, 0.25
        %v6413 = vmul.f32 %v6109, 0.25
        %v6414 = vmul.f32 %v6116, 0.25
        %v6415 = vmul.f32 %v6123, 0.25
        %v6416 = vmul.f32 %v6130, 0.25
        %v6417 = vmul.f32 %v6137, 0.25
        %v6418 = vmul.f32 %v6144, 0.25
        %v6419 = vmul.f32 %v6151, 0.25
        %v6420 = vmul.f32 %v6158, 0.25
        %v6421 = vmul.f32 %v6165, 0.25
        %v6422 = vmul.f32 %v6172, 0.25
        %v6423 = vmul.f32 %v6179, 0.25
        %v6424 = vmul.f32 %v6186, 0.25
        %v6425 = vmul.f32 %v6193, 0.25
        %v6426 = vmul.f32 %v6200, 0.25
        %v6427 = vmul.f32 %v6207, 0.25
        %v6428 = vmul.f32 %v6214, 0.25
        %v6429 = vmul.f32 %v6221, 0.25
        %v6430 = vmul.f32 %v6228, 0.25
        %v6431 = vmul.f32 %v6235, 0.25
        %v6432 = vmul.f32 %v6242, 0.25
        %v6433 = vmul.f32 %v6249, 0.25
        %v6434 = vmul.f32 %v6256, 0.25
        %v6435 = vmul.f32 %v6263, 0.25
        %v6436 = vmul.f32 %v6270, 0.25
        %v6437 = vmul.f32 %v6277, 0.25
        %v6438 = vmul.f32 %v6284, 0.25
        %v6439 = vmul.f32 %v6291, 0.25
        %v6440 = vmul.f32 %v6298, 0.25
        %v6441 = vmul.f32 %v6305, 0.25
        %v6442 = vmul.f32 %v6312, 0.25
        %v6443 = vmul.f32 %v6319, 0.25
        %v6444 = vmul.f32 %v6326, 0.25
        %v6445 = vmul.f32 %v6333, 0.25
        %v6446 = vmul.f32 %v6340, 0.25
        %v6447 = vmul.f32 %v6347, 0.25
        %v6448 = vmul.f32 %v6354, 0.25
        %v6449 = vmul.f32 %v6361, 0.25
        %v6450 = vmul.f32 %v6368, 0.25
        %v6451 = vmul.f32 %v6375, 0.25
        %v6452 = vmul.f32 %v6382, 0.25
        %v6453 = vmul.f32 %v6389, 0.25
        %v6454 = vpack.c.bf16 %v6390, %v6390
        %v6455 = vpack.c.bf16 %v6391, %v6391
        %v6456 = vpack.c.bf16 %v6392, %v6392
        %v6457 = vpack.c.bf16 %v6393, %v6393
        %v6458 = vpack.c.bf16 %v6394, %v6394
        %v6459 = vpack.c.bf16 %v6395, %v6395
        %v6460 = vpack.c.bf16 %v6396, %v6396
        %v6461 = vpack.c.bf16 %v6397, %v6397
        %v6462 = vpack.c.bf16 %v6398, %v6398
        %v6463 = vpack.c.bf16 %v6399, %v6399
        %v6464 = vpack.c.bf16 %v6400, %v6400
        %v6465 = vpack.c.bf16 %v6401, %v6401
        %v6466 = vpack.c.bf16 %v6402, %v6402
        %v6467 = vpack.c.bf16 %v6403, %v6403
        %v6468 = vpack.c.bf16 %v6404, %v6404
        %v6469 = vpack.c.bf16 %v6405, %v6405
        %v6470 = vpack.c.bf16 %v6406, %v6406
        %v6471 = vpack.c.bf16 %v6407, %v6407
        %v6472 = vpack.c.bf16 %v6408, %v6408
        %v6473 = vpack.c.bf16 %v6409, %v6409
        %v6474 = vpack.c.bf16 %v6410, %v6410
        %v6475 = vpack.c.bf16 %v6411, %v6411
        %v6476 = vpack.c.bf16 %v6412, %v6412
        %v6477 = vpack.c.bf16 %v6413, %v6413
        %v6478 = vpack.c.bf16 %v6414, %v6414
        %v6479 = vpack.c.bf16 %v6415, %v6415
        %v6480 = vpack.c.bf16 %v6416, %v6416
        %v6481 = vpack.c.bf16 %v6417, %v6417
        %v6482 = vpack.c.bf16 %v6418, %v6418
        %v6483 = vpack.c.bf16 %v6419, %v6419
        %v6484 = vpack.c.bf16 %v6420, %v6420
        %v6485 = vpack.c.bf16 %v6421, %v6421
        %v6486 = vpack.c.bf16 %v6422, %v6422
        %v6487 = vpack.c.bf16 %v6423, %v6423
        %v6488 = vpack.c.bf16 %v6424, %v6424
        %v6489 = vpack.c.bf16 %v6425, %v6425
        %v6490 = vpack.c.bf16 %v6426, %v6426
        %v6491 = vpack.c.bf16 %v6427, %v6427
        %v6492 = vpack.c.bf16 %v6428, %v6428
        %v6493 = vpack.c.bf16 %v6429, %v6429
        %v6494 = vpack.c.bf16 %v6430, %v6430
        %v6495 = vpack.c.bf16 %v6431, %v6431
        %v6496 = vpack.c.bf16 %v6432, %v6432
        %v6497 = vpack.c.bf16 %v6433, %v6433
        %v6498 = vpack.c.bf16 %v6434, %v6434
        %v6499 = vpack.c.bf16 %v6435, %v6435
        %v6500 = vpack.c.bf16 %v6436, %v6436
        %v6501 = vpack.c.bf16 %v6437, %v6437
        %v6502 = vpack.c.bf16 %v6438, %v6438
        %v6503 = vpack.c.bf16 %v6439, %v6439
        %v6504 = vpack.c.bf16 %v6440, %v6440
        %v6505 = vpack.c.bf16 %v6441, %v6441
        %v6506 = vpack.c.bf16 %v6442, %v6442
        %v6507 = vpack.c.bf16 %v6443, %v6443
        %v6508 = vpack.c.bf16 %v6444, %v6444
        %v6509 = vpack.c.bf16 %v6445, %v6445
        %v6510 = vpack.c.bf16 %v6446, %v6446
        %v6511 = vpack.c.bf16 %v6447, %v6447
        %v6512 = vpack.c.bf16 %v6448, %v6448
        %v6513 = vpack.c.bf16 %v6449, %v6449
        %v6514 = vpack.c.bf16 %v6450, %v6450
        %v6515 = vpack.c.bf16 %v6451, %v6451
        %v6516 = vpack.c.bf16 %v6452, %v6452
        %v6517 = vpack.c.bf16 %v6453, %v6453
        %v6582 = vunpack.c.l.b16 %v6454
        %v6583 = vunpack.c.l.b16 %v6455
        %v6584 = vunpack.c.l.b16 %v6456
        %v6585 = vunpack.c.l.b16 %v6457
        %v6586 = vunpack.c.l.b16 %v6458
        %v6587 = vunpack.c.l.b16 %v6459
        %v6588 = vunpack.c.l.b16 %v6460
        %v6589 = vunpack.c.l.b16 %v6461
        %v6590 = vunpack.c.l.b16 %v6462
        %v6591 = vunpack.c.l.b16 %v6463
        %v6592 = vunpack.c.l.b16 %v6464
        %v6593 = vunpack.c.l.b16 %v6465
        %v6594 = vunpack.c.l.b16 %v6466
        %v6595 = vunpack.c.l.b16 %v6467
        %v6596 = vunpack.c.l.b16 %v6468
        %v6597 = vunpack.c.l.b16 %v6469
        %v6598 = vunpack.c.l.b16 %v6470
        %v6599 = vunpack.c.l.b16 %v6471
        %v6600 = vunpack.c.l.b16 %v6472
        %v6601 = vunpack.c.l.b16 %v6473
        %v6602 = vunpack.c.l.b16 %v6474
        %v6603 = vunpack.c.l.b16 %v6475
        %v6604 = vunpack.c.l.b16 %v6476
        %v6605 = vunpack.c.l.b16 %v6477
        %v6606 = vunpack.c.l.b16 %v6478
        %v6607 = vunpack.c.l.b16 %v6479
        %v6608 = vunpack.c.l.b16 %v6480
        %v6609 = vunpack.c.l.b16 %v6481
        %v6610 = vunpack.c.l.b16 %v6482
        %v6611 = vunpack.c.l.b16 %v6483
        %v6612 = vunpack.c.l.b16 %v6484
        %v6613 = vunpack.c.l.b16 %v6485
        %v6614 = vunpack.c.l.b16 %v6486
        %v6615 = vunpack.c.l.b16 %v6487
        %v6616 = vunpack.c.l.b16 %v6488
        %v6617 = vunpack.c.l.b16 %v6489
        %v6618 = vunpack.c.l.b16 %v6490
        %v6619 = vunpack.c.l.b16 %v6491
        %v6620 = vunpack.c.l.b16 %v6492
        %v6621 = vunpack.c.l.b16 %v6493
        %v6622 = vunpack.c.l.b16 %v6494
        %v6623 = vunpack.c.l.b16 %v6495
        %v6624 = vunpack.c.l.b16 %v6496
        %v6625 = vunpack.c.l.b16 %v6497
        %v6626 = vunpack.c.l.b16 %v6498
        %v6627 = vunpack.c.l.b16 %v6499
        %v6628 = vunpack.c.l.b16 %v6500
        %v6629 = vunpack.c.l.b16 %v6501
        %v6630 = vunpack.c.l.b16 %v6502
        %v6631 = vunpack.c.l.b16 %v6503
        %v6632 = vunpack.c.l.b16 %v6504
        %v6633 = vunpack.c.l.b16 %v6505
        %v6634 = vunpack.c.l.b16 %v6506
        %v6635 = vunpack.c.l.b16 %v6507
        %v6636 = vunpack.c.l.b16 %v6508
        %v6637 = vunpack.c.l.b16 %v6509
        %v6638 = vunpack.c.l.b16 %v6510
        %v6639 = vunpack.c.l.b16 %v6511
        %v6640 = vunpack.c.l.b16 %v6512
        %v6641 = vunpack.c.l.b16 %v6513
        %v6642 = vunpack.c.l.b16 %v6514
        %v6643 = vunpack.c.l.b16 %v6515
        %v6644 = vunpack.c.l.b16 %v6516
        %v6645 = vunpack.c.l.b16 %v6517
        %v6646 = vsel %vm5062, %v6583, %v6582
        %v6647 = vsel %vm4993, %v6584, %v6646
        %v6648 = vsel %vm4995, %v6585, %v6647
        %v6649 = vsel %vm4997, %v6586, %v6648
        %v6650 = vsel %vm4999, %v6587, %v6649
        %v6651 = vsel %vm5001, %v6588, %v6650
        %v6652 = vsel %vm5003, %v6589, %v6651
        %v6653 = vsel %vm5062, %v6591, %v6590
        %v6654 = vsel %vm4993, %v6592, %v6653
        %v6655 = vsel %vm4995, %v6593, %v6654
        %v6656 = vsel %vm4997, %v6594, %v6655
        %v6657 = vsel %vm4999, %v6595, %v6656
        %v6658 = vsel %vm5001, %v6596, %v6657
        %v6659 = vsel %vm5003, %v6597, %v6658
        %v6660 = vsel %vm5062, %v6599, %v6598
        %v6661 = vsel %vm4993, %v6600, %v6660
        %v6662 = vsel %vm4995, %v6601, %v6661
        %v6663 = vsel %vm4997, %v6602, %v6662
        %v6664 = vsel %vm4999, %v6603, %v6663
        %v6665 = vsel %vm5001, %v6604, %v6664
        %v6666 = vsel %vm5003, %v6605, %v6665
        %v6667 = vsel %vm5062, %v6607, %v6606
        %v6668 = vsel %vm4993, %v6608, %v6667
        %v6669 = vsel %vm4995, %v6609, %v6668
        %v6670 = vsel %vm4997, %v6610, %v6669
        %v6671 = vsel %vm4999, %v6611, %v6670
        %v6672 = vsel %vm5001, %v6612, %v6671
        %v6673 = vsel %vm5003, %v6613, %v6672
        %v6674 = vsel %vm5062, %v6615, %v6614
        %v6675 = vsel %vm4993, %v6616, %v6674
        %v6676 = vsel %vm4995, %v6617, %v6675
        %v6677 = vsel %vm4997, %v6618, %v6676
        %v6678 = vsel %vm4999, %v6619, %v6677
        %v6679 = vsel %vm5001, %v6620, %v6678
        %v6680 = vsel %vm5003, %v6621, %v6679
        %v6681 = vsel %vm5062, %v6623, %v6622
        %v6682 = vsel %vm4993, %v6624, %v6681
        %v6683 = vsel %vm4995, %v6625, %v6682
        %v6684 = vsel %vm4997, %v6626, %v6683
        %v6685 = vsel %vm4999, %v6627, %v6684
        %v6686 = vsel %vm5001, %v6628, %v6685
        %v6687 = vsel %vm5003, %v6629, %v6686
        %v6688 = vsel %vm5062, %v6631, %v6630
        %v6689 = vsel %vm4993, %v6632, %v6688
        %v6690 = vsel %vm4995, %v6633, %v6689
        %v6691 = vsel %vm4997, %v6634, %v6690
        %v6692 = vsel %vm4999, %v6635, %v6691
        %v6693 = vsel %vm5001, %v6636, %v6692
        %v6694 = vsel %vm5003, %v6637, %v6693
        %v6695 = vsel %vm5062, %v6639, %v6638
        %v6696 = vsel %vm4993, %v6640, %v6695
        %v6697 = vsel %vm4995, %v6641, %v6696
        %v6698 = vsel %vm4997, %v6642, %v6697
        %v6699 = vsel %vm4999, %v6643, %v6698
        %v6700 = vsel %vm5001, %v6644, %v6699
        %v6701 = vsel %vm5003, %v6645, %v6700
        %v6702 = vpack.c.b16 %v6659, %v6652
        %v6703 = vpack.c.b16 %v6673, %v6666
        %v6704 = vpack.c.b16 %v6687, %v6680
        %v6705 = vpack.c.b16 %v6701, %v6694
        %v6707 = vsel %vm2457, %v6702, 0
        %v6710 = vsel %vm2457, %v6703, 0
        %v6713 = vsel %vm2457, %v6704, 0
        %v6716 = vsel %vm2457, %v6705, 0
        %v6719 = vsel %vm3666, %v605, 0
        %6721 = vmatprep.subr.bf16.mxu0 0
        %6722 = vmatpush1.bf16.msra.mxu0 %v6719
        %6723 = vmatprep.subr.bf16.mxu0 0
        %6724 = vmatpush1.bf16.msra.mxu0 0
        %6725 = vmatprep.subr.bf16.mxu0 0
        %6726 = vmatpush1.bf16.msra.mxu0 0
        %6727 = vmatprep.subr.bf16.mxu0 0
        %6728 = vmatpush1.bf16.msra.mxu0 0
        %6729 = vmatprep.subr.bf16.mxu0 0
        %6730 = vmatpush1.bf16.msra.mxu0 0
        %6731 = vmatprep.subr.bf16.mxu0 0
        %6732 = vmatpush1.bf16.msra.mxu0 0
        %6733 = vmatprep.subr.bf16.mxu0 0
        %6734 = vmatpush1.bf16.msra.mxu0 0
        %6735 = vmatprep.subr.bf16.mxu0 0
        %6736 = vmatpush1.bf16.msra.mxu0 0
        %6737 = vmatprep.subr.bf16.mxu0 0
        %6738 = vmatpush1.bf16.msra.mxu0 0
        %6739 = vmatprep.subr.bf16.mxu0 0
        %6740 = vmatpush1.bf16.msra.mxu0 0
        %6741 = vmatprep.subr.bf16.mxu0 0
        %6742 = vmatpush1.bf16.msra.mxu0 0
        %6743 = vmatprep.subr.bf16.mxu0 0
        %6744 = vmatpush1.bf16.msra.mxu0 0
        %6745 = vmatprep.subr.bf16.mxu0 0
        %6746 = vmatpush1.bf16.msra.mxu0 0
        %6747 = vmatprep.subr.bf16.mxu0 0
        %6748 = vmatpush1.bf16.msra.mxu0 0
        %6749 = vmatprep.subr.bf16.mxu0 0
        %6750 = vmatpush1.bf16.msra.mxu0 0
        %6751 = vmatprep.subr.bf16.mxu0 0
        %6752 = vmatpush1.bf16.msra.mxu0 0
        %6753 = vmatprep.mubr.bf16.mxu0 0
        %6754 = vmatmul.mubr.bf16.gmra.mrb[0].mxu0 %v6707
        %v6755 = vpop.f32.mrb[0].mxu0
        %v6756 = vadd.f32 0.0, %v6755
        %v6757 = vpop.f32.mrb[0].mxu0
        %v6758 = vpop.f32.mrb[0].mxu0
        %v6759 = vadd.f32 0.0, %v6758
        %v6760 = vpop.f32.mrb[0].mxu0
        %6761 = vmatprep.mubr.bf16.mxu0 0
        %6762 = vmatmul.mubr.bf16.gmra.mrb[0].mxu0 %v6710
        %v6763 = vpop.f32.mrb[0].mxu0
        %v6764 = vadd.f32 0.0, %v6763
        %v6765 = vpop.f32.mrb[0].mxu0
        %v6766 = vpop.f32.mrb[0].mxu0
        %v6767 = vadd.f32 0.0, %v6766
        %v6768 = vpop.f32.mrb[0].mxu0
        %6769 = vmatprep.mubr.bf16.mxu0 0
        %6770 = vmatmul.mubr.bf16.gmra.mrb[0].mxu0 %v6713
        %v6771 = vpop.f32.mrb[0].mxu0
        %v6772 = vadd.f32 0.0, %v6771
        %v6773 = vpop.f32.mrb[0].mxu0
        %v6774 = vpop.f32.mrb[0].mxu0
        %v6775 = vadd.f32 0.0, %v6774
        %v6776 = vpop.f32.mrb[0].mxu0
        %6777 = vmatprep.mubr.bf16.mxu0 0
        %6778 = vmatmul.mubr.bf16.gmra.mrb[0].mxu0 %v6716
        %v6779 = vpop.f32.mrb[0].mxu0
        %v6780 = vadd.f32 0.0, %v6779
        %v6781 = vpop.f32.mrb[0].mxu0
        %v6782 = vpop.f32.mrb[0].mxu0
        %v6783 = vadd.f32 0.0, %v6782
        %v6784 = vpop.f32.mrb[0].mxu0
        %6785 = vdwg.mxu0
        %v6786 = vadd.f32 %v5512, %v6756
        %v6787 = vadd.f32 %v5515, %v6759
        %v6788 = vadd.f32 %v5520, %v6764
        %v6789 = vadd.f32 %v5523, %v6767
        %v6790 = vadd.f32 %v5528, %v6772
        %v6791 = vadd.f32 %v5531, %v6775
        %v6792 = vadd.f32 %v5536, %v6780
        %v6793 = vadd.f32 %v5539, %v6783
        %v6794 = vmul.f32 %v6786, 0.70710677
        %v6795 = vmul.f32 %v6787, 0.70710677
        %v6796 = vmul.f32 %v6788, 0.70710677
        %v6797 = vmul.f32 %v6789, 0.70710677
        %v6798 = vmul.f32 %v6790, 0.70710677
        %v6799 = vmul.f32 %v6791, 0.70710677
        %v6800 = vmul.f32 %v6792, 0.70710677
        %v6801 = vmul.f32 %v6793, 0.70710677
        %vm6802 = vcmp.gt.f32.partialorder %v6794, 0.0
        %vm6803 = vcmp.gt.f32.partialorder %v6795, 0.0
        %vm6804 = vcmp.gt.f32.partialorder %v6796, 0.0
        %vm6805 = vcmp.gt.f32.partialorder %v6797, 0.0
        %vm6806 = vcmp.gt.f32.partialorder %v6798, 0.0
        %vm6807 = vcmp.gt.f32.partialorder %v6799, 0.0
        %vm6808 = vcmp.gt.f32.partialorder %v6800, 0.0
        %vm6809 = vcmp.gt.f32.partialorder %v6801, 0.0
        %v6810 = vmul.f32 %v6794, 0.2
        %v6811 = vmul.f32 %v6795, 0.2
        %v6812 = vmul.f32 %v6796, 0.2
        %v6813 = vmul.f32 %v6797, 0.2
        %v6814 = vmul.f32 %v6798, 0.2
        %v6815 = vmul.f32 %v6799, 0.2
        %v6816 = vmul.f32 %v6800, 0.2
        %v6817 = vmul.f32 %v6801, 0.2
        %v6818 = vsel %vm6802, %v6794, %v6810
        %v6819 = vsel %vm6803, %v6795, %v6811
        %v6820 = vsel %vm6804, %v6796, %v6812
        %v6821 = vsel %vm6805, %v6797, %v6813
        %v6822 = vsel %vm6806, %v6798, %v6814
        %v6823 = vsel %vm6807, %v6799, %v6815
        %v6824 = vsel %vm6808, %v6800, %v6816
        %v6825 = vsel %vm6809, %v6801, %v6817
        %6826 = vst [vmem:[#allocation2] sm:$0xff] 0.0
        %vm6827 = vcmask 130048
        %6828 = vst.msk [vmem:[#allocation2 + $0x8] sm:$0xff] %vm6827, 0.0
        %6829 = vst [vmem:[#allocation2 + $0x20] sm:$0xff] 0.0
        %6830 = vst.msk [vmem:[#allocation2 + $0x28] sm:$0xff] %vm6827, 0.0
        %6831 = vst [vmem:[#allocation2 + $0x40] sm:$0xff] 0.0
        %6832 = vst.msk [vmem:[#allocation2 + $0x48] sm:$0xff] %vm6827, 0.0
        %6833 = vst [vmem:[#allocation2 + $0x60] sm:$0xff] 0.0
        %6834 = vst.msk [vmem:[#allocation2 + $0x68] sm:$0xff] %vm6827, 0.0
        %6835 = vst [vmem:[#allocation2 + $0x80] sm:$0xff] 0.0
        %6836 = vst.msk [vmem:[#allocation2 + $0x88] sm:$0xff] %vm6827, 0.0
        %6837 = vst [vmem:[#allocation2 + $0xa0] sm:$0xff] 0.0
        %6838 = vst.msk [vmem:[#allocation2 + $0xa8] sm:$0xff] %vm6827, 0.0
        %6839 = vst [vmem:[#allocation2 + $0xc0] sm:$0xff] 0.0
        %6840 = vst.msk [vmem:[#allocation2 + $0xc8] sm:$0xff] %vm6827, 0.0
        %6841 = vst [vmem:[#allocation2 + $0xe0] sm:$0xff] 0.0
        %6842 = vst.msk [vmem:[#allocation2 + $0xe8] sm:$0xff] %vm6827, 0.0
        %v6850 = vrot.slane %v6818, 7
        %v6851 = vrot.slane %v6819, 7
        %v6852 = vrot.slane %v6820, 7
        %v6853 = vrot.slane %v6821, 7
        %v6854 = vrot.slane %v6822, 7
        %v6855 = vrot.slane %v6823, 7
        %v6856 = vrot.slane %v6824, 7
        %vm6864 = vcmask 130049
        %6865 = vst.msk [vmem:[%s855] sm:$0xfe] %vm6864, %v6850
        %6866 = vst.msk [vmem:[%s855 + $0x20] sm:$0xfe] %vm6864, %v6851
        %6867 = vst.msk [vmem:[%s855 + $0x40] sm:$0xfe] %vm6864, %v6852
        %6868 = vst.msk [vmem:[%s855 + $0x60] sm:$0xfe] %vm6864, %v6853
        %6869 = vst.msk [vmem:[%s855 + $0x80] sm:$0xfe] %vm6864, %v6854
        %6870 = vst.msk [vmem:[%s855 + $0xa0] sm:$0xfe] %vm6864, %v6855
        %6871 = vst.msk [vmem:[%s855 + $0xc0] sm:$0xfe] %vm6864, %v6856
        %6872 = vrot.lane.b32.xlu0 %v6818, 16
        %v6873 = vpop.permute.xlu0 %6872
        %6874 = vrot.lane.b32.xlu0 %v6819, 16
        %v6875 = vpop.permute.xlu0 %6874
        %6876 = vrot.lane.b32.xlu0 %v6820, 16
        %v6877 = vpop.permute.xlu0 %6876
        %6878 = vrot.lane.b32.xlu0 %v6821, 16
        %v6879 = vpop.permute.xlu0 %6878
        %6880 = vrot.lane.b32.xlu0 %v6822, 16
        %v6881 = vpop.permute.xlu0 %6880
        %6882 = vrot.lane.b32.xlu0 %v6823, 16
        %v6883 = vpop.permute.xlu0 %6882
        %6884 = vrot.lane.b32.xlu0 %v6824, 16
        %v6885 = vpop.permute.xlu0 %6884
        %vm6893 = vcmask 261248
        %6894 = vst.msk [vmem:[%s855] sm:$0xff] %vm6893, %v6873
        %6895 = vst.msk [vmem:[%s855 + $0x20] sm:$0xff] %vm6893, %v6875
        %6896 = vst.msk [vmem:[%s855 + $0x40] sm:$0xff] %vm6893, %v6877
        %6897 = vst.msk [vmem:[%s855 + $0x60] sm:$0xff] %vm6893, %v6879
        %6898 = vst.msk [vmem:[%s855 + $0x80] sm:$0xff] %vm6893, %v6881
        %6899 = vst.msk [vmem:[%s855 + $0xa0] sm:$0xff] %vm6893, %v6883
        %6900 = vst.msk [vmem:[%s855 + $0xc0] sm:$0xff] %vm6893, %v6885
        %v6901 = vrot.slane %v6818, 1
        %v6902 = vrot.slane %v6819, 1
        %v6903 = vrot.slane %v6820, 1
        %v6904 = vrot.slane %v6821, 1
        %v6905 = vrot.slane %v6822, 1
        %v6906 = vrot.slane %v6823, 1
        %v6907 = vrot.slane %v6824, 1
        %6908 = vrot.lane.b32.xlu0 %v6901, 32
        %v6909 = vpop.permute.xlu0 %6908
        %6910 = vrot.lane.b32.xlu0 %v6902, 32
        %v6911 = vpop.permute.xlu0 %6910
        %6912 = vrot.lane.b32.xlu0 %v6903, 32
        %v6913 = vpop.permute.xlu0 %6912
        %6914 = vrot.lane.b32.xlu0 %v6904, 32
        %v6915 = vpop.permute.xlu0 %6914
        %6916 = vrot.lane.b32.xlu0 %v6905, 32
        %v6917 = vpop.permute.xlu0 %6916
        %6918 = vrot.lane.b32.xlu0 %v6906, 32
        %v6919 = vpop.permute.xlu0 %6918
        %6920 = vrot.lane.b32.xlu0 %v6907, 32
        %v6921 = vpop.permute.xlu0 %6920
        %vm6929 = vcmask 391424
        %6930 = vst.msk [vmem:[%s855] sm:$0x7f] %vm6929, %v6909
        %6931 = vst.msk [vmem:[%s855 + $0x20] sm:$0x7f] %vm6929, %v6911
        %6932 = vst.msk [vmem:[%s855 + $0x40] sm:$0x7f] %vm6929, %v6913
        %6933 = vst.msk [vmem:[%s855 + $0x60] sm:$0x7f] %vm6929, %v6915
        %6934 = vst.msk [vmem:[%s855 + $0x80] sm:$0x7f] %vm6929, %v6917
        %6935 = vst.msk [vmem:[%s855 + $0xa0] sm:$0x7f] %vm6929, %v6919
        %6936 = vst.msk [vmem:[%s855 + $0xc0] sm:$0x7f] %vm6929, %v6921
        %v6938 = vrot.slane %v6825, 7
        %6939 = vrot.lane.b32.xlu0 %v6850, 48
        %v6940 = vpop.permute.xlu0 %6939
        %6941 = vrot.lane.b32.xlu0 %v6851, 48
        %v6942 = vpop.permute.xlu0 %6941
        %6943 = vrot.lane.b32.xlu0 %v6852, 48
        %v6944 = vpop.permute.xlu0 %6943
        %6945 = vrot.lane.b32.xlu0 %v6853, 48
        %v6946 = vpop.permute.xlu0 %6945
        %6947 = vrot.lane.b32.xlu0 %v6854, 48
        %v6948 = vpop.permute.xlu0 %6947
        %6949 = vrot.lane.b32.xlu0 %v6855, 48
        %v6950 = vpop.permute.xlu0 %6949
        %6951 = vrot.lane.b32.xlu0 %v6856, 48
        %v6952 = vpop.permute.xlu0 %6951
        %6953 = vrot.lane.b32.xlu0 %v6938, 48
        %v6954 = vpop.permute.xlu0 %6953
        %vm6963 = vcmask 523649
        %6964 = vst.msk [vmem:[#allocation2] sm:$0xfe] %vm6963, %v6940
        %6965 = vst.msk [vmem:[#allocation2 + $0x20] sm:$0xfe] %vm6963, %v6942
        %6966 = vst.msk [vmem:[#allocation2 + $0x40] sm:$0xfe] %vm6963, %v6944
        %6967 = vst.msk [vmem:[#allocation2 + $0x60] sm:$0xfe] %vm6963, %v6946
        %6968 = vst.msk [vmem:[#allocation2 + $0x80] sm:$0xfe] %vm6963, %v6948
        %6969 = vst.msk [vmem:[#allocation2 + $0xa0] sm:$0xfe] %vm6963, %v6950
        %6970 = vst.msk [vmem:[#allocation2 + $0xc0] sm:$0xfe] %vm6963, %v6952
        %6971 = vst.msk [vmem:[#allocation2 + $0xe0] sm:$0xfe] %vm6963, %v6954
        %6972 = vrot.lane.b32.xlu0 %v6818, 64
        %v6973 = vpop.permute.xlu0 %6972
        %6974 = vrot.lane.b32.xlu0 %v6819, 64
        %v6975 = vpop.permute.xlu0 %6974
        %6976 = vrot.lane.b32.xlu0 %v6820, 64
        %v6977 = vpop.permute.xlu0 %6976
        %6978 = vrot.lane.b32.xlu0 %v6821, 64
        %v6979 = vpop.permute.xlu0 %6978
        %6980 = vrot.lane.b32.xlu0 %v6822, 64
        %v6981 = vpop.permute.xlu0 %6980
        %6982 = vrot.lane.b32.xlu0 %v6823, 64
        %v6983 = vpop.permute.xlu0 %6982
        %6984 = vrot.lane.b32.xlu0 %v6824, 64
        %v6985 = vpop.permute.xlu0 %6984
        %6986 = vrot.lane.b32.xlu0 %v6825, 64
        %v6987 = vpop.permute.xlu0 %6986
        %vm6996 = vcmask 654848
        %6997 = vst.msk [vmem:[#allocation2] sm:$0xff] %vm6996, %v6973
        %6998 = vst.msk [vmem:[#allocation2 + $0x20] sm:$0xff] %vm6996, %v6975
        %6999 = vst.msk [vmem:[#allocation2 + $0x40] sm:$0xff] %vm6996, %v6977
        %7000 = vst.msk [vmem:[#allocation2 + $0x60] sm:$0xff] %vm6996, %v6979
        %7001 = vst.msk [vmem:[#allocation2 + $0x80] sm:$0xff] %vm6996, %v6981
        %7002 = vst.msk [vmem:[#allocation2 + $0xa0] sm:$0xff] %vm6996, %v6983
        %7003 = vst.msk [vmem:[#allocation2 + $0xc0] sm:$0xff] %vm6996, %v6985
        %7004 = vst.msk [vmem:[#allocation2 + $0xe0] sm:$0xff] %vm6996, %v6987
        %v7005 = vrot.slane %v6825, 1
        %7006 = vrot.lane.b32.xlu0 %v6901, 80
        %v7007 = vpop.permute.xlu0 %7006
        %7008 = vrot.lane.b32.xlu0 %v6902, 80
        %v7009 = vpop.permute.xlu0 %7008
        %7010 = vrot.lane.b32.xlu0 %v6903, 80
        %v7011 = vpop.permute.xlu0 %7010
        %7012 = vrot.lane.b32.xlu0 %v6904, 80
        %v7013 = vpop.permute.xlu0 %7012
        %7014 = vrot.lane.b32.xlu0 %v6905, 80
        %v7015 = vpop.permute.xlu0 %7014
        %7016 = vrot.lane.b32.xlu0 %v6906, 80
        %v7017 = vpop.permute.xlu0 %7016
        %7018 = vrot.lane.b32.xlu0 %v6907, 80
        %v7019 = vpop.permute.xlu0 %7018
        %7020 = vrot.lane.b32.xlu0 %v7005, 80
        %v7021 = vpop.permute.xlu0 %7020
        %vm7030 = vcmask 785024
        %7031 = vst.msk [vmem:[#allocation2] sm:$0x7f] %vm7030, %v7007
        %7032 = vst.msk [vmem:[#allocation2 + $0x20] sm:$0x7f] %vm7030, %v7009
        %7033 = vst.msk [vmem:[#allocation2 + $0x40] sm:$0x7f] %vm7030, %v7011
        %7034 = vst.msk [vmem:[#allocation2 + $0x60] sm:$0x7f] %vm7030, %v7013
        %7035 = vst.msk [vmem:[#allocation2 + $0x80] sm:$0x7f] %vm7030, %v7015
        %7036 = vst.msk [vmem:[#allocation2 + $0xa0] sm:$0x7f] %vm7030, %v7017
        %7037 = vst.msk [vmem:[#allocation2 + $0xc0] sm:$0x7f] %vm7030, %v7019
        %7038 = vst.msk [vmem:[#allocation2 + $0xe0] sm:$0x7f] %vm7030, %v7021
        %7039 = vrot.lane.b32.xlu0 %v6851, 96
        %v7040 = vpop.permute.xlu0 %7039
        %7041 = vrot.lane.b32.xlu0 %v6852, 96
        %v7042 = vpop.permute.xlu0 %7041
        %7043 = vrot.lane.b32.xlu0 %v6853, 96
        %v7044 = vpop.permute.xlu0 %7043
        %7045 = vrot.lane.b32.xlu0 %v6854, 96
        %v7046 = vpop.permute.xlu0 %7045
        %7047 = vrot.lane.b32.xlu0 %v6855, 96
        %v7048 = vpop.permute.xlu0 %7047
        %7049 = vrot.lane.b32.xlu0 %v6856, 96
        %v7050 = vpop.permute.xlu0 %7049
        %7051 = vrot.lane.b32.xlu0 %v6938, 96
        %v7052 = vpop.permute.xlu0 %7051
        %vm7060 = vcmask 917249
        %7061 = vst.msk [vmem:[#allocation2] sm:$0xfe] %vm7060, %v7040
        %7062 = vst.msk [vmem:[#allocation2 + $0x20] sm:$0xfe] %vm7060, %v7042
        %7063 = vst.msk [vmem:[#allocation2 + $0x40] sm:$0xfe] %vm7060, %v7044
        %7064 = vst.msk [vmem:[#allocation2 + $0x60] sm:$0xfe] %vm7060, %v7046
        %7065 = vst.msk [vmem:[#allocation2 + $0x80] sm:$0xfe] %vm7060, %v7048
        %7066 = vst.msk [vmem:[#allocation2 + $0xa0] sm:$0xfe] %vm7060, %v7050
        %7067 = vst.msk [vmem:[#allocation2 + $0xc0] sm:$0xfe] %vm7060, %v7052
        %7068 = vrot.lane.b32.xlu0 %v6819, 112
        %v7069 = vpop.permute.xlu0 %7068
        %7070 = vrot.lane.b32.xlu0 %v6820, 112
        %v7071 = vpop.permute.xlu0 %7070
        %7072 = vrot.lane.b32.xlu0 %v6821, 112
        %v7073 = vpop.permute.xlu0 %7072
        %7074 = vrot.lane.b32.xlu0 %v6822, 112
        %v7075 = vpop.permute.xlu0 %7074
        %7076 = vrot.lane.b32.xlu0 %v6823, 112
        %v7077 = vpop.permute.xlu0 %7076
        %7078 = vrot.lane.b32.xlu0 %v6824, 112
        %v7079 = vpop.permute.xlu0 %7078
        %7080 = vrot.lane.b32.xlu0 %v6825, 112
        %v7081 = vpop.permute.xlu0 %7080
        %vm7089 = vcmask 1048448
        %7090 = vst.msk [vmem:[#allocation2] sm:$0xff] %vm7089, %v7069
        %7091 = vst.msk [vmem:[#allocation2 + $0x20] sm:$0xff] %vm7089, %v7071
        %7092 = vst.msk [vmem:[#allocation2 + $0x40] sm:$0xff] %vm7089, %v7073
        %7093 = vst.msk [vmem:[#allocation2 + $0x60] sm:$0xff] %vm7089, %v7075
        %7094 = vst.msk [vmem:[#allocation2 + $0x80] sm:$0xff] %vm7089, %v7077
        %7095 = vst.msk [vmem:[#allocation2 + $0xa0] sm:$0xff] %vm7089, %v7079
        %7096 = vst.msk [vmem:[#allocation2 + $0xc0] sm:$0xff] %vm7089, %v7081
        %vm7104 = vcmask 129024
        %7105 = vst.msk [vmem:[#allocation2 + $0x8] sm:$0x7f] %vm7104, %v6902
        %7106 = vst.msk [vmem:[#allocation2 + $0x28] sm:$0x7f] %vm7104, %v6903
        %7107 = vst.msk [vmem:[#allocation2 + $0x48] sm:$0x7f] %vm7104, %v6904
        %7108 = vst.msk [vmem:[#allocation2 + $0x68] sm:$0x7f] %vm7104, %v6905
        %7109 = vst.msk [vmem:[#allocation2 + $0x88] sm:$0x7f] %vm7104, %v6906
        %7110 = vst.msk [vmem:[#allocation2 + $0xa8] sm:$0x7f] %vm7104, %v6907
        %7111 = vst.msk [vmem:[#allocation2 + $0xc8] sm:$0x7f] %vm7104, %v7005
        %v7112 = vld [vmem:[#allocation2] sm:$0xff]
        %v7113 = vld [vmem:[#allocation2 + $0x8] sm:$0xff]
        %v7114 = vld [vmem:[#allocation2 + $0x20] sm:$0xff]
        %v7115 = vld [vmem:[#allocation2 + $0x28] sm:$0xff]
        %v7116 = vld [vmem:[#allocation2 + $0x40] sm:$0xff]
        %v7117 = vld [vmem:[#allocation2 + $0x48] sm:$0xff]
        %v7118 = vld [vmem:[#allocation2 + $0x60] sm:$0xff]
        %v7119 = vld [vmem:[#allocation2 + $0x68] sm:$0xff]
        %v7120 = vld [vmem:[#allocation2 + $0x80] sm:$0xff]
        %v7121 = vld [vmem:[#allocation2 + $0x88] sm:$0xff]
        %v7122 = vld [vmem:[#allocation2 + $0xa0] sm:$0xff]
        %v7123 = vld [vmem:[#allocation2 + $0xa8] sm:$0xff]
        %v7124 = vld [vmem:[#allocation2 + $0xc0] sm:$0xff]
        %v7125 = vld [vmem:[#allocation2 + $0xc8] sm:$0xff]
        %v7126 = vld [vmem:[#allocation2 + $0xe0] sm:$0xff]
        %v7127 = vld [vmem:[#allocation2 + $0xe8] sm:$0xff]
        %v7128 = vpack.c.bf16 %v7114, %v7112
        %v7129 = vpack.c.bf16 %v7115, %v7113
        %v7130 = vpack.c.bf16 %v7118, %v7116
        %v7131 = vpack.c.bf16 %v7119, %v7117
        %v7132 = vpack.c.bf16 %v7122, %v7120
        %v7133 = vpack.c.bf16 %v7123, %v7121
        %v7134 = vpack.c.bf16 %v7126, %v7124
        %v7135 = vpack.c.bf16 %v7127, %v7125
        %v7137 = vlaneseq
        %v7138 = vshrl.u32 %v7137, 7
        %v7139 = vsub.s32 0, %v7138
        %v7140 = vrot.slane %v624, %v7139
        %v7160 = vunpack.c.l.b16 %v606
        %v7161 = vunpack.c.l.b16 %v607
        %v7162 = vunpack.c.l.b16 %v608
        %v7163 = vunpack.c.l.b16 %v609
        %v7164 = vunpack.c.l.b16 %v610
        %v7165 = vunpack.c.l.b16 %v611
        %v7166 = vunpack.c.l.b16 %v612
        %v7167 = vunpack.c.l.b16 %v613
        %v7168 = vunpack.c.l.b16 %v614
        %v7169 = vunpack.c.l.b16 %v615
        %v7170 = vunpack.c.l.b16 %v616
        %v7171 = vunpack.c.l.b16 %v617
        %v7172 = vunpack.c.l.b16 %v618
        %v7173 = vunpack.c.l.b16 %v619
        %v7174 = vunpack.c.l.b16 %v620
        %v7175 = vunpack.c.l.b16 %v621
        %v7176 = vunpack.c.l.b16 %v622
        %v7177 = vunpack.c.l.b16 %v623
        %v7178 = vpack.c.b16 %v7161, %v7160
        %v7179 = vpack.c.b16 %v7163, %v7162
        %v7180 = vpack.c.b16 %v7165, %v7164
        %v7181 = vpack.c.b16 %v7167, %v7166
        %v7182 = vpack.c.b16 %v7169, %v7168
        %v7183 = vpack.c.b16 %v7171, %v7170
        %v7184 = vpack.c.b16 %v7173, %v7172
        %v7185 = vpack.c.b16 %v7175, %v7174
        %v7186 = vpack.c.b16 %v7177, %v7176
        %v7197 = vsel %vm6827, %v7129, 0
        %v7200 = vsel %vm6827, %v7131, 0
        %v7203 = vsel %vm6827, %v7133, 0
        %v7206 = vsel %vm6827, %v7135, 0
        %7208 = vmatprep.subr.bf16.mxu0 0
        %7209 = vmatpush1.bf16.msra.mxu0 %v7178
        %7210 = vmatprep.subr.bf16.mxu0 0
        %7211 = vmatpush1.bf16.msra.mxu0 %v7179
        %7212 = vmatprep.subr.bf16.mxu0 0
        %7213 = vmatpush1.bf16.msra.mxu0 %v7180
        %7214 = vmatprep.subr.bf16.mxu0 0
        %7215 = vmatpush1.bf16.msra.mxu0 %v7181
        %7216 = vmatprep.subr.bf16.mxu0 0
        %7217 = vmatpush1.bf16.msra.mxu0 %v7182
        %7218 = vmatprep.subr.bf16.mxu0 0
        %7219 = vmatpush1.bf16.msra.mxu0 %v7183
        %7220 = vmatprep.subr.bf16.mxu0 0
        %7221 = vmatpush1.bf16.msra.mxu0 %v7184
        %7222 = vmatprep.subr.bf16.mxu0 0
        %7223 = vmatpush1.bf16.msra.mxu0 %v7185
        %7224 = vmatprep.subr.bf16.mxu0 0
        %7225 = vmatpush1.bf16.msra.mxu0 %v7186
        %7226 = vmatprep.subr.bf16.mxu0 0
        %7227 = vmatpush1.bf16.msra.mxu0 0
        %7228 = vmatprep.subr.bf16.mxu0 0
        %7229 = vmatpush1.bf16.msra.mxu0 0
        %7230 = vmatprep.subr.bf16.mxu0 0
        %7231 = vmatpush1.bf16.msra.mxu0 0
        %7232 = vmatprep.subr.bf16.mxu0 0
        %7233 = vmatpush1.bf16.msra.mxu0 0
        %7234 = vmatprep.subr.bf16.mxu0 0
        %7235 = vmatpush1.bf16.msra.mxu0 0
        %7236 = vmatprep.subr.bf16.mxu0 0
        %7237 = vmatpush1.bf16.msra.mxu0 0
        %7238 = vmatprep.subr.bf16.mxu0 0
        %7239 = vmatpush1.bf16.msra.mxu0 0
        %7240 = vmatprep.mubr.bf16.mxu0 %v7197
        %7241 = vmatmul.mubr.bf16.gmra.mrb[0].mxu0 %v7128
        %v7242 = vpop.f32.mrb[0].mxu0
        %v7243 = vadd.f32 %v7140, %v7242
        %v7244 = vpop.f32.mrb[0].mxu0
        %v7245 = vpop.f32.mrb[0].mxu0
        %v7246 = vadd.f32 %v7140, %v7245
        %v7247 = vpop.f32.mrb[0].mxu0
        %7248 = vmatprep.mubr.bf16.mxu0 %v7200
        %7249 = vmatmul.mubr.bf16.gmra.mrb[0].mxu0 %v7130
        %v7250 = vpop.f32.mrb[0].mxu0
        %v7251 = vadd.f32 %v7140, %v7250
        %v7252 = vpop.f32.mrb[0].mxu0
        %v7253 = vpop.f32.mrb[0].mxu0
        %v7254 = vadd.f32 %v7140, %v7253
        %v7255 = vpop.f32.mrb[0].mxu0
        %7256 = vmatprep.mubr.bf16.mxu0 %v7203
        %7257 = vmatmul.mubr.bf16.gmra.mrb[0].mxu0 %v7132
        %v7258 = vpop.f32.mrb[0].mxu0
        %v7259 = vadd.f32 %v7140, %v7258
        %v7260 = vpop.f32.mrb[0].mxu0
        %v7261 = vpop.f32.mrb[0].mxu0
        %v7262 = vadd.f32 %v7140, %v7261
        %v7263 = vpop.f32.mrb[0].mxu0
        %7264 = vmatprep.mubr.bf16.mxu0 %v7206
        %7265 = vmatmul.mubr.bf16.gmra.mrb[0].mxu0 %v7134
        %v7266 = vpop.f32.mrb[0].mxu0
        %v7267 = vadd.f32 %v7140, %v7266
        %v7268 = vpop.f32.mrb[0].mxu0
        %v7269 = vpop.f32.mrb[0].mxu0
        %v7270 = vadd.f32 %v7140, %v7269
        %v7271 = vpop.f32.mrb[0].mxu0
        %7272 = vdwg.mxu0
        %v7273 = vsel %vm6827, %v7243, 0.0
        %v7274 = vsel %vm6827, %v7246, 0.0
        %v7275 = vadd.f32 %v7273, %v7274
        %v7276 = vsel %vm6827, %v7251, 0.0
        %v7277 = vsel %vm6827, %v7254, 0.0
        %v7278 = vadd.f32 %v7276, %v7277
        %v7279 = vsel %vm6827, %v7259, 0.0
        %v7280 = vsel %vm6827, %v7262, 0.0
        %v7281 = vadd.f32 %v7279, %v7280
        %v7282 = vsel %vm6827, %v7267, 0.0
        %v7283 = vsel %vm6827, %v7270, 0.0
        %v7284 = vadd.f32 %v7282, %v7283
        %v7289 = vcombine.high %v7275, %v7275
        %v7291 = vunpack.c.l.s4 1983009808
        %v7292 = vunpack.c.0.s8 %v7291
        %v7293 = vlaneseq
        %v7294 = vshrl.u32 %v7293, 7
        %v7295 = vsub.s32 %v7292, %v7294
        %v7296 = vrot.slane %v7275, %v7295
        %v7298 = vunpack.c.l.s4 1983009808
        %v7299 = vunpack.c.0.s8 %v7298
        %v7300 = vlaneseq
        %v7301 = vshrl.u32 %v7300, 7
        %v7302 = vsub.s32 %v7299, %v7301
        %v7303 = vrot.slane %v7289, %v7302
        %v7304 = vcombine.high %v7296, %v7296
        %v7305 = vcombine.high %v7303, %v7303
        %v7306 = vcombine.high %v7278, %v7278
        %v7308 = vunpack.c.l.s4 1983009808
        %v7309 = vunpack.c.0.s8 %v7308
        %v7310 = vlaneseq
        %v7311 = vshrl.u32 %v7310, 7
        %v7312 = vsub.s32 %v7309, %v7311
        %v7313 = vrot.slane %v7278, %v7312
        %v7315 = vunpack.c.l.s4 1983009808
        %v7316 = vunpack.c.0.s8 %v7315
        %v7317 = vlaneseq
        %v7318 = vshrl.u32 %v7317, 7
        %v7319 = vsub.s32 %v7316, %v7318
        %v7320 = vrot.slane %v7306, %v7319
        %v7321 = vcombine.high %v7313, %v7313
        %v7322 = vcombine.high %v7320, %v7320
        %v7323 = vcombine.high %v7281, %v7281
        %v7325 = vunpack.c.l.s4 1983009808
        %v7326 = vunpack.c.0.s8 %v7325
        %v7327 = vlaneseq
        %v7328 = vshrl.u32 %v7327, 7
        %v7329 = vsub.s32 %v7326, %v7328
        %v7330 = vrot.slane %v7281, %v7329
        %v7332 = vunpack.c.l.s4 1983009808
        %v7333 = vunpack.c.0.s8 %v7332
        %v7334 = vlaneseq
        %v7335 = vshrl.u32 %v7334, 7
        %v7336 = vsub.s32 %v7333, %v7335
        %v7337 = vrot.slane %v7323, %v7336
        %v7338 = vcombine.high %v7330, %v7330
        %v7339 = vcombine.high %v7337, %v7337
        %v7340 = vcombine.high %v7284, %v7284
        %v7342 = vunpack.c.l.s4 1983009808
        %v7343 = vunpack.c.0.s8 %v7342
        %v7344 = vlaneseq
        %v7345 = vshrl.u32 %v7344, 7
        %v7346 = vsub.s32 %v7343, %v7345
        %v7347 = vrot.slane %v7284, %v7346
        %v7349 = vunpack.c.l.s4 1983009808
        %v7350 = vunpack.c.0.s8 %v7349
        %v7351 = vlaneseq
        %v7352 = vshrl.u32 %v7351, 7
        %v7353 = vsub.s32 %v7350, %v7352
        %v7354 = vrot.slane %v7340, %v7353
        %v7355 = vcombine.high %v7347, %v7347
        %v7356 = vcombine.high %v7354, %v7354
        %vm7373 = vcmask 123904
        %v7374 = vsel %vm7373, %v7296, 0.0
        %v7375 = vrot.slane %v7374, 4
        %v7376 = vadd.f32 %v7374, %v7375
        %v7377 = vrot.slane %v7376, 2
        %v7378 = vadd.f32 %v7376, %v7377
        %v7379 = vrot.slane %v7378, 1
        %v7380 = vadd.f32 %v7378, %v7379
        %v7381 = vsel %vm7373, %v7304, 0.0
        %v7382 = vrot.slane %v7381, 4
        %v7383 = vadd.f32 %v7381, %v7382
        %v7384 = vrot.slane %v7383, 2
        %v7385 = vadd.f32 %v7383, %v7384
        %v7386 = vrot.slane %v7385, 1
        %v7387 = vadd.f32 %v7385, %v7386
        %v7388 = vsel %vm7373, %v7303, 0.0
        %v7389 = vrot.slane %v7388, 4
        %v7390 = vadd.f32 %v7388, %v7389
        %v7391 = vrot.slane %v7390, 2
        %v7392 = vadd.f32 %v7390, %v7391
        %v7393 = vrot.slane %v7392, 1
        %v7394 = vadd.f32 %v7392, %v7393
        %v7395 = vsel %vm7373, %v7305, 0.0
        %v7396 = vrot.slane %v7395, 4
        %v7397 = vadd.f32 %v7395, %v7396
        %v7398 = vrot.slane %v7397, 2
        %v7399 = vadd.f32 %v7397, %v7398
        %v7400 = vrot.slane %v7399, 1
        %v7401 = vadd.f32 %v7399, %v7400
        %v7402 = vsel %vm7373, %v7313, 0.0
        %v7403 = vrot.slane %v7402, 4
        %v7404 = vadd.f32 %v7402, %v7403
        %v7405 = vrot.slane %v7404, 2
        %v7406 = vadd.f32 %v7404, %v7405
        %v7407 = vrot.slane %v7406, 1
        %v7408 = vadd.f32 %v7406, %v7407
        %v7409 = vsel %vm7373, %v7321, 0.0
        %v7410 = vrot.slane %v7409, 4
        %v7411 = vadd.f32 %v7409, %v7410
        %v7412 = vrot.slane %v7411, 2
        %v7413 = vadd.f32 %v7411, %v7412
        %v7414 = vrot.slane %v7413, 1
        %v7415 = vadd.f32 %v7413, %v7414
        %v7416 = vsel %vm7373, %v7320, 0.0
        %v7417 = vrot.slane %v7416, 4
        %v7418 = vadd.f32 %v7416, %v7417
        %v7419 = vrot.slane %v7418, 2
        %v7420 = vadd.f32 %v7418, %v7419
        %v7421 = vrot.slane %v7420, 1
        %v7422 = vadd.f32 %v7420, %v7421
        %v7423 = vsel %vm7373, %v7322, 0.0
        %v7424 = vrot.slane %v7423, 4
        %v7425 = vadd.f32 %v7423, %v7424
        %v7426 = vrot.slane %v7425, 2
        %v7427 = vadd.f32 %v7425, %v7426
        %v7428 = vrot.slane %v7427, 1
        %v7429 = vadd.f32 %v7427, %v7428
        %v7430 = vsel %vm7373, %v7330, 0.0
        %v7431 = vrot.slane %v7430, 4
        %v7432 = vadd.f32 %v7430, %v7431
        %v7433 = vrot.slane %v7432, 2
        %v7434 = vadd.f32 %v7432, %v7433
        %v7435 = vrot.slane %v7434, 1
        %v7436 = vadd.f32 %v7434, %v7435
        %v7437 = vsel %vm7373, %v7338, 0.0
        %v7438 = vrot.slane %v7437, 4
        %v7439 = vadd.f32 %v7437, %v7438
        %v7440 = vrot.slane %v7439, 2
        %v7441 = vadd.f32 %v7439, %v7440
        %v7442 = vrot.slane %v7441, 1
        %v7443 = vadd.f32 %v7441, %v7442
        %v7444 = vsel %vm7373, %v7337, 0.0
        %v7445 = vrot.slane %v7444, 4
        %v7446 = vadd.f32 %v7444, %v7445
        %v7447 = vrot.slane %v7446, 2
        %v7448 = vadd.f32 %v7446, %v7447
        %v7449 = vrot.slane %v7448, 1
        %v7450 = vadd.f32 %v7448, %v7449
        %v7451 = vsel %vm7373, %v7339, 0.0
        %v7452 = vrot.slane %v7451, 4
        %v7453 = vadd.f32 %v7451, %v7452
        %v7454 = vrot.slane %v7453, 2
        %v7455 = vadd.f32 %v7453, %v7454
        %v7456 = vrot.slane %v7455, 1
        %v7457 = vadd.f32 %v7455, %v7456
        %v7458 = vsel %vm7373, %v7347, 0.0
        %v7459 = vrot.slane %v7458, 4
        %v7460 = vadd.f32 %v7458, %v7459
        %v7461 = vrot.slane %v7460, 2
        %v7462 = vadd.f32 %v7460, %v7461
        %v7463 = vrot.slane %v7462, 1
        %v7464 = vadd.f32 %v7462, %v7463
        %v7465 = vsel %vm7373, %v7355, 0.0
        %v7466 = vrot.slane %v7465, 4
        %v7467 = vadd.f32 %v7465, %v7466
        %v7468 = vrot.slane %v7467, 2
        %v7469 = vadd.f32 %v7467, %v7468
        %v7470 = vrot.slane %v7469, 1
        %v7471 = vadd.f32 %v7469, %v7470
        %v7472 = vsel %vm7373, %v7354, 0.0
        %v7473 = vrot.slane %v7472, 4
        %v7474 = vadd.f32 %v7472, %v7473
        %v7475 = vrot.slane %v7474, 2
        %v7476 = vadd.f32 %v7474, %v7475
        %v7477 = vrot.slane %v7476, 1
        %v7478 = vadd.f32 %v7476, %v7477
        %v7479 = vsel %vm7373, %v7356, 0.0
        %v7480 = vrot.slane %v7479, 4
        %v7481 = vadd.f32 %v7479, %v7480
        %v7482 = vrot.slane %v7481, 2
        %v7483 = vadd.f32 %v7481, %v7482
        %v7484 = vrot.slane %v7483, 1
        %v7485 = vadd.f32 %v7483, %v7484
        %v7486 = vmul.f32 %v7380, 0.25
        %v7487 = vmul.f32 %v7387, 0.25
        %v7488 = vmul.f32 %v7394, 0.25
        %v7489 = vmul.f32 %v7401, 0.25
        %v7490 = vmul.f32 %v7408, 0.25
        %v7491 = vmul.f32 %v7415, 0.25
        %v7492 = vmul.f32 %v7422, 0.25
        %v7493 = vmul.f32 %v7429, 0.25
        %v7494 = vmul.f32 %v7436, 0.25
        %v7495 = vmul.f32 %v7443, 0.25
        %v7496 = vmul.f32 %v7450, 0.25
        %v7497 = vmul.f32 %v7457, 0.25
        %v7498 = vmul.f32 %v7464, 0.25
        %v7499 = vmul.f32 %v7471, 0.25
        %v7500 = vmul.f32 %v7478, 0.25
        %v7501 = vmul.f32 %v7485, 0.25
        %vm7502 = vcmp.gt.f32.partialorder %v7486, 0.0
        %vm7503 = vcmp.gt.f32.partialorder %v7487, 0.0
        %vm7504 = vcmp.gt.f32.partialorder %v7488, 0.0
        %vm7505 = vcmp.gt.f32.partialorder %v7489, 0.0
        %vm7506 = vcmp.gt.f32.partialorder %v7490, 0.0
        %vm7507 = vcmp.gt.f32.partialorder %v7491, 0.0
        %vm7508 = vcmp.gt.f32.partialorder %v7492, 0.0
        %vm7509 = vcmp.gt.f32.partialorder %v7493, 0.0
        %vm7510 = vcmp.gt.f32.partialorder %v7494, 0.0
        %vm7511 = vcmp.gt.f32.partialorder %v7495, 0.0
        %vm7512 = vcmp.gt.f32.partialorder %v7496, 0.0
        %vm7513 = vcmp.gt.f32.partialorder %v7497, 0.0
        %vm7514 = vcmp.gt.f32.partialorder %v7498, 0.0
        %vm7515 = vcmp.gt.f32.partialorder %v7499, 0.0
        %vm7516 = vcmp.gt.f32.partialorder %v7500, 0.0
        %vm7517 = vcmp.gt.f32.partialorder %v7501, 0.0
        %v7518 = vmul.f32 %v7486, 0.2
        %v7519 = vmul.f32 %v7487, 0.2
        %v7520 = vmul.f32 %v7488, 0.2
        %v7521 = vmul.f32 %v7489, 0.2
        %v7522 = vmul.f32 %v7490, 0.2
        %v7523 = vmul.f32 %v7491, 0.2
        %v7524 = vmul.f32 %v7492, 0.2
        %v7525 = vmul.f32 %v7493, 0.2
        %v7526 = vmul.f32 %v7494, 0.2
        %v7527 = vmul.f32 %v7495, 0.2
        %v7528 = vmul.f32 %v7496, 0.2
        %v7529 = vmul.f32 %v7497, 0.2
        %v7530 = vmul.f32 %v7498, 0.2
        %v7531 = vmul.f32 %v7499, 0.2
        %v7532 = vmul.f32 %v7500, 0.2
        %v7533 = vmul.f32 %v7501, 0.2
        %v7534 = vsel %vm7502, %v7486, %v7518
        %v7535 = vsel %vm7503, %v7487, %v7519
        %v7536 = vsel %vm7504, %v7488, %v7520
        %v7537 = vsel %vm7505, %v7489, %v7521
        %v7538 = vsel %vm7506, %v7490, %v7522
        %v7539 = vsel %vm7507, %v7491, %v7523
        %v7540 = vsel %vm7508, %v7492, %v7524
        %v7541 = vsel %vm7509, %v7493, %v7525
        %v7542 = vsel %vm7510, %v7494, %v7526
        %v7543 = vsel %vm7511, %v7495, %v7527
        %v7544 = vsel %vm7512, %v7496, %v7528
        %v7545 = vsel %vm7513, %v7497, %v7529
        %v7546 = vsel %vm7514, %v7498, %v7530
        %v7547 = vsel %vm7515, %v7499, %v7531
        %v7548 = vsel %vm7516, %v7500, %v7532
        %v7549 = vsel %vm7517, %v7501, %v7533
        %7550 = vst [vmem:[#allocation2] sm:$0xf] 0.0
        %vm7551 = vcmask 125952
        %7552 = vst.msk [vmem:[#allocation2 + $0x8] sm:$0xf] %vm7551, 0.0
        %7553 = vst [vmem:[#allocation2 + $0x20] sm:$0xf] 0.0
        %7554 = vst.msk [vmem:[#allocation2 + $0x28] sm:$0xf] %vm7551, 0.0
        %7555 = vst [vmem:[#allocation2 + $0x40] sm:$0xf] 0.0
        %7556 = vst.msk [vmem:[#allocation2 + $0x48] sm:$0xf] %vm7551, 0.0
        %7557 = vst [vmem:[#allocation2 + $0x60] sm:$0xf] 0.0
        %7558 = vst.msk [vmem:[#allocation2 + $0x68] sm:$0xf] %vm7551, 0.0
        %v7568 = vsel %vm4993, %v7535, %v7534
        %v7569 = vsel %vm4995, %v7536, %v7568
        %v7570 = vsel %vm4993, %v7539, %v7538
        %v7571 = vsel %vm4995, %v7540, %v7570
        %v7572 = vsel %vm4993, %v7543, %v7542
        %v7573 = vsel %vm4995, %v7544, %v7572
        %vm7577 = vcmask 125953
        %7578 = vst.msk [vmem:[%s855] sm:$0xe] %vm7577, %v7569
        %7579 = vst.msk [vmem:[%s855 + $0x20] sm:$0xe] %vm7577, %v7571
        %7580 = vst.msk [vmem:[%s855 + $0x40] sm:$0xe] %vm7577, %v7573
        %v7584 = vsel %vm5062, %v7535, %v7534
        %v7585 = vsel %vm4993, %v7536, %v7584
        %v7586 = vsel %vm4995, %v7537, %v7585
        %v7587 = vsel %vm5062, %v7539, %v7538
        %v7588 = vsel %vm4993, %v7540, %v7587
        %v7589 = vsel %vm4995, %v7541, %v7588
        %v7590 = vsel %vm5062, %v7543, %v7542
        %v7591 = vsel %vm4993, %v7544, %v7590
        %v7592 = vsel %vm4995, %v7545, %v7591
        %7593 = vrot.lane.b32.xlu0 %v7586, 16
        %v7594 = vpop.permute.xlu0 %7593
        %7595 = vrot.lane.b32.xlu0 %v7589, 16
        %v7596 = vpop.permute.xlu0 %7595
        %7597 = vrot.lane.b32.xlu0 %v7592, 16
        %v7598 = vpop.permute.xlu0 %7597
        %vm7602 = vcmask 257152
        %7603 = vst.msk [vmem:[%s855] sm:$0xf] %vm7602, %v7594
        %7604 = vst.msk [vmem:[%s855 + $0x20] sm:$0xf] %vm7602, %v7596
        %7605 = vst.msk [vmem:[%s855 + $0x40] sm:$0xf] %vm7602, %v7598
        %v7606 = vsel %vm5062, %v7536, %v7535
        %v7607 = vsel %vm4993, %v7537, %v7606
        %v7608 = vsel %vm5062, %v7540, %v7539
        %v7609 = vsel %vm4993, %v7541, %v7608
        %v7610 = vsel %vm5062, %v7544, %v7543
        %v7611 = vsel %vm4993, %v7545, %v7610
        %7612 = vrot.lane.b32.xlu0 %v7607, 32
        %v7613 = vpop.permute.xlu0 %7612
        %7614 = vrot.lane.b32.xlu0 %v7609, 32
        %v7615 = vpop.permute.xlu0 %7614
        %7616 = vrot.lane.b32.xlu0 %v7611, 32
        %v7617 = vpop.permute.xlu0 %7616
        %vm7621 = vcmask 387328
        %7622 = vst.msk [vmem:[%s855] sm:$0x7] %vm7621, %v7613
        %7623 = vst.msk [vmem:[%s855 + $0x20] sm:$0x7] %vm7621, %v7615
        %7624 = vst.msk [vmem:[%s855 + $0x40] sm:$0x7] %vm7621, %v7617
        %v7628 = vsel %vm4993, %v7547, %v7546
        %v7629 = vsel %vm4995, %v7548, %v7628
        %7630 = vrot.lane.b32.xlu0 %v7569, 48
        %v7631 = vpop.permute.xlu0 %7630
        %7632 = vrot.lane.b32.xlu0 %v7571, 48
        %v7633 = vpop.permute.xlu0 %7632
        %7634 = vrot.lane.b32.xlu0 %v7573, 48
        %v7635 = vpop.permute.xlu0 %7634
        %7636 = vrot.lane.b32.xlu0 %v7629, 48
        %v7637 = vpop.permute.xlu0 %7636
        %vm7642 = vcmask 519553
        %7643 = vst.msk [vmem:[#allocation2] sm:$0xe] %vm7642, %v7631
        %7644 = vst.msk [vmem:[#allocation2 + $0x20] sm:$0xe] %vm7642, %v7633
        %7645 = vst.msk [vmem:[#allocation2 + $0x40] sm:$0xe] %vm7642, %v7635
        %7646 = vst.msk [vmem:[#allocation2 + $0x60] sm:$0xe] %vm7642, %v7637
        %v7648 = vsel %vm5062, %v7547, %v7546
        %v7649 = vsel %vm4993, %v7548, %v7648
        %v7650 = vsel %vm4995, %v7549, %v7649
        %7651 = vrot.lane.b32.xlu0 %v7586, 64
        %v7652 = vpop.permute.xlu0 %7651
        %7653 = vrot.lane.b32.xlu0 %v7589, 64
        %v7654 = vpop.permute.xlu0 %7653
        %7655 = vrot.lane.b32.xlu0 %v7592, 64
        %v7656 = vpop.permute.xlu0 %7655
        %7657 = vrot.lane.b32.xlu0 %v7650, 64
        %v7658 = vpop.permute.xlu0 %7657
        %vm7663 = vcmask 650752
        %7664 = vst.msk [vmem:[#allocation2] sm:$0xf] %vm7663, %v7652
        %7665 = vst.msk [vmem:[#allocation2 + $0x20] sm:$0xf] %vm7663, %v7654
        %7666 = vst.msk [vmem:[#allocation2 + $0x40] sm:$0xf] %vm7663, %v7656
        %7667 = vst.msk [vmem:[#allocation2 + $0x60] sm:$0xf] %vm7663, %v7658
        %v7668 = vsel %vm5062, %v7548, %v7547
        %v7669 = vsel %vm4993, %v7549, %v7668
        %7670 = vrot.lane.b32.xlu0 %v7607, 80
        %v7671 = vpop.permute.xlu0 %7670
        %7672 = vrot.lane.b32.xlu0 %v7609, 80
        %v7673 = vpop.permute.xlu0 %7672
        %7674 = vrot.lane.b32.xlu0 %v7611, 80
        %v7675 = vpop.permute.xlu0 %7674
        %7676 = vrot.lane.b32.xlu0 %v7669, 80
        %v7677 = vpop.permute.xlu0 %7676
        %vm7682 = vcmask 780928
        %7683 = vst.msk [vmem:[#allocation2] sm:$0x7] %vm7682, %v7671
        %7684 = vst.msk [vmem:[#allocation2 + $0x20] sm:$0x7] %vm7682, %v7673
        %7685 = vst.msk [vmem:[#allocation2 + $0x40] sm:$0x7] %vm7682, %v7675
        %7686 = vst.msk [vmem:[#allocation2 + $0x60] sm:$0x7] %vm7682, %v7677
        %7687 = vrot.lane.b32.xlu0 %v7571, 96
        %v7688 = vpop.permute.xlu0 %7687
        %7689 = vrot.lane.b32.xlu0 %v7573, 96
        %v7690 = vpop.permute.xlu0 %7689
        %7691 = vrot.lane.b32.xlu0 %v7629, 96
        %v7692 = vpop.permute.xlu0 %7691
        %vm7696 = vcmask 913153
        %7697 = vst.msk [vmem:[#allocation2] sm:$0xe] %vm7696, %v7688
        %7698 = vst.msk [vmem:[#allocation2 + $0x20] sm:$0xe] %vm7696, %v7690
        %7699 = vst.msk [vmem:[#allocation2 + $0x40] sm:$0xe] %vm7696, %v7692
        %7700 = vrot.lane.b32.xlu0 %v7589, 112
        %v7701 = vpop.permute.xlu0 %7700
        %7702 = vrot.lane.b32.xlu0 %v7592, 112
        %v7703 = vpop.permute.xlu0 %7702
        %7704 = vrot.lane.b32.xlu0 %v7650, 112
        %v7705 = vpop.permute.xlu0 %7704
        %vm7709 = vcmask 1044352
        %7710 = vst.msk [vmem:[#allocation2] sm:$0xf] %vm7709, %v7701
        %7711 = vst.msk [vmem:[#allocation2 + $0x20] sm:$0xf] %vm7709, %v7703
        %7712 = vst.msk [vmem:[#allocation2 + $0x40] sm:$0xf] %vm7709, %v7705
        %vm7716 = vcmask 124928
        %7717 = vst.msk [vmem:[#allocation2 + $0x8] sm:$0x7] %vm7716, %v7609
        %7718 = vst.msk [vmem:[#allocation2 + $0x28] sm:$0x7] %vm7716, %v7611
        %7719 = vst.msk [vmem:[#allocation2 + $0x48] sm:$0x7] %vm7716, %v7669
        %v7720 = vld [vmem:[#allocation2] sm:$0xf]
        %v7721 = vld [vmem:[#allocation2 + $0x8] sm:$0xf]
        %v7722 = vld [vmem:[#allocation2 + $0x20] sm:$0xf]
        %v7723 = vld [vmem:[#allocation2 + $0x28] sm:$0xf]
        %v7724 = vld [vmem:[#allocation2 + $0x40] sm:$0xf]
        %v7725 = vld [vmem:[#allocation2 + $0x48] sm:$0xf]
        %v7726 = vld [vmem:[#allocation2 + $0x60] sm:$0xf]
        %v7727 = vld [vmem:[#allocation2 + $0x68] sm:$0xf]
        %v7736 = vcombine.low %v7720, %v7721
        %v7737 = vcombine.low %v7722, %v7723
        %v7738 = vcombine.low %v7724, %v7725
        %v7739 = vcombine.low %v7726, %v7727
        %v7740 = vcombine.low %v7736, %v7737
        %v7741 = vcombine.high %v7736, %v7737
        %v7742 = vcombine.low %v7738, %v7739
        %v7743 = vcombine.high %v7738, %v7739
        %v7748 = vpack.c.bf16 %v7742, %v7740
        %v7749 = vpack.c.bf16 %v7743, %v7741
        %v7751 = vlaneseq
        %v7752 = vshrl.u32 %v7751, 7
        %v7753 = vsub.s32 0, %v7752
        %v7754 = vrot.slane %v643, %v7753
        %v7774 = vunpack.c.l.b16 %v625
        %v7775 = vunpack.c.l.b16 %v626
        %v7776 = vunpack.c.l.b16 %v627
        %v7777 = vunpack.c.l.b16 %v628
        %v7778 = vunpack.c.l.b16 %v629
        %v7779 = vunpack.c.l.b16 %v630
        %v7780 = vunpack.c.l.b16 %v631
        %v7781 = vunpack.c.l.b16 %v632
        %v7782 = vunpack.c.l.b16 %v633
        %v7783 = vunpack.c.l.b16 %v634
        %v7784 = vunpack.c.l.b16 %v635
        %v7785 = vunpack.c.l.b16 %v636
        %v7786 = vunpack.c.l.b16 %v637
        %v7787 = vunpack.c.l.b16 %v638
        %v7788 = vunpack.c.l.b16 %v639
        %v7789 = vunpack.c.l.b16 %v640
        %v7790 = vunpack.c.l.b16 %v641
        %v7791 = vunpack.c.l.b16 %v642
        %v7792 = vpack.c.b16 %v7775, %v7774
        %v7793 = vpack.c.b16 %v7777, %v7776
        %v7794 = vpack.c.b16 %v7779, %v7778
        %v7795 = vpack.c.b16 %v7781, %v7780
        %v7796 = vpack.c.b16 %v7783, %v7782
        %v7797 = vpack.c.b16 %v7785, %v7784
        %v7798 = vpack.c.b16 %v7787, %v7786
        %v7799 = vpack.c.b16 %v7789, %v7788
        %v7800 = vpack.c.b16 %v7791, %v7790
        %v7811 = vsel %vm6827, %v7749, 0
        %7813 = vmatprep.subr.bf16.mxu0 0
        %7814 = vmatpush1.bf16.msra.mxu0 %v7792
        %7815 = vmatprep.subr.bf16.mxu0 0
        %7816 = vmatpush1.bf16.msra.mxu0 %v7793
        %7817 = vmatprep.subr.bf16.mxu0 0
        %7818 = vmatpush1.bf16.msra.mxu0 %v7794
        %7819 = vmatprep.subr.bf16.mxu0 0
        %7820 = vmatpush1.bf16.msra.mxu0 %v7795
        %7821 = vmatprep.subr.bf16.mxu0 0
        %7822 = vmatpush1.bf16.msra.mxu0 %v7796
        %7823 = vmatprep.subr.bf16.mxu0 0
        %7824 = vmatpush1.bf16.msra.mxu0 %v7797
        %7825 = vmatprep.subr.bf16.mxu0 0
        %7826 = vmatpush1.bf16.msra.mxu0 %v7798
        %7827 = vmatprep.subr.bf16.mxu0 0
        %7828 = vmatpush1.bf16.msra.mxu0 %v7799
        %7829 = vmatprep.subr.bf16.mxu0 0
        %7830 = vmatpush1.bf16.msra.mxu0 %v7800
        %7831 = vmatprep.subr.bf16.mxu0 0
        %7832 = vmatpush1.bf16.msra.mxu0 0
        %7833 = vmatprep.subr.bf16.mxu0 0
        %7834 = vmatpush1.bf16.msra.mxu0 0
        %7835 = vmatprep.subr.bf16.mxu0 0
        %7836 = vmatpush1.bf16.msra.mxu0 0
        %7837 = vmatprep.subr.bf16.mxu0 0
        %7838 = vmatpush1.bf16.msra.mxu0 0
        %7839 = vmatprep.subr.bf16.mxu0 0
        %7840 = vmatpush1.bf16.msra.mxu0 0
        %7841 = vmatprep.subr.bf16.mxu0 0
        %7842 = vmatpush1.bf16.msra.mxu0 0
        %7843 = vmatprep.subr.bf16.mxu0 0
        %7844 = vmatpush1.bf16.msra.mxu0 0
        %7845 = vmatprep.mubr.bf16.mxu0 %v7811
        %7846 = vmatmul.mubr.bf16.gmra.mrb[0].mxu0 %v7748
        %v7847 = vpop.f32.mrb[0].mxu0
        %v7848 = vadd.f32 %v7754, %v7847
        %v7849 = vpop.f32.mrb[0].mxu0
        %v7850 = vpop.f32.mrb[0].mxu0
        %v7851 = vadd.f32 %v7754, %v7850
        %v7852 = vpop.f32.mrb[0].mxu0
        %7853 = vdwg.mxu0
        %v7856 = vcombine.high %v7848, %v7848
        %v7857 = vcombine.high %v7851, %v7851
        %v7860 = vsel %vm6827, %v6794, 0.0
        %v7861 = vsel %vm6827, %v6795, 0.0
        %v7862 = vadd.f32 %v7860, %v7861
        %v7863 = vsel %vm6827, %v6796, 0.0
        %v7864 = vsel %vm6827, %v6797, 0.0
        %v7865 = vadd.f32 %v7863, %v7864
        %v7866 = vsel %vm6827, %v6798, 0.0
        %v7867 = vsel %vm6827, %v6799, 0.0
        %v7868 = vadd.f32 %v7866, %v7867
        %v7869 = vsel %vm6827, %v6800, 0.0
        %v7870 = vsel %vm6827, %v6801, 0.0
        %v7871 = vadd.f32 %v7869, %v7870
        %v7876 = vcombine.high %v7862, %v7862
        %v7878 = vunpack.c.l.s4 1983009808
        %v7879 = vunpack.c.0.s8 %v7878
        %v7880 = vlaneseq
        %v7881 = vshrl.u32 %v7880, 7
        %v7882 = vsub.s32 %v7879, %v7881
        %v7883 = vrot.slane %v7862, %v7882
        %v7885 = vunpack.c.l.s4 1983009808
        %v7886 = vunpack.c.0.s8 %v7885
        %v7887 = vlaneseq
        %v7888 = vshrl.u32 %v7887, 7
        %v7889 = vsub.s32 %v7886, %v7888
        %v7890 = vrot.slane %v7876, %v7889
        %v7891 = vcombine.high %v7883, %v7883
        %v7892 = vcombine.high %v7890, %v7890
        %v7893 = vcombine.high %v7865, %v7865
        %v7895 = vunpack.c.l.s4 1983009808
        %v7896 = vunpack.c.0.s8 %v7895
        %v7897 = vlaneseq
        %v7898 = vshrl.u32 %v7897, 7
        %v7899 = vsub.s32 %v7896, %v7898
        %v7900 = vrot.slane %v7865, %v7899
        %v7902 = vunpack.c.l.s4 1983009808
        %v7903 = vunpack.c.0.s8 %v7902
        %v7904 = vlaneseq
        %v7905 = vshrl.u32 %v7904, 7
        %v7906 = vsub.s32 %v7903, %v7905
        %v7907 = vrot.slane %v7893, %v7906
        %v7908 = vcombine.high %v7900, %v7900
        %v7909 = vcombine.high %v7907, %v7907
        %v7910 = vcombine.high %v7868, %v7868
        %v7912 = vunpack.c.l.s4 1983009808
        %v7913 = vunpack.c.0.s8 %v7912
        %v7914 = vlaneseq
        %v7915 = vshrl.u32 %v7914, 7
        %v7916 = vsub.s32 %v7913, %v7915
        %v7917 = vrot.slane %v7868, %v7916
        %v7919 = vunpack.c.l.s4 1983009808
        %v7920 = vunpack.c.0.s8 %v7919
        %v7921 = vlaneseq
        %v7922 = vshrl.u32 %v7921, 7
        %v7923 = vsub.s32 %v7920, %v7922
        %v7924 = vrot.slane %v7910, %v7923
        %v7925 = vcombine.high %v7917, %v7917
        %v7926 = vcombine.high %v7924, %v7924
        %v7927 = vcombine.high %v7871, %v7871
        %v7929 = vunpack.c.l.s4 1983009808
        %v7930 = vunpack.c.0.s8 %v7929
        %v7931 = vlaneseq
        %v7932 = vshrl.u32 %v7931, 7
        %v7933 = vsub.s32 %v7930, %v7932
        %v7934 = vrot.slane %v7871, %v7933
        %v7936 = vunpack.c.l.s4 1983009808
        %v7937 = vunpack.c.0.s8 %v7936
        %v7938 = vlaneseq
        %v7939 = vshrl.u32 %v7938, 7
        %v7940 = vsub.s32 %v7937, %v7939
        %v7941 = vrot.slane %v7927, %v7940
        %v7942 = vcombine.high %v7934, %v7934
        %v7943 = vcombine.high %v7941, %v7941
        %v7960 = vsel %vm7373, %v7883, 0.0
        %v7961 = vrot.slane %v7960, 4
        %v7962 = vadd.f32 %v7960, %v7961
        %v7963 = vrot.slane %v7962, 2
        %v7964 = vadd.f32 %v7962, %v7963
        %v7965 = vrot.slane %v7964, 1
        %v7966 = vadd.f32 %v7964, %v7965
        %v7967 = vsel %vm7373, %v7891, 0.0
        %v7968 = vrot.slane %v7967, 4
        %v7969 = vadd.f32 %v7967, %v7968
        %v7970 = vrot.slane %v7969, 2
        %v7971 = vadd.f32 %v7969, %v7970
        %v7972 = vrot.slane %v7971, 1
        %v7973 = vadd.f32 %v7971, %v7972
        %v7974 = vsel %vm7373, %v7890, 0.0
        %v7975 = vrot.slane %v7974, 4
        %v7976 = vadd.f32 %v7974, %v7975
        %v7977 = vrot.slane %v7976, 2
        %v7978 = vadd.f32 %v7976, %v7977
        %v7979 = vrot.slane %v7978, 1
        %v7980 = vadd.f32 %v7978, %v7979
        %v7981 = vsel %vm7373, %v7892, 0.0
        %v7982 = vrot.slane %v7981, 4
        %v7983 = vadd.f32 %v7981, %v7982
        %v7984 = vrot.slane %v7983, 2
        %v7985 = vadd.f32 %v7983, %v7984
        %v7986 = vrot.slane %v7985, 1
        %v7987 = vadd.f32 %v7985, %v7986
        %v7988 = vsel %vm7373, %v7900, 0.0
        %v7989 = vrot.slane %v7988, 4
        %v7990 = vadd.f32 %v7988, %v7989
        %v7991 = vrot.slane %v7990, 2
        %v7992 = vadd.f32 %v7990, %v7991
        %v7993 = vrot.slane %v7992, 1
        %v7994 = vadd.f32 %v7992, %v7993
        %v7995 = vsel %vm7373, %v7908, 0.0
        %v7996 = vrot.slane %v7995, 4
        %v7997 = vadd.f32 %v7995, %v7996
        %v7998 = vrot.slane %v7997, 2
        %v7999 = vadd.f32 %v7997, %v7998
        %v8000 = vrot.slane %v7999, 1
        %v8001 = vadd.f32 %v7999, %v8000
        %v8002 = vsel %vm7373, %v7907, 0.0
        %v8003 = vrot.slane %v8002, 4
        %v8004 = vadd.f32 %v8002, %v8003
        %v8005 = vrot.slane %v8004, 2
        %v8006 = vadd.f32 %v8004, %v8005
        %v8007 = vrot.slane %v8006, 1
        %v8008 = vadd.f32 %v8006, %v8007
        %v8009 = vsel %vm7373, %v7909, 0.0
        %v8010 = vrot.slane %v8009, 4
        %v8011 = vadd.f32 %v8009, %v8010
        %v8012 = vrot.slane %v8011, 2
        %v8013 = vadd.f32 %v8011, %v8012
        %v8014 = vrot.slane %v8013, 1
        %v8015 = vadd.f32 %v8013, %v8014
        %v8016 = vsel %vm7373, %v7917, 0.0
        %v8017 = vrot.slane %v8016, 4
        %v8018 = vadd.f32 %v8016, %v8017
        %v8019 = vrot.slane %v8018, 2
        %v8020 = vadd.f32 %v8018, %v8019
        %v8021 = vrot.slane %v8020, 1
        %v8022 = vadd.f32 %v8020, %v8021
        %v8023 = vsel %vm7373, %v7925, 0.0
        %v8024 = vrot.slane %v8023, 4
        %v8025 = vadd.f32 %v8023, %v8024
        %v8026 = vrot.slane %v8025, 2
        %v8027 = vadd.f32 %v8025, %v8026
        %v8028 = vrot.slane %v8027, 1
        %v8029 = vadd.f32 %v8027, %v8028
        %v8030 = vsel %vm7373, %v7924, 0.0
        %v8031 = vrot.slane %v8030, 4
        %v8032 = vadd.f32 %v8030, %v8031
        %v8033 = vrot.slane %v8032, 2
        %v8034 = vadd.f32 %v8032, %v8033
        %v8035 = vrot.slane %v8034, 1
        %v8036 = vadd.f32 %v8034, %v8035
        %v8037 = vsel %vm7373, %v7926, 0.0
        %v8038 = vrot.slane %v8037, 4
        %v8039 = vadd.f32 %v8037, %v8038
        %v8040 = vrot.slane %v8039, 2
        %v8041 = vadd.f32 %v8039, %v8040
        %v8042 = vrot.slane %v8041, 1
        %v8043 = vadd.f32 %v8041, %v8042
        %v8044 = vsel %vm7373, %v7934, 0.0
        %v8045 = vrot.slane %v8044, 4
        %v8046 = vadd.f32 %v8044, %v8045
        %v8047 = vrot.slane %v8046, 2
        %v8048 = vadd.f32 %v8046, %v8047
        %v8049 = vrot.slane %v8048, 1
        %v8050 = vadd.f32 %v8048, %v8049
        %v8051 = vsel %vm7373, %v7942, 0.0
        %v8052 = vrot.slane %v8051, 4
        %v8053 = vadd.f32 %v8051, %v8052
        %v8054 = vrot.slane %v8053, 2
        %v8055 = vadd.f32 %v8053, %v8054
        %v8056 = vrot.slane %v8055, 1
        %v8057 = vadd.f32 %v8055, %v8056
        %v8058 = vsel %vm7373, %v7941, 0.0
        %v8059 = vrot.slane %v8058, 4
        %v8060 = vadd.f32 %v8058, %v8059
        %v8061 = vrot.slane %v8060, 2
        %v8062 = vadd.f32 %v8060, %v8061
        %v8063 = vrot.slane %v8062, 1
        %v8064 = vadd.f32 %v8062, %v8063
        %v8065 = vsel %vm7373, %v7943, 0.0
        %v8066 = vrot.slane %v8065, 4
        %v8067 = vadd.f32 %v8065, %v8066
        %v8068 = vrot.slane %v8067, 2
        %v8069 = vadd.f32 %v8067, %v8068
        %v8070 = vrot.slane %v8069, 1
        %v8071 = vadd.f32 %v8069, %v8070
        %v8072 = vmul.f32 %v7966, 0.25
        %v8073 = vmul.f32 %v7973, 0.25
        %v8074 = vmul.f32 %v7980, 0.25
        %v8075 = vmul.f32 %v7987, 0.25
        %v8076 = vmul.f32 %v7994, 0.25
        %v8077 = vmul.f32 %v8001, 0.25
        %v8078 = vmul.f32 %v8008, 0.25
        %v8079 = vmul.f32 %v8015, 0.25
        %v8080 = vmul.f32 %v8022, 0.25
        %v8081 = vmul.f32 %v8029, 0.25
        %v8082 = vmul.f32 %v8036, 0.25
        %v8083 = vmul.f32 %v8043, 0.25
        %v8084 = vmul.f32 %v8050, 0.25
        %v8085 = vmul.f32 %v8057, 0.25
        %v8086 = vmul.f32 %v8064, 0.25
        %v8087 = vmul.f32 %v8071, 0.25
        %v8088 = vpack.c.bf16 %v8072, %v8072
        %v8089 = vpack.c.bf16 %v8073, %v8073
        %v8090 = vpack.c.bf16 %v8074, %v8074
        %v8091 = vpack.c.bf16 %v8075, %v8075
        %v8092 = vpack.c.bf16 %v8076, %v8076
        %v8093 = vpack.c.bf16 %v8077, %v8077
        %v8094 = vpack.c.bf16 %v8078, %v8078
        %v8095 = vpack.c.bf16 %v8079, %v8079
        %v8096 = vpack.c.bf16 %v8080, %v8080
        %v8097 = vpack.c.bf16 %v8081, %v8081
        %v8098 = vpack.c.bf16 %v8082, %v8082
        %v8099 = vpack.c.bf16 %v8083, %v8083
        %v8100 = vpack.c.bf16 %v8084, %v8084
        %v8101 = vpack.c.bf16 %v8085, %v8085
        %v8102 = vpack.c.bf16 %v8086, %v8086
        %v8103 = vpack.c.bf16 %v8087, %v8087
        %v8120 = vunpack.c.l.b16 %v8088
        %v8121 = vunpack.c.l.b16 %v8089
        %v8122 = vunpack.c.l.b16 %v8090
        %v8123 = vunpack.c.l.b16 %v8091
        %v8124 = vunpack.c.l.b16 %v8092
        %v8125 = vunpack.c.l.b16 %v8093
        %v8126 = vunpack.c.l.b16 %v8094
        %v8127 = vunpack.c.l.b16 %v8095
        %v8128 = vunpack.c.l.b16 %v8096
        %v8129 = vunpack.c.l.b16 %v8097
        %v8130 = vunpack.c.l.b16 %v8098
        %v8131 = vunpack.c.l.b16 %v8099
        %v8132 = vunpack.c.l.b16 %v8100
        %v8133 = vunpack.c.l.b16 %v8101
        %v8134 = vunpack.c.l.b16 %v8102
        %v8135 = vunpack.c.l.b16 %v8103
        %v8136 = vsel %vm5062, %v8121, %v8120
        %v8137 = vsel %vm4993, %v8122, %v8136
        %v8138 = vsel %vm4995, %v8123, %v8137
        %v8139 = vsel %vm4997, %v8124, %v8138
        %v8140 = vsel %vm4999, %v8125, %v8139
        %v8141 = vsel %vm5001, %v8126, %v8140
        %v8142 = vsel %vm5003, %v8127, %v8141
        %v8143 = vsel %vm5062, %v8129, %v8128
        %v8144 = vsel %vm4993, %v8130, %v8143
        %v8145 = vsel %vm4995, %v8131, %v8144
        %v8146 = vsel %vm4997, %v8132, %v8145
        %v8147 = vsel %vm4999, %v8133, %v8146
        %v8148 = vsel %vm5001, %v8134, %v8147
        %v8149 = vsel %vm5003, %v8135, %v8148
        %v8150 = vpack.c.b16 %v8149, %v8142
        %v8153 = vunpack.c.l.b16 %v644
        %v8154 = vunpack.c.l.b16 %v645
        %v8155 = vpack.c.b16 %v8154, %v8153
        %v8158 = vsel %vm6827, %v8150, 0
        %8160 = vmatprep.subr.bf16.mxu0 0
        %8161 = vmatpush1.bf16.msra.mxu0 %v8155
        %8162 = vmatprep.subr.bf16.mxu0 0
        %8163 = vmatpush1.bf16.msra.mxu0 0
        %8164 = vmatprep.subr.bf16.mxu0 0
        %8165 = vmatpush1.bf16.msra.mxu0 0
        %8166 = vmatprep.subr.bf16.mxu0 0
        %8167 = vmatpush1.bf16.msra.mxu0 0
        %8168 = vmatprep.subr.bf16.mxu0 0
        %8169 = vmatpush1.bf16.msra.mxu0 0
        %8170 = vmatprep.subr.bf16.mxu0 0
        %8171 = vmatpush1.bf16.msra.mxu0 0
        %8172 = vmatprep.subr.bf16.mxu0 0
        %8173 = vmatpush1.bf16.msra.mxu0 0
        %8174 = vmatprep.subr.bf16.mxu0 0
        %8175 = vmatpush1.bf16.msra.mxu0 0
        %8176 = vmatprep.subr.bf16.mxu0 0
        %8177 = vmatpush1.bf16.msra.mxu0 0
        %8178 = vmatprep.subr.bf16.mxu0 0
        %8179 = vmatpush1.bf16.msra.mxu0 0
        %8180 = vmatprep.subr.bf16.mxu0 0
        %8181 = vmatpush1.bf16.msra.mxu0 0
        %8182 = vmatprep.subr.bf16.mxu0 0
        %8183 = vmatpush1.bf16.msra.mxu0 0
        %8184 = vmatprep.subr.bf16.mxu0 0
        %8185 = vmatpush1.bf16.msra.mxu0 0
        %8186 = vmatprep.subr.bf16.mxu0 0
        %8187 = vmatpush1.bf16.msra.mxu0 0
        %8188 = vmatprep.subr.bf16.mxu0 0
        %8189 = vmatpush1.bf16.msra.mxu0 0
        %8190 = vmatprep.subr.bf16.mxu0 0
        %8191 = vmatpush1.bf16.msra.mxu0 0
        %8192 = vmatprep.mubr.bf16.mxu0 0
        %8193 = vmatmul.mubr.bf16.gmra.mrb[0].mxu0 %v8158
        %v8194 = vpop.f32.mrb[0].mxu0
        %v8195 = vadd.f32 0.0, %v8194
        %v8196 = vpop.f32.mrb[0].mxu0
        %v8197 = vpop.f32.mrb[0].mxu0
        %v8198 = vadd.f32 0.0, %v8197
        %v8199 = vpop.f32.mrb[0].mxu0
        %8200 = vdwg.mxu0
        %v8203 = vcombine.high %v8195, %v8195
        %v8204 = vcombine.high %v8198, %v8198
        %v8207 = vadd.f32 %v7848, %v8195
        %v8208 = vadd.f32 %v7856, %v8203
        %v8209 = vadd.f32 %v7851, %v8198
        %v8210 = vadd.f32 %v7857, %v8204
        %v8211 = vmul.f32 %v8207, 0.70710677
        %v8212 = vmul.f32 %v8208, 0.70710677
        %v8213 = vmul.f32 %v8209, 0.70710677
        %v8214 = vmul.f32 %v8210, 0.70710677
        %vm8215 = vcmp.gt.f32.partialorder %v8211, 0.0
        %vm8216 = vcmp.gt.f32.partialorder %v8212, 0.0
        %vm8217 = vcmp.gt.f32.partialorder %v8213, 0.0
        %vm8218 = vcmp.gt.f32.partialorder %v8214, 0.0
        %v8219 = vmul.f32 %v8211, 0.2
        %v8220 = vmul.f32 %v8212, 0.2
        %v8221 = vmul.f32 %v8213, 0.2
        %v8222 = vmul.f32 %v8214, 0.2
        %v8223 = vsel %vm8215, %v8211, %v8219
        %v8224 = vsel %vm8216, %v8212, %v8220
        %v8225 = vsel %vm8217, %v8213, %v8221
        %v8226 = vsel %vm8218, %v8214, %v8222
        %v8227 = vlaneseq
        %vm8228 = vcmp.ge.s32.totalorder %v8227, 0
        %vm8229 = vcmp.lt.s32.totalorder %v8227, 32
        %vm8230 = vmand %vm8228, %vm8229
        %8231 = vst.msk [vmem:[#allocation3] sm:$0x1] %vm8230, %v8223
        %v8234 = vunpack.c.l.s4 1966171168
        %v8235 = vunpack.c.0.s8 %v8234
        %v8236 = vlaneseq
        %v8237 = vshrl.u32 %v8236, 7
        %v8238 = vsub.s32 %v8235, %v8237
        %v8239 = vrot.slane %v8223, %v8238
        %v8240 = vcombine.high %v8239, %v8239
        %v8242 = vunpack.c.l.s4 1966171168
        %v8243 = vunpack.c.0.s8 %v8242
        %v8244 = vlaneseq
        %v8245 = vshrl.u32 %v8244, 7
        %v8246 = vsub.s32 %v8243, %v8245
        %v8247 = vrot.slane %v8239, %v8246
        %v8249 = vunpack.c.l.s4 1966171168
        %v8250 = vunpack.c.0.s8 %v8249
        %v8251 = vlaneseq
        %v8252 = vshrl.u32 %v8251, 7
        %v8253 = vsub.s32 %v8250, %v8252
        %v8254 = vrot.slane %v8240, %v8253
        %8255 = vrot.lane.b32.xlu0 %v8254, 32
        %v8256 = vpop.permute.xlu0 %8255
        %vm8258 = vcmp.ge.s32.totalorder %v8227, 32
        %vm8259 = vcmp.lt.s32.totalorder %v8227, 64
        %vm8260 = vmand %vm8258, %vm8259
        %8261 = vst.msk [vmem:[#allocation3] sm:$0x1] %vm8260, %v8256
        %v8262 = vcombine.high %v8247, %v8247
        %8263 = vrot.lane.b32.xlu0 %v8262, 64
        %v8264 = vpop.permute.xlu0 %8263
        %vm8266 = vcmp.ge.s32.totalorder %v8227, 64
        %vm8267 = vcmp.lt.s32.totalorder %v8227, 96
        %vm8268 = vmand %vm8266, %vm8267
        %8269 = vst.msk [vmem:[#allocation3] sm:$0x1] %vm8268, %v8264
        %v8270 = vcombine.high %v8254, %v8254
        %8271 = vrot.lane.b32.xlu0 %v8270, 96
        %v8272 = vpop.permute.xlu0 %8271
        %vm8274 = vcmp.ge.s32.totalorder %v8227, 96
        %vm8275 = vcmp.lt.s32.totalorder %v8227, 128
        %vm8276 = vmand %vm8274, %vm8275
        %8277 = vst.msk [vmem:[#allocation3] sm:$0x1] %vm8276, %v8272
        %8278 = vst.msk [vmem:[#allocation3 + $0x1] sm:$0x1] %vm8230, %v8224
        %v8281 = vunpack.c.l.s4 1966171168
        %v8282 = vunpack.c.0.s8 %v8281
        %v8283 = vlaneseq
        %v8284 = vshrl.u32 %v8283, 7
        %v8285 = vsub.s32 %v8282, %v8284
        %v8286 = vrot.slane %v8224, %v8285
        %v8287 = vcombine.high %v8286, %v8286
        %v8289 = vunpack.c.l.s4 1966171168
        %v8290 = vunpack.c.0.s8 %v8289
        %v8291 = vlaneseq
        %v8292 = vshrl.u32 %v8291, 7
        %v8293 = vsub.s32 %v8290, %v8292
        %v8294 = vrot.slane %v8286, %v8293
        %v8296 = vunpack.c.l.s4 1966171168
        %v8297 = vunpack.c.0.s8 %v8296
        %v8298 = vlaneseq
        %v8299 = vshrl.u32 %v8298, 7
        %v8300 = vsub.s32 %v8297, %v8299
        %v8301 = vrot.slane %v8287, %v8300
        %8302 = vrot.lane.b32.xlu0 %v8301, 32
        %v8303 = vpop.permute.xlu0 %8302
        %8305 = vst.msk [vmem:[#allocation3 + $0x1] sm:$0x1] %vm8260, %v8303
        %v8306 = vcombine.high %v8294, %v8294
        %8307 = vrot.lane.b32.xlu0 %v8306, 64
        %v8308 = vpop.permute.xlu0 %8307
        %8310 = vst.msk [vmem:[#allocation3 + $0x1] sm:$0x1] %vm8268, %v8308
        %v8311 = vcombine.high %v8301, %v8301
        %8312 = vrot.lane.b32.xlu0 %v8311, 96
        %v8313 = vpop.permute.xlu0 %8312
        %8315 = vst.msk [vmem:[#allocation3 + $0x1] sm:$0x1] %vm8276, %v8313
        %8316 = vst.msk [vmem:[#allocation3 + $0x2] sm:$0x1] %vm8230, %v8225
        %v8319 = vunpack.c.l.s4 1966171168
        %v8320 = vunpack.c.0.s8 %v8319
        %v8321 = vlaneseq
        %v8322 = vshrl.u32 %v8321, 7
        %v8323 = vsub.s32 %v8320, %v8322
        %v8324 = vrot.slane %v8225, %v8323
        %v8325 = vcombine.high %v8324, %v8324
        %v8327 = vunpack.c.l.s4 1966171168
        %v8328 = vunpack.c.0.s8 %v8327
        %v8329 = vlaneseq
        %v8330 = vshrl.u32 %v8329, 7
        %v8331 = vsub.s32 %v8328, %v8330
        %v8332 = vrot.slane %v8324, %v8331
        %v8334 = vunpack.c.l.s4 1966171168
        %v8335 = vunpack.c.0.s8 %v8334
        %v8336 = vlaneseq
        %v8337 = vshrl.u32 %v8336, 7
        %v8338 = vsub.s32 %v8335, %v8337
        %v8339 = vrot.slane %v8325, %v8338
        %8340 = vrot.lane.b32.xlu0 %v8339, 32
        %v8341 = vpop.permute.xlu0 %8340
        %8343 = vst.msk [vmem:[#allocation3 + $0x2] sm:$0x1] %vm8260, %v8341
        %v8344 = vcombine.high %v8332, %v8332
        %8345 = vrot.lane.b32.xlu0 %v8344, 64
        %v8346 = vpop.permute.xlu0 %8345
        %8348 = vst.msk [vmem:[#allocation3 + $0x2] sm:$0x1] %vm8268, %v8346
        %v8349 = vcombine.high %v8339, %v8339
        %8350 = vrot.lane.b32.xlu0 %v8349, 96
        %v8351 = vpop.permute.xlu0 %8350
        %8353 = vst.msk [vmem:[#allocation3 + $0x2] sm:$0x1] %vm8276, %v8351
        %8354 = vst.msk [vmem:[#allocation3 + $0x3] sm:$0x1] %vm8230, %v8226
        %v8357 = vunpack.c.l.s4 1966171168
        %v8358 = vunpack.c.0.s8 %v8357
        %v8359 = vlaneseq
        %v8360 = vshrl.u32 %v8359, 7
        %v8361 = vsub.s32 %v8358, %v8360
        %v8362 = vrot.slane %v8226, %v8361
        %v8363 = vcombine.high %v8362, %v8362
        %v8365 = vunpack.c.l.s4 1966171168
        %v8366 = vunpack.c.0.s8 %v8365
        %v8367 = vlaneseq
        %v8368 = vshrl.u32 %v8367, 7
        %v8369 = vsub.s32 %v8366, %v8368
        %v8370 = vrot.slane %v8362, %v8369
        %v8372 = vunpack.c.l.s4 1966171168
        %v8373 = vunpack.c.0.s8 %v8372
        %v8374 = vlaneseq
        %v8375 = vshrl.u32 %v8374, 7
        %v8376 = vsub.s32 %v8373, %v8375
        %v8377 = vrot.slane %v8363, %v8376
        %8378 = vrot.lane.b32.xlu0 %v8377, 32
        %v8379 = vpop.permute.xlu0 %8378
        %8381 = vst.msk [vmem:[#allocation3 + $0x3] sm:$0x1] %vm8260, %v8379
        %v8382 = vcombine.high %v8370, %v8370
        %8383 = vrot.lane.b32.xlu0 %v8382, 64
        %v8384 = vpop.permute.xlu0 %8383
        %8386 = vst.msk [vmem:[#allocation3 + $0x3] sm:$0x1] %vm8268, %v8384
        %v8387 = vcombine.high %v8377, %v8377
        %8388 = vrot.lane.b32.xlu0 %v8387, 96
        %v8389 = vpop.permute.xlu0 %8388
        %8391 = vst.msk [vmem:[#allocation3 + $0x3] sm:$0x1] %vm8276, %v8389
        %v8392 = vld [vmem:[#allocation3] sm:$0xf]
        %v8394 = vlaneseq
        %v8395 = vshrl.u32 %v8394, 7
        %v8396 = vsub.s32 0, %v8395
        %v8397 = vrot.slane %v8392, %v8396
        %v8398 = vlaneseq
        %v8399 = vshrl.u32 %v8398, 7
        %v8400 = vsub.s32 1, %v8399
        %v8401 = vrot.slane %v8392, %v8400
        %v8402 = vlaneseq
        %v8403 = vshrl.u32 %v8402, 7
        %v8404 = vsub.s32 2, %v8403
        %v8405 = vrot.slane %v8392, %v8404
        %v8406 = vlaneseq
        %v8407 = vshrl.u32 %v8406, 7
        %v8408 = vsub.s32 3, %v8407
        %v8409 = vrot.slane %v8392, %v8408
        %v8414 = vpack.c.bf16 %v8397, %v8397
        %v8415 = vpack.c.bf16 %v8401, %v8401
        %v8416 = vpack.c.bf16 %v8405, %v8405
        %v8417 = vpack.c.bf16 %v8409, %v8409
        %v8482 = vunpack.c.l.b16 %v646
        %v8483 = vunpack.c.l.b16 %v647
        %v8484 = vunpack.c.l.b16 %v648
        %v8485 = vunpack.c.l.b16 %v649
        %v8486 = vunpack.c.l.b16 %v650
        %v8487 = vunpack.c.l.b16 %v651
        %v8488 = vunpack.c.l.b16 %v652
        %v8489 = vunpack.c.l.b16 %v653
        %v8490 = vunpack.c.l.b16 %v654
        %v8491 = vunpack.c.l.b16 %v655
        %v8492 = vunpack.c.l.b16 %v656
        %v8493 = vunpack.c.l.b16 %v657
        %v8494 = vunpack.c.l.b16 %v658
        %v8495 = vunpack.c.l.b16 %v659
        %v8496 = vunpack.c.l.b16 %v660
        %v8497 = vunpack.c.l.b16 %v661
        %v8498 = vunpack.c.l.b16 %v662
        %v8499 = vunpack.c.l.b16 %v663
        %v8500 = vunpack.c.l.b16 %v664
        %v8501 = vunpack.c.l.b16 %v665
        %v8502 = vunpack.c.l.b16 %v666
        %v8503 = vunpack.c.l.b16 %v667
        %v8504 = vunpack.c.l.b16 %v668
        %v8505 = vunpack.c.l.b16 %v669
        %v8506 = vunpack.c.l.b16 %v670
        %v8507 = vunpack.c.l.b16 %v671
        %v8508 = vunpack.c.l.b16 %v672
        %v8509 = vunpack.c.l.b16 %v673
        %v8510 = vunpack.c.l.b16 %v674
        %v8511 = vunpack.c.l.b16 %v675
        %v8512 = vunpack.c.l.b16 %v676
        %v8513 = vunpack.c.l.b16 %v677
        %v8514 = vunpack.c.l.b16 %v678
        %v8515 = vunpack.c.l.b16 %v679
        %v8516 = vunpack.c.l.b16 %v680
        %v8517 = vunpack.c.l.b16 %v681
        %v8518 = vunpack.c.l.b16 %v682
        %v8519 = vunpack.c.l.b16 %v683
        %v8520 = vunpack.c.l.b16 %v684
        %v8521 = vunpack.c.l.b16 %v685
        %v8522 = vunpack.c.l.b16 %v686
        %v8523 = vunpack.c.l.b16 %v687
        %v8524 = vunpack.c.l.b16 %v688
        %v8525 = vunpack.c.l.b16 %v689
        %v8526 = vunpack.c.l.b16 %v690
        %v8527 = vunpack.c.l.b16 %v691
        %v8528 = vunpack.c.l.b16 %v692
        %v8529 = vunpack.c.l.b16 %v693
        %v8530 = vunpack.c.l.b16 %v694
        %v8531 = vunpack.c.l.b16 %v695
        %v8532 = vunpack.c.l.b16 %v696
        %v8533 = vunpack.c.l.b16 %v697
        %v8534 = vunpack.c.l.b16 %v698
        %v8535 = vunpack.c.l.b16 %v699
        %v8536 = vunpack.c.l.b16 %v700
        %v8537 = vunpack.c.l.b16 %v701
        %v8538 = vunpack.c.l.b16 %v702
        %v8539 = vunpack.c.l.b16 %v703
        %v8540 = vunpack.c.l.b16 %v704
        %v8541 = vunpack.c.l.b16 %v705
        %v8542 = vunpack.c.l.b16 %v706
        %v8543 = vunpack.c.l.b16 %v707
        %v8544 = vunpack.c.l.b16 %v708
        %v8545 = vunpack.c.l.b16 %v709
        %v8546 = vpack.c.b16 %v8483, %v8482
        %v8547 = vpack.c.b16 %v8485, %v8484
        %v8548 = vpack.c.b16 %v8487, %v8486
        %v8549 = vpack.c.b16 %v8489, %v8488
        %v8550 = vpack.c.b16 %v8491, %v8490
        %v8551 = vpack.c.b16 %v8493, %v8492
        %v8552 = vpack.c.b16 %v8495, %v8494
        %v8553 = vpack.c.b16 %v8497, %v8496
        %v8554 = vpack.c.b16 %v8499, %v8498
        %v8555 = vpack.c.b16 %v8501, %v8500
        %v8556 = vpack.c.b16 %v8503, %v8502
        %v8557 = vpack.c.b16 %v8505, %v8504
        %v8558 = vpack.c.b16 %v8507, %v8506
        %v8559 = vpack.c.b16 %v8509, %v8508
        %v8560 = vpack.c.b16 %v8511, %v8510
        %v8561 = vpack.c.b16 %v8513, %v8512
        %v8562 = vpack.c.b16 %v8515, %v8514
        %v8563 = vpack.c.b16 %v8517, %v8516
        %v8564 = vpack.c.b16 %v8519, %v8518
        %v8565 = vpack.c.b16 %v8521, %v8520
        %v8566 = vpack.c.b16 %v8523, %v8522
        %v8567 = vpack.c.b16 %v8525, %v8524
        %v8568 = vpack.c.b16 %v8527, %v8526
        %v8569 = vpack.c.b16 %v8529, %v8528
        %v8570 = vpack.c.b16 %v8531, %v8530
        %v8571 = vpack.c.b16 %v8533, %v8532
        %v8572 = vpack.c.b16 %v8535, %v8534
        %v8573 = vpack.c.b16 %v8537, %v8536
        %v8574 = vpack.c.b16 %v8539, %v8538
        %v8575 = vpack.c.b16 %v8541, %v8540
        %v8576 = vpack.c.b16 %v8543, %v8542
        %v8577 = vpack.c.b16 %v8545, %v8544
        %8610 = vmatprep.subr.bf16.mxu0 0
        %8611 = vmatpush1.bf16.msra.mxu0 %v8546
        %8612 = vmatprep.subr.bf16.mxu0 0
        %8613 = vmatpush1.bf16.msra.mxu0 %v8547
        %8614 = vmatprep.subr.bf16.mxu0 0
        %8615 = vmatpush1.bf16.msra.mxu0 %v8548
        %8616 = vmatprep.subr.bf16.mxu0 0
        %8617 = vmatpush1.bf16.msra.mxu0 %v8549
        %8618 = vmatprep.subr.bf16.mxu0 0
        %8619 = vmatpush1.bf16.msra.mxu0 %v8550
        %8620 = vmatprep.subr.bf16.mxu0 0
        %8621 = vmatpush1.bf16.msra.mxu0 %v8551
        %8622 = vmatprep.subr.bf16.mxu0 0
        %8623 = vmatpush1.bf16.msra.mxu0 %v8552
        %8624 = vmatprep.subr.bf16.mxu0 0
        %8625 = vmatpush1.bf16.msra.mxu0 %v8553
        %8626 = vmatprep.subr.bf16.mxu0 0
        %8627 = vmatpush1.bf16.msra.mxu0 %v8554
        %8628 = vmatprep.subr.bf16.mxu0 0
        %8629 = vmatpush1.bf16.msra.mxu0 %v8555
        %8630 = vmatprep.subr.bf16.mxu0 0
        %8631 = vmatpush1.bf16.msra.mxu0 %v8556
        %8632 = vmatprep.subr.bf16.mxu0 0
        %8633 = vmatpush1.bf16.msra.mxu0 %v8557
        %8634 = vmatprep.subr.bf16.mxu0 0
        %8635 = vmatpush1.bf16.msra.mxu0 %v8558
        %8636 = vmatprep.subr.bf16.mxu0 0
        %8637 = vmatpush1.bf16.msra.mxu0 %v8559
        %8638 = vmatprep.subr.bf16.mxu0 0
        %8639 = vmatpush1.bf16.msra.mxu0 %v8560
        %8640 = vmatprep.subr.bf16.mxu0 0
        %8641 = vmatpush1.bf16.msra.mxu0 %v8561
        %8642 = vmatprep.mubr.bf16.mxu0 %v8415
        %8643 = vmatmul.mubr.bf16.gmra.mrb[0].mxu0 %v8414
        %v8644 = vpop.f32.mrb[0].mxu0
        %v8645 = vadd.f32 %v710, %v8644
        %v8646 = vpop.f32.mrb[0].mxu0
        %v8647 = vpop.f32.mrb[0].mxu0
        %v8648 = vpop.f32.mrb[0].mxu0
        %8649 = vdwg.mxu0
        %8650 = vmatprep.subr.bf16.mxu0 0
        %8651 = vmatpush1.bf16.msra.mxu0 %v8562
        %8652 = vmatprep.subr.bf16.mxu0 0
        %8653 = vmatpush1.bf16.msra.mxu0 %v8563
        %8654 = vmatprep.subr.bf16.mxu0 0
        %8655 = vmatpush1.bf16.msra.mxu0 %v8564
        %8656 = vmatprep.subr.bf16.mxu0 0
        %8657 = vmatpush1.bf16.msra.mxu0 %v8565
        %8658 = vmatprep.subr.bf16.mxu0 0
        %8659 = vmatpush1.bf16.msra.mxu0 %v8566
        %8660 = vmatprep.subr.bf16.mxu0 0
        %8661 = vmatpush1.bf16.msra.mxu0 %v8567
        %8662 = vmatprep.subr.bf16.mxu0 0
        %8663 = vmatpush1.bf16.msra.mxu0 %v8568
        %8664 = vmatprep.subr.bf16.mxu0 0
        %8665 = vmatpush1.bf16.msra.mxu0 %v8569
        %8666 = vmatprep.subr.bf16.mxu0 0
        %8667 = vmatpush1.bf16.msra.mxu0 %v8570
        %8668 = vmatprep.subr.bf16.mxu0 0
        %8669 = vmatpush1.bf16.msra.mxu0 %v8571
        %8670 = vmatprep.subr.bf16.mxu0 0
        %8671 = vmatpush1.bf16.msra.mxu0 %v8572
        %8672 = vmatprep.subr.bf16.mxu0 0
        %8673 = vmatpush1.bf16.msra.mxu0 %v8573
        %8674 = vmatprep.subr.bf16.mxu0 0
        %8675 = vmatpush1.bf16.msra.mxu0 %v8574
        %8676 = vmatprep.subr.bf16.mxu0 0
        %8677 = vmatpush1.bf16.msra.mxu0 %v8575
        %8678 = vmatprep.subr.bf16.mxu0 0
        %8679 = vmatpush1.bf16.msra.mxu0 %v8576
        %8680 = vmatprep.subr.bf16.mxu0 0
        %8681 = vmatpush1.bf16.msra.mxu0 %v8577
        %8682 = vmatprep.mubr.bf16.mxu0 %v8417
        %8683 = vmatmul.mubr.bf16.gmra.mrb[0].mxu0 %v8416
        %v8684 = vpop.f32.mrb[0].mxu0
        %v8685 = vadd.f32 %v8645, %v8684
        %v8686 = vpop.f32.mrb[0].mxu0
        %v8687 = vpop.f32.mrb[0].mxu0
        %v8688 = vpop.f32.mrb[0].mxu0
        %8689 = vdwg.mxu0
        %vm8690 = vcmp.gt.f32.partialorder %v8685, 0.0
        %v8691 = vmul.f32 %v8685, 0.2
        %v8692 = vsel %vm8690, %v8685, %v8691
        %v8693 = vpack.c.bf16 %v8692, %v8692
        %v8698 = vunpack.c.l.b16 %v711
        %v8699 = vunpack.c.l.b16 %v712
        %v8700 = vunpack.c.l.b16 %v713
        %v8701 = vunpack.c.l.b16 %v714
        %v8702 = vpack.c.b16 %v8699, %v8698
        %v8703 = vpack.c.b16 %v8701, %v8700
        %vm8706 = vcmask 261120
        %v8708 = vsel %vm8706, %v8693, 0
        %8710 = vmatprep.subr.bf16.mxu0 0
        %8711 = vmatpush1.bf16.msra.mxu0 %v8702
        %8712 = vmatprep.subr.bf16.mxu0 0
        %8713 = vmatpush1.bf16.msra.mxu0 %v8703
        %8714 = vmatprep.subr.bf16.mxu0 0
        %8715 = vmatpush1.bf16.msra.mxu0 0
        %8716 = vmatprep.subr.bf16.mxu0 0
        %8717 = vmatpush1.bf16.msra.mxu0 0
        %8718 = vmatprep.subr.bf16.mxu0 0
        %8719 = vmatpush1.bf16.msra.mxu0 0
        %8720 = vmatprep.subr.bf16.mxu0 0
        %8721 = vmatpush1.bf16.msra.mxu0 0
        %8722 = vmatprep.subr.bf16.mxu0 0
        %8723 = vmatpush1.bf16.msra.mxu0 0
        %8724 = vmatprep.subr.bf16.mxu0 0
        %8725 = vmatpush1.bf16.msra.mxu0 0
        %8726 = vmatprep.subr.bf16.mxu0 0
        %8727 = vmatpush1.bf16.msra.mxu0 0
        %8728 = vmatprep.subr.bf16.mxu0 0
        %8729 = vmatpush1.bf16.msra.mxu0 0
        %8730 = vmatprep.subr.bf16.mxu0 0
        %8731 = vmatpush1.bf16.msra.mxu0 0
        %8732 = vmatprep.subr.bf16.mxu0 0
        %8733 = vmatpush1.bf16.msra.mxu0 0
        %8734 = vmatprep.subr.bf16.mxu0 0
        %8735 = vmatpush1.bf16.msra.mxu0 0
        %8736 = vmatprep.subr.bf16.mxu0 0
        %8737 = vmatpush1.bf16.msra.mxu0 0
        %8738 = vmatprep.subr.bf16.mxu0 0
        %8739 = vmatpush1.bf16.msra.mxu0 0
        %8740 = vmatprep.subr.bf16.mxu0 0
        %8741 = vmatpush1.bf16.msra.mxu0 0
        %8742 = vmatprep.mubr.bf16.mxu0 0
        %8743 = vmatmul.mubr.bf16.gmra.mrb[0].mxu0 %v8708
        %v8744 = vpop.f32.mrb[0].mxu0
        %v8745 = vadd.f32 %v715, %v8744
        %v8746 = vpop.f32.mrb[0].mxu0
        %v8747 = vpop.f32.mrb[0].mxu0
        %v8748 = vpop.f32.mrb[0].mxu0
        %8749 = vdwg.mxu0
        %vm8750 = vcmask 122880
        %8751 = vst.msk [vmem:[%s540] sm:$0x1] %vm8750, %v8745
        %s8752 = sand.u32 %s401, 1
        %s8753 = scalar_lea.sflag [#allocation5], %s8752
        %s8754 = sand.u32 %s401, 1
        %s8755 = scalar_lea.vmem [#allocation4], %s8754
        // Predicated region
        $region89: #{style_encoder_forward.1} parent=87 // pred_check
          %p8756 = pneg %p411
        $region90: #{style_encoder_forward.1} parent=87 // pred_check_branch
          %8758 = sbr.rel (%p8756) target = $region92
        $region91: #{style_encoder_forward.1} parent=87 // pred_region
          %s8760 = ssub.s32 16, 16
          %8761 = vsyncadd %s8753, %s8760
          %s8762 = smul.addr %s31, 16
          %s8763 = scalar_lea.hbm %s17, %s8762
          %s8765 = sshll.u32 %s8755, 4
          %s8766 = int_to_ptr.vmem [resolvable:$true] %s8765
          %8768 = dma.vmem_to_hbm [thread:$0]  %s8766, 16, %s8763, %s8753
        $region92: #{style_encoder_forward.1} parent=87 // pred_fallthru
          _
      $region88: #{style_encoder_forward.1} parent=5 // pred_fallthru
        _
      %p8769 = scmp.le.s32.totalorder 2, %s26
      // Predicated region
      $region93: #{style_encoder_forward.1} parent=5 // pred_check
        %p8770 = pneg %p8769
      $region94: #{style_encoder_forward.1} parent=5 // pred_check_branch
        %8772 = sbr.rel (%p8770) target = $region96
      $region95: #{style_encoder_forward.1} parent=5 // pred_region
        %s8773 = ssub.s32 %s26, 2
        // Predicated region
        $region97: #{style_encoder_forward.1} parent=95 // pred_check
          %p8774 = pneg %p417
        $region98: #{style_encoder_forward.1} parent=95 // pred_check_branch
          %8776 = sbr.rel (%p8774) target = $region100
        $region99: #{style_encoder_forward.1} parent=95 // pred_region
          %s8777 = sand.u32 %s402, 1
          %s8778 = scalar_lea.sflag [#allocation5], %s8777
          %s8779 = sand.u32 %s402, 1
          %s8780 = scalar_lea.vmem [#allocation4], %s8779
          %8781 = dma.done %s8778, 16
        $region100: #{style_encoder_forward.1} parent=95 // pred_fallthru
          _
      $region96: #{style_encoder_forward.1} parent=5 // pred_fallthru
        _
    $region6: #{style_encoder_forward.1} parent=1 // loop_footer
      %s30 = sadd.s32 1, %s26
    $region7: #{style_encoder_forward.1} parent=1 // loop_footer_branch
      %25 = sbr.rel target = $region3
    $region8: #{style_encoder_forward.1} parent=1 // loop_exit
      _
    %8782 = vsyncpa [#allocation5], 1
    %s8783 = scalar_lea.sflag [#allocation5], 1
    %8784 = vsyncpa %s8783, 1

</llo_original>
